<compile_context>
chip_gen: v7x
topology: tpu7x:2x2x1
jax: 0.10.0
libtpu: 0.0.40
codegen_flags: <defaults>
</compile_context>

<pallas_src>
import functools

import jax
import jax.numpy as jnp
import numpy as np
from jax.experimental import pallas as pl
from jax.experimental.pallas import tpu as pltpu

_EPS = 1e-5


# ----------------------------------------------------------------------------
# helpers
# ----------------------------------------------------------------------------
def _vmem_limit_bytes():
    """Generation-aware scoped-VMEM limit (physical minus headroom)."""
    phys = 64 << 20  # conservative default (v7x: 64 MiB per TensorCore)
    try:
        info = pltpu.get_tpu_info()
        phys = int(getattr(info, "vmem_capacity_bytes", phys))
    except Exception:
        pass
    return int(max(phys - (16 << 20), 32 << 20))


def _shift_w(v, dw, W):
    """out[..., w, :] = v[..., w+dw, :], zero outside [0, W).  dw in {-1,0,1}."""
    if dw == 0:
        return v
    zcol = jnp.zeros(v.shape[:2] + (1,) + v.shape[3:], v.dtype)
    if dw == 1:
        return jnp.concatenate([v[:, :, 1:, :], zcol], axis=2)
    return jnp.concatenate([zcol, v[:, :, : W - 1, :]], axis=2)


def _im2col(src_ref, patch_ref, H, W, C):
    """3x3 / stride-1 / pad-1 im2col: patch[0,h,w,t*C+c] = src[0,h+dh,w+dw,c].

    src_ref: (1, H, W, C); patch_ref: (1, H, W, 9*C); same dtype.  One row-group
    load per dh (shared by its three dw taps), full-W stores only (no sublane
    offsets), merged border-row zeroing per dh = +-1.
    """
    dt = patch_ref.dtype
    for dh in (-1, 0, 1):
        lo_h, hi_h = max(0, -dh), min(H, H - dh)
        rows = src_ref[:, lo_h + dh:hi_h + dh, :, :]          # (1, Hh, W, C)
        for dw in (-1, 0, 1):
            ct = ((dh + 1) * 3 + (dw + 1)) * C
            patch_ref[:, lo_h:hi_h, :, ct:ct + C] = _shift_w(rows, dw, W)
        if dh == -1:
            patch_ref[:, 0:1, :, 0:3 * C] = jnp.zeros((1, 1, W, 3 * C), dt)
        elif dh == 1:
            patch_ref[:, H - 1:H, :, 6 * C:9 * C] = jnp.zeros((1, 1, W, 3 * C), dt)


# ----------------------------------------------------------------------------
# kernels (one batch element per grid step)
# ----------------------------------------------------------------------------
def _make_pass1(H, W, Cin, Cp, conv_shortcut, mxu_dtype):
    """conv1 (+ fused 1x1 shortcut columns) + per-image BN partial sums."""
    HW = H * W

    def body(x_ref, w_ref, a1_ref, sc_ref, st_ref, xs_ref, patch_ref):
        xs_ref[...] = x_ref[...].astype(mxu_dtype)            # cast x ONCE
        _im2col(xs_ref, patch_ref, H, W, Cin)
        r = jnp.dot(patch_ref[...].reshape(HW, 9 * Cin), w_ref[...],
                    preferred_element_type=jnp.float32)       # (HW, Cp|2*Cp)
        a1 = r[:, :Cp]
        a1_ref[...] = a1.reshape(1, H, W, Cp)
        parts = [jnp.sum(a1, axis=0, keepdims=True),
                 jnp.sum(a1 * a1, axis=0, keepdims=True)]
        if conv_shortcut:
            sc = r[:, Cp:2 * Cp]
            sc_ref[...] = sc.reshape(1, H, W, Cp)
            parts += [jnp.sum(sc, axis=0, keepdims=True),
                      jnp.sum(sc * sc, axis=0, keepdims=True)]
        st = jnp.concatenate(parts, axis=0)                   # (R, Cp) f32
        st_ref[...] = st.reshape((1,) + st.shape)

    if conv_shortcut:
        def kernel(x_ref, w_ref, a1_ref, sc_ref, st_ref, xs_ref, patch_ref):
            body(x_ref, w_ref, a1_ref, sc_ref, st_ref, xs_ref, patch_ref)
    else:
        def kernel(x_ref, w_ref, a1_ref, st_ref, xs_ref, patch_ref):
            body(x_ref, w_ref, a1_ref, None, st_ref, xs_ref, patch_ref)
    return kernel


def _make_pass2(H, W, Cp, mxu_dtype):
    """BN1 scale/shift + ReLU -> conv2 im2col matmul + BN2 partial sums."""
    HW = H * W

    def kernel(c1_ref, a1_ref, w2_ref, a2_ref, st_ref, y_ref, patch_ref):
        a1 = a1_ref[...].reshape(HW, Cp)
        y = jnp.maximum(a1 * c1_ref[0:1, :] + c1_ref[1:2, :], 0.0)
        y_ref[...] = y.reshape(1, H, W, Cp).astype(mxu_dtype)  # conv2 input
        _im2col(y_ref, patch_ref, H, W, Cp)
        a2 = jnp.dot(patch_ref[...].reshape(HW, 9 * Cp), w2_ref[...],
                     preferred_element_type=jnp.float32)
        a2_ref[...] = a2.reshape(1, H, W, Cp)
        st = jnp.concatenate([jnp.sum(a2, axis=0, keepdims=True),
                              jnp.sum(a2 * a2, axis=0, keepdims=True)], axis=0)
        st_ref[...] = st.reshape(1, 2, Cp)

    return kernel


def _make_pass3(H, W, Cp, conv_shortcut):
    """BN2 + shortcut BN (or identity) + residual add + ReLU."""
    HW = H * W

    def kernel(c_ref, a2_ref, s_ref, out_ref):
        o = a2_ref[...].reshape(HW, Cp) * c_ref[0:1, :] + c_ref[1:2, :]
        s = s_ref[...].reshape(HW, Cp)
        if conv_shortcut:
            s = s * c_ref[2:3, :] + c_ref[3:4, :]
        out_ref[...] = jnp.maximum(o + s, 0.0).reshape(1, H, W, Cp).astype(
            out_ref.dtype)

    return kernel


# ----------------------------------------------------------------------------
# wrapper
# ----------------------------------------------------------------------------
def _bn_scale_shift(s, q, g, b, m):
    # Training-mode BN (biased variance).  Single-pass E[x^2]-E[x]^2 in f32;
    # clamp var at 0 against cancellation.  TODO(synk): Welford if ever needed.
    mean = s / m
    var = jnp.maximum(q / m - mean * mean, 0.0)
    scale = g * jax.lax.rsqrt(var + _EPS)
    return scale, b - mean * scale


@functools.partial(jax.jit, static_argnames=("stride", "mxu_dtype"))
def basic_block_forward(x_nchw, params, *, stride=1, mxu_dtype=jnp.bfloat16):
    """BasicBlock forward. x_nchw: (N, Cin, H, W) f32 -> (N, Cp, H, W) f32.

    mxu_dtype: dtype of MXU operands and im2col scratch.  bf16 is recommended
    on ALL generations (the MXU is bf16-native on v5e too); elementwise
    BN/ReLU/residual math stays f32 everywhere.
    """
    assert stride == 1, "only stride=1 supported by this kernel"
    N, Cin, H, W = x_nchw.shape
    Cp = params["w1"].shape[0]
    conv_shortcut = (stride != 1) or (Cin != Cp)
    f32 = jnp.float32
    M = N * H * W
    HWp = H * W * Cp

    # TODO(synk): accept NHWC from the producer / return NHWC to drop these.
    x = jnp.transpose(x_nchw, (0, 2, 3, 1)).astype(f32)         # (N, H, W, Cin)

    def conv_rhs(w):   # torch (Cout, Cin, 3, 3) -> tap-major (9*Cin, Cout)
        return (jnp.transpose(w, (2, 3, 1, 0))
                .reshape(9 * w.shape[1], w.shape[0]).astype(mxu_dtype))

    w1 = conv_rhs(params["w1"])                                 # (9*Cin, Cp)
    if conv_shortcut:
        wsc = (jnp.transpose(params["wsc"], (2, 3, 1, 0))
               .reshape(Cin, Cp).astype(mxu_dtype))
        wsc_full = jnp.zeros((9 * Cin, Cp), mxu_dtype)
        wsc_full = wsc_full.at[4 * Cin:5 * Cin, :].set(wsc)     # center tap rows
        w1 = jnp.concatenate([w1, wsc_full], axis=1)            # (9*Cin, 2*Cp)
    w2 = conv_rhs(params["w2"])                                 # (9*Cp, Cp)

    vmem_limit = _vmem_limit_bytes()
    mxu_bytes = jnp.dtype(mxu_dtype).itemsize

    def cparams():
        return pltpu.CompilerParams(dimension_semantics=("parallel",),
                                    vmem_limit_bytes=vmem_limit)

    full = lambda arr: pl.BlockSpec(arr.shape, lambda n: (0,) * arr.ndim)
    img = lambda C: pl.BlockSpec((1, H, W, C), lambda n: (n, 0, 0, 0))
    stat = lambda R: pl.BlockSpec((1, R, Cp), lambda n: (n, 0, 0))

    # -------- pass 1: conv1 (+ fused 1x1 shortcut) + BN partials -----------
    r1 = 4 if conv_shortcut else 2
    out_sh1 = [jax.ShapeDtypeStruct((N, H, W, Cp), f32)]
    out_sp1 = [img(Cp)]
    if conv_shortcut:
        out_sh1.append(jax.ShapeDtypeStruct((N, H, W, Cp), f32))
        out_sp1.append(img(Cp))
    out_sh1.append(jax.ShapeDtypeStruct((N, r1, Cp), f32))
    out_sp1.append(stat(r1))

    cost1 = pl.CostEstimate(
        flops=2 * M * 9 * Cin * w1.shape[1], transcendentals=0,
        bytes_accessed=4 * x.size + mxu_bytes * w1.size
        + 4 * (2 if conv_shortcut else 1) * M * Cp + 4 * N * r1 * Cp)

    p1 = pl.pallas_call(
        _make_pass1(H, W, Cin, Cp, conv_shortcut, mxu_dtype),
        grid=(N,),
        in_specs=[img(Cin), full(w1)],
        out_specs=tuple(out_sp1),
        out_shape=tuple(out_sh1),
        scratch_shapes=[
            pltpu.VMEM((1, H, W, Cin), mxu_dtype),      # x staged in MXU dtype
            pltpu.VMEM((1, H, W, 9 * Cin), mxu_dtype),  # im2col patches (conv1)
        ],
        compiler_params=cparams(),
        cost_estimate=cost1,
    )(x, w1)
    if conv_shortcut:
        a1, sc_pre, st1 = p1
    else:
        a1, st1 = p1
        sc_pre = None

    st1 = jnp.sum(st1, axis=0)                                   # (r1, Cp)
    scale1, shift1 = _bn_scale_shift(st1[0], st1[1],
                                     params["g1"].astype(f32),
                                     params["b1"].astype(f32), M)
    c1 = jnp.stack([scale1, shift1], axis=0)                     # (2, Cp)

    # -------- pass 2: BN1 + ReLU -> conv2 + BN partials ---------------------
    cost2 = pl.CostEstimate(
        flops=2 * M * 9 * Cp * Cp, transcendentals=0,
        bytes_accessed=4 * 2 * M * Cp + mxu_bytes * w2.size + 4 * N * 2 * Cp)

    a2, st2 = pl.pallas_call(
        _make_pass2(H, W, Cp, mxu_dtype),
        grid=(N,),
        in_specs=[full(c1), img(Cp), full(w2)],
        out_specs=(img(Cp), stat(2)),
        out_shape=(jax.ShapeDtypeStruct((N, H, W, Cp), f32),
                   jax.ShapeDtypeStruct((N, 2, Cp), f32)),
        scratch_shapes=[
            pltpu.VMEM((1, H, W, Cp), mxu_dtype),       # BN1+ReLU activation
            pltpu.VMEM((1, H, W, 9 * Cp), mxu_dtype),   # im2col patches (conv2)
        ],
        compiler_params=cparams(),
        cost_estimate=cost2,
    )(c1, a1, w2)

    st2 = jnp.sum(st2, axis=0)
    scale2, shift2 = _bn_scale_shift(st2[0], st2[1],
                                     params["g2"].astype(f32),
                                     params["b2"].astype(f32), M)
    if conv_shortcut:
        scalesc, shiftsc = _bn_scale_shift(st1[2], st1[3],
                                           params["gsc"].astype(f32),
                                           params["bsc"].astype(f32), M)
        c3 = jnp.stack([scale2, shift2, scalesc, shiftsc], axis=0)   # (4, Cp)
        s_in = sc_pre
    else:
        c3 = jnp.stack([scale2, shift2], axis=0)                     # (2, Cp)
        s_in = x                                                     # identity

    # -------- pass 3: BN2 + shortcut BN + residual + ReLU -------------------
    cost3 = pl.CostEstimate(flops=6 * M * Cp, transcendentals=0,
                            bytes_accessed=4 * 3 * M * Cp)

    out_nhwc = pl.pallas_call(
        _make_pass3(H, W, Cp, conv_shortcut),
        grid=(N,),
        in_specs=[full(c3), img(Cp), img(Cp)],
        out_specs=img(Cp),
        out_shape=jax.ShapeDtypeStruct((N, H, W, Cp), f32),
        compiler_params=cparams(),
        cost_estimate=cost3,
    )(c3, a2, s_in)

    return jnp.transpose(out_nhwc, (0, 3, 1, 2))


# ----------------------------------------------------------------------------
# pure-JAX reference (mirrors the PyTorch forward, training-mode BN)
# ----------------------------------------------------------------------------
def _ref_forward(x_nchw, params, stride=1, conv_dtype=jnp.float32):
    dn = ("NCHW", "OIHW", "NCHW")

    def conv(x, w, s, pad):
        return jax.lax.conv_general_dilated(
            x.astype(conv_dtype), w.astype(conv_dtype),
            window_strides=(s, s), padding=((pad, pad), (pad, pad)),
            dimension_numbers=dn, preferred_element_type=jnp.float32)

    def bn(x, g, b):
        mean = jnp.mean(x, axis=(0, 2, 3), keepdims=True)
        var = jnp.mean((x - mean) ** 2, axis=(0, 2, 3), keepdims=True)
        xh = (x - mean) / jnp.sqrt(var + _EPS)
        return xh * g.reshape(1, -1, 1, 1) + b.reshape(1, -1, 1, 1)

    out = jax.nn.relu(bn(conv(x_nchw, params["w1"], stride, 1),
                         params["g1"], params["b1"]))
    out = bn(conv(out, params["w2"], 1, 1), params["g2"], params["b2"])
    if "wsc" in params:
        sc = bn(conv(x_nchw, params["wsc"], stride, 0),
                params["gsc"], params["bsc"])
    else:
        sc = x_nchw
    return jax.nn.relu(out + sc)


# ----------------------------------------------------------------------------
# self-test
# ----------------------------------------------------------------------------
if __name__ == "__main__":
    N, Cin, Cp, H, W = 2, 4, 8, 16, 16

    key = jax.random.PRNGKey(0)
    (k1, k2, k3, kg1, kb1, kg2, kb2, kgs, kbs, kx, kw1i, kxi) = jax.random.split(key, 12)

    params = {
        "w1": 0.1 * jax.random.normal(k1, (Cp, Cin, 3, 3), jnp.float32),
        "g1": 1.0 + 0.1 * jax.random.normal(kg1, (Cp,), jnp.float32),
        "b1": 0.1 * jax.random.normal(kb1, (Cp,), jnp.float32),
        "w2": 0.1 * jax.random.normal(k2, (Cp, Cp, 3, 3), jnp.float32),
        "g2": 1.0 + 0.1 * jax.random.normal(kg2, (Cp,), jnp.float32),
        "b2": 0.1 * jax.random.normal(kb2, (Cp,), jnp.float32),
        "wsc": 0.1 * jax.random.normal(k3, (Cp, Cin, 1, 1), jnp.float32),
        "gsc": 1.0 + 0.1 * jax.random.normal(kgs, (Cp,), jnp.float32),
        "bsc": 0.1 * jax.random.normal(kbs, (Cp,), jnp.float32),
    }
    x = jax.random.normal(kx, (N, Cin, H, W), jnp.float32)

    # 1) exact-precision mode (f32 MXU operands) vs f32 reference
    out_f32 = jax.block_until_ready(
        basic_block_forward(x, params, stride=1, mxu_dtype=jnp.float32))
    ref_f32 = jax.block_until_ready(_ref_forward(x, params, stride=1))
    assert out_f32.shape == (N, Cp, H, W), out_f32.shape
    np.testing.assert_allclose(np.asarray(out_f32), np.asarray(ref_f32),
                               rtol=1e-3, atol=1e-3)

    # 2) bf16-MXU-operand perf mode vs a reference fed bf16 conv operands
    out_bf16 = jax.block_until_ready(
        basic_block_forward(x, params, stride=1, mxu_dtype=jnp.bfloat16))
    ref_bf16 = jax.block_until_ready(
        _ref_forward(x, params, stride=1, conv_dtype=jnp.bfloat16))
    np.testing.assert_allclose(np.asarray(out_bf16), np.asarray(ref_bf16),
                               rtol=1e-2, atol=1e-2)

    # 3) identity-shortcut path (in_planes == planes)
    params_id = {
        "w1": 0.1 * jax.random.normal(kw1i, (Cp, Cp, 3, 3), jnp.float32),
        "g1": params["g1"], "b1": params["b1"],
        "w2": params["w2"], "g2": params["g2"], "b2": params["b2"],
    }
    x_id = jax.random.normal(kxi, (N, Cp, H, W), jnp.float32)
    out_id = jax.block_until_ready(
        basic_block_forward(x_id, params_id, stride=1, mxu_dtype=jnp.float32))
    ref_id = jax.block_until_ready(_ref_forward(x_id, params_id, stride=1))
    np.testing.assert_allclose(np.asarray(out_id), np.asarray(ref_id),
                               rtol=1e-3, atol=1e-3)

    print("KERNEL_OK")
</pallas_src>

<mosaic_0001>
module attributes {stable_mosaic.version = 11 : i64} {
  func.func @kernel(%arg0: i32, %arg1: memref<1x16x16x4xf32, #tpu.memory_space<vmem>>, %arg2: memref<36x16xf32, #tpu.memory_space<vmem>>, %arg3: memref<1x16x16x8xf32, #tpu.memory_space<vmem>>, %arg4: memref<1x16x16x8xf32, #tpu.memory_space<vmem>>, %arg5: memref<1x4x8xf32, #tpu.memory_space<vmem>>, %arg6: memref<1x16x16x4xf32, #tpu.memory_space<vmem>>, %arg7: memref<1x16x16x36xf32, #tpu.memory_space<vmem>>) attributes {dimension_semantics = [#tpu.dimension_semantics<parallel>], iteration_bounds = array<i64: 2>, scalar_prefetch = 0 : i64, scratch_operands = 2 : i64, tpu.core_type = #tpu.core_type<tc>, window_params = [{transform_indices = @transform_0, window_bounds = array<i64: 1, 16, 16, 4>}, {pipeline_mode = #tpu.pipeline_mode<synchronous>, transform_indices = @transform_1, window_bounds = array<i64: 36, 16>}, {transform_indices = @transform_2, window_bounds = array<i64: 1, 16, 16, 8>}, {transform_indices = @transform_3, window_bounds = array<i64: 1, 16, 16, 8>}, {transform_indices = @transform_4, window_bounds = array<i64: 1, 4, 8>}]} {
    %c0 = arith.constant 0 : index
    %c0_0 = arith.constant 0 : index
    %c0_1 = arith.constant 0 : index
    %c0_2 = arith.constant 0 : index
    %0 = vector.load %arg1[%c0, %c0_0, %c0_1, %c0_2] : memref<1x16x16x4xf32, #tpu.memory_space<vmem>>, vector<1x16x16x4xf32>
    %c0_3 = arith.constant 0 : index
    %c0_4 = arith.constant 0 : index
    %c0_5 = arith.constant 0 : index
    %c0_6 = arith.constant 0 : index
    %1 = vector.load %arg6[%c0_3, %c0_4, %c0_5, %c0_6] : memref<1x16x16x4xf32, #tpu.memory_space<vmem>>, vector<1x16x16x4xf32>
    tpu.vector_store %arg6[%c0_3, %c0_4, %c0_5, %c0_6], %0 {strides = array<i32>} : memref<1x16x16x4xf32, #tpu.memory_space<vmem>>, vector<1x16x16x4xf32>,
    %c0_7 = arith.constant 0 : index
    %c0_8 = arith.constant 0 : index
    %c0_9 = arith.constant 0 : index
    %c0_10 = arith.constant 0 : index
    %2 = vector.load %arg6[%c0_7, %c0_8, %c0_9, %c0_10] : memref<1x16x16x4xf32, #tpu.memory_space<vmem>>, vector<1x15x16x4xf32>
    %cst = arith.constant 0.000000e+00 : f32
    %3 = vector.broadcast %cst : f32 to vector<1x15x1x4xf32>
    %4 = vector.extract_strided_slice %2 {offsets = [0, 0, 0, 0], sizes = [1, 15, 15, 4], strides = [1, 1, 1, 1]} : vector<1x15x16x4xf32> to vector<1x15x15x4xf32>
    %5 = tpu.concatenate %3, %4 in 2 : vector<1x15x1x4xf32>, vector<1x15x15x4xf32> -> vector<1x15x16x4xf32>
    %c0_11 = arith.constant 0 : index
    %c1 = arith.constant 1 : index
    %c0_12 = arith.constant 0 : index
    %c0_13 = arith.constant 0 : index
    %6 = vector.load %arg7[%c0_11, %c1, %c0_12, %c0_13] : memref<1x16x16x36xf32, #tpu.memory_space<vmem>>, vector<1x15x16x4xf32>
    tpu.vector_store %arg7[%c0_11, %c1, %c0_12, %c0_13], %5 {strides = array<i32>} : memref<1x16x16x36xf32, #tpu.memory_space<vmem>>, vector<1x15x16x4xf32>,
    %c0_14 = arith.constant 0 : index
    %c1_15 = arith.constant 1 : index
    %c0_16 = arith.constant 0 : index
    %c4 = arith.constant 4 : index
    %7 = vector.load %arg7[%c0_14, %c1_15, %c0_16, %c4] : memref<1x16x16x36xf32, #tpu.memory_space<vmem>>, vector<1x15x16x4xf32>
    tpu.vector_store %arg7[%c0_14, %c1_15, %c0_16, %c4], %2 {strides = array<i32>} : memref<1x16x16x36xf32, #tpu.memory_space<vmem>>, vector<1x15x16x4xf32>,
    %cst_17 = arith.constant 0.000000e+00 : f32
    %8 = vector.broadcast %cst_17 : f32 to vector<1x15x1x4xf32>
    %9 = vector.extract_strided_slice %2 {offsets = [0, 0, 1, 0], sizes = [1, 15, 15, 4], strides = [1, 1, 1, 1]} : vector<1x15x16x4xf32> to vector<1x15x15x4xf32>
    %10 = tpu.concatenate %9, %8 in 2 : vector<1x15x15x4xf32>, vector<1x15x1x4xf32> -> vector<1x15x16x4xf32>
    %c0_18 = arith.constant 0 : index
    %c1_19 = arith.constant 1 : index
    %c0_20 = arith.constant 0 : index
    %c8 = arith.constant 8 : index
    %11 = vector.load %arg7[%c0_18, %c1_19, %c0_20, %c8] : memref<1x16x16x36xf32, #tpu.memory_space<vmem>>, vector<1x15x16x4xf32>
    tpu.vector_store %arg7[%c0_18, %c1_19, %c0_20, %c8], %10 {strides = array<i32>} : memref<1x16x16x36xf32, #tpu.memory_space<vmem>>, vector<1x15x16x4xf32>,
    %cst_21 = arith.constant 0.000000e+00 : f32
    %12 = vector.broadcast %cst_21 : f32 to vector<1x1x16x12xf32>
    %c0_22 = arith.constant 0 : index
    %c0_23 = arith.constant 0 : index
    %c0_24 = arith.constant 0 : index
    %c0_25 = arith.constant 0 : index
    %13 = vector.load %arg7[%c0_22, %c0_23, %c0_24, %c0_25] : memref<1x16x16x36xf32, #tpu.memory_space<vmem>>, vector<1x1x16x12xf32>
    tpu.vector_store %arg7[%c0_22, %c0_23, %c0_24, %c0_25], %12 {strides = array<i32>} : memref<1x16x16x36xf32, #tpu.memory_space<vmem>>, vector<1x1x16x12xf32>,
    %c0_26 = arith.constant 0 : index
    %c0_27 = arith.constant 0 : index
    %c0_28 = arith.constant 0 : index
    %c0_29 = arith.constant 0 : index
    %14 = vector.load %arg6[%c0_26, %c0_27, %c0_28, %c0_29] : memref<1x16x16x4xf32, #tpu.memory_space<vmem>>, vector<1x16x16x4xf32>
    %cst_30 = arith.constant 0.000000e+00 : f32
    %15 = vector.broadcast %cst_30 : f32 to vector<1x16x1x4xf32>
    %16 = vector.extract_strided_slice %14 {offsets = [0, 0, 0, 0], sizes = [1, 16, 15, 4], strides = [1, 1, 1, 1]} : vector<1x16x16x4xf32> to vector<1x16x15x4xf32>
    %17 = tpu.concatenate %15, %16 in 2 : vector<1x16x1x4xf32>, vector<1x16x15x4xf32> -> vector<1x16x16x4xf32>
    %c0_31 = arith.constant 0 : index
    %c0_32 = arith.constant 0 : index
    %c0_33 = arith.constant 0 : index
    %c12 = arith.constant 12 : index
    %18 = vector.load %arg7[%c0_31, %c0_32, %c0_33, %c12] : memref<1x16x16x36xf32, #tpu.memory_space<vmem>>, vector<1x16x16x4xf32>
    tpu.vector_store %arg7[%c0_31, %c0_32, %c0_33, %c12], %17 {strides = array<i32>} : memref<1x16x16x36xf32, #tpu.memory_space<vmem>>, vector<1x16x16x4xf32>,
    %c0_34 = arith.constant 0 : index
    %c0_35 = arith.constant 0 : index
    %c0_36 = arith.constant 0 : index
    %c16 = arith.constant 16 : index
    %19 = vector.load %arg7[%c0_34, %c0_35, %c0_36, %c16] : memref<1x16x16x36xf32, #tpu.memory_space<vmem>>, vector<1x16x16x4xf32>
    tpu.vector_store %arg7[%c0_34, %c0_35, %c0_36, %c16], %14 {strides = array<i32>} : memref<1x16x16x36xf32, #tpu.memory_space<vmem>>, vector<1x16x16x4xf32>,
    %cst_37 = arith.constant 0.000000e+00 : f32
    %20 = vector.broadcast %cst_37 : f32 to vector<1x16x1x4xf32>
    %21 = vector.extract_strided_slice %14 {offsets = [0, 0, 1, 0], sizes = [1, 16, 15, 4], strides = [1, 1, 1, 1]} : vector<1x16x16x4xf32> to vector<1x16x15x4xf32>
    %22 = tpu.concatenate %21, %20 in 2 : vector<1x16x15x4xf32>, vector<1x16x1x4xf32> -> vector<1x16x16x4xf32>
    %c0_38 = arith.constant 0 : index
    %c0_39 = arith.constant 0 : index
    %c0_40 = arith.constant 0 : index
    %c20 = arith.constant 20 : index
    %23 = vector.load %arg7[%c0_38, %c0_39, %c0_40, %c20] : memref<1x16x16x36xf32, #tpu.memory_space<vmem>>, vector<1x16x16x4xf32>
    tpu.vector_store %arg7[%c0_38, %c0_39, %c0_40, %c20], %22 {strides = array<i32>} : memref<1x16x16x36xf32, #tpu.memory_space<vmem>>, vector<1x16x16x4xf32>,
    %c0_41 = arith.constant 0 : index
    %c1_42 = arith.constant 1 : index
    %c0_43 = arith.constant 0 : index
    %c0_44 = arith.constant 0 : index
    %24 = vector.load %arg6[%c0_41, %c1_42, %c0_43, %c0_44] : memref<1x16x16x4xf32, #tpu.memory_space<vmem>>, vector<1x15x16x4xf32>
    %cst_45 = arith.constant 0.000000e+00 : f32
    %25 = vector.broadcast %cst_45 : f32 to vector<1x15x1x4xf32>
    %26 = vector.extract_strided_slice %24 {offsets = [0, 0, 0, 0], sizes = [1, 15, 15, 4], strides = [1, 1, 1, 1]} : vector<1x15x16x4xf32> to vector<1x15x15x4xf32>
    %27 = tpu.concatenate %25, %26 in 2 : vector<1x15x1x4xf32>, vector<1x15x15x4xf32> -> vector<1x15x16x4xf32>
    %c0_46 = arith.constant 0 : index
    %c0_47 = arith.constant 0 : index
    %c0_48 = arith.constant 0 : index
    %c24 = arith.constant 24 : index
    %28 = vector.load %arg7[%c0_46, %c0_47, %c0_48, %c24] : memref<1x16x16x36xf32, #tpu.memory_space<vmem>>, vector<1x15x16x4xf32>
    tpu.vector_store %arg7[%c0_46, %c0_47, %c0_48, %c24], %27 {strides = array<i32>} : memref<1x16x16x36xf32, #tpu.memory_space<vmem>>, vector<1x15x16x4xf32>,
    %c0_49 = arith.constant 0 : index
    %c0_50 = arith.constant 0 : index
    %c0_51 = arith.constant 0 : index
    %c28 = arith.constant 28 : index
    %29 = vector.load %arg7[%c0_49, %c0_50, %c0_51, %c28] : memref<1x16x16x36xf32, #tpu.memory_space<vmem>>, vector<1x15x16x4xf32>
    tpu.vector_store %arg7[%c0_49, %c0_50, %c0_51, %c28], %24 {strides = array<i32>} : memref<1x16x16x36xf32, #tpu.memory_space<vmem>>, vector<1x15x16x4xf32>,
    %cst_52 = arith.constant 0.000000e+00 : f32
    %30 = vector.broadcast %cst_52 : f32 to vector<1x15x1x4xf32>
    %31 = vector.extract_strided_slice %24 {offsets = [0, 0, 1, 0], sizes = [1, 15, 15, 4], strides = [1, 1, 1, 1]} : vector<1x15x16x4xf32> to vector<1x15x15x4xf32>
    %32 = tpu.concatenate %31, %30 in 2 : vector<1x15x15x4xf32>, vector<1x15x1x4xf32> -> vector<1x15x16x4xf32>
    %c0_53 = arith.constant 0 : index
    %c0_54 = arith.constant 0 : index
    %c0_55 = arith.constant 0 : index
    %c32 = arith.constant 32 : index
    %33 = vector.load %arg7[%c0_53, %c0_54, %c0_55, %c32] : memref<1x16x16x36xf32, #tpu.memory_space<vmem>>, vector<1x15x16x4xf32>
    tpu.vector_store %arg7[%c0_53, %c0_54, %c0_55, %c32], %32 {strides = array<i32>} : memref<1x16x16x36xf32, #tpu.memory_space<vmem>>, vector<1x15x16x4xf32>,
    %cst_56 = arith.constant 0.000000e+00 : f32
    %34 = vector.broadcast %cst_56 : f32 to vector<1x1x16x12xf32>
    %c0_57 = arith.constant 0 : index
    %c15 = arith.constant 15 : index
    %c0_58 = arith.constant 0 : index
    %c24_59 = arith.constant 24 : index
    %35 = vector.load %arg7[%c0_57, %c15, %c0_58, %c24_59] : memref<1x16x16x36xf32, #tpu.memory_space<vmem>>, vector<1x1x16x12xf32>
    tpu.vector_store %arg7[%c0_57, %c15, %c0_58, %c24_59], %34 {strides = array<i32>} : memref<1x16x16x36xf32, #tpu.memory_space<vmem>>, vector<1x1x16x12xf32>,
    %c0_60 = arith.constant 0 : index
    %c0_61 = arith.constant 0 : index
    %c0_62 = arith.constant 0 : index
    %c0_63 = arith.constant 0 : index
    %36 = vector.load %arg7[%c0_60, %c0_61, %c0_62, %c0_63] : memref<1x16x16x36xf32, #tpu.memory_space<vmem>>, vector<1x16x16x36xf32>
    %37 = vector.shape_cast %36 : vector<1x16x16x36xf32> to vector<256x36xf32>
    %c0_64 = arith.constant 0 : index
    %c0_65 = arith.constant 0 : index
    %38 = vector.load %arg2[%c0_64, %c0_65] : memref<36x16xf32, #tpu.memory_space<vmem>>, vector<36x16xf32>
    %cst_66 = arith.constant dense<0.000000e+00> : vector<256x16xf32>
    %39 = tpu.matmul %37, %38, %cst_66 {dimension_numbers = #tpu.dot_dimension_numbers<[1], [0], [0], [1], [0, 0, 1, 1], [], []>} : vector<256x36xf32>, vector<36x16xf32>, vector<256x16xf32> -> vector<256x16xf32>
    %40 = vector.extract_strided_slice %39 {offsets = [0, 0], sizes = [256, 8], strides = [1, 1]} : vector<256x16xf32> to vector<256x8xf32>
    %41 = vector.shape_cast %40 : vector<256x8xf32> to vector<1x16x16x8xf32>
    %c0_67 = arith.constant 0 : index
    %c0_68 = arith.constant 0 : index
    %c0_69 = arith.constant 0 : index
    %c0_70 = arith.constant 0 : index
    %42 = vector.load %arg3[%c0_67, %c0_68, %c0_69, %c0_70] : memref<1x16x16x8xf32, #tpu.memory_space<vmem>>, vector<1x16x16x8xf32>
    tpu.vector_store %arg3[%c0_67, %c0_68, %c0_69, %c0_70], %41 {strides = array<i32>} : memref<1x16x16x8xf32, #tpu.memory_space<vmem>>, vector<1x16x16x8xf32>,
    %cst_71 = arith.constant dense<0.000000e+00> : vector<8xf32>
    %43 = vector.multi_reduction <add>, %40, %cst_71 [0] : vector<256x8xf32> to vector<8xf32>
    %44 = vector.shape_cast %43 : vector<8xf32> to vector<1x8xf32>
    %45 = arith.mulf %40, %40 : vector<256x8xf32>
    %cst_72 = arith.constant dense<0.000000e+00> : vector<8xf32>
    %46 = vector.multi_reduction <add>, %45, %cst_72 [0] : vector<256x8xf32> to vector<8xf32>
    %47 = vector.shape_cast %46 : vector<8xf32> to vector<1x8xf32>
    %48 = vector.extract_strided_slice %39 {offsets = [0, 8], sizes = [256, 8], strides = [1, 1]} : vector<256x16xf32> to vector<256x8xf32>
    %49 = vector.shape_cast %48 : vector<256x8xf32> to vector<1x16x16x8xf32>
    %c0_73 = arith.constant 0 : index
    %c0_74 = arith.constant 0 : index
    %c0_75 = arith.constant 0 : index
    %c0_76 = arith.constant 0 : index
    %50 = vector.load %arg4[%c0_73, %c0_74, %c0_75, %c0_76] : memref<1x16x16x8xf32, #tpu.memory_space<vmem>>, vector<1x16x16x8xf32>
    tpu.vector_store %arg4[%c0_73, %c0_74, %c0_75, %c0_76], %49 {strides = array<i32>} : memref<1x16x16x8xf32, #tpu.memory_space<vmem>>, vector<1x16x16x8xf32>,
    %cst_77 = arith.constant dense<0.000000e+00> : vector<8xf32>
    %51 = vector.multi_reduction <add>, %48, %cst_77 [0] : vector<256x8xf32> to vector<8xf32>
    %52 = vector.shape_cast %51 : vector<8xf32> to vector<1x8xf32>
    %53 = arith.mulf %48, %48 : vector<256x8xf32>
    %cst_78 = arith.constant dense<0.000000e+00> : vector<8xf32>
    %54 = vector.multi_reduction <add>, %53, %cst_78 [0] : vector<256x8xf32> to vector<8xf32>
    %55 = vector.shape_cast %54 : vector<8xf32> to vector<1x8xf32>
    %56 = tpu.concatenate %44, %47, %52, %55 in 0 : vector<1x8xf32>, vector<1x8xf32>, vector<1x8xf32>, vector<1x8xf32> -> vector<4x8xf32>
    %57 = vector.shape_cast %56 : vector<4x8xf32> to vector<1x4x8xf32>
    %c0_79 = arith.constant 0 : index
    %c0_80 = arith.constant 0 : index
    %c0_81 = arith.constant 0 : index
    %58 = vector.load %arg5[%c0_79, %c0_80, %c0_81] : memref<1x4x8xf32, #tpu.memory_space<vmem>>, vector<1x4x8xf32>
    tpu.vector_store %arg5[%c0_79, %c0_80, %c0_81], %57 {strides = array<i32>} : memref<1x4x8xf32, #tpu.memory_space<vmem>>, vector<1x4x8xf32>,
    return
  }
  func.func @transform_0(%arg0: i32) -> (i32, i32, i32, i32) {
    %c0_i32 = arith.constant 0 : i32
    %c0_i32_0 = arith.constant 0 : i32
    %c0_i32_1 = arith.constant 0 : i32
    %c0_i32_2 = arith.constant 0 : i32
    return %arg0, %c0_i32, %c0_i32_0, %c0_i32_1 : i32, i32, i32, i32
  }
  func.func @transform_1(%arg0: i32) -> (i32, i32) {
    %c0_i32 = arith.constant 0 : i32
    %c0_i32_0 = arith.constant 0 : i32
    %c0_i32_1 = arith.constant 0 : i32
    return %c0_i32, %c0_i32_0 : i32, i32
  }
  func.func @transform_2(%arg0: i32) -> (i32, i32, i32, i32) {
    %c0_i32 = arith.constant 0 : i32
    %c0_i32_0 = arith.constant 0 : i32
    %c0_i32_1 = arith.constant 0 : i32
    %c0_i32_2 = arith.constant 0 : i32
    return %arg0, %c0_i32, %c0_i32_0, %c0_i32_1 : i32, i32, i32, i32
  }
  func.func @transform_3(%arg0: i32) -> (i32, i32, i32, i32) {
    %c0_i32 = arith.constant 0 : i32
    %c0_i32_0 = arith.constant 0 : i32
    %c0_i32_1 = arith.constant 0 : i32
    %c0_i32_2 = arith.constant 0 : i32
    return %arg0, %c0_i32, %c0_i32_0, %c0_i32_1 : i32, i32, i32, i32
  }
  func.func @transform_4(%arg0: i32) -> (i32, i32, i32) {
    %c0_i32 = arith.constant 0 : i32
    %c0_i32_0 = arith.constant 0 : i32
    %c0_i32_1 = arith.constant 0 : i32
    return %arg0, %c0_i32, %c0_i32_0 : i32, i32, i32
  }
}

module attributes {stable_mosaic.version = 11 : i64} {
  func.func @kernel(%arg0: i32, %arg1: memref<2x8xf32, #tpu.memory_space<vmem>>, %arg2: memref<1x16x16x8xf32, #tpu.memory_space<vmem>>, %arg3: memref<72x8xf32, #tpu.memory_space<vmem>>, %arg4: memref<1x16x16x8xf32, #tpu.memory_space<vmem>>, %arg5: memref<1x2x8xf32, #tpu.memory_space<vmem>>, %arg6: memref<1x16x16x8xf32, #tpu.memory_space<vmem>>, %arg7: memref<1x16x16x72xf32, #tpu.memory_space<vmem>>) attributes {dimension_semantics = [#tpu.dimension_semantics<parallel>], iteration_bounds = array<i64: 2>, scalar_prefetch = 0 : i64, scratch_operands = 2 : i64, tpu.core_type = #tpu.core_type<tc>, window_params = [{pipeline_mode = #tpu.pipeline_mode<synchronous>, transform_indices = @transform_0, window_bounds = array<i64: 2, 8>}, {transform_indices = @transform_1, window_bounds = array<i64: 1, 16, 16, 8>}, {pipeline_mode = #tpu.pipeline_mode<synchronous>, transform_indices = @transform_2, window_bounds = array<i64: 72, 8>}, {transform_indices = @transform_3, window_bounds = array<i64: 1, 16, 16, 8>}, {transform_indices = @transform_4, window_bounds = array<i64: 1, 2, 8>}]} {
    %c0 = arith.constant 0 : index
    %c0_0 = arith.constant 0 : index
    %c0_1 = arith.constant 0 : index
    %c0_2 = arith.constant 0 : index
    %0 = vector.load %arg2[%c0, %c0_0, %c0_1, %c0_2] : memref<1x16x16x8xf32, #tpu.memory_space<vmem>>, vector<1x16x16x8xf32>
    %1 = vector.shape_cast %0 : vector<1x16x16x8xf32> to vector<256x8xf32>
    %c0_3 = arith.constant 0 : index
    %c0_4 = arith.constant 0 : index
    %2 = vector.load %arg1[%c0_3, %c0_4] : memref<2x8xf32, #tpu.memory_space<vmem>>, vector<1x8xf32>
    %3 = vector.broadcast %2 : vector<1x8xf32> to vector<256x8xf32>
    %4 = arith.mulf %1, %3 : vector<256x8xf32>
    %c1 = arith.constant 1 : index
    %c0_5 = arith.constant 0 : index
    %5 = vector.load %arg1[%c1, %c0_5] : memref<2x8xf32, #tpu.memory_space<vmem>>, vector<1x8xf32>
    %6 = vector.broadcast %5 : vector<1x8xf32> to vector<256x8xf32>
    %7 = arith.addf %4, %6 : vector<256x8xf32>
    %cst = arith.constant 0.000000e+00 : f32
    %8 = vector.broadcast %cst : f32 to vector<256x8xf32>
    %9 = arith.maximumf %7, %8 : vector<256x8xf32>
    %10 = vector.shape_cast %9 : vector<256x8xf32> to vector<1x16x16x8xf32>
    %c0_6 = arith.constant 0 : index
    %c0_7 = arith.constant 0 : index
    %c0_8 = arith.constant 0 : index
    %c0_9 = arith.constant 0 : index
    %11 = vector.load %arg6[%c0_6, %c0_7, %c0_8, %c0_9] : memref<1x16x16x8xf32, #tpu.memory_space<vmem>>, vector<1x16x16x8xf32>
    tpu.vector_store %arg6[%c0_6, %c0_7, %c0_8, %c0_9], %10 {strides = array<i32>} : memref<1x16x16x8xf32, #tpu.memory_space<vmem>>, vector<1x16x16x8xf32>,
    %c0_10 = arith.constant 0 : index
    %c0_11 = arith.constant 0 : index
    %c0_12 = arith.constant 0 : index
    %c0_13 = arith.constant 0 : index
    %12 = vector.load %arg6[%c0_10, %c0_11, %c0_12, %c0_13] : memref<1x16x16x8xf32, #tpu.memory_space<vmem>>, vector<1x15x16x8xf32>
    %cst_14 = arith.constant 0.000000e+00 : f32
    %13 = vector.broadcast %cst_14 : f32 to vector<1x15x1x8xf32>
    %14 = vector.extract_strided_slice %12 {offsets = [0, 0, 0, 0], sizes = [1, 15, 15, 8], strides = [1, 1, 1, 1]} : vector<1x15x16x8xf32> to vector<1x15x15x8xf32>
    %15 = tpu.concatenate %13, %14 in 2 : vector<1x15x1x8xf32>, vector<1x15x15x8xf32> -> vector<1x15x16x8xf32>
    %c0_15 = arith.constant 0 : index
    %c1_16 = arith.constant 1 : index
    %c0_17 = arith.constant 0 : index
    %c0_18 = arith.constant 0 : index
    %16 = vector.load %arg7[%c0_15, %c1_16, %c0_17, %c0_18] : memref<1x16x16x72xf32, #tpu.memory_space<vmem>>, vector<1x15x16x8xf32>
    tpu.vector_store %arg7[%c0_15, %c1_16, %c0_17, %c0_18], %15 {strides = array<i32>} : memref<1x16x16x72xf32, #tpu.memory_space<vmem>>, vector<1x15x16x8xf32>,
    %c0_19 = arith.constant 0 : index
    %c1_20 = arith.constant 1 : index
    %c0_21 = arith.constant 0 : index
    %c8 = arith.constant 8 : index
    %17 = vector.load %arg7[%c0_19, %c1_20, %c0_21, %c8] : memref<1x16x16x72xf32, #tpu.memory_space<vmem>>, vector<1x15x16x8xf32>
    tpu.vector_store %arg7[%c0_19, %c1_20, %c0_21, %c8], %12 {strides = array<i32>} : memref<1x16x16x72xf32, #tpu.memory_space<vmem>>, vector<1x15x16x8xf32>,
    %cst_22 = arith.constant 0.000000e+00 : f32
    %18 = vector.broadcast %cst_22 : f32 to vector<1x15x1x8xf32>
    %19 = vector.extract_strided_slice %12 {offsets = [0, 0, 1, 0], sizes = [1, 15, 15, 8], strides = [1, 1, 1, 1]} : vector<1x15x16x8xf32> to vector<1x15x15x8xf32>
    %20 = tpu.concatenate %19, %18 in 2 : vector<1x15x15x8xf32>, vector<1x15x1x8xf32> -> vector<1x15x16x8xf32>
    %c0_23 = arith.constant 0 : index
    %c1_24 = arith.constant 1 : index
    %c0_25 = arith.constant 0 : index
    %c16 = arith.constant 16 : index
    %21 = vector.load %arg7[%c0_23, %c1_24, %c0_25, %c16] : memref<1x16x16x72xf32, #tpu.memory_space<vmem>>, vector<1x15x16x8xf32>
    tpu.vector_store %arg7[%c0_23, %c1_24, %c0_25, %c16], %20 {strides = array<i32>} : memref<1x16x16x72xf32, #tpu.memory_space<vmem>>, vector<1x15x16x8xf32>,
    %cst_26 = arith.constant 0.000000e+00 : f32
    %22 = vector.broadcast %cst_26 : f32 to vector<1x1x16x24xf32>
    %c0_27 = arith.constant 0 : index
    %c0_28 = arith.constant 0 : index
    %c0_29 = arith.constant 0 : index
    %c0_30 = arith.constant 0 : index
    %23 = vector.load %arg7[%c0_27, %c0_28, %c0_29, %c0_30] : memref<1x16x16x72xf32, #tpu.memory_space<vmem>>, vector<1x1x16x24xf32>
    tpu.vector_store %arg7[%c0_27, %c0_28, %c0_29, %c0_30], %22 {strides = array<i32>} : memref<1x16x16x72xf32, #tpu.memory_space<vmem>>, vector<1x1x16x24xf32>,
    %c0_31 = arith.constant 0 : index
    %c0_32 = arith.constant 0 : index
    %c0_33 = arith.constant 0 : index
    %c0_34 = arith.constant 0 : index
    %24 = vector.load %arg6[%c0_31, %c0_32, %c0_33, %c0_34] : memref<1x16x16x8xf32, #tpu.memory_space<vmem>>, vector<1x16x16x8xf32>
    %cst_35 = arith.constant 0.000000e+00 : f32
    %25 = vector.broadcast %cst_35 : f32 to vector<1x16x1x8xf32>
    %26 = vector.extract_strided_slice %24 {offsets = [0, 0, 0, 0], sizes = [1, 16, 15, 8], strides = [1, 1, 1, 1]} : vector<1x16x16x8xf32> to vector<1x16x15x8xf32>
    %27 = tpu.concatenate %25, %26 in 2 : vector<1x16x1x8xf32>, vector<1x16x15x8xf32> -> vector<1x16x16x8xf32>
    %c0_36 = arith.constant 0 : index
    %c0_37 = arith.constant 0 : index
    %c0_38 = arith.constant 0 : index
    %c24 = arith.constant 24 : index
    %28 = vector.load %arg7[%c0_36, %c0_37, %c0_38, %c24] : memref<1x16x16x72xf32, #tpu.memory_space<vmem>>, vector<1x16x16x8xf32>
    tpu.vector_store %arg7[%c0_36, %c0_37, %c0_38, %c24], %27 {strides = array<i32>} : memref<1x16x16x72xf32, #tpu.memory_space<vmem>>, vector<1x16x16x8xf32>,
    %c0_39 = arith.constant 0 : index
    %c0_40 = arith.constant 0 : index
    %c0_41 = arith.constant 0 : index
    %c32 = arith.constant 32 : index
    %29 = vector.load %arg7[%c0_39, %c0_40, %c0_41, %c32] : memref<1x16x16x72xf32, #tpu.memory_space<vmem>>, vector<1x16x16x8xf32>
    tpu.vector_store %arg7[%c0_39, %c0_40, %c0_41, %c32], %24 {strides = array<i32>} : memref<1x16x16x72xf32, #tpu.memory_space<vmem>>, vector<1x16x16x8xf32>,
    %cst_42 = arith.constant 0.000000e+00 : f32
    %30 = vector.broadcast %cst_42 : f32 to vector<1x16x1x8xf32>
    %31 = vector.extract_strided_slice %24 {offsets = [0, 0, 1, 0], sizes = [1, 16, 15, 8], strides = [1, 1, 1, 1]} : vector<1x16x16x8xf32> to vector<1x16x15x8xf32>
    %32 = tpu.concatenate %31, %30 in 2 : vector<1x16x15x8xf32>, vector<1x16x1x8xf32> -> vector<1x16x16x8xf32>
    %c0_43 = arith.constant 0 : index
    %c0_44 = arith.constant 0 : index
    %c0_45 = arith.constant 0 : index
    %c40 = arith.constant 40 : index
    %33 = vector.load %arg7[%c0_43, %c0_44, %c0_45, %c40] : memref<1x16x16x72xf32, #tpu.memory_space<vmem>>, vector<1x16x16x8xf32>
    tpu.vector_store %arg7[%c0_43, %c0_44, %c0_45, %c40], %32 {strides = array<i32>} : memref<1x16x16x72xf32, #tpu.memory_space<vmem>>, vector<1x16x16x8xf32>,
    %c0_46 = arith.constant 0 : index
    %c1_47 = arith.constant 1 : index
    %c0_48 = arith.constant 0 : index
    %c0_49 = arith.constant 0 : index
    %34 = vector.load %arg6[%c0_46, %c1_47, %c0_48, %c0_49] : memref<1x16x16x8xf32, #tpu.memory_space<vmem>>, vector<1x15x16x8xf32>
    %cst_50 = arith.constant 0.000000e+00 : f32
    %35 = vector.broadcast %cst_50 : f32 to vector<1x15x1x8xf32>
    %36 = vector.extract_strided_slice %34 {offsets = [0, 0, 0, 0], sizes = [1, 15, 15, 8], strides = [1, 1, 1, 1]} : vector<1x15x16x8xf32> to vector<1x15x15x8xf32>
    %37 = tpu.concatenate %35, %36 in 2 : vector<1x15x1x8xf32>, vector<1x15x15x8xf32> -> vector<1x15x16x8xf32>
    %c0_51 = arith.constant 0 : index
    %c0_52 = arith.constant 0 : index
    %c0_53 = arith.constant 0 : index
    %c48 = arith.constant 48 : index
    %38 = vector.load %arg7[%c0_51, %c0_52, %c0_53, %c48] : memref<1x16x16x72xf32, #tpu.memory_space<vmem>>, vector<1x15x16x8xf32>
    tpu.vector_store %arg7[%c0_51, %c0_52, %c0_53, %c48], %37 {strides = array<i32>} : memref<1x16x16x72xf32, #tpu.memory_space<vmem>>, vector<1x15x16x8xf32>,
    %c0_54 = arith.constant 0 : index
    %c0_55 = arith.constant 0 : index
    %c0_56 = arith.constant 0 : index
    %c56 = arith.constant 56 : index
    %39 = vector.load %arg7[%c0_54, %c0_55, %c0_56, %c56] : memref<1x16x16x72xf32, #tpu.memory_space<vmem>>, vector<1x15x16x8xf32>
    tpu.vector_store %arg7[%c0_54, %c0_55, %c0_56, %c56], %34 {strides = array<i32>} : memref<1x16x16x72xf32, #tpu.memory_space<vmem>>, vector<1x15x16x8xf32>,
    %cst_57 = arith.constant 0.000000e+00 : f32
    %40 = vector.broadcast %cst_57 : f32 to vector<1x15x1x8xf32>
    %41 = vector.extract_strided_slice %34 {offsets = [0, 0, 1, 0], sizes = [1, 15, 15, 8], strides = [1, 1, 1, 1]} : vector<1x15x16x8xf32> to vector<1x15x15x8xf32>
    %42 = tpu.concatenate %41, %40 in 2 : vector<1x15x15x8xf32>, vector<1x15x1x8xf32> -> vector<1x15x16x8xf32>
    %c0_58 = arith.constant 0 : index
    %c0_59 = arith.constant 0 : index
    %c0_60 = arith.constant 0 : index
    %c64 = arith.constant 64 : index
    %43 = vector.load %arg7[%c0_58, %c0_59, %c0_60, %c64] : memref<1x16x16x72xf32, #tpu.memory_space<vmem>>, vector<1x15x16x8xf32>
    tpu.vector_store %arg7[%c0_58, %c0_59, %c0_60, %c64], %42 {strides = array<i32>} : memref<1x16x16x72xf32, #tpu.memory_space<vmem>>, vector<1x15x16x8xf32>,
    %cst_61 = arith.constant 0.000000e+00 : f32
    %44 = vector.broadcast %cst_61 : f32 to vector<1x1x16x24xf32>
    %c0_62 = arith.constant 0 : index
    %c15 = arith.constant 15 : index
    %c0_63 = arith.constant 0 : index
    %c48_64 = arith.constant 48 : index
    %45 = vector.load %arg7[%c0_62, %c15, %c0_63, %c48_64] : memref<1x16x16x72xf32, #tpu.memory_space<vmem>>, vector<1x1x16x24xf32>
    tpu.vector_store %arg7[%c0_62, %c15, %c0_63, %c48_64], %44 {strides = array<i32>} : memref<1x16x16x72xf32, #tpu.memory_space<vmem>>, vector<1x1x16x24xf32>,
    %c0_65 = arith.constant 0 : index
    %c0_66 = arith.constant 0 : index
    %c0_67 = arith.constant 0 : index
    %c0_68 = arith.constant 0 : index
    %46 = vector.load %arg7[%c0_65, %c0_66, %c0_67, %c0_68] : memref<1x16x16x72xf32, #tpu.memory_space<vmem>>, vector<1x16x16x72xf32>
    %47 = vector.shape_cast %46 : vector<1x16x16x72xf32> to vector<256x72xf32>
    %c0_69 = arith.constant 0 : index
    %c0_70 = arith.constant 0 : index
    %48 = vector.load %arg3[%c0_69, %c0_70] : memref<72x8xf32, #tpu.memory_space<vmem>>, vector<72x8xf32>
    %cst_71 = arith.constant dense<0.000000e+00> : vector<256x8xf32>
    %49 = tpu.matmul %47, %48, %cst_71 {dimension_numbers = #tpu.dot_dimension_numbers<[1], [0], [0], [1], [0, 0, 1, 1], [], []>} : vector<256x72xf32>, vector<72x8xf32>, vector<256x8xf32> -> vector<256x8xf32>
    %50 = vector.shape_cast %49 : vector<256x8xf32> to vector<1x16x16x8xf32>
    %c0_72 = arith.constant 0 : index
    %c0_73 = arith.constant 0 : index
    %c0_74 = arith.constant 0 : index
    %c0_75 = arith.constant 0 : index
    %51 = vector.load %arg4[%c0_72, %c0_73, %c0_74, %c0_75] : memref<1x16x16x8xf32, #tpu.memory_space<vmem>>, vector<1x16x16x8xf32>
    tpu.vector_store %arg4[%c0_72, %c0_73, %c0_74, %c0_75], %50 {strides = array<i32>} : memref<1x16x16x8xf32, #tpu.memory_space<vmem>>, vector<1x16x16x8xf32>,
    %cst_76 = arith.constant dense<0.000000e+00> : vector<8xf32>
    %52 = vector.multi_reduction <add>, %49, %cst_76 [0] : vector<256x8xf32> to vector<8xf32>
    %53 = vector.shape_cast %52 : vector<8xf32> to vector<1x8xf32>
    %54 = arith.mulf %49, %49 : vector<256x8xf32>
    %cst_77 = arith.constant dense<0.000000e+00> : vector<8xf32>
    %55 = vector.multi_reduction <add>, %54, %cst_77 [0] : vector<256x8xf32> to vector<8xf32>
    %56 = vector.shape_cast %55 : vector<8xf32> to vector<1x8xf32>
    %57 = tpu.concatenate %53, %56 in 0 : vector<1x8xf32>, vector<1x8xf32> -> vector<2x8xf32>
    %58 = vector.shape_cast %57 : vector<2x8xf32> to vector<1x2x8xf32>
    %c0_78 = arith.constant 0 : index
    %c0_79 = arith.constant 0 : index
    %c0_80 = arith.constant 0 : index
    %59 = vector.load %arg5[%c0_78, %c0_79, %c0_80] : memref<1x2x8xf32, #tpu.memory_space<vmem>>, vector<1x2x8xf32>
    tpu.vector_store %arg5[%c0_78, %c0_79, %c0_80], %58 {strides = array<i32>} : memref<1x2x8xf32, #tpu.memory_space<vmem>>, vector<1x2x8xf32>,
    return
  }
  func.func @transform_0(%arg0: i32) -> (i32, i32) {
    %c0_i32 = arith.constant 0 : i32
    %c0_i32_0 = arith.constant 0 : i32
    %c0_i32_1 = arith.constant 0 : i32
    return %c0_i32, %c0_i32_0 : i32, i32
  }
  func.func @transform_1(%arg0: i32) -> (i32, i32, i32, i32) {
    %c0_i32 = arith.constant 0 : i32
    %c0_i32_0 = arith.constant 0 : i32
    %c0_i32_1 = arith.constant 0 : i32
    %c0_i32_2 = arith.constant 0 : i32
    return %arg0, %c0_i32, %c0_i32_0, %c0_i32_1 : i32, i32, i32, i32
  }
  func.func @transform_2(%arg0: i32) -> (i32, i32) {
    %c0_i32 = arith.constant 0 : i32
    %c0_i32_0 = arith.constant 0 : i32
    %c0_i32_1 = arith.constant 0 : i32
    return %c0_i32, %c0_i32_0 : i32, i32
  }
  func.func @transform_3(%arg0: i32) -> (i32, i32, i32, i32) {
    %c0_i32 = arith.constant 0 : i32
    %c0_i32_0 = arith.constant 0 : i32
    %c0_i32_1 = arith.constant 0 : i32
    %c0_i32_2 = arith.constant 0 : i32
    return %arg0, %c0_i32, %c0_i32_0, %c0_i32_1 : i32, i32, i32, i32
  }
  func.func @transform_4(%arg0: i32) -> (i32, i32, i32) {
    %c0_i32 = arith.constant 0 : i32
    %c0_i32_0 = arith.constant 0 : i32
    %c0_i32_1 = arith.constant 0 : i32
    return %arg0, %c0_i32, %c0_i32_0 : i32, i32, i32
  }
}

module attributes {stable_mosaic.version = 11 : i64} {
  func.func @kernel(%arg0: i32, %arg1: memref<4x8xf32, #tpu.memory_space<vmem>>, %arg2: memref<1x16x16x8xf32, #tpu.memory_space<vmem>>, %arg3: memref<1x16x16x8xf32, #tpu.memory_space<vmem>>, %arg4: memref<1x16x16x8xf32, #tpu.memory_space<vmem>>) attributes {dimension_semantics = [#tpu.dimension_semantics<parallel>], iteration_bounds = array<i64: 2>, scalar_prefetch = 0 : i64, scratch_operands = 0 : i64, tpu.core_type = #tpu.core_type<tc>, window_params = [{pipeline_mode = #tpu.pipeline_mode<synchronous>, transform_indices = @transform_0, window_bounds = array<i64: 4, 8>}, {transform_indices = @transform_1, window_bounds = array<i64: 1, 16, 16, 8>}, {transform_indices = @transform_2, window_bounds = array<i64: 1, 16, 16, 8>}, {transform_indices = @transform_3, window_bounds = array<i64: 1, 16, 16, 8>}]} {
    %c0 = arith.constant 0 : index
    %c0_0 = arith.constant 0 : index
    %c0_1 = arith.constant 0 : index
    %c0_2 = arith.constant 0 : index
    %0 = vector.load %arg2[%c0, %c0_0, %c0_1, %c0_2] : memref<1x16x16x8xf32, #tpu.memory_space<vmem>>, vector<1x16x16x8xf32>
    %1 = vector.shape_cast %0 : vector<1x16x16x8xf32> to vector<256x8xf32>
    %c0_3 = arith.constant 0 : index
    %c0_4 = arith.constant 0 : index
    %2 = vector.load %arg1[%c0_3, %c0_4] : memref<4x8xf32, #tpu.memory_space<vmem>>, vector<1x8xf32>
    %3 = vector.broadcast %2 : vector<1x8xf32> to vector<256x8xf32>
    %4 = arith.mulf %1, %3 : vector<256x8xf32>
    %c1 = arith.constant 1 : index
    %c0_5 = arith.constant 0 : index
    %5 = vector.load %arg1[%c1, %c0_5] : memref<4x8xf32, #tpu.memory_space<vmem>>, vector<1x8xf32>
    %6 = vector.broadcast %5 : vector<1x8xf32> to vector<256x8xf32>
    %7 = arith.addf %4, %6 : vector<256x8xf32>
    %c0_6 = arith.constant 0 : index
    %c0_7 = arith.constant 0 : index
    %c0_8 = arith.constant 0 : index
    %c0_9 = arith.constant 0 : index
    %8 = vector.load %arg3[%c0_6, %c0_7, %c0_8, %c0_9] : memref<1x16x16x8xf32, #tpu.memory_space<vmem>>, vector<1x16x16x8xf32>
    %9 = vector.shape_cast %8 : vector<1x16x16x8xf32> to vector<256x8xf32>
    %c2 = arith.constant 2 : index
    %c0_10 = arith.constant 0 : index
    %10 = vector.load %arg1[%c2, %c0_10] : memref<4x8xf32, #tpu.memory_space<vmem>>, vector<1x8xf32>
    %11 = vector.broadcast %10 : vector<1x8xf32> to vector<256x8xf32>
    %12 = arith.mulf %9, %11 : vector<256x8xf32>
    %c3 = arith.constant 3 : index
    %c0_11 = arith.constant 0 : index
    %13 = vector.load %arg1[%c3, %c0_11] : memref<4x8xf32, #tpu.memory_space<vmem>>, vector<1x8xf32>
    %14 = vector.broadcast %13 : vector<1x8xf32> to vector<256x8xf32>
    %15 = arith.addf %12, %14 : vector<256x8xf32>
    %16 = arith.addf %7, %15 : vector<256x8xf32>
    %cst = arith.constant 0.000000e+00 : f32
    %17 = vector.broadcast %cst : f32 to vector<256x8xf32>
    %18 = arith.maximumf %16, %17 : vector<256x8xf32>
    %19 = vector.shape_cast %18 : vector<256x8xf32> to vector<1x16x16x8xf32>
    %c0_12 = arith.constant 0 : index
    %c0_13 = arith.constant 0 : index
    %c0_14 = arith.constant 0 : index
    %c0_15 = arith.constant 0 : index
    %20 = vector.load %arg4[%c0_12, %c0_13, %c0_14, %c0_15] : memref<1x16x16x8xf32, #tpu.memory_space<vmem>>, vector<1x16x16x8xf32>
    tpu.vector_store %arg4[%c0_12, %c0_13, %c0_14, %c0_15], %19 {strides = array<i32>} : memref<1x16x16x8xf32, #tpu.memory_space<vmem>>, vector<1x16x16x8xf32>,
    return
  }
  func.func @transform_0(%arg0: i32) -> (i32, i32) {
    %c0_i32 = arith.constant 0 : i32
    %c0_i32_0 = arith.constant 0 : i32
    %c0_i32_1 = arith.constant 0 : i32
    return %c0_i32, %c0_i32_0 : i32, i32
  }
  func.func @transform_1(%arg0: i32) -> (i32, i32, i32, i32) {
    %c0_i32 = arith.constant 0 : i32
    %c0_i32_0 = arith.constant 0 : i32
    %c0_i32_1 = arith.constant 0 : i32
    %c0_i32_2 = arith.constant 0 : i32
    return %arg0, %c0_i32, %c0_i32_0, %c0_i32_1 : i32, i32, i32, i32
  }
  func.func @transform_2(%arg0: i32) -> (i32, i32, i32, i32) {
    %c0_i32 = arith.constant 0 : i32
    %c0_i32_0 = arith.constant 0 : i32
    %c0_i32_1 = arith.constant 0 : i32
    %c0_i32_2 = arith.constant 0 : i32
    return %arg0, %c0_i32, %c0_i32_0, %c0_i32_1 : i32, i32, i32, i32
  }
  func.func @transform_3(%arg0: i32) -> (i32, i32, i32, i32) {
    %c0_i32 = arith.constant 0 : i32
    %c0_i32_0 = arith.constant 0 : i32
    %c0_i32_1 = arith.constant 0 : i32
    %c0_i32_2 = arith.constant 0 : i32
    return %arg0, %c0_i32, %c0_i32_0, %c0_i32_1 : i32, i32, i32, i32
  }
}

</mosaic_0001>

<llo_original>
// kernel: basic_block_forward.5
$region0: #{basic_block_forward.5}
  #allocation0 [shape = 'u32[]', space=smem, size = 0x4, offset = 0x4, fixed_abs, tag = 'smem constant byte address 0x4 - core index']
  #allocation1 [shape = 'u32[144,128]{1,0:T(1,128)}', space=vmem, size = 0x12000, scoped, tag = 'internal scratch']
  %s0 = inlined_call_operand.vmem [shape: f32[4,8], index: 0, kind: input, shape index: {}]
  %s1 = inlined_call_operand.vmem [shape: f32[2,16,16,8], index: 1, kind: input, shape index: {}]
  %s2 = inlined_call_operand.vmem [shape: f32[2,16,16,8], index: 2, kind: input, shape index: {}]
  %s3 = inlined_call_operand.vmem [shape: f32[2,16,16,8], index: 3, kind: output, shape index: {}]
  %s4 = sld [smem:[#allocation0]]
  $region45: #{basic_block_forward.5} parent=0
    _
  %s6 = ssub.s32 1, %s4
  %s7 = scalar_select 0, %s6, %s4
  loop: start=0, step=1, limit=4
  $region2: #{basic_block_forward.5} parent=0 // loop_pre_header
    _
  $region3: #{basic_block_forward.5} parent=0 // loop_header
    %s9 = sphi 0, %s13
    %p10 = scmp.ge.s32.totalorder %s9, 4
    %s17 = sphi 0, %s17
    %s19 = sphi 0, %s17
    %s20 = sphi 0, %s19
    %s34 = sphi 0, %s20
    %s40 = sphi 0, %s42
    %s43 = sphi 0, %s40
    %s44 = sphi 0, %s43
    %s60 = sphi 0, %s44
    %s66 = sphi 0, %s68
    %s69 = sphi 0, %s66
    %s70 = sphi 0, %s69
    %s86 = sphi 0, %s70
    %s92 = sphi 0, %s94
    %s95 = sphi 0, %s92
    %s96 = sphi 0, %s95
    %s112 = sphi 0, %s96
  $region4: #{basic_block_forward.5} parent=0 // loop_header_branch
    %12 = sbr.rel (%p10) target = $region8
  $region5: #{basic_block_forward.5} parent=0 // loop_body
    %s14 = ssub.s32 %s9, 1
    %s15 = ssub.s32 %s9, 2
    %s16 = sadd.s32 %s9, 1
    %s18 = sadd.s32 %s17, 1
    %p21 = scmp.eq.s32.totalorder %s9, 1
    %p22 = scmp.ne.s32.totalorder %s17, %s19
    %p23 = scmp.eq.s32.totalorder %s9, 0
    %p24 = por %p22, %p23
    %p25 = scmp.ne.s32.totalorder %s17, %s19
    %p26 = scmp.eq.s32.totalorder %s14, 1
    %p27 = por %p25, %p26
    %p28 = scmp.ne.s32.totalorder %s19, %s20
    %p29 = scmp.eq.s32.totalorder %s14, 0
    %p30 = por %p28, %p29
    %p31 = scmp.ne.s32.totalorder %s19, %s20
    %p32 = scmp.eq.s32.totalorder %s15, 1
    %p33 = por %p31, %p32
    %p35 = scmp.ne.s32.totalorder %s20, %s34
    %p36 = scmp.eq.s32.totalorder %s15, 0
    %p37 = por %p35, %p36
    %s38 = ssub.s32 %s9, %s16
    %p39 = scmp.eq.s32.totalorder %s38, 0
    %s41 = sadd.s32 %s40, 1
    %s42 = scalar_select %p39, %s40, %s41
    %p45 = pneg %p39
    %p46 = scmp.eq.s32.totalorder %s9, 1
    %p47 = por %p45, %p46
    %p48 = scmp.ne.s32.totalorder %s40, %s43
    %p49 = scmp.eq.s32.totalorder %s9, 0
    %p50 = por %p48, %p49
    %p51 = scmp.ne.s32.totalorder %s40, %s43
    %p52 = scmp.eq.s32.totalorder %s14, 1
    %p53 = por %p51, %p52
    %p54 = scmp.ne.s32.totalorder %s43, %s44
    %p55 = scmp.eq.s32.totalorder %s14, 0
    %p56 = por %p54, %p55
    %p57 = scmp.ne.s32.totalorder %s43, %s44
    %p58 = scmp.eq.s32.totalorder %s15, 1
    %p59 = por %p57, %p58
    %p61 = scmp.ne.s32.totalorder %s44, %s60
    %p62 = scmp.eq.s32.totalorder %s15, 0
    %p63 = por %p61, %p62
    %s64 = ssub.s32 %s9, %s16
    %p65 = scmp.eq.s32.totalorder %s64, 0
    %s67 = sadd.s32 %s66, 1
    %s68 = scalar_select %p65, %s66, %s67
    %p71 = pneg %p65
    %p72 = scmp.eq.s32.totalorder %s9, 1
    %p73 = por %p71, %p72
    %p74 = scmp.ne.s32.totalorder %s66, %s69
    %p75 = scmp.eq.s32.totalorder %s9, 0
    %p76 = por %p74, %p75
    %p77 = scmp.ne.s32.totalorder %s66, %s69
    %p78 = scmp.eq.s32.totalorder %s14, 1
    %p79 = por %p77, %p78
    %p80 = scmp.ne.s32.totalorder %s69, %s70
    %p81 = scmp.eq.s32.totalorder %s14, 0
    %p82 = por %p80, %p81
    %p83 = scmp.ne.s32.totalorder %s69, %s70
    %p84 = scmp.eq.s32.totalorder %s15, 1
    %p85 = por %p83, %p84
    %p87 = scmp.ne.s32.totalorder %s70, %s86
    %p88 = scmp.eq.s32.totalorder %s15, 0
    %p89 = por %p87, %p88
    %s90 = ssub.s32 %s9, %s16
    %p91 = scmp.eq.s32.totalorder %s90, 0
    %s93 = sadd.s32 %s92, 1
    %s94 = scalar_select %p91, %s92, %s93
    %p97 = pneg %p91
    %p98 = scmp.eq.s32.totalorder %s9, 1
    %p99 = por %p97, %p98
    %p100 = scmp.ne.s32.totalorder %s92, %s95
    %p101 = scmp.eq.s32.totalorder %s9, 0
    %p102 = por %p100, %p101
    %p103 = scmp.ne.s32.totalorder %s92, %s95
    %p104 = scmp.eq.s32.totalorder %s14, 1
    %p105 = por %p103, %p104
    %p106 = scmp.ne.s32.totalorder %s95, %s96
    %p107 = scmp.eq.s32.totalorder %s14, 0
    %p108 = por %p106, %p107
    %p109 = scmp.ne.s32.totalorder %s95, %s96
    %p110 = scmp.eq.s32.totalorder %s15, 1
    %p111 = por %p109, %p110
    %p113 = scmp.ne.s32.totalorder %s96, %s112
    %p114 = scmp.eq.s32.totalorder %s15, 0
    %p115 = por %p113, %p114
    %p116 = scmp.le.s32.totalorder 1, %s9
    %p117 = scmp.lt.s32.totalorder %s9, 3
    %p118 = pnand %p116, %p117
    %p119 = pneg %p118
    // Predicated region
    $region9: #{basic_block_forward.5} parent=5 // pred_check
      _
    $region10: #{basic_block_forward.5} parent=5 // pred_check_branch
      %121 = sbr.rel (%p118) target = $region12
    $region11: #{basic_block_forward.5} parent=5 // pred_region
      %s122 = ssub.s32 %s9, 1
      // Predicated region
      $region13: #{basic_block_forward.5} parent=11 // pred_check
        %p123 = pneg %p30
      $region14: #{basic_block_forward.5} parent=11 // pred_check_branch
        %125 = sbr.rel (%p123) target = $region16
      $region15: #{basic_block_forward.5} parent=11 // pred_region
        _
      $region16: #{basic_block_forward.5} parent=11 // pred_fallthru
        _
    $region12: #{basic_block_forward.5} parent=5 // pred_fallthru
      _
    %p126 = scmp.lt.s32.totalorder %s9, 2
    // Predicated region
    $region17: #{basic_block_forward.5} parent=5 // pred_check
      %p127 = pneg %p126
    $region18: #{basic_block_forward.5} parent=5 // pred_check_branch
      %129 = sbr.rel (%p127) target = $region20
    $region19: #{basic_block_forward.5} parent=5 // pred_region
      // Predicated region
      $region21: #{basic_block_forward.5} parent=19 // pred_check
        %p130 = pneg %p50
      $region22: #{basic_block_forward.5} parent=19 // pred_check_branch
        %132 = sbr.rel (%p130) target = $region24
      $region23: #{basic_block_forward.5} parent=19 // pred_region
        %p133 = scmp.lt.s32.totalorder %s9, 1
        %s134 = scalar_select %p133, %s9, 1
        %s135 = smul.addr %s134, 32
        %s136 = smul.addr %s135, 8
        %s137 = scalar_lea.vmem %s1, %s136
      $region24: #{basic_block_forward.5} parent=19 // pred_fallthru
        _
      // Predicated region
      $region25: #{basic_block_forward.5} parent=19 // pred_check
        %p138 = pneg %p76
      $region26: #{basic_block_forward.5} parent=19 // pred_check_branch
        %140 = sbr.rel (%p138) target = $region28
      $region27: #{basic_block_forward.5} parent=19 // pred_region
        %p141 = scmp.lt.s32.totalorder %s9, 1
        %s142 = scalar_select %p141, %s9, 1
        %s143 = smul.addr %s142, 32
        %s144 = smul.addr %s143, 8
        %s145 = scalar_lea.vmem %s2, %s144
      $region28: #{basic_block_forward.5} parent=19 // pred_fallthru
        _
    $region20: #{basic_block_forward.5} parent=5 // pred_fallthru
      _
    %p146 = scmp.le.s32.totalorder 1, %s9
    %p147 = scmp.lt.s32.totalorder %s9, 3
    %p148 = pnand %p146, %p147
    %p149 = pneg %p148
    // Predicated region
    $region29: #{basic_block_forward.5} parent=5 // pred_check
      _
    $region30: #{basic_block_forward.5} parent=5 // pred_check_branch
      %151 = sbr.rel (%p148) target = $region32
    $region31: #{basic_block_forward.5} parent=5 // pred_region
      %s152 = ssub.s32 %s9, 1
      %p153 = pneg %p30
      %p154 = pneg %p27
      %p155 = scmp.lt.s32.totalorder %s14, 1
      %s156 = scalar_select %p155, %s14, 1
      %s157 = smul.addr %s156, 32
      %s158 = smul.addr %s157, 8
      %s159 = scalar_lea.vmem %s1, %s158
      %p160 = pneg %p56
      %p161 = pneg %p53
      %p162 = scmp.lt.s32.totalorder %s14, 1
      %s163 = scalar_select %p162, %s14, 1
      %s164 = smul.addr %s163, 32
      %s165 = smul.addr %s164, 8
      %s166 = scalar_lea.vmem %s2, %s165
      %p167 = pneg %p82
      %p168 = pneg %p79
      %p169 = pneg %p108
      %p170 = pneg %p105
      %p171 = scmp.lt.s32.totalorder %s14, 1
      %s172 = scalar_select %p171, %s14, 1
      %s173 = smul.addr %s172, 32
      %s174 = smul.addr %s173, 8
      %s175 = scalar_lea.vmem %s3, %s174
      %p176 = scmp.lt.s32.totalorder %s14, 1
      %s177 = scalar_select %p176, %s14, 1
      %s178 = smul.addr %s177, 32
      %s179 = smul.addr %s178, 8
      %s180 = scalar_lea.vmem %s1, %s179
      %p181 = scmp.lt.s32.totalorder %s14, 1
      %s182 = scalar_select %p181, %s14, 1
      %s183 = smul.addr %s182, 32
      %s184 = smul.addr %s183, 8
      %s185 = scalar_lea.vmem %s2, %s184
      %p186 = scmp.lt.s32.totalorder %s14, 1
      %s187 = scalar_select %p186, %s14, 1
      %s188 = smul.addr %s187, 32
      %s189 = smul.addr %s188, 8
      %s190 = scalar_lea.vmem %s3, %s189
      %v191 = vld [vmem:[%s180] sm:$0xff]
      %v192 = vld [vmem:[%s180 + $0x8] sm:$0xff]
      %v193 = vld [vmem:[%s180 + $0x10] sm:$0xff]
      %v194 = vld [vmem:[%s180 + $0x18] sm:$0xff]
      %v195 = vld [vmem:[%s180 + $0x20] sm:$0xff]
      %v196 = vld [vmem:[%s180 + $0x28] sm:$0xff]
      %v197 = vld [vmem:[%s180 + $0x30] sm:$0xff]
      %v198 = vld [vmem:[%s180 + $0x38] sm:$0xff]
      %v199 = vld [vmem:[%s180 + $0x40] sm:$0xff]
      %v200 = vld [vmem:[%s180 + $0x48] sm:$0xff]
      %v201 = vld [vmem:[%s180 + $0x50] sm:$0xff]
      %v202 = vld [vmem:[%s180 + $0x58] sm:$0xff]
      %v203 = vld [vmem:[%s180 + $0x60] sm:$0xff]
      %v204 = vld [vmem:[%s180 + $0x68] sm:$0xff]
      %v205 = vld [vmem:[%s180 + $0x70] sm:$0xff]
      %v206 = vld [vmem:[%s180 + $0x78] sm:$0xff]
      %v207 = vld [vmem:[%s180 + $0x80] sm:$0xff]
      %v208 = vld [vmem:[%s180 + $0x88] sm:$0xff]
      %v209 = vld [vmem:[%s180 + $0x90] sm:$0xff]
      %v210 = vld [vmem:[%s180 + $0x98] sm:$0xff]
      %v211 = vld [vmem:[%s180 + $0xa0] sm:$0xff]
      %v212 = vld [vmem:[%s180 + $0xa8] sm:$0xff]
      %v213 = vld [vmem:[%s180 + $0xb0] sm:$0xff]
      %v214 = vld [vmem:[%s180 + $0xb8] sm:$0xff]
      %v215 = vld [vmem:[%s180 + $0xc0] sm:$0xff]
      %v216 = vld [vmem:[%s180 + $0xc8] sm:$0xff]
      %v217 = vld [vmem:[%s180 + $0xd0] sm:$0xff]
      %v218 = vld [vmem:[%s180 + $0xd8] sm:$0xff]
      %v219 = vld [vmem:[%s180 + $0xe0] sm:$0xff]
      %v220 = vld [vmem:[%s180 + $0xe8] sm:$0xff]
      %v221 = vld [vmem:[%s180 + $0xf0] sm:$0xff]
      %v222 = vld [vmem:[%s180 + $0xf8] sm:$0xff]
      %v223 = vld [vmem:[%s0] sm:$0x1]
      %v224 = vlaneseq
      %v225 = vshrl.u32 %v224, 7
      %v226 = vsub.s32 0, %v225
      %v227 = vrot.slane %v223, %v226
      %v228 = vmul.f32 %v191, %v227
      %v229 = vmul.f32 %v192, %v227
      %v230 = vmul.f32 %v193, %v227
      %v231 = vmul.f32 %v194, %v227
      %v232 = vmul.f32 %v195, %v227
      %v233 = vmul.f32 %v196, %v227
      %v234 = vmul.f32 %v197, %v227
      %v235 = vmul.f32 %v198, %v227
      %v236 = vmul.f32 %v199, %v227
      %v237 = vmul.f32 %v200, %v227
      %v238 = vmul.f32 %v201, %v227
      %v239 = vmul.f32 %v202, %v227
      %v240 = vmul.f32 %v203, %v227
      %v241 = vmul.f32 %v204, %v227
      %v242 = vmul.f32 %v205, %v227
      %v243 = vmul.f32 %v206, %v227
      %v244 = vmul.f32 %v207, %v227
      %v245 = vmul.f32 %v208, %v227
      %v246 = vmul.f32 %v209, %v227
      %v247 = vmul.f32 %v210, %v227
      %v248 = vmul.f32 %v211, %v227
      %v249 = vmul.f32 %v212, %v227
      %v250 = vmul.f32 %v213, %v227
      %v251 = vmul.f32 %v214, %v227
      %v252 = vmul.f32 %v215, %v227
      %v253 = vmul.f32 %v216, %v227
      %v254 = vmul.f32 %v217, %v227
      %v255 = vmul.f32 %v218, %v227
      %v256 = vmul.f32 %v219, %v227
      %v257 = vmul.f32 %v220, %v227
      %v258 = vmul.f32 %v221, %v227
      %v259 = vmul.f32 %v222, %v227
      %v260 = vld [vmem:[%s0 + $0x1] sm:$0x1]
      %v261 = vlaneseq
      %v262 = vshrl.u32 %v261, 7
      %v263 = vsub.s32 0, %v262
      %v264 = vrot.slane %v260, %v263
      %v265 = vadd.f32 %v228, %v264
      %v266 = vadd.f32 %v229, %v264
      %v267 = vadd.f32 %v230, %v264
      %v268 = vadd.f32 %v231, %v264
      %v269 = vadd.f32 %v232, %v264
      %v270 = vadd.f32 %v233, %v264
      %v271 = vadd.f32 %v234, %v264
      %v272 = vadd.f32 %v235, %v264
      %v273 = vadd.f32 %v236, %v264
      %v274 = vadd.f32 %v237, %v264
      %v275 = vadd.f32 %v238, %v264
      %v276 = vadd.f32 %v239, %v264
      %v277 = vadd.f32 %v240, %v264
      %v278 = vadd.f32 %v241, %v264
      %v279 = vadd.f32 %v242, %v264
      %v280 = vadd.f32 %v243, %v264
      %v281 = vadd.f32 %v244, %v264
      %v282 = vadd.f32 %v245, %v264
      %v283 = vadd.f32 %v246, %v264
      %v284 = vadd.f32 %v247, %v264
      %v285 = vadd.f32 %v248, %v264
      %v286 = vadd.f32 %v249, %v264
      %v287 = vadd.f32 %v250, %v264
      %v288 = vadd.f32 %v251, %v264
      %v289 = vadd.f32 %v252, %v264
      %v290 = vadd.f32 %v253, %v264
      %v291 = vadd.f32 %v254, %v264
      %v292 = vadd.f32 %v255, %v264
      %v293 = vadd.f32 %v256, %v264
      %v294 = vadd.f32 %v257, %v264
      %v295 = vadd.f32 %v258, %v264
      %v296 = vadd.f32 %v259, %v264
      %v297 = vld [vmem:[%s185] sm:$0xff]
      %v298 = vld [vmem:[%s185 + $0x8] sm:$0xff]
      %v299 = vld [vmem:[%s185 + $0x10] sm:$0xff]
      %v300 = vld [vmem:[%s185 + $0x18] sm:$0xff]
      %v301 = vld [vmem:[%s185 + $0x20] sm:$0xff]
      %v302 = vld [vmem:[%s185 + $0x28] sm:$0xff]
      %v303 = vld [vmem:[%s185 + $0x30] sm:$0xff]
      %v304 = vld [vmem:[%s185 + $0x38] sm:$0xff]
      %v305 = vld [vmem:[%s185 + $0x40] sm:$0xff]
      %v306 = vld [vmem:[%s185 + $0x48] sm:$0xff]
      %v307 = vld [vmem:[%s185 + $0x50] sm:$0xff]
      %v308 = vld [vmem:[%s185 + $0x58] sm:$0xff]
      %v309 = vld [vmem:[%s185 + $0x60] sm:$0xff]
      %v310 = vld [vmem:[%s185 + $0x68] sm:$0xff]
      %v311 = vld [vmem:[%s185 + $0x70] sm:$0xff]
      %v312 = vld [vmem:[%s185 + $0x78] sm:$0xff]
      %v313 = vld [vmem:[%s185 + $0x80] sm:$0xff]
      %v314 = vld [vmem:[%s185 + $0x88] sm:$0xff]
      %v315 = vld [vmem:[%s185 + $0x90] sm:$0xff]
      %v316 = vld [vmem:[%s185 + $0x98] sm:$0xff]
      %v317 = vld [vmem:[%s185 + $0xa0] sm:$0xff]
      %v318 = vld [vmem:[%s185 + $0xa8] sm:$0xff]
      %v319 = vld [vmem:[%s185 + $0xb0] sm:$0xff]
      %v320 = vld [vmem:[%s185 + $0xb8] sm:$0xff]
      %v321 = vld [vmem:[%s185 + $0xc0] sm:$0xff]
      %v322 = vld [vmem:[%s185 + $0xc8] sm:$0xff]
      %v323 = vld [vmem:[%s185 + $0xd0] sm:$0xff]
      %v324 = vld [vmem:[%s185 + $0xd8] sm:$0xff]
      %v325 = vld [vmem:[%s185 + $0xe0] sm:$0xff]
      %v326 = vld [vmem:[%s185 + $0xe8] sm:$0xff]
      %v327 = vld [vmem:[%s185 + $0xf0] sm:$0xff]
      %v328 = vld [vmem:[%s185 + $0xf8] sm:$0xff]
      %v329 = vld [vmem:[%s0 + $0x2] sm:$0x1]
      %v330 = vlaneseq
      %v331 = vshrl.u32 %v330, 7
      %v332 = vsub.s32 0, %v331
      %v333 = vrot.slane %v329, %v332
      %v334 = vmul.f32 %v297, %v333
      %v335 = vmul.f32 %v298, %v333
      %v336 = vmul.f32 %v299, %v333
      %v337 = vmul.f32 %v300, %v333
      %v338 = vmul.f32 %v301, %v333
      %v339 = vmul.f32 %v302, %v333
      %v340 = vmul.f32 %v303, %v333
      %v341 = vmul.f32 %v304, %v333
      %v342 = vmul.f32 %v305, %v333
      %v343 = vmul.f32 %v306, %v333
      %v344 = vmul.f32 %v307, %v333
      %v345 = vmul.f32 %v308, %v333
      %v346 = vmul.f32 %v309, %v333
      %v347 = vmul.f32 %v310, %v333
      %v348 = vmul.f32 %v311, %v333
      %v349 = vmul.f32 %v312, %v333
      %v350 = vmul.f32 %v313, %v333
      %v351 = vmul.f32 %v314, %v333
      %v352 = vmul.f32 %v315, %v333
      %v353 = vmul.f32 %v316, %v333
      %v354 = vmul.f32 %v317, %v333
      %v355 = vmul.f32 %v318, %v333
      %v356 = vmul.f32 %v319, %v333
      %v357 = vmul.f32 %v320, %v333
      %v358 = vmul.f32 %v321, %v333
      %v359 = vmul.f32 %v322, %v333
      %v360 = vmul.f32 %v323, %v333
      %v361 = vmul.f32 %v324, %v333
      %v362 = vmul.f32 %v325, %v333
      %v363 = vmul.f32 %v326, %v333
      %v364 = vmul.f32 %v327, %v333
      %v365 = vmul.f32 %v328, %v333
      %v366 = vld [vmem:[%s0 + $0x3] sm:$0x1]
      %v367 = vlaneseq
      %v368 = vshrl.u32 %v367, 7
      %v369 = vsub.s32 0, %v368
      %v370 = vrot.slane %v366, %v369
      %v371 = vadd.f32 %v334, %v370
      %v372 = vadd.f32 %v335, %v370
      %v373 = vadd.f32 %v336, %v370
      %v374 = vadd.f32 %v337, %v370
      %v375 = vadd.f32 %v338, %v370
      %v376 = vadd.f32 %v339, %v370
      %v377 = vadd.f32 %v340, %v370
      %v378 = vadd.f32 %v341, %v370
      %v379 = vadd.f32 %v342, %v370
      %v380 = vadd.f32 %v343, %v370
      %v381 = vadd.f32 %v344, %v370
      %v382 = vadd.f32 %v345, %v370
      %v383 = vadd.f32 %v346, %v370
      %v384 = vadd.f32 %v347, %v370
      %v385 = vadd.f32 %v348, %v370
      %v386 = vadd.f32 %v349, %v370
      %v387 = vadd.f32 %v350, %v370
      %v388 = vadd.f32 %v351, %v370
      %v389 = vadd.f32 %v352, %v370
      %v390 = vadd.f32 %v353, %v370
      %v391 = vadd.f32 %v354, %v370
      %v392 = vadd.f32 %v355, %v370
      %v393 = vadd.f32 %v356, %v370
      %v394 = vadd.f32 %v357, %v370
      %v395 = vadd.f32 %v358, %v370
      %v396 = vadd.f32 %v359, %v370
      %v397 = vadd.f32 %v360, %v370
      %v398 = vadd.f32 %v361, %v370
      %v399 = vadd.f32 %v362, %v370
      %v400 = vadd.f32 %v363, %v370
      %v401 = vadd.f32 %v364, %v370
      %v402 = vadd.f32 %v365, %v370
      %v403 = vadd.f32 %v265, %v371
      %v404 = vadd.f32 %v266, %v372
      %v405 = vadd.f32 %v267, %v373
      %v406 = vadd.f32 %v268, %v374
      %v407 = vadd.f32 %v269, %v375
      %v408 = vadd.f32 %v270, %v376
      %v409 = vadd.f32 %v271, %v377
      %v410 = vadd.f32 %v272, %v378
      %v411 = vadd.f32 %v273, %v379
      %v412 = vadd.f32 %v274, %v380
      %v413 = vadd.f32 %v275, %v381
      %v414 = vadd.f32 %v276, %v382
      %v415 = vadd.f32 %v277, %v383
      %v416 = vadd.f32 %v278, %v384
      %v417 = vadd.f32 %v279, %v385
      %v418 = vadd.f32 %v280, %v386
      %v419 = vadd.f32 %v281, %v387
      %v420 = vadd.f32 %v282, %v388
      %v421 = vadd.f32 %v283, %v389
      %v422 = vadd.f32 %v284, %v390
      %v423 = vadd.f32 %v285, %v391
      %v424 = vadd.f32 %v286, %v392
      %v425 = vadd.f32 %v287, %v393
      %v426 = vadd.f32 %v288, %v394
      %v427 = vadd.f32 %v289, %v395
      %v428 = vadd.f32 %v290, %v396
      %v429 = vadd.f32 %v291, %v397
      %v430 = vadd.f32 %v292, %v398
      %v431 = vadd.f32 %v293, %v399
      %v432 = vadd.f32 %v294, %v400
      %v433 = vadd.f32 %v295, %v401
      %v434 = vadd.f32 %v296, %v402
      %v435 = vmax.f32 %v403, 0.0
      %v436 = vmax.f32 %v404, 0.0
      %v437 = vmax.f32 %v405, 0.0
      %v438 = vmax.f32 %v406, 0.0
      %v439 = vmax.f32 %v407, 0.0
      %v440 = vmax.f32 %v408, 0.0
      %v441 = vmax.f32 %v409, 0.0
      %v442 = vmax.f32 %v410, 0.0
      %v443 = vmax.f32 %v411, 0.0
      %v444 = vmax.f32 %v412, 0.0
      %v445 = vmax.f32 %v413, 0.0
      %v446 = vmax.f32 %v414, 0.0
      %v447 = vmax.f32 %v415, 0.0
      %v448 = vmax.f32 %v416, 0.0
      %v449 = vmax.f32 %v417, 0.0
      %v450 = vmax.f32 %v418, 0.0
      %v451 = vmax.f32 %v419, 0.0
      %v452 = vmax.f32 %v420, 0.0
      %v453 = vmax.f32 %v421, 0.0
      %v454 = vmax.f32 %v422, 0.0
      %v455 = vmax.f32 %v423, 0.0
      %v456 = vmax.f32 %v424, 0.0
      %v457 = vmax.f32 %v425, 0.0
      %v458 = vmax.f32 %v426, 0.0
      %v459 = vmax.f32 %v427, 0.0
      %v460 = vmax.f32 %v428, 0.0
      %v461 = vmax.f32 %v429, 0.0
      %v462 = vmax.f32 %v430, 0.0
      %v463 = vmax.f32 %v431, 0.0
      %v464 = vmax.f32 %v432, 0.0
      %v465 = vmax.f32 %v433, 0.0
      %v466 = vmax.f32 %v434, 0.0
      %vm467 = vcmask 64512
      %468 = vst.msk [vmem:[%s190] sm:$0xff] %vm467, %v435
      %469 = vst.msk [vmem:[%s190 + $0x8] sm:$0xff] %vm467, %v436
      %470 = vst.msk [vmem:[%s190 + $0x10] sm:$0xff] %vm467, %v437
      %471 = vst.msk [vmem:[%s190 + $0x18] sm:$0xff] %vm467, %v438
      %472 = vst.msk [vmem:[%s190 + $0x20] sm:$0xff] %vm467, %v439
      %473 = vst.msk [vmem:[%s190 + $0x28] sm:$0xff] %vm467, %v440
      %474 = vst.msk [vmem:[%s190 + $0x30] sm:$0xff] %vm467, %v441
      %475 = vst.msk [vmem:[%s190 + $0x38] sm:$0xff] %vm467, %v442
      %476 = vst.msk [vmem:[%s190 + $0x40] sm:$0xff] %vm467, %v443
      %477 = vst.msk [vmem:[%s190 + $0x48] sm:$0xff] %vm467, %v444
      %478 = vst.msk [vmem:[%s190 + $0x50] sm:$0xff] %vm467, %v445
      %479 = vst.msk [vmem:[%s190 + $0x58] sm:$0xff] %vm467, %v446
      %480 = vst.msk [vmem:[%s190 + $0x60] sm:$0xff] %vm467, %v447
      %481 = vst.msk [vmem:[%s190 + $0x68] sm:$0xff] %vm467, %v448
      %482 = vst.msk [vmem:[%s190 + $0x70] sm:$0xff] %vm467, %v449
      %483 = vst.msk [vmem:[%s190 + $0x78] sm:$0xff] %vm467, %v450
      %484 = vst.msk [vmem:[%s190 + $0x80] sm:$0xff] %vm467, %v451
      %485 = vst.msk [vmem:[%s190 + $0x88] sm:$0xff] %vm467, %v452
      %486 = vst.msk [vmem:[%s190 + $0x90] sm:$0xff] %vm467, %v453
      %487 = vst.msk [vmem:[%s190 + $0x98] sm:$0xff] %vm467, %v454
      %488 = vst.msk [vmem:[%s190 + $0xa0] sm:$0xff] %vm467, %v455
      %489 = vst.msk [vmem:[%s190 + $0xa8] sm:$0xff] %vm467, %v456
      %490 = vst.msk [vmem:[%s190 + $0xb0] sm:$0xff] %vm467, %v457
      %491 = vst.msk [vmem:[%s190 + $0xb8] sm:$0xff] %vm467, %v458
      %492 = vst.msk [vmem:[%s190 + $0xc0] sm:$0xff] %vm467, %v459
      %493 = vst.msk [vmem:[%s190 + $0xc8] sm:$0xff] %vm467, %v460
      %494 = vst.msk [vmem:[%s190 + $0xd0] sm:$0xff] %vm467, %v461
      %495 = vst.msk [vmem:[%s190 + $0xd8] sm:$0xff] %vm467, %v462
      %496 = vst.msk [vmem:[%s190 + $0xe0] sm:$0xff] %vm467, %v463
      %497 = vst.msk [vmem:[%s190 + $0xe8] sm:$0xff] %vm467, %v464
      %498 = vst.msk [vmem:[%s190 + $0xf0] sm:$0xff] %vm467, %v465
      %499 = vst.msk [vmem:[%s190 + $0xf8] sm:$0xff] %vm467, %v466
      %p500 = scmp.lt.s32.totalorder %s14, 1
      %s501 = scalar_select %p500, %s14, 1
      %s502 = smul.addr %s501, 32
      %s503 = smul.addr %s502, 8
      %s504 = scalar_lea.vmem %s3, %s503
      // Predicated region
      $region33: #{basic_block_forward.5} parent=31 // pred_check
        %p505 = pneg %p105
      $region34: #{basic_block_forward.5} parent=31 // pred_check_branch
        %507 = sbr.rel (%p505) target = $region36
      $region35: #{basic_block_forward.5} parent=31 // pred_region
        _
      $region36: #{basic_block_forward.5} parent=31 // pred_fallthru
        _
    $region32: #{basic_block_forward.5} parent=5 // pred_fallthru
      _
    %p508 = scmp.le.s32.totalorder 2, %s9
    // Predicated region
    $region37: #{basic_block_forward.5} parent=5 // pred_check
      %p509 = pneg %p508
    $region38: #{basic_block_forward.5} parent=5 // pred_check_branch
      %511 = sbr.rel (%p509) target = $region40
    $region39: #{basic_block_forward.5} parent=5 // pred_region
      %s512 = ssub.s32 %s9, 2
      // Predicated region
      $region41: #{basic_block_forward.5} parent=39 // pred_check
        %p513 = pneg %p111
      $region42: #{basic_block_forward.5} parent=39 // pred_check_branch
        %515 = sbr.rel (%p513) target = $region44
      $region43: #{basic_block_forward.5} parent=39 // pred_region
        %p516 = scmp.lt.s32.totalorder %s15, 1
        %s517 = scalar_select %p516, %s15, 1
        %s518 = smul.addr %s517, 32
        %s519 = smul.addr %s518, 8
        %s520 = scalar_lea.vmem %s3, %s519
      $region44: #{basic_block_forward.5} parent=39 // pred_fallthru
        _
    $region40: #{basic_block_forward.5} parent=5 // pred_fallthru
      _
  $region6: #{basic_block_forward.5} parent=0 // loop_footer
    %s13 = sadd.s32 1, %s9
  $region7: #{basic_block_forward.5} parent=0 // loop_footer_branch
    %8 = sbr.rel target = $region3
  $region8: #{basic_block_forward.5} parent=0 // loop_exit
    _

// kernel: basic_block_forward.3
$region0: #{basic_block_forward.3}
  #allocation0 [shape = 'u32[]', space=smem, size = 0x4, offset = 0x4, fixed_abs, tag = 'smem constant byte address 0x4 - core index']
  #allocation1 [shape = 'u32[144,128]{1,0:T(1,128)}', space=vmem, size = 0x12000, scoped, tag = 'internal scratch']
  #allocation2 [shape = 'f32[1,16,16,4]{3,2,1,0:T(8,128)}', space=vmem, size = 0x20000, scoped, tag = 'scratch operand']
  #allocation3 [shape = 'f32[1,16,16,36]{3,2,1,0:T(8,128)}', space=vmem, size = 0x20000, scoped, tag = 'scratch operand']
  %s0 = inlined_call_operand.vmem [shape: f32[2,16,16,4], index: 0, kind: input, shape index: {}]
  %s1 = inlined_call_operand.vmem [shape: f32[36,16], index: 1, kind: input, shape index: {}]
  %s2 = inlined_call_operand.vmem [shape: f32[2,16,16,8], index: 2, kind: output, shape index: {0}]
  %s3 = inlined_call_operand.vmem [shape: f32[2,16,16,8], index: 3, kind: output, shape index: {1}]
  %s4 = inlined_call_operand.vmem [shape: f32[2,4,8], index: 4, kind: output, shape index: {2}]
  %5 = xla_tuple %s2, %s3, %s4
  %s6 = sld [smem:[#allocation0]]
  $region57: #{basic_block_forward.3} parent=0
    _
  %s8 = ssub.s32 1, %s6
  %s9 = scalar_select 0, %s8, %s6
  loop: start=0, step=1, limit=4
  $region2: #{basic_block_forward.3} parent=0 // loop_pre_header
    _
  $region3: #{basic_block_forward.3} parent=0 // loop_header
    %s11 = sphi 0, %s15
    %p12 = scmp.ge.s32.totalorder %s11, 4
    %s21 = sphi 0, %s23
    %s24 = sphi 0, %s21
    %s25 = sphi 0, %s24
    %s41 = sphi 0, %s25
    %s45 = sphi 0, %s45
    %s47 = sphi 0, %s45
    %s48 = sphi 0, %s47
    %s62 = sphi 0, %s48
    %s68 = sphi 0, %s70
    %s71 = sphi 0, %s68
    %s72 = sphi 0, %s71
    %s88 = sphi 0, %s72
    %s94 = sphi 0, %s96
    %s97 = sphi 0, %s94
    %s98 = sphi 0, %s97
    %s114 = sphi 0, %s98
    %s120 = sphi 0, %s122
    %s123 = sphi 0, %s120
    %s124 = sphi 0, %s123
    %s140 = sphi 0, %s124
  $region4: #{basic_block_forward.3} parent=0 // loop_header_branch
    %14 = sbr.rel (%p12) target = $region8
  $region5: #{basic_block_forward.3} parent=0 // loop_body
    %s16 = ssub.s32 %s11, 1
    %s17 = ssub.s32 %s11, 2
    %s18 = sadd.s32 %s11, 1
    %s19 = ssub.s32 %s11, %s18
    %p20 = scmp.eq.s32.totalorder %s19, 0
    %s22 = sadd.s32 %s21, 1
    %s23 = scalar_select %p20, %s21, %s22
    %p26 = pneg %p20
    %p27 = scmp.eq.s32.totalorder %s11, 1
    %p28 = por %p26, %p27
    %p29 = scmp.ne.s32.totalorder %s21, %s24
    %p30 = scmp.eq.s32.totalorder %s11, 0
    %p31 = por %p29, %p30
    %p32 = scmp.ne.s32.totalorder %s21, %s24
    %p33 = scmp.eq.s32.totalorder %s16, 1
    %p34 = por %p32, %p33
    %p35 = scmp.ne.s32.totalorder %s24, %s25
    %p36 = scmp.eq.s32.totalorder %s16, 0
    %p37 = por %p35, %p36
    %p38 = scmp.ne.s32.totalorder %s24, %s25
    %p39 = scmp.eq.s32.totalorder %s17, 1
    %p40 = por %p38, %p39
    %p42 = scmp.ne.s32.totalorder %s25, %s41
    %p43 = scmp.eq.s32.totalorder %s17, 0
    %p44 = por %p42, %p43
    %s46 = sadd.s32 %s45, 1
    %p49 = scmp.eq.s32.totalorder %s11, 1
    %p50 = scmp.ne.s32.totalorder %s45, %s47
    %p51 = scmp.eq.s32.totalorder %s11, 0
    %p52 = por %p50, %p51
    %p53 = scmp.ne.s32.totalorder %s45, %s47
    %p54 = scmp.eq.s32.totalorder %s16, 1
    %p55 = por %p53, %p54
    %p56 = scmp.ne.s32.totalorder %s47, %s48
    %p57 = scmp.eq.s32.totalorder %s16, 0
    %p58 = por %p56, %p57
    %p59 = scmp.ne.s32.totalorder %s47, %s48
    %p60 = scmp.eq.s32.totalorder %s17, 1
    %p61 = por %p59, %p60
    %p63 = scmp.ne.s32.totalorder %s48, %s62
    %p64 = scmp.eq.s32.totalorder %s17, 0
    %p65 = por %p63, %p64
    %s66 = ssub.s32 %s11, %s18
    %p67 = scmp.eq.s32.totalorder %s66, 0
    %s69 = sadd.s32 %s68, 1
    %s70 = scalar_select %p67, %s68, %s69
    %p73 = pneg %p67
    %p74 = scmp.eq.s32.totalorder %s11, 1
    %p75 = por %p73, %p74
    %p76 = scmp.ne.s32.totalorder %s68, %s71
    %p77 = scmp.eq.s32.totalorder %s11, 0
    %p78 = por %p76, %p77
    %p79 = scmp.ne.s32.totalorder %s68, %s71
    %p80 = scmp.eq.s32.totalorder %s16, 1
    %p81 = por %p79, %p80
    %p82 = scmp.ne.s32.totalorder %s71, %s72
    %p83 = scmp.eq.s32.totalorder %s16, 0
    %p84 = por %p82, %p83
    %p85 = scmp.ne.s32.totalorder %s71, %s72
    %p86 = scmp.eq.s32.totalorder %s17, 1
    %p87 = por %p85, %p86
    %p89 = scmp.ne.s32.totalorder %s72, %s88
    %p90 = scmp.eq.s32.totalorder %s17, 0
    %p91 = por %p89, %p90
    %s92 = ssub.s32 %s11, %s18
    %p93 = scmp.eq.s32.totalorder %s92, 0
    %s95 = sadd.s32 %s94, 1
    %s96 = scalar_select %p93, %s94, %s95
    %p99 = pneg %p93
    %p100 = scmp.eq.s32.totalorder %s11, 1
    %p101 = por %p99, %p100
    %p102 = scmp.ne.s32.totalorder %s94, %s97
    %p103 = scmp.eq.s32.totalorder %s11, 0
    %p104 = por %p102, %p103
    %p105 = scmp.ne.s32.totalorder %s94, %s97
    %p106 = scmp.eq.s32.totalorder %s16, 1
    %p107 = por %p105, %p106
    %p108 = scmp.ne.s32.totalorder %s97, %s98
    %p109 = scmp.eq.s32.totalorder %s16, 0
    %p110 = por %p108, %p109
    %p111 = scmp.ne.s32.totalorder %s97, %s98
    %p112 = scmp.eq.s32.totalorder %s17, 1
    %p113 = por %p111, %p112
    %p115 = scmp.ne.s32.totalorder %s98, %s114
    %p116 = scmp.eq.s32.totalorder %s17, 0
    %p117 = por %p115, %p116
    %s118 = ssub.s32 %s11, %s18
    %p119 = scmp.eq.s32.totalorder %s118, 0
    %s121 = sadd.s32 %s120, 1
    %s122 = scalar_select %p119, %s120, %s121
    %p125 = pneg %p119
    %p126 = scmp.eq.s32.totalorder %s11, 1
    %p127 = por %p125, %p126
    %p128 = scmp.ne.s32.totalorder %s120, %s123
    %p129 = scmp.eq.s32.totalorder %s11, 0
    %p130 = por %p128, %p129
    %p131 = scmp.ne.s32.totalorder %s120, %s123
    %p132 = scmp.eq.s32.totalorder %s16, 1
    %p133 = por %p131, %p132
    %p134 = scmp.ne.s32.totalorder %s123, %s124
    %p135 = scmp.eq.s32.totalorder %s16, 0
    %p136 = por %p134, %p135
    %p137 = scmp.ne.s32.totalorder %s123, %s124
    %p138 = scmp.eq.s32.totalorder %s17, 1
    %p139 = por %p137, %p138
    %p141 = scmp.ne.s32.totalorder %s124, %s140
    %p142 = scmp.eq.s32.totalorder %s17, 0
    %p143 = por %p141, %p142
    %p144 = scmp.le.s32.totalorder 1, %s11
    %p145 = scmp.lt.s32.totalorder %s11, 3
    %p146 = pnand %p144, %p145
    %p147 = pneg %p146
    // Predicated region
    $region9: #{basic_block_forward.3} parent=5 // pred_check
      _
    $region10: #{basic_block_forward.3} parent=5 // pred_check_branch
      %149 = sbr.rel (%p146) target = $region12
    $region11: #{basic_block_forward.3} parent=5 // pred_region
      %s150 = ssub.s32 %s11, 1
      // Predicated region
      $region13: #{basic_block_forward.3} parent=11 // pred_check
        %p151 = pneg %p58
      $region14: #{basic_block_forward.3} parent=11 // pred_check_branch
        %153 = sbr.rel (%p151) target = $region16
      $region15: #{basic_block_forward.3} parent=11 // pred_region
        _
      $region16: #{basic_block_forward.3} parent=11 // pred_fallthru
        _
    $region12: #{basic_block_forward.3} parent=5 // pred_fallthru
      _
    %p154 = scmp.lt.s32.totalorder %s11, 2
    // Predicated region
    $region17: #{basic_block_forward.3} parent=5 // pred_check
      %p155 = pneg %p154
    $region18: #{basic_block_forward.3} parent=5 // pred_check_branch
      %157 = sbr.rel (%p155) target = $region20
    $region19: #{basic_block_forward.3} parent=5 // pred_region
      // Predicated region
      $region21: #{basic_block_forward.3} parent=19 // pred_check
        %p158 = pneg %p31
      $region22: #{basic_block_forward.3} parent=19 // pred_check_branch
        %160 = sbr.rel (%p158) target = $region24
      $region23: #{basic_block_forward.3} parent=19 // pred_region
        %p161 = scmp.lt.s32.totalorder %s11, 1
        %s162 = scalar_select %p161, %s11, 1
        %s163 = smul.addr %s162, 32
        %s164 = smul.addr %s163, 8
        %s165 = scalar_lea.vmem %s0, %s164
      $region24: #{basic_block_forward.3} parent=19 // pred_fallthru
        _
    $region20: #{basic_block_forward.3} parent=5 // pred_fallthru
      _
    %p166 = scmp.le.s32.totalorder 1, %s11
    %p167 = scmp.lt.s32.totalorder %s11, 3
    %p168 = pnand %p166, %p167
    %p169 = pneg %p168
    // Predicated region
    $region25: #{basic_block_forward.3} parent=5 // pred_check
      _
    $region26: #{basic_block_forward.3} parent=5 // pred_check_branch
      %171 = sbr.rel (%p168) target = $region28
    $region27: #{basic_block_forward.3} parent=5 // pred_region
      %s172 = ssub.s32 %s11, 1
      %p173 = scmp.lt.s32.totalorder %s16, 1
      %s174 = scalar_select %p173, %s16, 1
      %s175 = smul.addr %s174, 32
      %s176 = smul.addr %s175, 8
      %s177 = scalar_lea.vmem %s0, %s176
      %p178 = pneg %p37
      %p179 = pneg %p34
      %p180 = pneg %p58
      %p181 = pneg %p55
      %p182 = pneg %p84
      %p183 = pneg %p81
      %p184 = scmp.lt.s32.totalorder %s16, 1
      %s185 = scalar_select %p184, %s16, 1
      %s186 = smul.addr %s185, 32
      %s187 = smul.addr %s186, 8
      %s188 = scalar_lea.vmem %s2, %s187
      %p189 = pneg %p110
      %p190 = pneg %p107
      %p191 = scmp.lt.s32.totalorder %s16, 1
      %s192 = scalar_select %p191, %s16, 1
      %s193 = smul.addr %s192, 32
      %s194 = smul.addr %s193, 8
      %s195 = scalar_lea.vmem %s3, %s194
      %p196 = pneg %p136
      %p197 = pneg %p133
      %p198 = scmp.lt.s32.totalorder %s16, 1
      %s199 = scalar_select %p198, %s16, 1
      %s200 = smul.addr %s199, 4
      %s201 = scalar_lea.vmem %s4, %s200
      %p202 = scmp.lt.s32.totalorder %s16, 1
      %s203 = scalar_select %p202, %s16, 1
      %s204 = smul.addr %s203, 32
      %s205 = smul.addr %s204, 8
      %s206 = scalar_lea.vmem %s0, %s205
      %p207 = scmp.lt.s32.totalorder %s16, 1
      %s208 = scalar_select %p207, %s16, 1
      %s209 = smul.addr %s208, 32
      %s210 = smul.addr %s209, 8
      %s211 = scalar_lea.vmem %s2, %s210
      %p212 = scmp.lt.s32.totalorder %s16, 1
      %s213 = scalar_select %p212, %s16, 1
      %s214 = smul.addr %s213, 32
      %s215 = smul.addr %s214, 8
      %s216 = scalar_lea.vmem %s3, %s215
      %p217 = scmp.lt.s32.totalorder %s16, 1
      %s218 = scalar_select %p217, %s16, 1
      %s219 = smul.addr %s218, 4
      %s220 = scalar_lea.vmem %s4, %s219
      %v221 = vld [vmem:[%s206] sm:$0xff]
      %v222 = vld [vmem:[%s206 + $0x8] sm:$0xff]
      %v223 = vld [vmem:[%s206 + $0x10] sm:$0xff]
      %v224 = vld [vmem:[%s206 + $0x18] sm:$0xff]
      %v225 = vld [vmem:[%s206 + $0x20] sm:$0xff]
      %v226 = vld [vmem:[%s206 + $0x28] sm:$0xff]
      %v227 = vld [vmem:[%s206 + $0x30] sm:$0xff]
      %v228 = vld [vmem:[%s206 + $0x38] sm:$0xff]
      %v229 = vld [vmem:[%s206 + $0x40] sm:$0xff]
      %v230 = vld [vmem:[%s206 + $0x48] sm:$0xff]
      %v231 = vld [vmem:[%s206 + $0x50] sm:$0xff]
      %v232 = vld [vmem:[%s206 + $0x58] sm:$0xff]
      %v233 = vld [vmem:[%s206 + $0x60] sm:$0xff]
      %v234 = vld [vmem:[%s206 + $0x68] sm:$0xff]
      %v235 = vld [vmem:[%s206 + $0x70] sm:$0xff]
      %v236 = vld [vmem:[%s206 + $0x78] sm:$0xff]
      %v237 = vld [vmem:[%s206 + $0x80] sm:$0xff]
      %v238 = vld [vmem:[%s206 + $0x88] sm:$0xff]
      %v239 = vld [vmem:[%s206 + $0x90] sm:$0xff]
      %v240 = vld [vmem:[%s206 + $0x98] sm:$0xff]
      %v241 = vld [vmem:[%s206 + $0xa0] sm:$0xff]
      %v242 = vld [vmem:[%s206 + $0xa8] sm:$0xff]
      %v243 = vld [vmem:[%s206 + $0xb0] sm:$0xff]
      %v244 = vld [vmem:[%s206 + $0xb8] sm:$0xff]
      %v245 = vld [vmem:[%s206 + $0xc0] sm:$0xff]
      %v246 = vld [vmem:[%s206 + $0xc8] sm:$0xff]
      %v247 = vld [vmem:[%s206 + $0xd0] sm:$0xff]
      %v248 = vld [vmem:[%s206 + $0xd8] sm:$0xff]
      %v249 = vld [vmem:[%s206 + $0xe0] sm:$0xff]
      %v250 = vld [vmem:[%s206 + $0xe8] sm:$0xff]
      %v251 = vld [vmem:[%s206 + $0xf0] sm:$0xff]
      %v252 = vld [vmem:[%s206 + $0xf8] sm:$0xff]
      %vm253 = vcmask 31744
      %254 = vst.msk [vmem:[#allocation2] sm:$0xff] %vm253, %v221
      %255 = vst.msk [vmem:[#allocation2 + $0x8] sm:$0xff] %vm253, %v222
      %256 = vst.msk [vmem:[#allocation2 + $0x10] sm:$0xff] %vm253, %v223
      %257 = vst.msk [vmem:[#allocation2 + $0x18] sm:$0xff] %vm253, %v224
      %258 = vst.msk [vmem:[#allocation2 + $0x20] sm:$0xff] %vm253, %v225
      %259 = vst.msk [vmem:[#allocation2 + $0x28] sm:$0xff] %vm253, %v226
      %260 = vst.msk [vmem:[#allocation2 + $0x30] sm:$0xff] %vm253, %v227
      %261 = vst.msk [vmem:[#allocation2 + $0x38] sm:$0xff] %vm253, %v228
      %262 = vst.msk [vmem:[#allocation2 + $0x40] sm:$0xff] %vm253, %v229
      %263 = vst.msk [vmem:[#allocation2 + $0x48] sm:$0xff] %vm253, %v230
      %264 = vst.msk [vmem:[#allocation2 + $0x50] sm:$0xff] %vm253, %v231
      %265 = vst.msk [vmem:[#allocation2 + $0x58] sm:$0xff] %vm253, %v232
      %266 = vst.msk [vmem:[#allocation2 + $0x60] sm:$0xff] %vm253, %v233
      %267 = vst.msk [vmem:[#allocation2 + $0x68] sm:$0xff] %vm253, %v234
      %268 = vst.msk [vmem:[#allocation2 + $0x70] sm:$0xff] %vm253, %v235
      %269 = vst.msk [vmem:[#allocation2 + $0x78] sm:$0xff] %vm253, %v236
      %270 = vst.msk [vmem:[#allocation2 + $0x80] sm:$0xff] %vm253, %v237
      %271 = vst.msk [vmem:[#allocation2 + $0x88] sm:$0xff] %vm253, %v238
      %272 = vst.msk [vmem:[#allocation2 + $0x90] sm:$0xff] %vm253, %v239
      %273 = vst.msk [vmem:[#allocation2 + $0x98] sm:$0xff] %vm253, %v240
      %274 = vst.msk [vmem:[#allocation2 + $0xa0] sm:$0xff] %vm253, %v241
      %275 = vst.msk [vmem:[#allocation2 + $0xa8] sm:$0xff] %vm253, %v242
      %276 = vst.msk [vmem:[#allocation2 + $0xb0] sm:$0xff] %vm253, %v243
      %277 = vst.msk [vmem:[#allocation2 + $0xb8] sm:$0xff] %vm253, %v244
      %278 = vst.msk [vmem:[#allocation2 + $0xc0] sm:$0xff] %vm253, %v245
      %279 = vst.msk [vmem:[#allocation2 + $0xc8] sm:$0xff] %vm253, %v246
      %280 = vst.msk [vmem:[#allocation2 + $0xd0] sm:$0xff] %vm253, %v247
      %281 = vst.msk [vmem:[#allocation2 + $0xd8] sm:$0xff] %vm253, %v248
      %282 = vst.msk [vmem:[#allocation2 + $0xe0] sm:$0xff] %vm253, %v249
      %283 = vst.msk [vmem:[#allocation2 + $0xe8] sm:$0xff] %vm253, %v250
      %284 = vst.msk [vmem:[#allocation2 + $0xf0] sm:$0xff] %vm253, %v251
      %285 = vst.msk [vmem:[#allocation2 + $0xf8] sm:$0xff] %vm253, %v252
      %v286 = vld [vmem:[#allocation2] sm:$0xff]
      %v287 = vld [vmem:[#allocation2 + $0x8] sm:$0xff]
      %v288 = vld [vmem:[#allocation2 + $0x10] sm:$0xff]
      %v289 = vld [vmem:[#allocation2 + $0x18] sm:$0xff]
      %v290 = vld [vmem:[#allocation2 + $0x20] sm:$0xff]
      %v291 = vld [vmem:[#allocation2 + $0x28] sm:$0xff]
      %v292 = vld [vmem:[#allocation2 + $0x30] sm:$0xff]
      %v293 = vld [vmem:[#allocation2 + $0x38] sm:$0xff]
      %v294 = vld [vmem:[#allocation2 + $0x40] sm:$0xff]
      %v295 = vld [vmem:[#allocation2 + $0x48] sm:$0xff]
      %v296 = vld [vmem:[#allocation2 + $0x50] sm:$0xff]
      %v297 = vld [vmem:[#allocation2 + $0x58] sm:$0xff]
      %v298 = vld [vmem:[#allocation2 + $0x60] sm:$0xff]
      %v299 = vld [vmem:[#allocation2 + $0x68] sm:$0xff]
      %v300 = vld [vmem:[#allocation2 + $0x70] sm:$0xff]
      %v301 = vld [vmem:[#allocation2 + $0x78] sm:$0xff]
      %v302 = vld [vmem:[#allocation2 + $0x80] sm:$0xff]
      %v303 = vld [vmem:[#allocation2 + $0x88] sm:$0xff]
      %v304 = vld [vmem:[#allocation2 + $0x90] sm:$0xff]
      %v305 = vld [vmem:[#allocation2 + $0x98] sm:$0xff]
      %v306 = vld [vmem:[#allocation2 + $0xa0] sm:$0xff]
      %v307 = vld [vmem:[#allocation2 + $0xa8] sm:$0xff]
      %v308 = vld [vmem:[#allocation2 + $0xb0] sm:$0xff]
      %v309 = vld [vmem:[#allocation2 + $0xb8] sm:$0xff]
      %v310 = vld [vmem:[#allocation2 + $0xc0] sm:$0xff]
      %v311 = vld [vmem:[#allocation2 + $0xc8] sm:$0xff]
      %v312 = vld [vmem:[#allocation2 + $0xd0] sm:$0xff]
      %v313 = vld [vmem:[#allocation2 + $0xd8] sm:$0xff]
      %v314 = vld [vmem:[#allocation2 + $0xe0] sm:$0xff]
      %v315 = vld [vmem:[#allocation2 + $0xe8] sm:$0xff]
      %vm346 = vcmask 1040384
      %v347 = vrot.slane %v286, 7
      %v348 = vrot.slane %v287, 7
      %v349 = vsel %vm346, %v347, %v348
      %v350 = vrot.slane %v288, 7
      %v351 = vrot.slane %v289, 7
      %v352 = vsel %vm346, %v350, %v351
      %v353 = vrot.slane %v290, 7
      %v354 = vrot.slane %v291, 7
      %v355 = vsel %vm346, %v353, %v354
      %v356 = vrot.slane %v292, 7
      %v357 = vrot.slane %v293, 7
      %v358 = vsel %vm346, %v356, %v357
      %v359 = vrot.slane %v294, 7
      %v360 = vrot.slane %v295, 7
      %v361 = vsel %vm346, %v359, %v360
      %v362 = vrot.slane %v296, 7
      %v363 = vrot.slane %v297, 7
      %v364 = vsel %vm346, %v362, %v363
      %v365 = vrot.slane %v298, 7
      %v366 = vrot.slane %v299, 7
      %v367 = vsel %vm346, %v365, %v366
      %v368 = vrot.slane %v300, 7
      %v369 = vrot.slane %v301, 7
      %v370 = vsel %vm346, %v368, %v369
      %v371 = vrot.slane %v302, 7
      %v372 = vrot.slane %v303, 7
      %v373 = vsel %vm346, %v371, %v372
      %v374 = vrot.slane %v304, 7
      %v375 = vrot.slane %v305, 7
      %v376 = vsel %vm346, %v374, %v375
      %v377 = vrot.slane %v306, 7
      %v378 = vrot.slane %v307, 7
      %v379 = vsel %vm346, %v377, %v378
      %v380 = vrot.slane %v308, 7
      %v381 = vrot.slane %v309, 7
      %v382 = vsel %vm346, %v380, %v381
      %v383 = vrot.slane %v310, 7
      %v384 = vrot.slane %v311, 7
      %v385 = vsel %vm346, %v383, %v384
      %v386 = vrot.slane %v312, 7
      %v387 = vrot.slane %v313, 7
      %v388 = vsel %vm346, %v386, %v387
      %v389 = vrot.slane %v314, 7
      %v390 = vrot.slane %v315, 7
      %v391 = vsel %vm346, %v389, %v390
      %v422 = vsel %vm346, 0.0, %v347
      %v423 = vsel %vm346, 0.0, %v350
      %v424 = vsel %vm346, 0.0, %v353
      %v425 = vsel %vm346, 0.0, %v356
      %v426 = vsel %vm346, 0.0, %v359
      %v427 = vsel %vm346, 0.0, %v362
      %v428 = vsel %vm346, 0.0, %v365
      %v429 = vsel %vm346, 0.0, %v368
      %v430 = vsel %vm346, 0.0, %v371
      %v431 = vsel %vm346, 0.0, %v374
      %v432 = vsel %vm346, 0.0, %v377
      %v433 = vsel %vm346, 0.0, %v380
      %v434 = vsel %vm346, 0.0, %v383
      %v435 = vsel %vm346, 0.0, %v386
      %v436 = vsel %vm346, 0.0, %v389
      %s437 = scalar_lea.vmem [#allocation3], 16
      %438 = vst.msk [vmem:[%s437] sm:$0xff] %vm253, %v422
      %439 = vst.msk [vmem:[%s437 + $0x8] sm:$0xff] %vm253, %v349
      %440 = vst.msk [vmem:[%s437 + $0x10] sm:$0xff] %vm253, %v423
      %441 = vst.msk [vmem:[%s437 + $0x18] sm:$0xff] %vm253, %v352
      %442 = vst.msk [vmem:[%s437 + $0x20] sm:$0xff] %vm253, %v424
      %443 = vst.msk [vmem:[%s437 + $0x28] sm:$0xff] %vm253, %v355
      %444 = vst.msk [vmem:[%s437 + $0x30] sm:$0xff] %vm253, %v425
      %445 = vst.msk [vmem:[%s437 + $0x38] sm:$0xff] %vm253, %v358
      %446 = vst.msk [vmem:[%s437 + $0x40] sm:$0xff] %vm253, %v426
      %447 = vst.msk [vmem:[%s437 + $0x48] sm:$0xff] %vm253, %v361
      %448 = vst.msk [vmem:[%s437 + $0x50] sm:$0xff] %vm253, %v427
      %449 = vst.msk [vmem:[%s437 + $0x58] sm:$0xff] %vm253, %v364
      %450 = vst.msk [vmem:[%s437 + $0x60] sm:$0xff] %vm253, %v428
      %451 = vst.msk [vmem:[%s437 + $0x68] sm:$0xff] %vm253, %v367
      %452 = vst.msk [vmem:[%s437 + $0x70] sm:$0xff] %vm253, %v429
      %453 = vst.msk [vmem:[%s437 + $0x78] sm:$0xff] %vm253, %v370
      %454 = vst.msk [vmem:[%s437 + $0x80] sm:$0xff] %vm253, %v430
      %455 = vst.msk [vmem:[%s437 + $0x88] sm:$0xff] %vm253, %v373
      %456 = vst.msk [vmem:[%s437 + $0x90] sm:$0xff] %vm253, %v431
      %457 = vst.msk [vmem:[%s437 + $0x98] sm:$0xff] %vm253, %v376
      %458 = vst.msk [vmem:[%s437 + $0xa0] sm:$0xff] %vm253, %v432
      %459 = vst.msk [vmem:[%s437 + $0xa8] sm:$0xff] %vm253, %v379
      %460 = vst.msk [vmem:[%s437 + $0xb0] sm:$0xff] %vm253, %v433
      %461 = vst.msk [vmem:[%s437 + $0xb8] sm:$0xff] %vm253, %v382
      %462 = vst.msk [vmem:[%s437 + $0xc0] sm:$0xff] %vm253, %v434
      %463 = vst.msk [vmem:[%s437 + $0xc8] sm:$0xff] %vm253, %v385
      %464 = vst.msk [vmem:[%s437 + $0xd0] sm:$0xff] %vm253, %v435
      %465 = vst.msk [vmem:[%s437 + $0xd8] sm:$0xff] %vm253, %v388
      %466 = vst.msk [vmem:[%s437 + $0xe0] sm:$0xff] %vm253, %v436
      %467 = vst.msk [vmem:[%s437 + $0xe8] sm:$0xff] %vm253, %v391
      %468 = vrot.lane.b32.xlu0 %v286, 4
      %v469 = vpop.permute.xlu0 %468
      %470 = vrot.lane.b32.xlu0 %v287, 4
      %v471 = vpop.permute.xlu0 %470
      %472 = vrot.lane.b32.xlu0 %v288, 4
      %v473 = vpop.permute.xlu0 %472
      %474 = vrot.lane.b32.xlu0 %v289, 4
      %v475 = vpop.permute.xlu0 %474
      %476 = vrot.lane.b32.xlu0 %v290, 4
      %v477 = vpop.permute.xlu0 %476
      %478 = vrot.lane.b32.xlu0 %v291, 4
      %v479 = vpop.permute.xlu0 %478
      %480 = vrot.lane.b32.xlu0 %v292, 4
      %v481 = vpop.permute.xlu0 %480
      %482 = vrot.lane.b32.xlu0 %v293, 4
      %v483 = vpop.permute.xlu0 %482
      %484 = vrot.lane.b32.xlu0 %v294, 4
      %v485 = vpop.permute.xlu0 %484
      %486 = vrot.lane.b32.xlu0 %v295, 4
      %v487 = vpop.permute.xlu0 %486
      %488 = vrot.lane.b32.xlu0 %v296, 4
      %v489 = vpop.permute.xlu0 %488
      %490 = vrot.lane.b32.xlu0 %v297, 4
      %v491 = vpop.permute.xlu0 %490
      %492 = vrot.lane.b32.xlu0 %v298, 4
      %v493 = vpop.permute.xlu0 %492
      %494 = vrot.lane.b32.xlu0 %v299, 4
      %v495 = vpop.permute.xlu0 %494
      %496 = vrot.lane.b32.xlu0 %v300, 4
      %v497 = vpop.permute.xlu0 %496
      %498 = vrot.lane.b32.xlu0 %v301, 4
      %v499 = vpop.permute.xlu0 %498
      %500 = vrot.lane.b32.xlu0 %v302, 4
      %v501 = vpop.permute.xlu0 %500
      %502 = vrot.lane.b32.xlu0 %v303, 4
      %v503 = vpop.permute.xlu0 %502
      %504 = vrot.lane.b32.xlu0 %v304, 4
      %v505 = vpop.permute.xlu0 %504
      %506 = vrot.lane.b32.xlu0 %v305, 4
      %v507 = vpop.permute.xlu0 %506
      %508 = vrot.lane.b32.xlu0 %v306, 4
      %v509 = vpop.permute.xlu0 %508
      %510 = vrot.lane.b32.xlu0 %v307, 4
      %v511 = vpop.permute.xlu0 %510
      %512 = vrot.lane.b32.xlu0 %v308, 4
      %v513 = vpop.permute.xlu0 %512
      %514 = vrot.lane.b32.xlu0 %v309, 4
      %v515 = vpop.permute.xlu0 %514
      %516 = vrot.lane.b32.xlu0 %v310, 4
      %v517 = vpop.permute.xlu0 %516
      %518 = vrot.lane.b32.xlu0 %v311, 4
      %v519 = vpop.permute.xlu0 %518
      %520 = vrot.lane.b32.xlu0 %v312, 4
      %v521 = vpop.permute.xlu0 %520
      %522 = vrot.lane.b32.xlu0 %v313, 4
      %v523 = vpop.permute.xlu0 %522
      %524 = vrot.lane.b32.xlu0 %v314, 4
      %v525 = vpop.permute.xlu0 %524
      %526 = vrot.lane.b32.xlu0 %v315, 4
      %v527 = vpop.permute.xlu0 %526
      %vm558 = vcmask 64544
      %559 = vst.msk [vmem:[%s437] sm:$0xff] %vm558, %v469
      %560 = vst.msk [vmem:[%s437 + $0x8] sm:$0xff] %vm558, %v471
      %561 = vst.msk [vmem:[%s437 + $0x10] sm:$0xff] %vm558, %v473
      %562 = vst.msk [vmem:[%s437 + $0x18] sm:$0xff] %vm558, %v475
      %563 = vst.msk [vmem:[%s437 + $0x20] sm:$0xff] %vm558, %v477
      %564 = vst.msk [vmem:[%s437 + $0x28] sm:$0xff] %vm558, %v479
      %565 = vst.msk [vmem:[%s437 + $0x30] sm:$0xff] %vm558, %v481
      %566 = vst.msk [vmem:[%s437 + $0x38] sm:$0xff] %vm558, %v483
      %567 = vst.msk [vmem:[%s437 + $0x40] sm:$0xff] %vm558, %v485
      %568 = vst.msk [vmem:[%s437 + $0x48] sm:$0xff] %vm558, %v487
      %569 = vst.msk [vmem:[%s437 + $0x50] sm:$0xff] %vm558, %v489
      %570 = vst.msk [vmem:[%s437 + $0x58] sm:$0xff] %vm558, %v491
      %571 = vst.msk [vmem:[%s437 + $0x60] sm:$0xff] %vm558, %v493
      %572 = vst.msk [vmem:[%s437 + $0x68] sm:$0xff] %vm558, %v495
      %573 = vst.msk [vmem:[%s437 + $0x70] sm:$0xff] %vm558, %v497
      %574 = vst.msk [vmem:[%s437 + $0x78] sm:$0xff] %vm558, %v499
      %575 = vst.msk [vmem:[%s437 + $0x80] sm:$0xff] %vm558, %v501
      %576 = vst.msk [vmem:[%s437 + $0x88] sm:$0xff] %vm558, %v503
      %577 = vst.msk [vmem:[%s437 + $0x90] sm:$0xff] %vm558, %v505
      %578 = vst.msk [vmem:[%s437 + $0x98] sm:$0xff] %vm558, %v507
      %579 = vst.msk [vmem:[%s437 + $0xa0] sm:$0xff] %vm558, %v509
      %580 = vst.msk [vmem:[%s437 + $0xa8] sm:$0xff] %vm558, %v511
      %581 = vst.msk [vmem:[%s437 + $0xb0] sm:$0xff] %vm558, %v513
      %582 = vst.msk [vmem:[%s437 + $0xb8] sm:$0xff] %vm558, %v515
      %583 = vst.msk [vmem:[%s437 + $0xc0] sm:$0xff] %vm558, %v517
      %584 = vst.msk [vmem:[%s437 + $0xc8] sm:$0xff] %vm558, %v519
      %585 = vst.msk [vmem:[%s437 + $0xd0] sm:$0xff] %vm558, %v521
      %586 = vst.msk [vmem:[%s437 + $0xd8] sm:$0xff] %vm558, %v523
      %587 = vst.msk [vmem:[%s437 + $0xe0] sm:$0xff] %vm558, %v525
      %588 = vst.msk [vmem:[%s437 + $0xe8] sm:$0xff] %vm558, %v527
      %vm589 = vcmask 1046528
      %v590 = vrot.slane %v286, 1
      %v591 = vrot.slane %v287, 1
      %v592 = vsel %vm589, %v590, %v591
      %v593 = vrot.slane %v288, 1
      %v594 = vrot.slane %v289, 1
      %v595 = vsel %vm589, %v593, %v594
      %v596 = vrot.slane %v290, 1
      %v597 = vrot.slane %v291, 1
      %v598 = vsel %vm589, %v596, %v597
      %v599 = vrot.slane %v292, 1
      %v600 = vrot.slane %v293, 1
      %v601 = vsel %vm589, %v599, %v600
      %v602 = vrot.slane %v294, 1
      %v603 = vrot.slane %v295, 1
      %v604 = vsel %vm589, %v602, %v603
      %v605 = vrot.slane %v296, 1
      %v606 = vrot.slane %v297, 1
      %v607 = vsel %vm589, %v605, %v606
      %v608 = vrot.slane %v298, 1
      %v609 = vrot.slane %v299, 1
      %v610 = vsel %vm589, %v608, %v609
      %v611 = vrot.slane %v300, 1
      %v612 = vrot.slane %v301, 1
      %v613 = vsel %vm589, %v611, %v612
      %v614 = vrot.slane %v302, 1
      %v615 = vrot.slane %v303, 1
      %v616 = vsel %vm589, %v614, %v615
      %v617 = vrot.slane %v304, 1
      %v618 = vrot.slane %v305, 1
      %v619 = vsel %vm589, %v617, %v618
      %v620 = vrot.slane %v306, 1
      %v621 = vrot.slane %v307, 1
      %v622 = vsel %vm589, %v620, %v621
      %v623 = vrot.slane %v308, 1
      %v624 = vrot.slane %v309, 1
      %v625 = vsel %vm589, %v623, %v624
      %v626 = vrot.slane %v310, 1
      %v627 = vrot.slane %v311, 1
      %v628 = vsel %vm589, %v626, %v627
      %v629 = vrot.slane %v312, 1
      %v630 = vrot.slane %v313, 1
      %v631 = vsel %vm589, %v629, %v630
      %v632 = vrot.slane %v314, 1
      %v633 = vrot.slane %v315, 1
      %v634 = vsel %vm589, %v632, %v633
      %v650 = vsel %vm589, %v591, 0.0
      %v651 = vsel %vm589, %v594, 0.0
      %v652 = vsel %vm589, %v597, 0.0
      %v653 = vsel %vm589, %v600, 0.0
      %v654 = vsel %vm589, %v603, 0.0
      %v655 = vsel %vm589, %v606, 0.0
      %v656 = vsel %vm589, %v609, 0.0
      %v657 = vsel %vm589, %v612, 0.0
      %v658 = vsel %vm589, %v615, 0.0
      %v659 = vsel %vm589, %v618, 0.0
      %v660 = vsel %vm589, %v621, 0.0
      %v661 = vsel %vm589, %v624, 0.0
      %v662 = vsel %vm589, %v627, 0.0
      %v663 = vsel %vm589, %v630, 0.0
      %v664 = vsel %vm589, %v633, 0.0
      %680 = vrot.lane.b32.xlu0 %v592, 8
      %v681 = vpop.permute.xlu0 %680
      %682 = vrot.lane.b32.xlu0 %v650, 8
      %v683 = vpop.permute.xlu0 %682
      %684 = vrot.lane.b32.xlu0 %v595, 8
      %v685 = vpop.permute.xlu0 %684
      %686 = vrot.lane.b32.xlu0 %v651, 8
      %v687 = vpop.permute.xlu0 %686
      %688 = vrot.lane.b32.xlu0 %v598, 8
      %v689 = vpop.permute.xlu0 %688
      %690 = vrot.lane.b32.xlu0 %v652, 8
      %v691 = vpop.permute.xlu0 %690
      %692 = vrot.lane.b32.xlu0 %v601, 8
      %v693 = vpop.permute.xlu0 %692
      %694 = vrot.lane.b32.xlu0 %v653, 8
      %v695 = vpop.permute.xlu0 %694
      %696 = vrot.lane.b32.xlu0 %v604, 8
      %v697 = vpop.permute.xlu0 %696
      %698 = vrot.lane.b32.xlu0 %v654, 8
      %v699 = vpop.permute.xlu0 %698
      %700 = vrot.lane.b32.xlu0 %v607, 8
      %v701 = vpop.permute.xlu0 %700
      %702 = vrot.lane.b32.xlu0 %v655, 8
      %v703 = vpop.permute.xlu0 %702
      %704 = vrot.lane.b32.xlu0 %v610, 8
      %v705 = vpop.permute.xlu0 %704
      %706 = vrot.lane.b32.xlu0 %v656, 8
      %v707 = vpop.permute.xlu0 %706
      %708 = vrot.lane.b32.xlu0 %v613, 8
      %v709 = vpop.permute.xlu0 %708
      %710 = vrot.lane.b32.xlu0 %v657, 8
      %v711 = vpop.permute.xlu0 %710
      %712 = vrot.lane.b32.xlu0 %v616, 8
      %v713 = vpop.permute.xlu0 %712
      %714 = vrot.lane.b32.xlu0 %v658, 8
      %v715 = vpop.permute.xlu0 %714
      %716 = vrot.lane.b32.xlu0 %v619, 8
      %v717 = vpop.permute.xlu0 %716
      %718 = vrot.lane.b32.xlu0 %v659, 8
      %v719 = vpop.permute.xlu0 %718
      %720 = vrot.lane.b32.xlu0 %v622, 8
      %v721 = vpop.permute.xlu0 %720
      %722 = vrot.lane.b32.xlu0 %v660, 8
      %v723 = vpop.permute.xlu0 %722
      %724 = vrot.lane.b32.xlu0 %v625, 8
      %v725 = vpop.permute.xlu0 %724
      %726 = vrot.lane.b32.xlu0 %v661, 8
      %v727 = vpop.permute.xlu0 %726
      %728 = vrot.lane.b32.xlu0 %v628, 8
      %v729 = vpop.permute.xlu0 %728
      %730 = vrot.lane.b32.xlu0 %v662, 8
      %v731 = vpop.permute.xlu0 %730
      %732 = vrot.lane.b32.xlu0 %v631, 8
      %v733 = vpop.permute.xlu0 %732
      %734 = vrot.lane.b32.xlu0 %v663, 8
      %v735 = vpop.permute.xlu0 %734
      %736 = vrot.lane.b32.xlu0 %v634, 8
      %v737 = vpop.permute.xlu0 %736
      %738 = vrot.lane.b32.xlu0 %v664, 8
      %v739 = vpop.permute.xlu0 %738
      %vm770 = vcmask 97344
      %771 = vst.msk [vmem:[%s437] sm:$0xff] %vm770, %v681
      %772 = vst.msk [vmem:[%s437 + $0x8] sm:$0xff] %vm770, %v683
      %773 = vst.msk [vmem:[%s437 + $0x10] sm:$0xff] %vm770, %v685
      %774 = vst.msk [vmem:[%s437 + $0x18] sm:$0xff] %vm770, %v687
      %775 = vst.msk [vmem:[%s437 + $0x20] sm:$0xff] %vm770, %v689
      %776 = vst.msk [vmem:[%s437 + $0x28] sm:$0xff] %vm770, %v691
      %777 = vst.msk [vmem:[%s437 + $0x30] sm:$0xff] %vm770, %v693
      %778 = vst.msk [vmem:[%s437 + $0x38] sm:$0xff] %vm770, %v695
      %779 = vst.msk [vmem:[%s437 + $0x40] sm:$0xff] %vm770, %v697
      %780 = vst.msk [vmem:[%s437 + $0x48] sm:$0xff] %vm770, %v699
      %781 = vst.msk [vmem:[%s437 + $0x50] sm:$0xff] %vm770, %v701
      %782 = vst.msk [vmem:[%s437 + $0x58] sm:$0xff] %vm770, %v703
      %783 = vst.msk [vmem:[%s437 + $0x60] sm:$0xff] %vm770, %v705
      %784 = vst.msk [vmem:[%s437 + $0x68] sm:$0xff] %vm770, %v707
      %785 = vst.msk [vmem:[%s437 + $0x70] sm:$0xff] %vm770, %v709
      %786 = vst.msk [vmem:[%s437 + $0x78] sm:$0xff] %vm770, %v711
      %787 = vst.msk [vmem:[%s437 + $0x80] sm:$0xff] %vm770, %v713
      %788 = vst.msk [vmem:[%s437 + $0x88] sm:$0xff] %vm770, %v715
      %789 = vst.msk [vmem:[%s437 + $0x90] sm:$0xff] %vm770, %v717
      %790 = vst.msk [vmem:[%s437 + $0x98] sm:$0xff] %vm770, %v719
      %791 = vst.msk [vmem:[%s437 + $0xa0] sm:$0xff] %vm770, %v721
      %792 = vst.msk [vmem:[%s437 + $0xa8] sm:$0xff] %vm770, %v723
      %793 = vst.msk [vmem:[%s437 + $0xb0] sm:$0xff] %vm770, %v725
      %794 = vst.msk [vmem:[%s437 + $0xb8] sm:$0xff] %vm770, %v727
      %795 = vst.msk [vmem:[%s437 + $0xc0] sm:$0xff] %vm770, %v729
      %796 = vst.msk [vmem:[%s437 + $0xc8] sm:$0xff] %vm770, %v731
      %797 = vst.msk [vmem:[%s437 + $0xd0] sm:$0xff] %vm770, %v733
      %798 = vst.msk [vmem:[%s437 + $0xd8] sm:$0xff] %vm770, %v735
      %799 = vst.msk [vmem:[%s437 + $0xe0] sm:$0xff] %vm770, %v737
      %800 = vst.msk [vmem:[%s437 + $0xe8] sm:$0xff] %vm770, %v739
      %vm801 = vcmask 97280
      %802 = vst.msk [vmem:[#allocation3] sm:$0xff] %vm801, 0.0
      %803 = vst.msk [vmem:[#allocation3 + $0x8] sm:$0xff] %vm801, 0.0
      %v804 = vld [vmem:[#allocation2] sm:$0xff]
      %v805 = vld [vmem:[#allocation2 + $0x8] sm:$0xff]
      %v806 = vld [vmem:[#allocation2 + $0x10] sm:$0xff]
      %v807 = vld [vmem:[#allocation2 + $0x18] sm:$0xff]
      %v808 = vld [vmem:[#allocation2 + $0x20] sm:$0xff]
      %v809 = vld [vmem:[#allocation2 + $0x28] sm:$0xff]
      %v810 = vld [vmem:[#allocation2 + $0x30] sm:$0xff]
      %v811 = vld [vmem:[#allocation2 + $0x38] sm:$0xff]
      %v812 = vld [vmem:[#allocation2 + $0x40] sm:$0xff]
      %v813 = vld [vmem:[#allocation2 + $0x48] sm:$0xff]
      %v814 = vld [vmem:[#allocation2 + $0x50] sm:$0xff]
      %v815 = vld [vmem:[#allocation2 + $0x58] sm:$0xff]
      %v816 = vld [vmem:[#allocation2 + $0x60] sm:$0xff]
      %v817 = vld [vmem:[#allocation2 + $0x68] sm:$0xff]
      %v818 = vld [vmem:[#allocation2 + $0x70] sm:$0xff]
      %v819 = vld [vmem:[#allocation2 + $0x78] sm:$0xff]
      %v820 = vld [vmem:[#allocation2 + $0x80] sm:$0xff]
      %v821 = vld [vmem:[#allocation2 + $0x88] sm:$0xff]
      %v822 = vld [vmem:[#allocation2 + $0x90] sm:$0xff]
      %v823 = vld [vmem:[#allocation2 + $0x98] sm:$0xff]
      %v824 = vld [vmem:[#allocation2 + $0xa0] sm:$0xff]
      %v825 = vld [vmem:[#allocation2 + $0xa8] sm:$0xff]
      %v826 = vld [vmem:[#allocation2 + $0xb0] sm:$0xff]
      %v827 = vld [vmem:[#allocation2 + $0xb8] sm:$0xff]
      %v828 = vld [vmem:[#allocation2 + $0xc0] sm:$0xff]
      %v829 = vld [vmem:[#allocation2 + $0xc8] sm:$0xff]
      %v830 = vld [vmem:[#allocation2 + $0xd0] sm:$0xff]
      %v831 = vld [vmem:[#allocation2 + $0xd8] sm:$0xff]
      %v832 = vld [vmem:[#allocation2 + $0xe0] sm:$0xff]
      %v833 = vld [vmem:[#allocation2 + $0xe8] sm:$0xff]
      %v834 = vld [vmem:[#allocation2 + $0xf0] sm:$0xff]
      %v835 = vld [vmem:[#allocation2 + $0xf8] sm:$0xff]
      %v868 = vrot.slane %v804, 7
      %v869 = vrot.slane %v805, 7
      %v870 = vsel %vm346, %v868, %v869
      %v871 = vrot.slane %v806, 7
      %v872 = vrot.slane %v807, 7
      %v873 = vsel %vm346, %v871, %v872
      %v874 = vrot.slane %v808, 7
      %v875 = vrot.slane %v809, 7
      %v876 = vsel %vm346, %v874, %v875
      %v877 = vrot.slane %v810, 7
      %v878 = vrot.slane %v811, 7
      %v879 = vsel %vm346, %v877, %v878
      %v880 = vrot.slane %v812, 7
      %v881 = vrot.slane %v813, 7
      %v882 = vsel %vm346, %v880, %v881
      %v883 = vrot.slane %v814, 7
      %v884 = vrot.slane %v815, 7
      %v885 = vsel %vm346, %v883, %v884
      %v886 = vrot.slane %v816, 7
      %v887 = vrot.slane %v817, 7
      %v888 = vsel %vm346, %v886, %v887
      %v889 = vrot.slane %v818, 7
      %v890 = vrot.slane %v819, 7
      %v891 = vsel %vm346, %v889, %v890
      %v892 = vrot.slane %v820, 7
      %v893 = vrot.slane %v821, 7
      %v894 = vsel %vm346, %v892, %v893
      %v895 = vrot.slane %v822, 7
      %v896 = vrot.slane %v823, 7
      %v897 = vsel %vm346, %v895, %v896
      %v898 = vrot.slane %v824, 7
      %v899 = vrot.slane %v825, 7
      %v900 = vsel %vm346, %v898, %v899
      %v901 = vrot.slane %v826, 7
      %v902 = vrot.slane %v827, 7
      %v903 = vsel %vm346, %v901, %v902
      %v904 = vrot.slane %v828, 7
      %v905 = vrot.slane %v829, 7
      %v906 = vsel %vm346, %v904, %v905
      %v907 = vrot.slane %v830, 7
      %v908 = vrot.slane %v831, 7
      %v909 = vsel %vm346, %v907, %v908
      %v910 = vrot.slane %v832, 7
      %v911 = vrot.slane %v833, 7
      %v912 = vsel %vm346, %v910, %v911
      %v913 = vrot.slane %v834, 7
      %v914 = vrot.slane %v835, 7
      %v915 = vsel %vm346, %v913, %v914
      %v932 = vsel %vm346, 0.0, %v868
      %v933 = vsel %vm346, 0.0, %v871
      %v934 = vsel %vm346, 0.0, %v874
      %v935 = vsel %vm346, 0.0, %v877
      %v936 = vsel %vm346, 0.0, %v880
      %v937 = vsel %vm346, 0.0, %v883
      %v938 = vsel %vm346, 0.0, %v886
      %v939 = vsel %vm346, 0.0, %v889
      %v940 = vsel %vm346, 0.0, %v892
      %v941 = vsel %vm346, 0.0, %v895
      %v942 = vsel %vm346, 0.0, %v898
      %v943 = vsel %vm346, 0.0, %v901
      %v944 = vsel %vm346, 0.0, %v904
      %v945 = vsel %vm346, 0.0, %v907
      %v946 = vsel %vm346, 0.0, %v910
      %v947 = vsel %vm346, 0.0, %v913
      %964 = vrot.lane.b32.xlu0 %v932, 12
      %v965 = vpop.permute.xlu0 %964
      %966 = vrot.lane.b32.xlu0 %v870, 12
      %v967 = vpop.permute.xlu0 %966
      %968 = vrot.lane.b32.xlu0 %v933, 12
      %v969 = vpop.permute.xlu0 %968
      %970 = vrot.lane.b32.xlu0 %v873, 12
      %v971 = vpop.permute.xlu0 %970
      %972 = vrot.lane.b32.xlu0 %v934, 12
      %v973 = vpop.permute.xlu0 %972
      %974 = vrot.lane.b32.xlu0 %v876, 12
      %v975 = vpop.permute.xlu0 %974
      %976 = vrot.lane.b32.xlu0 %v935, 12
      %v977 = vpop.permute.xlu0 %976
      %978 = vrot.lane.b32.xlu0 %v879, 12
      %v979 = vpop.permute.xlu0 %978
      %980 = vrot.lane.b32.xlu0 %v936, 12
      %v981 = vpop.permute.xlu0 %980
      %982 = vrot.lane.b32.xlu0 %v882, 12
      %v983 = vpop.permute.xlu0 %982
      %984 = vrot.lane.b32.xlu0 %v937, 12
      %v985 = vpop.permute.xlu0 %984
      %986 = vrot.lane.b32.xlu0 %v885, 12
      %v987 = vpop.permute.xlu0 %986
      %988 = vrot.lane.b32.xlu0 %v938, 12
      %v989 = vpop.permute.xlu0 %988
      %990 = vrot.lane.b32.xlu0 %v888, 12
      %v991 = vpop.permute.xlu0 %990
      %992 = vrot.lane.b32.xlu0 %v939, 12
      %v993 = vpop.permute.xlu0 %992
      %994 = vrot.lane.b32.xlu0 %v891, 12
      %v995 = vpop.permute.xlu0 %994
      %996 = vrot.lane.b32.xlu0 %v940, 12
      %v997 = vpop.permute.xlu0 %996
      %998 = vrot.lane.b32.xlu0 %v894, 12
      %v999 = vpop.permute.xlu0 %998
      %1000 = vrot.lane.b32.xlu0 %v941, 12
      %v1001 = vpop.permute.xlu0 %1000
      %1002 = vrot.lane.b32.xlu0 %v897, 12
      %v1003 = vpop.permute.xlu0 %1002
      %1004 = vrot.lane.b32.xlu0 %v942, 12
      %v1005 = vpop.permute.xlu0 %1004
      %1006 = vrot.lane.b32.xlu0 %v900, 12
      %v1007 = vpop.permute.xlu0 %1006
      %1008 = vrot.lane.b32.xlu0 %v943, 12
      %v1009 = vpop.permute.xlu0 %1008
      %1010 = vrot.lane.b32.xlu0 %v903, 12
      %v1011 = vpop.permute.xlu0 %1010
      %1012 = vrot.lane.b32.xlu0 %v944, 12
      %v1013 = vpop.permute.xlu0 %1012
      %1014 = vrot.lane.b32.xlu0 %v906, 12
      %v1015 = vpop.permute.xlu0 %1014
      %1016 = vrot.lane.b32.xlu0 %v945, 12
      %v1017 = vpop.permute.xlu0 %1016
      %1018 = vrot.lane.b32.xlu0 %v909, 12
      %v1019 = vpop.permute.xlu0 %1018
      %1020 = vrot.lane.b32.xlu0 %v946, 12
      %v1021 = vpop.permute.xlu0 %1020
      %1022 = vrot.lane.b32.xlu0 %v912, 12
      %v1023 = vpop.permute.xlu0 %1022
      %1024 = vrot.lane.b32.xlu0 %v947, 12
      %v1025 = vpop.permute.xlu0 %1024
      %1026 = vrot.lane.b32.xlu0 %v915, 12
      %v1027 = vpop.permute.xlu0 %1026
      %vm1060 = vcmask 130144
      %1061 = vst.msk [vmem:[#allocation3] sm:$0xff] %vm1060, %v965
      %1062 = vst.msk [vmem:[#allocation3 + $0x8] sm:$0xff] %vm1060, %v967
      %1063 = vst.msk [vmem:[#allocation3 + $0x10] sm:$0xff] %vm1060, %v969
      %1064 = vst.msk [vmem:[#allocation3 + $0x18] sm:$0xff] %vm1060, %v971
      %1065 = vst.msk [vmem:[#allocation3 + $0x20] sm:$0xff] %vm1060, %v973
      %1066 = vst.msk [vmem:[#allocation3 + $0x28] sm:$0xff] %vm1060, %v975
      %1067 = vst.msk [vmem:[#allocation3 + $0x30] sm:$0xff] %vm1060, %v977
      %1068 = vst.msk [vmem:[#allocation3 + $0x38] sm:$0xff] %vm1060, %v979
      %1069 = vst.msk [vmem:[#allocation3 + $0x40] sm:$0xff] %vm1060, %v981
      %1070 = vst.msk [vmem:[#allocation3 + $0x48] sm:$0xff] %vm1060, %v983
      %1071 = vst.msk [vmem:[#allocation3 + $0x50] sm:$0xff] %vm1060, %v985
      %1072 = vst.msk [vmem:[#allocation3 + $0x58] sm:$0xff] %vm1060, %v987
      %1073 = vst.msk [vmem:[#allocation3 + $0x60] sm:$0xff] %vm1060, %v989
      %1074 = vst.msk [vmem:[#allocation3 + $0x68] sm:$0xff] %vm1060, %v991
      %1075 = vst.msk [vmem:[#allocation3 + $0x70] sm:$0xff] %vm1060, %v993
      %1076 = vst.msk [vmem:[#allocation3 + $0x78] sm:$0xff] %vm1060, %v995
      %1077 = vst.msk [vmem:[#allocation3 + $0x80] sm:$0xff] %vm1060, %v997
      %1078 = vst.msk [vmem:[#allocation3 + $0x88] sm:$0xff] %vm1060, %v999
      %1079 = vst.msk [vmem:[#allocation3 + $0x90] sm:$0xff] %vm1060, %v1001
      %1080 = vst.msk [vmem:[#allocation3 + $0x98] sm:$0xff] %vm1060, %v1003
      %1081 = vst.msk [vmem:[#allocation3 + $0xa0] sm:$0xff] %vm1060, %v1005
      %1082 = vst.msk [vmem:[#allocation3 + $0xa8] sm:$0xff] %vm1060, %v1007
      %1083 = vst.msk [vmem:[#allocation3 + $0xb0] sm:$0xff] %vm1060, %v1009
      %1084 = vst.msk [vmem:[#allocation3 + $0xb8] sm:$0xff] %vm1060, %v1011
      %1085 = vst.msk [vmem:[#allocation3 + $0xc0] sm:$0xff] %vm1060, %v1013
      %1086 = vst.msk [vmem:[#allocation3 + $0xc8] sm:$0xff] %vm1060, %v1015
      %1087 = vst.msk [vmem:[#allocation3 + $0xd0] sm:$0xff] %vm1060, %v1017
      %1088 = vst.msk [vmem:[#allocation3 + $0xd8] sm:$0xff] %vm1060, %v1019
      %1089 = vst.msk [vmem:[#allocation3 + $0xe0] sm:$0xff] %vm1060, %v1021
      %1090 = vst.msk [vmem:[#allocation3 + $0xe8] sm:$0xff] %vm1060, %v1023
      %1091 = vst.msk [vmem:[#allocation3 + $0xf0] sm:$0xff] %vm1060, %v1025
      %1092 = vst.msk [vmem:[#allocation3 + $0xf8] sm:$0xff] %vm1060, %v1027
      %1093 = vrot.lane.b32.xlu0 %v804, 16
      %v1094 = vpop.permute.xlu0 %1093
      %1095 = vrot.lane.b32.xlu0 %v805, 16
      %v1096 = vpop.permute.xlu0 %1095
      %1097 = vrot.lane.b32.xlu0 %v806, 16
      %v1098 = vpop.permute.xlu0 %1097
      %1099 = vrot.lane.b32.xlu0 %v807, 16
      %v1100 = vpop.permute.xlu0 %1099
      %1101 = vrot.lane.b32.xlu0 %v808, 16
      %v1102 = vpop.permute.xlu0 %1101
      %1103 = vrot.lane.b32.xlu0 %v809, 16
      %v1104 = vpop.permute.xlu0 %1103
      %1105 = vrot.lane.b32.xlu0 %v810, 16
      %v1106 = vpop.permute.xlu0 %1105
      %1107 = vrot.lane.b32.xlu0 %v811, 16
      %v1108 = vpop.permute.xlu0 %1107
      %1109 = vrot.lane.b32.xlu0 %v812, 16
      %v1110 = vpop.permute.xlu0 %1109
      %1111 = vrot.lane.b32.xlu0 %v813, 16
      %v1112 = vpop.permute.xlu0 %1111
      %1113 = vrot.lane.b32.xlu0 %v814, 16
      %v1114 = vpop.permute.xlu0 %1113
      %1115 = vrot.lane.b32.xlu0 %v815, 16
      %v1116 = vpop.permute.xlu0 %1115
      %1117 = vrot.lane.b32.xlu0 %v816, 16
      %v1118 = vpop.permute.xlu0 %1117
      %1119 = vrot.lane.b32.xlu0 %v817, 16
      %v1120 = vpop.permute.xlu0 %1119
      %1121 = vrot.lane.b32.xlu0 %v818, 16
      %v1122 = vpop.permute.xlu0 %1121
      %1123 = vrot.lane.b32.xlu0 %v819, 16
      %v1124 = vpop.permute.xlu0 %1123
      %1125 = vrot.lane.b32.xlu0 %v820, 16
      %v1126 = vpop.permute.xlu0 %1125
      %1127 = vrot.lane.b32.xlu0 %v821, 16
      %v1128 = vpop.permute.xlu0 %1127
      %1129 = vrot.lane.b32.xlu0 %v822, 16
      %v1130 = vpop.permute.xlu0 %1129
      %1131 = vrot.lane.b32.xlu0 %v823, 16
      %v1132 = vpop.permute.xlu0 %1131
      %1133 = vrot.lane.b32.xlu0 %v824, 16
      %v1134 = vpop.permute.xlu0 %1133
      %1135 = vrot.lane.b32.xlu0 %v825, 16
      %v1136 = vpop.permute.xlu0 %1135
      %1137 = vrot.lane.b32.xlu0 %v826, 16
      %v1138 = vpop.permute.xlu0 %1137
      %1139 = vrot.lane.b32.xlu0 %v827, 16
      %v1140 = vpop.permute.xlu0 %1139
      %1141 = vrot.lane.b32.xlu0 %v828, 16
      %v1142 = vpop.permute.xlu0 %1141
      %1143 = vrot.lane.b32.xlu0 %v829, 16
      %v1144 = vpop.permute.xlu0 %1143
      %1145 = vrot.lane.b32.xlu0 %v830, 16
      %v1146 = vpop.permute.xlu0 %1145
      %1147 = vrot.lane.b32.xlu0 %v831, 16
      %v1148 = vpop.permute.xlu0 %1147
      %1149 = vrot.lane.b32.xlu0 %v832, 16
      %v1150 = vpop.permute.xlu0 %1149
      %1151 = vrot.lane.b32.xlu0 %v833, 16
      %v1152 = vpop.permute.xlu0 %1151
      %1153 = vrot.lane.b32.xlu0 %v834, 16
      %v1154 = vpop.permute.xlu0 %1153
      %1155 = vrot.lane.b32.xlu0 %v835, 16
      %v1156 = vpop.permute.xlu0 %1155
      %vm1189 = vcmask 162944
      %1190 = vst.msk [vmem:[#allocation3] sm:$0xff] %vm1189, %v1094
      %1191 = vst.msk [vmem:[#allocation3 + $0x8] sm:$0xff] %vm1189, %v1096
      %1192 = vst.msk [vmem:[#allocation3 + $0x10] sm:$0xff] %vm1189, %v1098
      %1193 = vst.msk [vmem:[#allocation3 + $0x18] sm:$0xff] %vm1189, %v1100
      %1194 = vst.msk [vmem:[#allocation3 + $0x20] sm:$0xff] %vm1189, %v1102
      %1195 = vst.msk [vmem:[#allocation3 + $0x28] sm:$0xff] %vm1189, %v1104
      %1196 = vst.msk [vmem:[#allocation3 + $0x30] sm:$0xff] %vm1189, %v1106
      %1197 = vst.msk [vmem:[#allocation3 + $0x38] sm:$0xff] %vm1189, %v1108
      %1198 = vst.msk [vmem:[#allocation3 + $0x40] sm:$0xff] %vm1189, %v1110
      %1199 = vst.msk [vmem:[#allocation3 + $0x48] sm:$0xff] %vm1189, %v1112
      %1200 = vst.msk [vmem:[#allocation3 + $0x50] sm:$0xff] %vm1189, %v1114
      %1201 = vst.msk [vmem:[#allocation3 + $0x58] sm:$0xff] %vm1189, %v1116
      %1202 = vst.msk [vmem:[#allocation3 + $0x60] sm:$0xff] %vm1189, %v1118
      %1203 = vst.msk [vmem:[#allocation3 + $0x68] sm:$0xff] %vm1189, %v1120
      %1204 = vst.msk [vmem:[#allocation3 + $0x70] sm:$0xff] %vm1189, %v1122
      %1205 = vst.msk [vmem:[#allocation3 + $0x78] sm:$0xff] %vm1189, %v1124
      %1206 = vst.msk [vmem:[#allocation3 + $0x80] sm:$0xff] %vm1189, %v1126
      %1207 = vst.msk [vmem:[#allocation3 + $0x88] sm:$0xff] %vm1189, %v1128
      %1208 = vst.msk [vmem:[#allocation3 + $0x90] sm:$0xff] %vm1189, %v1130
      %1209 = vst.msk [vmem:[#allocation3 + $0x98] sm:$0xff] %vm1189, %v1132
      %1210 = vst.msk [vmem:[#allocation3 + $0xa0] sm:$0xff] %vm1189, %v1134
      %1211 = vst.msk [vmem:[#allocation3 + $0xa8] sm:$0xff] %vm1189, %v1136
      %1212 = vst.msk [vmem:[#allocation3 + $0xb0] sm:$0xff] %vm1189, %v1138
      %1213 = vst.msk [vmem:[#allocation3 + $0xb8] sm:$0xff] %vm1189, %v1140
      %1214 = vst.msk [vmem:[#allocation3 + $0xc0] sm:$0xff] %vm1189, %v1142
      %1215 = vst.msk [vmem:[#allocation3 + $0xc8] sm:$0xff] %vm1189, %v1144
      %1216 = vst.msk [vmem:[#allocation3 + $0xd0] sm:$0xff] %vm1189, %v1146
      %1217 = vst.msk [vmem:[#allocation3 + $0xd8] sm:$0xff] %vm1189, %v1148
      %1218 = vst.msk [vmem:[#allocation3 + $0xe0] sm:$0xff] %vm1189, %v1150
      %1219 = vst.msk [vmem:[#allocation3 + $0xe8] sm:$0xff] %vm1189, %v1152
      %1220 = vst.msk [vmem:[#allocation3 + $0xf0] sm:$0xff] %vm1189, %v1154
      %1221 = vst.msk [vmem:[#allocation3 + $0xf8] sm:$0xff] %vm1189, %v1156
      %v1222 = vrot.slane %v804, 1
      %v1223 = vrot.slane %v805, 1
      %v1224 = vsel %vm589, %v1222, %v1223
      %v1225 = vrot.slane %v806, 1
      %v1226 = vrot.slane %v807, 1
      %v1227 = vsel %vm589, %v1225, %v1226
      %v1228 = vrot.slane %v808, 1
      %v1229 = vrot.slane %v809, 1
      %v1230 = vsel %vm589, %v1228, %v1229
      %v1231 = vrot.slane %v810, 1
      %v1232 = vrot.slane %v811, 1
      %v1233 = vsel %vm589, %v1231, %v1232
      %v1234 = vrot.slane %v812, 1
      %v1235 = vrot.slane %v813, 1
      %v1236 = vsel %vm589, %v1234, %v1235
      %v1237 = vrot.slane %v814, 1
      %v1238 = vrot.slane %v815, 1
      %v1239 = vsel %vm589, %v1237, %v1238
      %v1240 = vrot.slane %v816, 1
      %v1241 = vrot.slane %v817, 1
      %v1242 = vsel %vm589, %v1240, %v1241
      %v1243 = vrot.slane %v818, 1
      %v1244 = vrot.slane %v819, 1
      %v1245 = vsel %vm589, %v1243, %v1244
      %v1246 = vrot.slane %v820, 1
      %v1247 = vrot.slane %v821, 1
      %v1248 = vsel %vm589, %v1246, %v1247
      %v1249 = vrot.slane %v822, 1
      %v1250 = vrot.slane %v823, 1
      %v1251 = vsel %vm589, %v1249, %v1250
      %v1252 = vrot.slane %v824, 1
      %v1253 = vrot.slane %v825, 1
      %v1254 = vsel %vm589, %v1252, %v1253
      %v1255 = vrot.slane %v826, 1
      %v1256 = vrot.slane %v827, 1
      %v1257 = vsel %vm589, %v1255, %v1256
      %v1258 = vrot.slane %v828, 1
      %v1259 = vrot.slane %v829, 1
      %v1260 = vsel %vm589, %v1258, %v1259
      %v1261 = vrot.slane %v830, 1
      %v1262 = vrot.slane %v831, 1
      %v1263 = vsel %vm589, %v1261, %v1262
      %v1264 = vrot.slane %v832, 1
      %v1265 = vrot.slane %v833, 1
      %v1266 = vsel %vm589, %v1264, %v1265
      %v1267 = vrot.slane %v834, 1
      %v1268 = vrot.slane %v835, 1
      %v1269 = vsel %vm589, %v1267, %v1268
      %v1286 = vsel %vm589, %v1223, 0.0
      %v1287 = vsel %vm589, %v1226, 0.0
      %v1288 = vsel %vm589, %v1229, 0.0
      %v1289 = vsel %vm589, %v1232, 0.0
      %v1290 = vsel %vm589, %v1235, 0.0
      %v1291 = vsel %vm589, %v1238, 0.0
      %v1292 = vsel %vm589, %v1241, 0.0
      %v1293 = vsel %vm589, %v1244, 0.0
      %v1294 = vsel %vm589, %v1247, 0.0
      %v1295 = vsel %vm589, %v1250, 0.0
      %v1296 = vsel %vm589, %v1253, 0.0
      %v1297 = vsel %vm589, %v1256, 0.0
      %v1298 = vsel %vm589, %v1259, 0.0
      %v1299 = vsel %vm589, %v1262, 0.0
      %v1300 = vsel %vm589, %v1265, 0.0
      %v1301 = vsel %vm589, %v1268, 0.0
      %1318 = vrot.lane.b32.xlu0 %v1224, 20
      %v1319 = vpop.permute.xlu0 %1318
      %1320 = vrot.lane.b32.xlu0 %v1286, 20
      %v1321 = vpop.permute.xlu0 %1320
      %1322 = vrot.lane.b32.xlu0 %v1227, 20
      %v1323 = vpop.permute.xlu0 %1322
      %1324 = vrot.lane.b32.xlu0 %v1287, 20
      %v1325 = vpop.permute.xlu0 %1324
      %1326 = vrot.lane.b32.xlu0 %v1230, 20
      %v1327 = vpop.permute.xlu0 %1326
      %1328 = vrot.lane.b32.xlu0 %v1288, 20
      %v1329 = vpop.permute.xlu0 %1328
      %1330 = vrot.lane.b32.xlu0 %v1233, 20
      %v1331 = vpop.permute.xlu0 %1330
      %1332 = vrot.lane.b32.xlu0 %v1289, 20
      %v1333 = vpop.permute.xlu0 %1332
      %1334 = vrot.lane.b32.xlu0 %v1236, 20
      %v1335 = vpop.permute.xlu0 %1334
      %1336 = vrot.lane.b32.xlu0 %v1290, 20
      %v1337 = vpop.permute.xlu0 %1336
      %1338 = vrot.lane.b32.xlu0 %v1239, 20
      %v1339 = vpop.permute.xlu0 %1338
      %1340 = vrot.lane.b32.xlu0 %v1291, 20
      %v1341 = vpop.permute.xlu0 %1340
      %1342 = vrot.lane.b32.xlu0 %v1242, 20
      %v1343 = vpop.permute.xlu0 %1342
      %1344 = vrot.lane.b32.xlu0 %v1292, 20
      %v1345 = vpop.permute.xlu0 %1344
      %1346 = vrot.lane.b32.xlu0 %v1245, 20
      %v1347 = vpop.permute.xlu0 %1346
      %1348 = vrot.lane.b32.xlu0 %v1293, 20
      %v1349 = vpop.permute.xlu0 %1348
      %1350 = vrot.lane.b32.xlu0 %v1248, 20
      %v1351 = vpop.permute.xlu0 %1350
      %1352 = vrot.lane.b32.xlu0 %v1294, 20
      %v1353 = vpop.permute.xlu0 %1352
      %1354 = vrot.lane.b32.xlu0 %v1251, 20
      %v1355 = vpop.permute.xlu0 %1354
      %1356 = vrot.lane.b32.xlu0 %v1295, 20
      %v1357 = vpop.permute.xlu0 %1356
      %1358 = vrot.lane.b32.xlu0 %v1254, 20
      %v1359 = vpop.permute.xlu0 %1358
      %1360 = vrot.lane.b32.xlu0 %v1296, 20
      %v1361 = vpop.permute.xlu0 %1360
      %1362 = vrot.lane.b32.xlu0 %v1257, 20
      %v1363 = vpop.permute.xlu0 %1362
      %1364 = vrot.lane.b32.xlu0 %v1297, 20
      %v1365 = vpop.permute.xlu0 %1364
      %1366 = vrot.lane.b32.xlu0 %v1260, 20
      %v1367 = vpop.permute.xlu0 %1366
      %1368 = vrot.lane.b32.xlu0 %v1298, 20
      %v1369 = vpop.permute.xlu0 %1368
      %1370 = vrot.lane.b32.xlu0 %v1263, 20
      %v1371 = vpop.permute.xlu0 %1370
      %1372 = vrot.lane.b32.xlu0 %v1299, 20
      %v1373 = vpop.permute.xlu0 %1372
      %1374 = vrot.lane.b32.xlu0 %v1266, 20
      %v1375 = vpop.permute.xlu0 %1374
      %1376 = vrot.lane.b32.xlu0 %v1300, 20
      %v1377 = vpop.permute.xlu0 %1376
      %1378 = vrot.lane.b32.xlu0 %v1269, 20
      %v1379 = vpop.permute.xlu0 %1378
      %1380 = vrot.lane.b32.xlu0 %v1301, 20
      %v1381 = vpop.permute.xlu0 %1380
      %vm1414 = vcmask 195744
      %1415 = vst.msk [vmem:[#allocation3] sm:$0xff] %vm1414, %v1319
      %1416 = vst.msk [vmem:[#allocation3 + $0x8] sm:$0xff] %vm1414, %v1321
      %1417 = vst.msk [vmem:[#allocation3 + $0x10] sm:$0xff] %vm1414, %v1323
      %1418 = vst.msk [vmem:[#allocation3 + $0x18] sm:$0xff] %vm1414, %v1325
      %1419 = vst.msk [vmem:[#allocation3 + $0x20] sm:$0xff] %vm1414, %v1327
      %1420 = vst.msk [vmem:[#allocation3 + $0x28] sm:$0xff] %vm1414, %v1329
      %1421 = vst.msk [vmem:[#allocation3 + $0x30] sm:$0xff] %vm1414, %v1331
      %1422 = vst.msk [vmem:[#allocation3 + $0x38] sm:$0xff] %vm1414, %v1333
      %1423 = vst.msk [vmem:[#allocation3 + $0x40] sm:$0xff] %vm1414, %v1335
      %1424 = vst.msk [vmem:[#allocation3 + $0x48] sm:$0xff] %vm1414, %v1337
      %1425 = vst.msk [vmem:[#allocation3 + $0x50] sm:$0xff] %vm1414, %v1339
      %1426 = vst.msk [vmem:[#allocation3 + $0x58] sm:$0xff] %vm1414, %v1341
      %1427 = vst.msk [vmem:[#allocation3 + $0x60] sm:$0xff] %vm1414, %v1343
      %1428 = vst.msk [vmem:[#allocation3 + $0x68] sm:$0xff] %vm1414, %v1345
      %1429 = vst.msk [vmem:[#allocation3 + $0x70] sm:$0xff] %vm1414, %v1347
      %1430 = vst.msk [vmem:[#allocation3 + $0x78] sm:$0xff] %vm1414, %v1349
      %1431 = vst.msk [vmem:[#allocation3 + $0x80] sm:$0xff] %vm1414, %v1351
      %1432 = vst.msk [vmem:[#allocation3 + $0x88] sm:$0xff] %vm1414, %v1353
      %1433 = vst.msk [vmem:[#allocation3 + $0x90] sm:$0xff] %vm1414, %v1355
      %1434 = vst.msk [vmem:[#allocation3 + $0x98] sm:$0xff] %vm1414, %v1357
      %1435 = vst.msk [vmem:[#allocation3 + $0xa0] sm:$0xff] %vm1414, %v1359
      %1436 = vst.msk [vmem:[#allocation3 + $0xa8] sm:$0xff] %vm1414, %v1361
      %1437 = vst.msk [vmem:[#allocation3 + $0xb0] sm:$0xff] %vm1414, %v1363
      %1438 = vst.msk [vmem:[#allocation3 + $0xb8] sm:$0xff] %vm1414, %v1365
      %1439 = vst.msk [vmem:[#allocation3 + $0xc0] sm:$0xff] %vm1414, %v1367
      %1440 = vst.msk [vmem:[#allocation3 + $0xc8] sm:$0xff] %vm1414, %v1369
      %1441 = vst.msk [vmem:[#allocation3 + $0xd0] sm:$0xff] %vm1414, %v1371
      %1442 = vst.msk [vmem:[#allocation3 + $0xd8] sm:$0xff] %vm1414, %v1373
      %1443 = vst.msk [vmem:[#allocation3 + $0xe0] sm:$0xff] %vm1414, %v1375
      %1444 = vst.msk [vmem:[#allocation3 + $0xe8] sm:$0xff] %vm1414, %v1377
      %1445 = vst.msk [vmem:[#allocation3 + $0xf0] sm:$0xff] %vm1414, %v1379
      %1446 = vst.msk [vmem:[#allocation3 + $0xf8] sm:$0xff] %vm1414, %v1381
      %s1447 = scalar_lea.vmem [#allocation2], 16
      %v1448 = vld [vmem:[%s1447] sm:$0xff]
      %v1449 = vld [vmem:[%s1447 + $0x8] sm:$0xff]
      %v1450 = vld [vmem:[%s1447 + $0x10] sm:$0xff]
      %v1451 = vld [vmem:[%s1447 + $0x18] sm:$0xff]
      %v1452 = vld [vmem:[%s1447 + $0x20] sm:$0xff]
      %v1453 = vld [vmem:[%s1447 + $0x28] sm:$0xff]
      %v1454 = vld [vmem:[%s1447 + $0x30] sm:$0xff]
      %v1455 = vld [vmem:[%s1447 + $0x38] sm:$0xff]
      %v1456 = vld [vmem:[%s1447 + $0x40] sm:$0xff]
      %v1457 = vld [vmem:[%s1447 + $0x48] sm:$0xff]
      %v1458 = vld [vmem:[%s1447 + $0x50] sm:$0xff]
      %v1459 = vld [vmem:[%s1447 + $0x58] sm:$0xff]
      %v1460 = vld [vmem:[%s1447 + $0x60] sm:$0xff]
      %v1461 = vld [vmem:[%s1447 + $0x68] sm:$0xff]
      %v1462 = vld [vmem:[%s1447 + $0x70] sm:$0xff]
      %v1463 = vld [vmem:[%s1447 + $0x78] sm:$0xff]
      %v1464 = vld [vmem:[%s1447 + $0x80] sm:$0xff]
      %v1465 = vld [vmem:[%s1447 + $0x88] sm:$0xff]
      %v1466 = vld [vmem:[%s1447 + $0x90] sm:$0xff]
      %v1467 = vld [vmem:[%s1447 + $0x98] sm:$0xff]
      %v1468 = vld [vmem:[%s1447 + $0xa0] sm:$0xff]
      %v1469 = vld [vmem:[%s1447 + $0xa8] sm:$0xff]
      %v1470 = vld [vmem:[%s1447 + $0xb0] sm:$0xff]
      %v1471 = vld [vmem:[%s1447 + $0xb8] sm:$0xff]
      %v1472 = vld [vmem:[%s1447 + $0xc0] sm:$0xff]
      %v1473 = vld [vmem:[%s1447 + $0xc8] sm:$0xff]
      %v1474 = vld [vmem:[%s1447 + $0xd0] sm:$0xff]
      %v1475 = vld [vmem:[%s1447 + $0xd8] sm:$0xff]
      %v1476 = vld [vmem:[%s1447 + $0xe0] sm:$0xff]
      %v1477 = vld [vmem:[%s1447 + $0xe8] sm:$0xff]
      %v1508 = vrot.slane %v1448, 7
      %v1509 = vrot.slane %v1449, 7
      %v1510 = vsel %vm346, %v1508, %v1509
      %v1511 = vrot.slane %v1450, 7
      %v1512 = vrot.slane %v1451, 7
      %v1513 = vsel %vm346, %v1511, %v1512
      %v1514 = vrot.slane %v1452, 7
      %v1515 = vrot.slane %v1453, 7
      %v1516 = vsel %vm346, %v1514, %v1515
      %v1517 = vrot.slane %v1454, 7
      %v1518 = vrot.slane %v1455, 7
      %v1519 = vsel %vm346, %v1517, %v1518
      %v1520 = vrot.slane %v1456, 7
      %v1521 = vrot.slane %v1457, 7
      %v1522 = vsel %vm346, %v1520, %v1521
      %v1523 = vrot.slane %v1458, 7
      %v1524 = vrot.slane %v1459, 7
      %v1525 = vsel %vm346, %v1523, %v1524
      %v1526 = vrot.slane %v1460, 7
      %v1527 = vrot.slane %v1461, 7
      %v1528 = vsel %vm346, %v1526, %v1527
      %v1529 = vrot.slane %v1462, 7
      %v1530 = vrot.slane %v1463, 7
      %v1531 = vsel %vm346, %v1529, %v1530
      %v1532 = vrot.slane %v1464, 7
      %v1533 = vrot.slane %v1465, 7
      %v1534 = vsel %vm346, %v1532, %v1533
      %v1535 = vrot.slane %v1466, 7
      %v1536 = vrot.slane %v1467, 7
      %v1537 = vsel %vm346, %v1535, %v1536
      %v1538 = vrot.slane %v1468, 7
      %v1539 = vrot.slane %v1469, 7
      %v1540 = vsel %vm346, %v1538, %v1539
      %v1541 = vrot.slane %v1470, 7
      %v1542 = vrot.slane %v1471, 7
      %v1543 = vsel %vm346, %v1541, %v1542
      %v1544 = vrot.slane %v1472, 7
      %v1545 = vrot.slane %v1473, 7
      %v1546 = vsel %vm346, %v1544, %v1545
      %v1547 = vrot.slane %v1474, 7
      %v1548 = vrot.slane %v1475, 7
      %v1549 = vsel %vm346, %v1547, %v1548
      %v1550 = vrot.slane %v1476, 7
      %v1551 = vrot.slane %v1477, 7
      %v1552 = vsel %vm346, %v1550, %v1551
      %v1568 = vsel %vm346, 0.0, %v1508
      %v1569 = vsel %vm346, 0.0, %v1511
      %v1570 = vsel %vm346, 0.0, %v1514
      %v1571 = vsel %vm346, 0.0, %v1517
      %v1572 = vsel %vm346, 0.0, %v1520
      %v1573 = vsel %vm346, 0.0, %v1523
      %v1574 = vsel %vm346, 0.0, %v1526
      %v1575 = vsel %vm346, 0.0, %v1529
      %v1576 = vsel %vm346, 0.0, %v1532
      %v1577 = vsel %vm346, 0.0, %v1535
      %v1578 = vsel %vm346, 0.0, %v1538
      %v1579 = vsel %vm346, 0.0, %v1541
      %v1580 = vsel %vm346, 0.0, %v1544
      %v1581 = vsel %vm346, 0.0, %v1547
      %v1582 = vsel %vm346, 0.0, %v1550
      %1598 = vrot.lane.b32.xlu0 %v1568, 24
      %v1599 = vpop.permute.xlu0 %1598
      %1600 = vrot.lane.b32.xlu0 %v1510, 24
      %v1601 = vpop.permute.xlu0 %1600
      %1602 = vrot.lane.b32.xlu0 %v1569, 24
      %v1603 = vpop.permute.xlu0 %1602
      %1604 = vrot.lane.b32.xlu0 %v1513, 24
      %v1605 = vpop.permute.xlu0 %1604
      %1606 = vrot.lane.b32.xlu0 %v1570, 24
      %v1607 = vpop.permute.xlu0 %1606
      %1608 = vrot.lane.b32.xlu0 %v1516, 24
      %v1609 = vpop.permute.xlu0 %1608
      %1610 = vrot.lane.b32.xlu0 %v1571, 24
      %v1611 = vpop.permute.xlu0 %1610
      %1612 = vrot.lane.b32.xlu0 %v1519, 24
      %v1613 = vpop.permute.xlu0 %1612
      %1614 = vrot.lane.b32.xlu0 %v1572, 24
      %v1615 = vpop.permute.xlu0 %1614
      %1616 = vrot.lane.b32.xlu0 %v1522, 24
      %v1617 = vpop.permute.xlu0 %1616
      %1618 = vrot.lane.b32.xlu0 %v1573, 24
      %v1619 = vpop.permute.xlu0 %1618
      %1620 = vrot.lane.b32.xlu0 %v1525, 24
      %v1621 = vpop.permute.xlu0 %1620
      %1622 = vrot.lane.b32.xlu0 %v1574, 24
      %v1623 = vpop.permute.xlu0 %1622
      %1624 = vrot.lane.b32.xlu0 %v1528, 24
      %v1625 = vpop.permute.xlu0 %1624
      %1626 = vrot.lane.b32.xlu0 %v1575, 24
      %v1627 = vpop.permute.xlu0 %1626
      %1628 = vrot.lane.b32.xlu0 %v1531, 24
      %v1629 = vpop.permute.xlu0 %1628
      %1630 = vrot.lane.b32.xlu0 %v1576, 24
      %v1631 = vpop.permute.xlu0 %1630
      %1632 = vrot.lane.b32.xlu0 %v1534, 24
      %v1633 = vpop.permute.xlu0 %1632
      %1634 = vrot.lane.b32.xlu0 %v1577, 24
      %v1635 = vpop.permute.xlu0 %1634
      %1636 = vrot.lane.b32.xlu0 %v1537, 24
      %v1637 = vpop.permute.xlu0 %1636
      %1638 = vrot.lane.b32.xlu0 %v1578, 24
      %v1639 = vpop.permute.xlu0 %1638
      %1640 = vrot.lane.b32.xlu0 %v1540, 24
      %v1641 = vpop.permute.xlu0 %1640
      %1642 = vrot.lane.b32.xlu0 %v1579, 24
      %v1643 = vpop.permute.xlu0 %1642
      %1644 = vrot.lane.b32.xlu0 %v1543, 24
      %v1645 = vpop.permute.xlu0 %1644
      %1646 = vrot.lane.b32.xlu0 %v1580, 24
      %v1647 = vpop.permute.xlu0 %1646
      %1648 = vrot.lane.b32.xlu0 %v1546, 24
      %v1649 = vpop.permute.xlu0 %1648
      %1650 = vrot.lane.b32.xlu0 %v1581, 24
      %v1651 = vpop.permute.xlu0 %1650
      %1652 = vrot.lane.b32.xlu0 %v1549, 24
      %v1653 = vpop.permute.xlu0 %1652
      %1654 = vrot.lane.b32.xlu0 %v1582, 24
      %v1655 = vpop.permute.xlu0 %1654
      %1656 = vrot.lane.b32.xlu0 %v1552, 24
      %v1657 = vpop.permute.xlu0 %1656
      %vm1688 = vcmask 228544
      %1689 = vst.msk [vmem:[#allocation3] sm:$0xff] %vm1688, %v1599
      %1690 = vst.msk [vmem:[#allocation3 + $0x8] sm:$0xff] %vm1688, %v1601
      %1691 = vst.msk [vmem:[#allocation3 + $0x10] sm:$0xff] %vm1688, %v1603
      %1692 = vst.msk [vmem:[#allocation3 + $0x18] sm:$0xff] %vm1688, %v1605
      %1693 = vst.msk [vmem:[#allocation3 + $0x20] sm:$0xff] %vm1688, %v1607
      %1694 = vst.msk [vmem:[#allocation3 + $0x28] sm:$0xff] %vm1688, %v1609
      %1695 = vst.msk [vmem:[#allocation3 + $0x30] sm:$0xff] %vm1688, %v1611
      %1696 = vst.msk [vmem:[#allocation3 + $0x38] sm:$0xff] %vm1688, %v1613
      %1697 = vst.msk [vmem:[#allocation3 + $0x40] sm:$0xff] %vm1688, %v1615
      %1698 = vst.msk [vmem:[#allocation3 + $0x48] sm:$0xff] %vm1688, %v1617
      %1699 = vst.msk [vmem:[#allocation3 + $0x50] sm:$0xff] %vm1688, %v1619
      %1700 = vst.msk [vmem:[#allocation3 + $0x58] sm:$0xff] %vm1688, %v1621
      %1701 = vst.msk [vmem:[#allocation3 + $0x60] sm:$0xff] %vm1688, %v1623
      %1702 = vst.msk [vmem:[#allocation3 + $0x68] sm:$0xff] %vm1688, %v1625
      %1703 = vst.msk [vmem:[#allocation3 + $0x70] sm:$0xff] %vm1688, %v1627
      %1704 = vst.msk [vmem:[#allocation3 + $0x78] sm:$0xff] %vm1688, %v1629
      %1705 = vst.msk [vmem:[#allocation3 + $0x80] sm:$0xff] %vm1688, %v1631
      %1706 = vst.msk [vmem:[#allocation3 + $0x88] sm:$0xff] %vm1688, %v1633
      %1707 = vst.msk [vmem:[#allocation3 + $0x90] sm:$0xff] %vm1688, %v1635
      %1708 = vst.msk [vmem:[#allocation3 + $0x98] sm:$0xff] %vm1688, %v1637
      %1709 = vst.msk [vmem:[#allocation3 + $0xa0] sm:$0xff] %vm1688, %v1639
      %1710 = vst.msk [vmem:[#allocation3 + $0xa8] sm:$0xff] %vm1688, %v1641
      %1711 = vst.msk [vmem:[#allocation3 + $0xb0] sm:$0xff] %vm1688, %v1643
      %1712 = vst.msk [vmem:[#allocation3 + $0xb8] sm:$0xff] %vm1688, %v1645
      %1713 = vst.msk [vmem:[#allocation3 + $0xc0] sm:$0xff] %vm1688, %v1647
      %1714 = vst.msk [vmem:[#allocation3 + $0xc8] sm:$0xff] %vm1688, %v1649
      %1715 = vst.msk [vmem:[#allocation3 + $0xd0] sm:$0xff] %vm1688, %v1651
      %1716 = vst.msk [vmem:[#allocation3 + $0xd8] sm:$0xff] %vm1688, %v1653
      %1717 = vst.msk [vmem:[#allocation3 + $0xe0] sm:$0xff] %vm1688, %v1655
      %1718 = vst.msk [vmem:[#allocation3 + $0xe8] sm:$0xff] %vm1688, %v1657
      %1719 = vrot.lane.b32.xlu0 %v1448, 28
      %v1720 = vpop.permute.xlu0 %1719
      %1721 = vrot.lane.b32.xlu0 %v1449, 28
      %v1722 = vpop.permute.xlu0 %1721
      %1723 = vrot.lane.b32.xlu0 %v1450, 28
      %v1724 = vpop.permute.xlu0 %1723
      %1725 = vrot.lane.b32.xlu0 %v1451, 28
      %v1726 = vpop.permute.xlu0 %1725
      %1727 = vrot.lane.b32.xlu0 %v1452, 28
      %v1728 = vpop.permute.xlu0 %1727
      %1729 = vrot.lane.b32.xlu0 %v1453, 28
      %v1730 = vpop.permute.xlu0 %1729
      %1731 = vrot.lane.b32.xlu0 %v1454, 28
      %v1732 = vpop.permute.xlu0 %1731
      %1733 = vrot.lane.b32.xlu0 %v1455, 28
      %v1734 = vpop.permute.xlu0 %1733
      %1735 = vrot.lane.b32.xlu0 %v1456, 28
      %v1736 = vpop.permute.xlu0 %1735
      %1737 = vrot.lane.b32.xlu0 %v1457, 28
      %v1738 = vpop.permute.xlu0 %1737
      %1739 = vrot.lane.b32.xlu0 %v1458, 28
      %v1740 = vpop.permute.xlu0 %1739
      %1741 = vrot.lane.b32.xlu0 %v1459, 28
      %v1742 = vpop.permute.xlu0 %1741
      %1743 = vrot.lane.b32.xlu0 %v1460, 28
      %v1744 = vpop.permute.xlu0 %1743
      %1745 = vrot.lane.b32.xlu0 %v1461, 28
      %v1746 = vpop.permute.xlu0 %1745
      %1747 = vrot.lane.b32.xlu0 %v1462, 28
      %v1748 = vpop.permute.xlu0 %1747
      %1749 = vrot.lane.b32.xlu0 %v1463, 28
      %v1750 = vpop.permute.xlu0 %1749
      %1751 = vrot.lane.b32.xlu0 %v1464, 28
      %v1752 = vpop.permute.xlu0 %1751
      %1753 = vrot.lane.b32.xlu0 %v1465, 28
      %v1754 = vpop.permute.xlu0 %1753
      %1755 = vrot.lane.b32.xlu0 %v1466, 28
      %v1756 = vpop.permute.xlu0 %1755
      %1757 = vrot.lane.b32.xlu0 %v1467, 28
      %v1758 = vpop.permute.xlu0 %1757
      %1759 = vrot.lane.b32.xlu0 %v1468, 28
      %v1760 = vpop.permute.xlu0 %1759
      %1761 = vrot.lane.b32.xlu0 %v1469, 28
      %v1762 = vpop.permute.xlu0 %1761
      %1763 = vrot.lane.b32.xlu0 %v1470, 28
      %v1764 = vpop.permute.xlu0 %1763
      %1765 = vrot.lane.b32.xlu0 %v1471, 28
      %v1766 = vpop.permute.xlu0 %1765
      %1767 = vrot.lane.b32.xlu0 %v1472, 28
      %v1768 = vpop.permute.xlu0 %1767
      %1769 = vrot.lane.b32.xlu0 %v1473, 28
      %v1770 = vpop.permute.xlu0 %1769
      %1771 = vrot.lane.b32.xlu0 %v1474, 28
      %v1772 = vpop.permute.xlu0 %1771
      %1773 = vrot.lane.b32.xlu0 %v1475, 28
      %v1774 = vpop.permute.xlu0 %1773
      %1775 = vrot.lane.b32.xlu0 %v1476, 28
      %v1776 = vpop.permute.xlu0 %1775
      %1777 = vrot.lane.b32.xlu0 %v1477, 28
      %v1778 = vpop.permute.xlu0 %1777
      %vm1809 = vcmask 261344
      %1810 = vst.msk [vmem:[#allocation3] sm:$0xff] %vm1809, %v1720
      %1811 = vst.msk [vmem:[#allocation3 + $0x8] sm:$0xff] %vm1809, %v1722
      %1812 = vst.msk [vmem:[#allocation3 + $0x10] sm:$0xff] %vm1809, %v1724
      %1813 = vst.msk [vmem:[#allocation3 + $0x18] sm:$0xff] %vm1809, %v1726
      %1814 = vst.msk [vmem:[#allocation3 + $0x20] sm:$0xff] %vm1809, %v1728
      %1815 = vst.msk [vmem:[#allocation3 + $0x28] sm:$0xff] %vm1809, %v1730
      %1816 = vst.msk [vmem:[#allocation3 + $0x30] sm:$0xff] %vm1809, %v1732
      %1817 = vst.msk [vmem:[#allocation3 + $0x38] sm:$0xff] %vm1809, %v1734
      %1818 = vst.msk [vmem:[#allocation3 + $0x40] sm:$0xff] %vm1809, %v1736
      %1819 = vst.msk [vmem:[#allocation3 + $0x48] sm:$0xff] %vm1809, %v1738
      %1820 = vst.msk [vmem:[#allocation3 + $0x50] sm:$0xff] %vm1809, %v1740
      %1821 = vst.msk [vmem:[#allocation3 + $0x58] sm:$0xff] %vm1809, %v1742
      %1822 = vst.msk [vmem:[#allocation3 + $0x60] sm:$0xff] %vm1809, %v1744
      %1823 = vst.msk [vmem:[#allocation3 + $0x68] sm:$0xff] %vm1809, %v1746
      %1824 = vst.msk [vmem:[#allocation3 + $0x70] sm:$0xff] %vm1809, %v1748
      %1825 = vst.msk [vmem:[#allocation3 + $0x78] sm:$0xff] %vm1809, %v1750
      %1826 = vst.msk [vmem:[#allocation3 + $0x80] sm:$0xff] %vm1809, %v1752
      %1827 = vst.msk [vmem:[#allocation3 + $0x88] sm:$0xff] %vm1809, %v1754
      %1828 = vst.msk [vmem:[#allocation3 + $0x90] sm:$0xff] %vm1809, %v1756
      %1829 = vst.msk [vmem:[#allocation3 + $0x98] sm:$0xff] %vm1809, %v1758
      %1830 = vst.msk [vmem:[#allocation3 + $0xa0] sm:$0xff] %vm1809, %v1760
      %1831 = vst.msk [vmem:[#allocation3 + $0xa8] sm:$0xff] %vm1809, %v1762
      %1832 = vst.msk [vmem:[#allocation3 + $0xb0] sm:$0xff] %vm1809, %v1764
      %1833 = vst.msk [vmem:[#allocation3 + $0xb8] sm:$0xff] %vm1809, %v1766
      %1834 = vst.msk [vmem:[#allocation3 + $0xc0] sm:$0xff] %vm1809, %v1768
      %1835 = vst.msk [vmem:[#allocation3 + $0xc8] sm:$0xff] %vm1809, %v1770
      %1836 = vst.msk [vmem:[#allocation3 + $0xd0] sm:$0xff] %vm1809, %v1772
      %1837 = vst.msk [vmem:[#allocation3 + $0xd8] sm:$0xff] %vm1809, %v1774
      %1838 = vst.msk [vmem:[#allocation3 + $0xe0] sm:$0xff] %vm1809, %v1776
      %1839 = vst.msk [vmem:[#allocation3 + $0xe8] sm:$0xff] %vm1809, %v1778
      %v1840 = vrot.slane %v1448, 1
      %v1841 = vrot.slane %v1449, 1
      %v1842 = vsel %vm589, %v1840, %v1841
      %v1843 = vrot.slane %v1450, 1
      %v1844 = vrot.slane %v1451, 1
      %v1845 = vsel %vm589, %v1843, %v1844
      %v1846 = vrot.slane %v1452, 1
      %v1847 = vrot.slane %v1453, 1
      %v1848 = vsel %vm589, %v1846, %v1847
      %v1849 = vrot.slane %v1454, 1
      %v1850 = vrot.slane %v1455, 1
      %v1851 = vsel %vm589, %v1849, %v1850
      %v1852 = vrot.slane %v1456, 1
      %v1853 = vrot.slane %v1457, 1
      %v1854 = vsel %vm589, %v1852, %v1853
      %v1855 = vrot.slane %v1458, 1
      %v1856 = vrot.slane %v1459, 1
      %v1857 = vsel %vm589, %v1855, %v1856
      %v1858 = vrot.slane %v1460, 1
      %v1859 = vrot.slane %v1461, 1
      %v1860 = vsel %vm589, %v1858, %v1859
      %v1861 = vrot.slane %v1462, 1
      %v1862 = vrot.slane %v1463, 1
      %v1863 = vsel %vm589, %v1861, %v1862
      %v1864 = vrot.slane %v1464, 1
      %v1865 = vrot.slane %v1465, 1
      %v1866 = vsel %vm589, %v1864, %v1865
      %v1867 = vrot.slane %v1466, 1
      %v1868 = vrot.slane %v1467, 1
      %v1869 = vsel %vm589, %v1867, %v1868
      %v1870 = vrot.slane %v1468, 1
      %v1871 = vrot.slane %v1469, 1
      %v1872 = vsel %vm589, %v1870, %v1871
      %v1873 = vrot.slane %v1470, 1
      %v1874 = vrot.slane %v1471, 1
      %v1875 = vsel %vm589, %v1873, %v1874
      %v1876 = vrot.slane %v1472, 1
      %v1877 = vrot.slane %v1473, 1
      %v1878 = vsel %vm589, %v1876, %v1877
      %v1879 = vrot.slane %v1474, 1
      %v1880 = vrot.slane %v1475, 1
      %v1881 = vsel %vm589, %v1879, %v1880
      %v1882 = vrot.slane %v1476, 1
      %v1883 = vrot.slane %v1477, 1
      %v1884 = vsel %vm589, %v1882, %v1883
      %v1900 = vsel %vm589, %v1841, 0.0
      %v1901 = vsel %vm589, %v1844, 0.0
      %v1902 = vsel %vm589, %v1847, 0.0
      %v1903 = vsel %vm589, %v1850, 0.0
      %v1904 = vsel %vm589, %v1853, 0.0
      %v1905 = vsel %vm589, %v1856, 0.0
      %v1906 = vsel %vm589, %v1859, 0.0
      %v1907 = vsel %vm589, %v1862, 0.0
      %v1908 = vsel %vm589, %v1865, 0.0
      %v1909 = vsel %vm589, %v1868, 0.0
      %v1910 = vsel %vm589, %v1871, 0.0
      %v1911 = vsel %vm589, %v1874, 0.0
      %v1912 = vsel %vm589, %v1877, 0.0
      %v1913 = vsel %vm589, %v1880, 0.0
      %v1914 = vsel %vm589, %v1883, 0.0
      %1930 = vrot.lane.b32.xlu0 %v1842, 32
      %v1931 = vpop.permute.xlu0 %1930
      %1932 = vrot.lane.b32.xlu0 %v1900, 32
      %v1933 = vpop.permute.xlu0 %1932
      %1934 = vrot.lane.b32.xlu0 %v1845, 32
      %v1935 = vpop.permute.xlu0 %1934
      %1936 = vrot.lane.b32.xlu0 %v1901, 32
      %v1937 = vpop.permute.xlu0 %1936
      %1938 = vrot.lane.b32.xlu0 %v1848, 32
      %v1939 = vpop.permute.xlu0 %1938
      %1940 = vrot.lane.b32.xlu0 %v1902, 32
      %v1941 = vpop.permute.xlu0 %1940
      %1942 = vrot.lane.b32.xlu0 %v1851, 32
      %v1943 = vpop.permute.xlu0 %1942
      %1944 = vrot.lane.b32.xlu0 %v1903, 32
      %v1945 = vpop.permute.xlu0 %1944
      %1946 = vrot.lane.b32.xlu0 %v1854, 32
      %v1947 = vpop.permute.xlu0 %1946
      %1948 = vrot.lane.b32.xlu0 %v1904, 32
      %v1949 = vpop.permute.xlu0 %1948
      %1950 = vrot.lane.b32.xlu0 %v1857, 32
      %v1951 = vpop.permute.xlu0 %1950
      %1952 = vrot.lane.b32.xlu0 %v1905, 32
      %v1953 = vpop.permute.xlu0 %1952
      %1954 = vrot.lane.b32.xlu0 %v1860, 32
      %v1955 = vpop.permute.xlu0 %1954
      %1956 = vrot.lane.b32.xlu0 %v1906, 32
      %v1957 = vpop.permute.xlu0 %1956
      %1958 = vrot.lane.b32.xlu0 %v1863, 32
      %v1959 = vpop.permute.xlu0 %1958
      %1960 = vrot.lane.b32.xlu0 %v1907, 32
      %v1961 = vpop.permute.xlu0 %1960
      %1962 = vrot.lane.b32.xlu0 %v1866, 32
      %v1963 = vpop.permute.xlu0 %1962
      %1964 = vrot.lane.b32.xlu0 %v1908, 32
      %v1965 = vpop.permute.xlu0 %1964
      %1966 = vrot.lane.b32.xlu0 %v1869, 32
      %v1967 = vpop.permute.xlu0 %1966
      %1968 = vrot.lane.b32.xlu0 %v1909, 32
      %v1969 = vpop.permute.xlu0 %1968
      %1970 = vrot.lane.b32.xlu0 %v1872, 32
      %v1971 = vpop.permute.xlu0 %1970
      %1972 = vrot.lane.b32.xlu0 %v1910, 32
      %v1973 = vpop.permute.xlu0 %1972
      %1974 = vrot.lane.b32.xlu0 %v1875, 32
      %v1975 = vpop.permute.xlu0 %1974
      %1976 = vrot.lane.b32.xlu0 %v1911, 32
      %v1977 = vpop.permute.xlu0 %1976
      %1978 = vrot.lane.b32.xlu0 %v1878, 32
      %v1979 = vpop.permute.xlu0 %1978
      %1980 = vrot.lane.b32.xlu0 %v1912, 32
      %v1981 = vpop.permute.xlu0 %1980
      %1982 = vrot.lane.b32.xlu0 %v1881, 32
      %v1983 = vpop.permute.xlu0 %1982
      %1984 = vrot.lane.b32.xlu0 %v1913, 32
      %v1985 = vpop.permute.xlu0 %1984
      %1986 = vrot.lane.b32.xlu0 %v1884, 32
      %v1987 = vpop.permute.xlu0 %1986
      %1988 = vrot.lane.b32.xlu0 %v1914, 32
      %v1989 = vpop.permute.xlu0 %1988
      %vm2020 = vcmask 294144
      %2021 = vst.msk [vmem:[#allocation3] sm:$0xff] %vm2020, %v1931
      %2022 = vst.msk [vmem:[#allocation3 + $0x8] sm:$0xff] %vm2020, %v1933
      %2023 = vst.msk [vmem:[#allocation3 + $0x10] sm:$0xff] %vm2020, %v1935
      %2024 = vst.msk [vmem:[#allocation3 + $0x18] sm:$0xff] %vm2020, %v1937
      %2025 = vst.msk [vmem:[#allocation3 + $0x20] sm:$0xff] %vm2020, %v1939
      %2026 = vst.msk [vmem:[#allocation3 + $0x28] sm:$0xff] %vm2020, %v1941
      %2027 = vst.msk [vmem:[#allocation3 + $0x30] sm:$0xff] %vm2020, %v1943
      %2028 = vst.msk [vmem:[#allocation3 + $0x38] sm:$0xff] %vm2020, %v1945
      %2029 = vst.msk [vmem:[#allocation3 + $0x40] sm:$0xff] %vm2020, %v1947
      %2030 = vst.msk [vmem:[#allocation3 + $0x48] sm:$0xff] %vm2020, %v1949
      %2031 = vst.msk [vmem:[#allocation3 + $0x50] sm:$0xff] %vm2020, %v1951
      %2032 = vst.msk [vmem:[#allocation3 + $0x58] sm:$0xff] %vm2020, %v1953
      %2033 = vst.msk [vmem:[#allocation3 + $0x60] sm:$0xff] %vm2020, %v1955
      %2034 = vst.msk [vmem:[#allocation3 + $0x68] sm:$0xff] %vm2020, %v1957
      %2035 = vst.msk [vmem:[#allocation3 + $0x70] sm:$0xff] %vm2020, %v1959
      %2036 = vst.msk [vmem:[#allocation3 + $0x78] sm:$0xff] %vm2020, %v1961
      %2037 = vst.msk [vmem:[#allocation3 + $0x80] sm:$0xff] %vm2020, %v1963
      %2038 = vst.msk [vmem:[#allocation3 + $0x88] sm:$0xff] %vm2020, %v1965
      %2039 = vst.msk [vmem:[#allocation3 + $0x90] sm:$0xff] %vm2020, %v1967
      %2040 = vst.msk [vmem:[#allocation3 + $0x98] sm:$0xff] %vm2020, %v1969
      %2041 = vst.msk [vmem:[#allocation3 + $0xa0] sm:$0xff] %vm2020, %v1971
      %2042 = vst.msk [vmem:[#allocation3 + $0xa8] sm:$0xff] %vm2020, %v1973
      %2043 = vst.msk [vmem:[#allocation3 + $0xb0] sm:$0xff] %vm2020, %v1975
      %2044 = vst.msk [vmem:[#allocation3 + $0xb8] sm:$0xff] %vm2020, %v1977
      %2045 = vst.msk [vmem:[#allocation3 + $0xc0] sm:$0xff] %vm2020, %v1979
      %2046 = vst.msk [vmem:[#allocation3 + $0xc8] sm:$0xff] %vm2020, %v1981
      %2047 = vst.msk [vmem:[#allocation3 + $0xd0] sm:$0xff] %vm2020, %v1983
      %2048 = vst.msk [vmem:[#allocation3 + $0xd8] sm:$0xff] %vm2020, %v1985
      %2049 = vst.msk [vmem:[#allocation3 + $0xe0] sm:$0xff] %vm2020, %v1987
      %2050 = vst.msk [vmem:[#allocation3 + $0xe8] sm:$0xff] %vm2020, %v1989
      %s2051 = scalar_lea.vmem [#allocation3], 240
      %vm2052 = vcmask 294080
      %2053 = vst.msk [vmem:[%s2051] sm:$0xff] %vm2052, 0.0
      %2054 = vst.msk [vmem:[%s2051 + $0x8] sm:$0xff] %vm2052, 0.0
      %v2055 = vld [vmem:[#allocation3] sm:$0xff]
      %v2056 = vld [vmem:[#allocation3 + $0x8] sm:$0xff]
      %v2057 = vld [vmem:[#allocation3 + $0x10] sm:$0xff]
      %v2058 = vld [vmem:[#allocation3 + $0x18] sm:$0xff]
      %v2059 = vld [vmem:[#allocation3 + $0x20] sm:$0xff]
      %v2060 = vld [vmem:[#allocation3 + $0x28] sm:$0xff]
      %v2061 = vld [vmem:[#allocation3 + $0x30] sm:$0xff]
      %v2062 = vld [vmem:[#allocation3 + $0x38] sm:$0xff]
      %v2063 = vld [vmem:[#allocation3 + $0x40] sm:$0xff]
      %v2064 = vld [vmem:[#allocation3 + $0x48] sm:$0xff]
      %v2065 = vld [vmem:[#allocation3 + $0x50] sm:$0xff]
      %v2066 = vld [vmem:[#allocation3 + $0x58] sm:$0xff]
      %v2067 = vld [vmem:[#allocation3 + $0x60] sm:$0xff]
      %v2068 = vld [vmem:[#allocation3 + $0x68] sm:$0xff]
      %v2069 = vld [vmem:[#allocation3 + $0x70] sm:$0xff]
      %v2070 = vld [vmem:[#allocation3 + $0x78] sm:$0xff]
      %v2071 = vld [vmem:[#allocation3 + $0x80] sm:$0xff]
      %v2072 = vld [vmem:[#allocation3 + $0x88] sm:$0xff]
      %v2073 = vld [vmem:[#allocation3 + $0x90] sm:$0xff]
      %v2074 = vld [vmem:[#allocation3 + $0x98] sm:$0xff]
      %v2075 = vld [vmem:[#allocation3 + $0xa0] sm:$0xff]
      %v2076 = vld [vmem:[#allocation3 + $0xa8] sm:$0xff]
      %v2077 = vld [vmem:[#allocation3 + $0xb0] sm:$0xff]
      %v2078 = vld [vmem:[#allocation3 + $0xb8] sm:$0xff]
      %v2079 = vld [vmem:[#allocation3 + $0xc0] sm:$0xff]
      %v2080 = vld [vmem:[#allocation3 + $0xc8] sm:$0xff]
      %v2081 = vld [vmem:[#allocation3 + $0xd0] sm:$0xff]
      %v2082 = vld [vmem:[#allocation3 + $0xd8] sm:$0xff]
      %v2083 = vld [vmem:[#allocation3 + $0xe0] sm:$0xff]
      %v2084 = vld [vmem:[#allocation3 + $0xe8] sm:$0xff]
      %v2085 = vld [vmem:[#allocation3 + $0xf0] sm:$0xff]
      %v2086 = vld [vmem:[#allocation3 + $0xf8] sm:$0xff]
      %v2087 = vld [vmem:[%s1] sm:$0xff]
      %v2088 = vld [vmem:[%s1 + $0x8] sm:$0xff]
      %v2089 = vld [vmem:[%s1 + $0x10] sm:$0xff]
      %v2090 = vld [vmem:[%s1 + $0x18] sm:$0xff]
      %v2091 = vld [vmem:[%s1 + $0x20] sm:$0xf]
      %vm2092 = vcmask 293888
      %v2094 = vsel %vm2092, %v2055, 0
      %v2097 = vsel %vm2092, %v2056, 0
      %v2100 = vsel %vm2092, %v2057, 0
      %v2103 = vsel %vm2092, %v2058, 0
      %v2106 = vsel %vm2092, %v2059, 0
      %v2109 = vsel %vm2092, %v2060, 0
      %v2112 = vsel %vm2092, %v2061, 0
      %v2115 = vsel %vm2092, %v2062, 0
      %v2118 = vsel %vm2092, %v2063, 0
      %v2121 = vsel %vm2092, %v2064, 0
      %v2124 = vsel %vm2092, %v2065, 0
      %v2127 = vsel %vm2092, %v2066, 0
      %v2130 = vsel %vm2092, %v2067, 0
      %v2133 = vsel %vm2092, %v2068, 0
      %v2136 = vsel %vm2092, %v2069, 0
      %v2139 = vsel %vm2092, %v2070, 0
      %v2142 = vsel %vm2092, %v2071, 0
      %v2145 = vsel %vm2092, %v2072, 0
      %v2148 = vsel %vm2092, %v2073, 0
      %v2151 = vsel %vm2092, %v2074, 0
      %v2154 = vsel %vm2092, %v2075, 0
      %v2157 = vsel %vm2092, %v2076, 0
      %v2160 = vsel %vm2092, %v2077, 0
      %v2163 = vsel %vm2092, %v2078, 0
      %v2166 = vsel %vm2092, %v2079, 0
      %v2169 = vsel %vm2092, %v2080, 0
      %v2172 = vsel %vm2092, %v2081, 0
      %v2175 = vsel %vm2092, %v2082, 0
      %v2178 = vsel %vm2092, %v2083, 0
      %v2181 = vsel %vm2092, %v2084, 0
      %v2184 = vsel %vm2092, %v2085, 0
      %v2187 = vsel %vm2092, %v2086, 0
      %vm2189 = vcmask 1043456
      %v2191 = vsel %vm2189, %v2091, 0
      %2193 = vmatprep.subr.mxu0 0.0
      %2194 = vmatpush1.msra.mxu0 %v2087
      %2195 = vmatprep.subr.mxu0 0.0
      %2196 = vmatpush1.msra.mxu0 %v2088
      %2197 = vmatprep.subr.mxu0 0.0
      %2198 = vmatpush1.msra.mxu0 %v2089
      %2199 = vmatprep.subr.mxu0 0.0
      %2200 = vmatpush1.msra.mxu0 %v2090
      %2201 = vmatprep.subr.mxu0 0.0
      %2202 = vmatpush1.msra.mxu0 %v2191
      %2203 = vmatprep.subr.mxu0 0.0
      %2204 = vmatpush1.msra.mxu0 0.0
      %2205 = vmatprep.subr.mxu0 0.0
      %2206 = vmatpush1.msra.mxu0 0.0
      %2207 = vmatprep.subr.mxu0 0.0
      %2208 = vmatpush1.msra.mxu0 0.0
      %2209 = vmatprep.subr.mxu0 0.0
      %2210 = vmatpush1.msra.mxu0 0.0
      %2211 = vmatprep.subr.mxu0 0.0
      %2212 = vmatpush1.msra.mxu0 0.0
      %2213 = vmatprep.subr.mxu0 0.0
      %2214 = vmatpush1.msra.mxu0 0.0
      %2215 = vmatprep.subr.mxu0 0.0
      %2216 = vmatpush1.msra.mxu0 0.0
      %2217 = vmatprep.subr.mxu0 0.0
      %2218 = vmatpush1.msra.mxu0 0.0
      %2219 = vmatprep.subr.mxu0 0.0
      %2220 = vmatpush1.msra.mxu0 0.0
      %2221 = vmatprep.subr.mxu0 0.0
      %2222 = vmatpush1.msra.mxu0 0.0
      %2223 = vmatprep.subr.mxu0 0.0
      %2224 = vmatpush1.msra.mxu0 0.0
      %2225 = vmatprep.subr.mxu0 0.0
      %2226 = vmatpush1.msra.mxu0 0.0
      %2227 = vmatprep.subr.mxu0 0.0
      %2228 = vmatpush1.msra.mxu0 0.0
      %2229 = vmatprep.subr.mxu0 0.0
      %2230 = vmatpush1.msra.mxu0 0.0
      %2231 = vmatprep.subr.mxu0 0.0
      %2232 = vmatpush1.msra.mxu0 0.0
      %2233 = vmatprep.subr.mxu0 0.0
      %2234 = vmatpush1.msra.mxu0 0.0
      %2235 = vmatprep.subr.mxu0 0.0
      %2236 = vmatpush1.msra.mxu0 0.0
      %2237 = vmatprep.subr.mxu0 0.0
      %2238 = vmatpush1.msra.mxu0 0.0
      %2239 = vmatprep.subr.mxu0 0.0
      %2240 = vmatpush1.msra.mxu0 0.0
      %2241 = vmatprep.subr.mxu0 0.0
      %2242 = vmatpush1.msra.mxu0 0.0
      %2243 = vmatprep.subr.mxu0 0.0
      %2244 = vmatpush1.msra.mxu0 0.0
      %2245 = vmatprep.subr.mxu0 0.0
      %2246 = vmatpush1.msra.mxu0 0.0
      %2247 = vmatprep.subr.mxu0 0.0
      %2248 = vmatpush1.msra.mxu0 0.0
      %2249 = vmatprep.subr.mxu0 0.0
      %2250 = vmatpush1.msra.mxu0 0.0
      %2251 = vmatprep.subr.mxu0 0.0
      %2252 = vmatpush1.msra.mxu0 0.0
      %2253 = vmatprep.subr.mxu0 0.0
      %2254 = vmatpush1.msra.mxu0 0.0
      %2255 = vmatprep.subr.mxu0 0.0
      %2256 = vmatpush1.msra.mxu0 0.0
      %2257 = vmatprep.mubr.f32.mxu0 0.0
      %2258 = vmatmul.mubr.f32.gmra.mrb[0].mxu0 %v2094
      %v2259 = vpop.f32.mrb[0].mxu0
      %v2260 = vadd.f32 0.0, %v2259
      %v2261 = vpop.f32.mrb[0].mxu0
      %2262 = vmatprep.mubr.f32.mxu0 0.0
      %2263 = vmatmul.mubr.f32.gmra.mrb[0].mxu0 %v2097
      %v2264 = vpop.f32.mrb[0].mxu0
      %v2265 = vadd.f32 0.0, %v2264
      %v2266 = vpop.f32.mrb[0].mxu0
      %2267 = vmatprep.mubr.f32.mxu0 0.0
      %2268 = vmatmul.mubr.f32.gmra.mrb[0].mxu0 %v2100
      %v2269 = vpop.f32.mrb[0].mxu0
      %v2270 = vadd.f32 0.0, %v2269
      %v2271 = vpop.f32.mrb[0].mxu0
      %2272 = vmatprep.mubr.f32.mxu0 0.0
      %2273 = vmatmul.mubr.f32.gmra.mrb[0].mxu0 %v2103
      %v2274 = vpop.f32.mrb[0].mxu0
      %v2275 = vadd.f32 0.0, %v2274
      %v2276 = vpop.f32.mrb[0].mxu0
      %2277 = vmatprep.mubr.f32.mxu0 0.0
      %2278 = vmatmul.mubr.f32.gmra.mrb[0].mxu0 %v2106
      %v2279 = vpop.f32.mrb[0].mxu0
      %v2280 = vadd.f32 0.0, %v2279
      %v2281 = vpop.f32.mrb[0].mxu0
      %2282 = vmatprep.mubr.f32.mxu0 0.0
      %2283 = vmatmul.mubr.f32.gmra.mrb[0].mxu0 %v2109
      %v2284 = vpop.f32.mrb[0].mxu0
      %v2285 = vadd.f32 0.0, %v2284
      %v2286 = vpop.f32.mrb[0].mxu0
      %2287 = vmatprep.mubr.f32.mxu0 0.0
      %2288 = vmatmul.mubr.f32.gmra.mrb[0].mxu0 %v2112
      %v2289 = vpop.f32.mrb[0].mxu0
      %v2290 = vadd.f32 0.0, %v2289
      %v2291 = vpop.f32.mrb[0].mxu0
      %2292 = vmatprep.mubr.f32.mxu0 0.0
      %2293 = vmatmul.mubr.f32.gmra.mrb[0].mxu0 %v2115
      %v2294 = vpop.f32.mrb[0].mxu0
      %v2295 = vadd.f32 0.0, %v2294
      %v2296 = vpop.f32.mrb[0].mxu0
      %2297 = vmatprep.mubr.f32.mxu0 0.0
      %2298 = vmatmul.mubr.f32.gmra.mrb[0].mxu0 %v2118
      %v2299 = vpop.f32.mrb[0].mxu0
      %v2300 = vadd.f32 0.0, %v2299
      %v2301 = vpop.f32.mrb[0].mxu0
      %2302 = vmatprep.mubr.f32.mxu0 0.0
      %2303 = vmatmul.mubr.f32.gmra.mrb[0].mxu0 %v2121
      %v2304 = vpop.f32.mrb[0].mxu0
      %v2305 = vadd.f32 0.0, %v2304
      %v2306 = vpop.f32.mrb[0].mxu0
      %2307 = vmatprep.mubr.f32.mxu0 0.0
      %2308 = vmatmul.mubr.f32.gmra.mrb[0].mxu0 %v2124
      %v2309 = vpop.f32.mrb[0].mxu0
      %v2310 = vadd.f32 0.0, %v2309
      %v2311 = vpop.f32.mrb[0].mxu0
      %2312 = vmatprep.mubr.f32.mxu0 0.0
      %2313 = vmatmul.mubr.f32.gmra.mrb[0].mxu0 %v2127
      %v2314 = vpop.f32.mrb[0].mxu0
      %v2315 = vadd.f32 0.0, %v2314
      %v2316 = vpop.f32.mrb[0].mxu0
      %2317 = vmatprep.mubr.f32.mxu0 0.0
      %2318 = vmatmul.mubr.f32.gmra.mrb[0].mxu0 %v2130
      %v2319 = vpop.f32.mrb[0].mxu0
      %v2320 = vadd.f32 0.0, %v2319
      %v2321 = vpop.f32.mrb[0].mxu0
      %2322 = vmatprep.mubr.f32.mxu0 0.0
      %2323 = vmatmul.mubr.f32.gmra.mrb[0].mxu0 %v2133
      %v2324 = vpop.f32.mrb[0].mxu0
      %v2325 = vadd.f32 0.0, %v2324
      %v2326 = vpop.f32.mrb[0].mxu0
      %2327 = vmatprep.mubr.f32.mxu0 0.0
      %2328 = vmatmul.mubr.f32.gmra.mrb[0].mxu0 %v2136
      %v2329 = vpop.f32.mrb[0].mxu0
      %v2330 = vadd.f32 0.0, %v2329
      %v2331 = vpop.f32.mrb[0].mxu0
      %2332 = vmatprep.mubr.f32.mxu0 0.0
      %2333 = vmatmul.mubr.f32.gmra.mrb[0].mxu0 %v2139
      %v2334 = vpop.f32.mrb[0].mxu0
      %v2335 = vadd.f32 0.0, %v2334
      %v2336 = vpop.f32.mrb[0].mxu0
      %2337 = vmatprep.mubr.f32.mxu0 0.0
      %2338 = vmatmul.mubr.f32.gmra.mrb[0].mxu0 %v2142
      %v2339 = vpop.f32.mrb[0].mxu0
      %v2340 = vadd.f32 0.0, %v2339
      %v2341 = vpop.f32.mrb[0].mxu0
      %2342 = vmatprep.mubr.f32.mxu0 0.0
      %2343 = vmatmul.mubr.f32.gmra.mrb[0].mxu0 %v2145
      %v2344 = vpop.f32.mrb[0].mxu0
      %v2345 = vadd.f32 0.0, %v2344
      %v2346 = vpop.f32.mrb[0].mxu0
      %2347 = vmatprep.mubr.f32.mxu0 0.0
      %2348 = vmatmul.mubr.f32.gmra.mrb[0].mxu0 %v2148
      %v2349 = vpop.f32.mrb[0].mxu0
      %v2350 = vadd.f32 0.0, %v2349
      %v2351 = vpop.f32.mrb[0].mxu0
      %2352 = vmatprep.mubr.f32.mxu0 0.0
      %2353 = vmatmul.mubr.f32.gmra.mrb[0].mxu0 %v2151
      %v2354 = vpop.f32.mrb[0].mxu0
      %v2355 = vadd.f32 0.0, %v2354
      %v2356 = vpop.f32.mrb[0].mxu0
      %2357 = vmatprep.mubr.f32.mxu0 0.0
      %2358 = vmatmul.mubr.f32.gmra.mrb[0].mxu0 %v2154
      %v2359 = vpop.f32.mrb[0].mxu0
      %v2360 = vadd.f32 0.0, %v2359
      %v2361 = vpop.f32.mrb[0].mxu0
      %2362 = vmatprep.mubr.f32.mxu0 0.0
      %2363 = vmatmul.mubr.f32.gmra.mrb[0].mxu0 %v2157
      %v2364 = vpop.f32.mrb[0].mxu0
      %v2365 = vadd.f32 0.0, %v2364
      %v2366 = vpop.f32.mrb[0].mxu0
      %2367 = vmatprep.mubr.f32.mxu0 0.0
      %2368 = vmatmul.mubr.f32.gmra.mrb[0].mxu0 %v2160
      %v2369 = vpop.f32.mrb[0].mxu0
      %v2370 = vadd.f32 0.0, %v2369
      %v2371 = vpop.f32.mrb[0].mxu0
      %2372 = vmatprep.mubr.f32.mxu0 0.0
      %2373 = vmatmul.mubr.f32.gmra.mrb[0].mxu0 %v2163
      %v2374 = vpop.f32.mrb[0].mxu0
      %v2375 = vadd.f32 0.0, %v2374
      %v2376 = vpop.f32.mrb[0].mxu0
      %2377 = vmatprep.mubr.f32.mxu0 0.0
      %2378 = vmatmul.mubr.f32.gmra.mrb[0].mxu0 %v2166
      %v2379 = vpop.f32.mrb[0].mxu0
      %v2380 = vadd.f32 0.0, %v2379
      %v2381 = vpop.f32.mrb[0].mxu0
      %2382 = vmatprep.mubr.f32.mxu0 0.0
      %2383 = vmatmul.mubr.f32.gmra.mrb[0].mxu0 %v2169
      %v2384 = vpop.f32.mrb[0].mxu0
      %v2385 = vadd.f32 0.0, %v2384
      %v2386 = vpop.f32.mrb[0].mxu0
      %2387 = vmatprep.mubr.f32.mxu0 0.0
      %2388 = vmatmul.mubr.f32.gmra.mrb[0].mxu0 %v2172
      %v2389 = vpop.f32.mrb[0].mxu0
      %v2390 = vadd.f32 0.0, %v2389
      %v2391 = vpop.f32.mrb[0].mxu0
      %2392 = vmatprep.mubr.f32.mxu0 0.0
      %2393 = vmatmul.mubr.f32.gmra.mrb[0].mxu0 %v2175
      %v2394 = vpop.f32.mrb[0].mxu0
      %v2395 = vadd.f32 0.0, %v2394
      %v2396 = vpop.f32.mrb[0].mxu0
      %2397 = vmatprep.mubr.f32.mxu0 0.0
      %2398 = vmatmul.mubr.f32.gmra.mrb[0].mxu0 %v2178
      %v2399 = vpop.f32.mrb[0].mxu0
      %v2400 = vadd.f32 0.0, %v2399
      %v2401 = vpop.f32.mrb[0].mxu0
      %2402 = vmatprep.mubr.f32.mxu0 0.0
      %2403 = vmatmul.mubr.f32.gmra.mrb[0].mxu0 %v2181
      %v2404 = vpop.f32.mrb[0].mxu0
      %v2405 = vadd.f32 0.0, %v2404
      %v2406 = vpop.f32.mrb[0].mxu0
      %2407 = vmatprep.mubr.f32.mxu0 0.0
      %2408 = vmatmul.mubr.f32.gmra.mrb[0].mxu0 %v2184
      %v2409 = vpop.f32.mrb[0].mxu0
      %v2410 = vadd.f32 0.0, %v2409
      %v2411 = vpop.f32.mrb[0].mxu0
      %2412 = vmatprep.mubr.f32.mxu0 0.0
      %2413 = vmatmul.mubr.f32.gmra.mrb[0].mxu0 %v2187
      %v2414 = vpop.f32.mrb[0].mxu0
      %v2415 = vadd.f32 0.0, %v2414
      %v2416 = vpop.f32.mrb[0].mxu0
      %2417 = vdwg.mxu0
      %vm2418 = vcmask 64512
      %2419 = vst.msk [vmem:[%s211] sm:$0xff] %vm2418, %v2260
      %2420 = vst.msk [vmem:[%s211 + $0x8] sm:$0xff] %vm2418, %v2265
      %2421 = vst.msk [vmem:[%s211 + $0x10] sm:$0xff] %vm2418, %v2270
      %2422 = vst.msk [vmem:[%s211 + $0x18] sm:$0xff] %vm2418, %v2275
      %2423 = vst.msk [vmem:[%s211 + $0x20] sm:$0xff] %vm2418, %v2280
      %2424 = vst.msk [vmem:[%s211 + $0x28] sm:$0xff] %vm2418, %v2285
      %2425 = vst.msk [vmem:[%s211 + $0x30] sm:$0xff] %vm2418, %v2290
      %2426 = vst.msk [vmem:[%s211 + $0x38] sm:$0xff] %vm2418, %v2295
      %2427 = vst.msk [vmem:[%s211 + $0x40] sm:$0xff] %vm2418, %v2300
      %2428 = vst.msk [vmem:[%s211 + $0x48] sm:$0xff] %vm2418, %v2305
      %2429 = vst.msk [vmem:[%s211 + $0x50] sm:$0xff] %vm2418, %v2310
      %2430 = vst.msk [vmem:[%s211 + $0x58] sm:$0xff] %vm2418, %v2315
      %2431 = vst.msk [vmem:[%s211 + $0x60] sm:$0xff] %vm2418, %v2320
      %2432 = vst.msk [vmem:[%s211 + $0x68] sm:$0xff] %vm2418, %v2325
      %2433 = vst.msk [vmem:[%s211 + $0x70] sm:$0xff] %vm2418, %v2330
      %2434 = vst.msk [vmem:[%s211 + $0x78] sm:$0xff] %vm2418, %v2335
      %2435 = vst.msk [vmem:[%s211 + $0x80] sm:$0xff] %vm2418, %v2340
      %2436 = vst.msk [vmem:[%s211 + $0x88] sm:$0xff] %vm2418, %v2345
      %2437 = vst.msk [vmem:[%s211 + $0x90] sm:$0xff] %vm2418, %v2350
      %2438 = vst.msk [vmem:[%s211 + $0x98] sm:$0xff] %vm2418, %v2355
      %2439 = vst.msk [vmem:[%s211 + $0xa0] sm:$0xff] %vm2418, %v2360
      %2440 = vst.msk [vmem:[%s211 + $0xa8] sm:$0xff] %vm2418, %v2365
      %2441 = vst.msk [vmem:[%s211 + $0xb0] sm:$0xff] %vm2418, %v2370
      %2442 = vst.msk [vmem:[%s211 + $0xb8] sm:$0xff] %vm2418, %v2375
      %2443 = vst.msk [vmem:[%s211 + $0xc0] sm:$0xff] %vm2418, %v2380
      %2444 = vst.msk [vmem:[%s211 + $0xc8] sm:$0xff] %vm2418, %v2385
      %2445 = vst.msk [vmem:[%s211 + $0xd0] sm:$0xff] %vm2418, %v2390
      %2446 = vst.msk [vmem:[%s211 + $0xd8] sm:$0xff] %vm2418, %v2395
      %2447 = vst.msk [vmem:[%s211 + $0xe0] sm:$0xff] %vm2418, %v2400
      %2448 = vst.msk [vmem:[%s211 + $0xe8] sm:$0xff] %vm2418, %v2405
      %2449 = vst.msk [vmem:[%s211 + $0xf0] sm:$0xff] %vm2418, %v2410
      %2450 = vst.msk [vmem:[%s211 + $0xf8] sm:$0xff] %vm2418, %v2415
      %v2451 = vsel %vm2418, %v2260, 0.0
      %v2452 = vsel %vm2418, %v2265, 0.0
      %v2453 = vadd.f32 %v2451, %v2452
      %v2454 = vsel %vm2418, %v2270, 0.0
      %v2455 = vadd.f32 %v2453, %v2454
      %v2456 = vsel %vm2418, %v2275, 0.0
      %v2457 = vadd.f32 %v2455, %v2456
      %v2458 = vsel %vm2418, %v2280, 0.0
      %v2459 = vadd.f32 %v2457, %v2458
      %v2460 = vsel %vm2418, %v2285, 0.0
      %v2461 = vadd.f32 %v2459, %v2460
      %v2462 = vsel %vm2418, %v2290, 0.0
      %v2463 = vadd.f32 %v2461, %v2462
      %v2464 = vsel %vm2418, %v2295, 0.0
      %v2465 = vadd.f32 %v2463, %v2464
      %v2466 = vsel %vm2418, %v2300, 0.0
      %v2467 = vadd.f32 %v2465, %v2466
      %v2468 = vsel %vm2418, %v2305, 0.0
      %v2469 = vadd.f32 %v2467, %v2468
      %v2470 = vsel %vm2418, %v2310, 0.0
      %v2471 = vadd.f32 %v2469, %v2470
      %v2472 = vsel %vm2418, %v2315, 0.0
      %v2473 = vadd.f32 %v2471, %v2472
      %v2474 = vsel %vm2418, %v2320, 0.0
      %v2475 = vadd.f32 %v2473, %v2474
      %v2476 = vsel %vm2418, %v2325, 0.0
      %v2477 = vadd.f32 %v2475, %v2476
      %v2478 = vsel %vm2418, %v2330, 0.0
      %v2479 = vadd.f32 %v2477, %v2478
      %v2480 = vsel %vm2418, %v2335, 0.0
      %v2481 = vadd.f32 %v2479, %v2480
      %v2482 = vsel %vm2418, %v2340, 0.0
      %v2483 = vadd.f32 %v2481, %v2482
      %v2484 = vsel %vm2418, %v2345, 0.0
      %v2485 = vadd.f32 %v2483, %v2484
      %v2486 = vsel %vm2418, %v2350, 0.0
      %v2487 = vadd.f32 %v2485, %v2486
      %v2488 = vsel %vm2418, %v2355, 0.0
      %v2489 = vadd.f32 %v2487, %v2488
      %v2490 = vsel %vm2418, %v2360, 0.0
      %v2491 = vadd.f32 %v2489, %v2490
      %v2492 = vsel %vm2418, %v2365, 0.0
      %v2493 = vadd.f32 %v2491, %v2492
      %v2494 = vsel %vm2418, %v2370, 0.0
      %v2495 = vadd.f32 %v2493, %v2494
      %v2496 = vsel %vm2418, %v2375, 0.0
      %v2497 = vadd.f32 %v2495, %v2496
      %v2498 = vsel %vm2418, %v2380, 0.0
      %v2499 = vadd.f32 %v2497, %v2498
      %v2500 = vsel %vm2418, %v2385, 0.0
      %v2501 = vadd.f32 %v2499, %v2500
      %v2502 = vsel %vm2418, %v2390, 0.0
      %v2503 = vadd.f32 %v2501, %v2502
      %v2504 = vsel %vm2418, %v2395, 0.0
      %v2505 = vadd.f32 %v2503, %v2504
      %v2506 = vsel %vm2418, %v2400, 0.0
      %v2507 = vadd.f32 %v2505, %v2506
      %v2508 = vsel %vm2418, %v2405, 0.0
      %v2509 = vadd.f32 %v2507, %v2508
      %v2510 = vsel %vm2418, %v2410, 0.0
      %v2511 = vadd.f32 %v2509, %v2510
      %v2512 = vsel %vm2418, %v2415, 0.0
      %v2513 = vadd.f32 %v2511, %v2512
      %v2514 = vrot.slane %v2513, 4
      %v2515 = vadd.f32 %v2513, %v2514
      %v2516 = vrot.slane %v2515, 2
      %v2517 = vadd.f32 %v2515, %v2516
      %v2518 = vrot.slane %v2517, 1
      %v2519 = vadd.f32 %v2517, %v2518
      %v2520 = vmul.f32 %v2260, %v2260
      %v2521 = vmul.f32 %v2265, %v2265
      %v2522 = vmul.f32 %v2270, %v2270
      %v2523 = vmul.f32 %v2275, %v2275
      %v2524 = vmul.f32 %v2280, %v2280
      %v2525 = vmul.f32 %v2285, %v2285
      %v2526 = vmul.f32 %v2290, %v2290
      %v2527 = vmul.f32 %v2295, %v2295
      %v2528 = vmul.f32 %v2300, %v2300
      %v2529 = vmul.f32 %v2305, %v2305
      %v2530 = vmul.f32 %v2310, %v2310
      %v2531 = vmul.f32 %v2315, %v2315
      %v2532 = vmul.f32 %v2320, %v2320
      %v2533 = vmul.f32 %v2325, %v2325
      %v2534 = vmul.f32 %v2330, %v2330
      %v2535 = vmul.f32 %v2335, %v2335
      %v2536 = vmul.f32 %v2340, %v2340
      %v2537 = vmul.f32 %v2345, %v2345
      %v2538 = vmul.f32 %v2350, %v2350
      %v2539 = vmul.f32 %v2355, %v2355
      %v2540 = vmul.f32 %v2360, %v2360
      %v2541 = vmul.f32 %v2365, %v2365
      %v2542 = vmul.f32 %v2370, %v2370
      %v2543 = vmul.f32 %v2375, %v2375
      %v2544 = vmul.f32 %v2380, %v2380
      %v2545 = vmul.f32 %v2385, %v2385
      %v2546 = vmul.f32 %v2390, %v2390
      %v2547 = vmul.f32 %v2395, %v2395
      %v2548 = vmul.f32 %v2400, %v2400
      %v2549 = vmul.f32 %v2405, %v2405
      %v2550 = vmul.f32 %v2410, %v2410
      %v2551 = vmul.f32 %v2415, %v2415
      %v2552 = vsel %vm2418, %v2520, 0.0
      %v2553 = vsel %vm2418, %v2521, 0.0
      %v2554 = vadd.f32 %v2552, %v2553
      %v2555 = vsel %vm2418, %v2522, 0.0
      %v2556 = vadd.f32 %v2554, %v2555
      %v2557 = vsel %vm2418, %v2523, 0.0
      %v2558 = vadd.f32 %v2556, %v2557
      %v2559 = vsel %vm2418, %v2524, 0.0
      %v2560 = vadd.f32 %v2558, %v2559
      %v2561 = vsel %vm2418, %v2525, 0.0
      %v2562 = vadd.f32 %v2560, %v2561
      %v2563 = vsel %vm2418, %v2526, 0.0
      %v2564 = vadd.f32 %v2562, %v2563
      %v2565 = vsel %vm2418, %v2527, 0.0
      %v2566 = vadd.f32 %v2564, %v2565
      %v2567 = vsel %vm2418, %v2528, 0.0
      %v2568 = vadd.f32 %v2566, %v2567
      %v2569 = vsel %vm2418, %v2529, 0.0
      %v2570 = vadd.f32 %v2568, %v2569
      %v2571 = vsel %vm2418, %v2530, 0.0
      %v2572 = vadd.f32 %v2570, %v2571
      %v2573 = vsel %vm2418, %v2531, 0.0
      %v2574 = vadd.f32 %v2572, %v2573
      %v2575 = vsel %vm2418, %v2532, 0.0
      %v2576 = vadd.f32 %v2574, %v2575
      %v2577 = vsel %vm2418, %v2533, 0.0
      %v2578 = vadd.f32 %v2576, %v2577
      %v2579 = vsel %vm2418, %v2534, 0.0
      %v2580 = vadd.f32 %v2578, %v2579
      %v2581 = vsel %vm2418, %v2535, 0.0
      %v2582 = vadd.f32 %v2580, %v2581
      %v2583 = vsel %vm2418, %v2536, 0.0
      %v2584 = vadd.f32 %v2582, %v2583
      %v2585 = vsel %vm2418, %v2537, 0.0
      %v2586 = vadd.f32 %v2584, %v2585
      %v2587 = vsel %vm2418, %v2538, 0.0
      %v2588 = vadd.f32 %v2586, %v2587
      %v2589 = vsel %vm2418, %v2539, 0.0
      %v2590 = vadd.f32 %v2588, %v2589
      %v2591 = vsel %vm2418, %v2540, 0.0
      %v2592 = vadd.f32 %v2590, %v2591
      %v2593 = vsel %vm2418, %v2541, 0.0
      %v2594 = vadd.f32 %v2592, %v2593
      %v2595 = vsel %vm2418, %v2542, 0.0
      %v2596 = vadd.f32 %v2594, %v2595
      %v2597 = vsel %vm2418, %v2543, 0.0
      %v2598 = vadd.f32 %v2596, %v2597
      %v2599 = vsel %vm2418, %v2544, 0.0
      %v2600 = vadd.f32 %v2598, %v2599
      %v2601 = vsel %vm2418, %v2545, 0.0
      %v2602 = vadd.f32 %v2600, %v2601
      %v2603 = vsel %vm2418, %v2546, 0.0
      %v2604 = vadd.f32 %v2602, %v2603
      %v2605 = vsel %vm2418, %v2547, 0.0
      %v2606 = vadd.f32 %v2604, %v2605
      %v2607 = vsel %vm2418, %v2548, 0.0
      %v2608 = vadd.f32 %v2606, %v2607
      %v2609 = vsel %vm2418, %v2549, 0.0
      %v2610 = vadd.f32 %v2608, %v2609
      %v2611 = vsel %vm2418, %v2550, 0.0
      %v2612 = vadd.f32 %v2610, %v2611
      %v2613 = vsel %vm2418, %v2551, 0.0
      %v2614 = vadd.f32 %v2612, %v2613
      %v2615 = vrot.slane %v2614, 4
      %v2616 = vadd.f32 %v2614, %v2615
      %v2617 = vrot.slane %v2616, 2
      %v2618 = vadd.f32 %v2616, %v2617
      %v2619 = vrot.slane %v2618, 1
      %v2620 = vadd.f32 %v2618, %v2619
      %2653 = vrot.lane.b32.xlu0 %v2260, 120
      %v2654 = vpop.permute.xlu0 %2653
      %2655 = vrot.lane.b32.xlu0 %v2265, 120
      %v2656 = vpop.permute.xlu0 %2655
      %2657 = vrot.lane.b32.xlu0 %v2270, 120
      %v2658 = vpop.permute.xlu0 %2657
      %2659 = vrot.lane.b32.xlu0 %v2275, 120
      %v2660 = vpop.permute.xlu0 %2659
      %2661 = vrot.lane.b32.xlu0 %v2280, 120
      %v2662 = vpop.permute.xlu0 %2661
      %2663 = vrot.lane.b32.xlu0 %v2285, 120
      %v2664 = vpop.permute.xlu0 %2663
      %2665 = vrot.lane.b32.xlu0 %v2290, 120
      %v2666 = vpop.permute.xlu0 %2665
      %2667 = vrot.lane.b32.xlu0 %v2295, 120
      %v2668 = vpop.permute.xlu0 %2667
      %2669 = vrot.lane.b32.xlu0 %v2300, 120
      %v2670 = vpop.permute.xlu0 %2669
      %2671 = vrot.lane.b32.xlu0 %v2305, 120
      %v2672 = vpop.permute.xlu0 %2671
      %2673 = vrot.lane.b32.xlu0 %v2310, 120
      %v2674 = vpop.permute.xlu0 %2673
      %2675 = vrot.lane.b32.xlu0 %v2315, 120
      %v2676 = vpop.permute.xlu0 %2675
      %2677 = vrot.lane.b32.xlu0 %v2320, 120
      %v2678 = vpop.permute.xlu0 %2677
      %2679 = vrot.lane.b32.xlu0 %v2325, 120
      %v2680 = vpop.permute.xlu0 %2679
      %2681 = vrot.lane.b32.xlu0 %v2330, 120
      %v2682 = vpop.permute.xlu0 %2681
      %2683 = vrot.lane.b32.xlu0 %v2335, 120
      %v2684 = vpop.permute.xlu0 %2683
      %2685 = vrot.lane.b32.xlu0 %v2340, 120
      %v2686 = vpop.permute.xlu0 %2685
      %2687 = vrot.lane.b32.xlu0 %v2345, 120
      %v2688 = vpop.permute.xlu0 %2687
      %2689 = vrot.lane.b32.xlu0 %v2350, 120
      %v2690 = vpop.permute.xlu0 %2689
      %2691 = vrot.lane.b32.xlu0 %v2355, 120
      %v2692 = vpop.permute.xlu0 %2691
      %2693 = vrot.lane.b32.xlu0 %v2360, 120
      %v2694 = vpop.permute.xlu0 %2693
      %2695 = vrot.lane.b32.xlu0 %v2365, 120
      %v2696 = vpop.permute.xlu0 %2695
      %2697 = vrot.lane.b32.xlu0 %v2370, 120
      %v2698 = vpop.permute.xlu0 %2697
      %2699 = vrot.lane.b32.xlu0 %v2375, 120
      %v2700 = vpop.permute.xlu0 %2699
      %2701 = vrot.lane.b32.xlu0 %v2380, 120
      %v2702 = vpop.permute.xlu0 %2701
      %2703 = vrot.lane.b32.xlu0 %v2385, 120
      %v2704 = vpop.permute.xlu0 %2703
      %2705 = vrot.lane.b32.xlu0 %v2390, 120
      %v2706 = vpop.permute.xlu0 %2705
      %2707 = vrot.lane.b32.xlu0 %v2395, 120
      %v2708 = vpop.permute.xlu0 %2707
      %2709 = vrot.lane.b32.xlu0 %v2400, 120
      %v2710 = vpop.permute.xlu0 %2709
      %2711 = vrot.lane.b32.xlu0 %v2405, 120
      %v2712 = vpop.permute.xlu0 %2711
      %2713 = vrot.lane.b32.xlu0 %v2410, 120
      %v2714 = vpop.permute.xlu0 %2713
      %2715 = vrot.lane.b32.xlu0 %v2415, 120
      %v2716 = vpop.permute.xlu0 %2715
      %2749 = vst.msk [vmem:[%s216] sm:$0xff] %vm2418, %v2654
      %2750 = vst.msk [vmem:[%s216 + $0x8] sm:$0xff] %vm2418, %v2656
      %2751 = vst.msk [vmem:[%s216 + $0x10] sm:$0xff] %vm2418, %v2658
      %2752 = vst.msk [vmem:[%s216 + $0x18] sm:$0xff] %vm2418, %v2660
      %2753 = vst.msk [vmem:[%s216 + $0x20] sm:$0xff] %vm2418, %v2662
      %2754 = vst.msk [vmem:[%s216 + $0x28] sm:$0xff] %vm2418, %v2664
      %2755 = vst.msk [vmem:[%s216 + $0x30] sm:$0xff] %vm2418, %v2666
      %2756 = vst.msk [vmem:[%s216 + $0x38] sm:$0xff] %vm2418, %v2668
      %2757 = vst.msk [vmem:[%s216 + $0x40] sm:$0xff] %vm2418, %v2670
      %2758 = vst.msk [vmem:[%s216 + $0x48] sm:$0xff] %vm2418, %v2672
      %2759 = vst.msk [vmem:[%s216 + $0x50] sm:$0xff] %vm2418, %v2674
      %2760 = vst.msk [vmem:[%s216 + $0x58] sm:$0xff] %vm2418, %v2676
      %2761 = vst.msk [vmem:[%s216 + $0x60] sm:$0xff] %vm2418, %v2678
      %2762 = vst.msk [vmem:[%s216 + $0x68] sm:$0xff] %vm2418, %v2680
      %2763 = vst.msk [vmem:[%s216 + $0x70] sm:$0xff] %vm2418, %v2682
      %2764 = vst.msk [vmem:[%s216 + $0x78] sm:$0xff] %vm2418, %v2684
      %2765 = vst.msk [vmem:[%s216 + $0x80] sm:$0xff] %vm2418, %v2686
      %2766 = vst.msk [vmem:[%s216 + $0x88] sm:$0xff] %vm2418, %v2688
      %2767 = vst.msk [vmem:[%s216 + $0x90] sm:$0xff] %vm2418, %v2690
      %2768 = vst.msk [vmem:[%s216 + $0x98] sm:$0xff] %vm2418, %v2692
      %2769 = vst.msk [vmem:[%s216 + $0xa0] sm:$0xff] %vm2418, %v2694
      %2770 = vst.msk [vmem:[%s216 + $0xa8] sm:$0xff] %vm2418, %v2696
      %2771 = vst.msk [vmem:[%s216 + $0xb0] sm:$0xff] %vm2418, %v2698
      %2772 = vst.msk [vmem:[%s216 + $0xb8] sm:$0xff] %vm2418, %v2700
      %2773 = vst.msk [vmem:[%s216 + $0xc0] sm:$0xff] %vm2418, %v2702
      %2774 = vst.msk [vmem:[%s216 + $0xc8] sm:$0xff] %vm2418, %v2704
      %2775 = vst.msk [vmem:[%s216 + $0xd0] sm:$0xff] %vm2418, %v2706
      %2776 = vst.msk [vmem:[%s216 + $0xd8] sm:$0xff] %vm2418, %v2708
      %2777 = vst.msk [vmem:[%s216 + $0xe0] sm:$0xff] %vm2418, %v2710
      %2778 = vst.msk [vmem:[%s216 + $0xe8] sm:$0xff] %vm2418, %v2712
      %2779 = vst.msk [vmem:[%s216 + $0xf0] sm:$0xff] %vm2418, %v2714
      %2780 = vst.msk [vmem:[%s216 + $0xf8] sm:$0xff] %vm2418, %v2716
      %vm2781 = vcmask 130112
      %v2782 = vsel %vm2781, %v2260, 0.0
      %v2783 = vsel %vm2781, %v2265, 0.0
      %v2784 = vadd.f32 %v2782, %v2783
      %v2785 = vsel %vm2781, %v2270, 0.0
      %v2786 = vadd.f32 %v2784, %v2785
      %v2787 = vsel %vm2781, %v2275, 0.0
      %v2788 = vadd.f32 %v2786, %v2787
      %v2789 = vsel %vm2781, %v2280, 0.0
      %v2790 = vadd.f32 %v2788, %v2789
      %v2791 = vsel %vm2781, %v2285, 0.0
      %v2792 = vadd.f32 %v2790, %v2791
      %v2793 = vsel %vm2781, %v2290, 0.0
      %v2794 = vadd.f32 %v2792, %v2793
      %v2795 = vsel %vm2781, %v2295, 0.0
      %v2796 = vadd.f32 %v2794, %v2795
      %v2797 = vsel %vm2781, %v2300, 0.0
      %v2798 = vadd.f32 %v2796, %v2797
      %v2799 = vsel %vm2781, %v2305, 0.0
      %v2800 = vadd.f32 %v2798, %v2799
      %v2801 = vsel %vm2781, %v2310, 0.0
      %v2802 = vadd.f32 %v2800, %v2801
      %v2803 = vsel %vm2781, %v2315, 0.0
      %v2804 = vadd.f32 %v2802, %v2803
      %v2805 = vsel %vm2781, %v2320, 0.0
      %v2806 = vadd.f32 %v2804, %v2805
      %v2807 = vsel %vm2781, %v2325, 0.0
      %v2808 = vadd.f32 %v2806, %v2807
      %v2809 = vsel %vm2781, %v2330, 0.0
      %v2810 = vadd.f32 %v2808, %v2809
      %v2811 = vsel %vm2781, %v2335, 0.0
      %v2812 = vadd.f32 %v2810, %v2811
      %v2813 = vsel %vm2781, %v2340, 0.0
      %v2814 = vadd.f32 %v2812, %v2813
      %v2815 = vsel %vm2781, %v2345, 0.0
      %v2816 = vadd.f32 %v2814, %v2815
      %v2817 = vsel %vm2781, %v2350, 0.0
      %v2818 = vadd.f32 %v2816, %v2817
      %v2819 = vsel %vm2781, %v2355, 0.0
      %v2820 = vadd.f32 %v2818, %v2819
      %v2821 = vsel %vm2781, %v2360, 0.0
      %v2822 = vadd.f32 %v2820, %v2821
      %v2823 = vsel %vm2781, %v2365, 0.0
      %v2824 = vadd.f32 %v2822, %v2823
      %v2825 = vsel %vm2781, %v2370, 0.0
      %v2826 = vadd.f32 %v2824, %v2825
      %v2827 = vsel %vm2781, %v2375, 0.0
      %v2828 = vadd.f32 %v2826, %v2827
      %v2829 = vsel %vm2781, %v2380, 0.0
      %v2830 = vadd.f32 %v2828, %v2829
      %v2831 = vsel %vm2781, %v2385, 0.0
      %v2832 = vadd.f32 %v2830, %v2831
      %v2833 = vsel %vm2781, %v2390, 0.0
      %v2834 = vadd.f32 %v2832, %v2833
      %v2835 = vsel %vm2781, %v2395, 0.0
      %v2836 = vadd.f32 %v2834, %v2835
      %v2837 = vsel %vm2781, %v2400, 0.0
      %v2838 = vadd.f32 %v2836, %v2837
      %v2839 = vsel %vm2781, %v2405, 0.0
      %v2840 = vadd.f32 %v2838, %v2839
      %v2841 = vsel %vm2781, %v2410, 0.0
      %v2842 = vadd.f32 %v2840, %v2841
      %v2843 = vsel %vm2781, %v2415, 0.0
      %v2844 = vadd.f32 %v2842, %v2843
      %v2845 = vrot.slane %v2844, 4
      %v2846 = vadd.f32 %v2844, %v2845
      %v2847 = vrot.slane %v2846, 2
      %v2848 = vadd.f32 %v2846, %v2847
      %v2849 = vrot.slane %v2848, 1
      %v2850 = vadd.f32 %v2848, %v2849
      %v2851 = vsel %vm2781, %v2520, 0.0
      %v2852 = vsel %vm2781, %v2521, 0.0
      %v2853 = vadd.f32 %v2851, %v2852
      %v2854 = vsel %vm2781, %v2522, 0.0
      %v2855 = vadd.f32 %v2853, %v2854
      %v2856 = vsel %vm2781, %v2523, 0.0
      %v2857 = vadd.f32 %v2855, %v2856
      %v2858 = vsel %vm2781, %v2524, 0.0
      %v2859 = vadd.f32 %v2857, %v2858
      %v2860 = vsel %vm2781, %v2525, 0.0
      %v2861 = vadd.f32 %v2859, %v2860
      %v2862 = vsel %vm2781, %v2526, 0.0
      %v2863 = vadd.f32 %v2861, %v2862
      %v2864 = vsel %vm2781, %v2527, 0.0
      %v2865 = vadd.f32 %v2863, %v2864
      %v2866 = vsel %vm2781, %v2528, 0.0
      %v2867 = vadd.f32 %v2865, %v2866
      %v2868 = vsel %vm2781, %v2529, 0.0
      %v2869 = vadd.f32 %v2867, %v2868
      %v2870 = vsel %vm2781, %v2530, 0.0
      %v2871 = vadd.f32 %v2869, %v2870
      %v2872 = vsel %vm2781, %v2531, 0.0
      %v2873 = vadd.f32 %v2871, %v2872
      %v2874 = vsel %vm2781, %v2532, 0.0
      %v2875 = vadd.f32 %v2873, %v2874
      %v2876 = vsel %vm2781, %v2533, 0.0
      %v2877 = vadd.f32 %v2875, %v2876
      %v2878 = vsel %vm2781, %v2534, 0.0
      %v2879 = vadd.f32 %v2877, %v2878
      %v2880 = vsel %vm2781, %v2535, 0.0
      %v2881 = vadd.f32 %v2879, %v2880
      %v2882 = vsel %vm2781, %v2536, 0.0
      %v2883 = vadd.f32 %v2881, %v2882
      %v2884 = vsel %vm2781, %v2537, 0.0
      %v2885 = vadd.f32 %v2883, %v2884
      %v2886 = vsel %vm2781, %v2538, 0.0
      %v2887 = vadd.f32 %v2885, %v2886
      %v2888 = vsel %vm2781, %v2539, 0.0
      %v2889 = vadd.f32 %v2887, %v2888
      %v2890 = vsel %vm2781, %v2540, 0.0
      %v2891 = vadd.f32 %v2889, %v2890
      %v2892 = vsel %vm2781, %v2541, 0.0
      %v2893 = vadd.f32 %v2891, %v2892
      %v2894 = vsel %vm2781, %v2542, 0.0
      %v2895 = vadd.f32 %v2893, %v2894
      %v2896 = vsel %vm2781, %v2543, 0.0
      %v2897 = vadd.f32 %v2895, %v2896
      %v2898 = vsel %vm2781, %v2544, 0.0
      %v2899 = vadd.f32 %v2897, %v2898
      %v2900 = vsel %vm2781, %v2545, 0.0
      %v2901 = vadd.f32 %v2899, %v2900
      %v2902 = vsel %vm2781, %v2546, 0.0
      %v2903 = vadd.f32 %v2901, %v2902
      %v2904 = vsel %vm2781, %v2547, 0.0
      %v2905 = vadd.f32 %v2903, %v2904
      %v2906 = vsel %vm2781, %v2548, 0.0
      %v2907 = vadd.f32 %v2905, %v2906
      %v2908 = vsel %vm2781, %v2549, 0.0
      %v2909 = vadd.f32 %v2907, %v2908
      %v2910 = vsel %vm2781, %v2550, 0.0
      %v2911 = vadd.f32 %v2909, %v2910
      %v2912 = vsel %vm2781, %v2551, 0.0
      %v2913 = vadd.f32 %v2911, %v2912
      %v2914 = vrot.slane %v2913, 4
      %v2915 = vadd.f32 %v2913, %v2914
      %v2916 = vrot.slane %v2915, 2
      %v2917 = vadd.f32 %v2915, %v2916
      %v2918 = vrot.slane %v2917, 1
      %v2919 = vadd.f32 %v2917, %v2918
      %2921 = vrot.lane.b32.xlu0 %v2850, 120
      %v2922 = vpop.permute.xlu0 %2921
      %2925 = vrot.lane.b32.xlu0 %v2919, 120
      %v2926 = vpop.permute.xlu0 %2925
      %v2928 = vsel %vm346, %v2519, %v2620
      %vm2929 = vcmask 1041408
      %v2930 = vsel %vm2929, %v2928, %v2922
      %vm2931 = vcmask 1042432
      %v2932 = vsel %vm2931, %v2930, %v2926
      %vm2933 = vcmask 60416
      %2934 = vst.msk [vmem:[%s220] sm:$0xf] %vm2933, %v2932
      %p2935 = scmp.lt.s32.totalorder %s16, 1
      %s2936 = scalar_select %p2935, %s16, 1
      %s2937 = smul.addr %s2936, 32
      %s2938 = smul.addr %s2937, 8
      %s2939 = scalar_lea.vmem %s2, %s2938
      %p2940 = scmp.lt.s32.totalorder %s16, 1
      %s2941 = scalar_select %p2940, %s16, 1
      %s2942 = smul.addr %s2941, 32
      %s2943 = smul.addr %s2942, 8
      %s2944 = scalar_lea.vmem %s3, %s2943
      %p2945 = scmp.lt.s32.totalorder %s16, 1
      %s2946 = scalar_select %p2945, %s16, 1
      %s2947 = smul.addr %s2946, 4
      %s2948 = scalar_lea.vmem %s4, %s2947
      // Predicated region
      $region29: #{basic_block_forward.3} parent=27 // pred_check
        %p2949 = pneg %p81
      $region30: #{basic_block_forward.3} parent=27 // pred_check_branch
        %2951 = sbr.rel (%p2949) target = $region32
      $region31: #{basic_block_forward.3} parent=27 // pred_region
        _
      $region32: #{basic_block_forward.3} parent=27 // pred_fallthru
        _
      // Predicated region
      $region33: #{basic_block_forward.3} parent=27 // pred_check
        %p2952 = pneg %p107
      $region34: #{basic_block_forward.3} parent=27 // pred_check_branch
        %2954 = sbr.rel (%p2952) target = $region36
      $region35: #{basic_block_forward.3} parent=27 // pred_region
        _
      $region36: #{basic_block_forward.3} parent=27 // pred_fallthru
        _
      // Predicated region
      $region37: #{basic_block_forward.3} parent=27 // pred_check
        %p2955 = pneg %p133
      $region38: #{basic_block_forward.3} parent=27 // pred_check_branch
        %2957 = sbr.rel (%p2955) target = $region40
      $region39: #{basic_block_forward.3} parent=27 // pred_region
        _
      $region40: #{basic_block_forward.3} parent=27 // pred_fallthru
        _
    $region28: #{basic_block_forward.3} parent=5 // pred_fallthru
      _
    %p2958 = scmp.le.s32.totalorder 2, %s11
    // Predicated region
    $region41: #{basic_block_forward.3} parent=5 // pred_check
      %p2959 = pneg %p2958
    $region42: #{basic_block_forward.3} parent=5 // pred_check_branch
      %2961 = sbr.rel (%p2959) target = $region44
    $region43: #{basic_block_forward.3} parent=5 // pred_region
      %s2962 = ssub.s32 %s11, 2
      // Predicated region
      $region45: #{basic_block_forward.3} parent=43 // pred_check
        %p2963 = pneg %p87
      $region46: #{basic_block_forward.3} parent=43 // pred_check_branch
        %2965 = sbr.rel (%p2963) target = $region48
      $region47: #{basic_block_forward.3} parent=43 // pred_region
        %p2966 = scmp.lt.s32.totalorder %s17, 1
        %s2967 = scalar_select %p2966, %s17, 1
        %s2968 = smul.addr %s2967, 32
        %s2969 = smul.addr %s2968, 8
        %s2970 = scalar_lea.vmem %s2, %s2969
      $region48: #{basic_block_forward.3} parent=43 // pred_fallthru
        _
      // Predicated region
      $region49: #{basic_block_forward.3} parent=43 // pred_check
        %p2971 = pneg %p113
      $region50: #{basic_block_forward.3} parent=43 // pred_check_branch
        %2973 = sbr.rel (%p2971) target = $region52
      $region51: #{basic_block_forward.3} parent=43 // pred_region
        %p2974 = scmp.lt.s32.totalorder %s17, 1
        %s2975 = scalar_select %p2974, %s17, 1
        %s2976 = smul.addr %s2975, 32
        %s2977 = smul.addr %s2976, 8
        %s2978 = scalar_lea.vmem %s3, %s2977
      $region52: #{basic_block_forward.3} parent=43 // pred_fallthru
        _
      // Predicated region
      $region53: #{basic_block_forward.3} parent=43 // pred_check
        %p2979 = pneg %p139
      $region54: #{basic_block_forward.3} parent=43 // pred_check_branch
        %2981 = sbr.rel (%p2979) target = $region56
      $region55: #{basic_block_forward.3} parent=43 // pred_region
        %p2982 = scmp.lt.s32.totalorder %s17, 1
        %s2983 = scalar_select %p2982, %s17, 1
        %s2984 = smul.addr %s2983, 4
        %s2985 = scalar_lea.vmem %s4, %s2984
      $region56: #{basic_block_forward.3} parent=43 // pred_fallthru
        _
    $region44: #{basic_block_forward.3} parent=5 // pred_fallthru
      _
  $region6: #{basic_block_forward.3} parent=0 // loop_footer
    %s15 = sadd.s32 1, %s11
  $region7: #{basic_block_forward.3} parent=0 // loop_footer_branch
    %10 = sbr.rel target = $region3
  $region8: #{basic_block_forward.3} parent=0 // loop_exit
    _

// kernel: basic_block_forward.4
$region0: #{basic_block_forward.4}
  #allocation0 [shape = 'u32[]', space=smem, size = 0x4, offset = 0x4, fixed_abs, tag = 'smem constant byte address 0x4 - core index']
  #allocation1 [shape = 'u32[144,128]{1,0:T(1,128)}', space=vmem, size = 0x12000, scoped, tag = 'internal scratch']
  #allocation2 [shape = 'f32[1,16,16,8]{3,2,1,0:T(8,128)}', space=vmem, size = 0x20000, scoped, tag = 'scratch operand']
  #allocation3 [shape = 'f32[1,16,16,72]{3,2,1,0:T(8,128)}', space=vmem, size = 0x20000, scoped, tag = 'scratch operand']
  %s0 = inlined_call_operand.vmem [shape: f32[2,8], index: 0, kind: input, shape index: {}]
  %s1 = inlined_call_operand.vmem [shape: f32[2,16,16,8], index: 1, kind: input, shape index: {}]
  %s2 = inlined_call_operand.vmem [shape: f32[72,8], index: 2, kind: input, shape index: {}]
  %s3 = inlined_call_operand.vmem [shape: f32[2,16,16,8], index: 3, kind: output, shape index: {0}]
  %s4 = inlined_call_operand.vmem [shape: f32[2,2,8], index: 4, kind: output, shape index: {1}]
  %5 = xla_tuple %s3, %s4
  %s6 = sld [smem:[#allocation0]]
  $region53: #{basic_block_forward.4} parent=0
    _
  %s8 = ssub.s32 1, %s6
  %s9 = scalar_select 0, %s8, %s6
  loop: start=0, step=1, limit=4
  $region2: #{basic_block_forward.4} parent=0 // loop_pre_header
    _
  $region3: #{basic_block_forward.4} parent=0 // loop_header
    %s11 = sphi 0, %s15
    %p12 = scmp.ge.s32.totalorder %s11, 4
    %s19 = sphi 0, %s19
    %s21 = sphi 0, %s19
    %s22 = sphi 0, %s21
    %s36 = sphi 0, %s22
    %s42 = sphi 0, %s44
    %s45 = sphi 0, %s42
    %s46 = sphi 0, %s45
    %s62 = sphi 0, %s46
    %s66 = sphi 0, %s66
    %s68 = sphi 0, %s66
    %s69 = sphi 0, %s68
    %s83 = sphi 0, %s69
    %s89 = sphi 0, %s91
    %s92 = sphi 0, %s89
    %s93 = sphi 0, %s92
    %s109 = sphi 0, %s93
    %s115 = sphi 0, %s117
    %s118 = sphi 0, %s115
    %s119 = sphi 0, %s118
    %s135 = sphi 0, %s119
  $region4: #{basic_block_forward.4} parent=0 // loop_header_branch
    %14 = sbr.rel (%p12) target = $region8
  $region5: #{basic_block_forward.4} parent=0 // loop_body
    %s16 = ssub.s32 %s11, 1
    %s17 = ssub.s32 %s11, 2
    %s18 = sadd.s32 %s11, 1
    %s20 = sadd.s32 %s19, 1
    %p23 = scmp.eq.s32.totalorder %s11, 1
    %p24 = scmp.ne.s32.totalorder %s19, %s21
    %p25 = scmp.eq.s32.totalorder %s11, 0
    %p26 = por %p24, %p25
    %p27 = scmp.ne.s32.totalorder %s19, %s21
    %p28 = scmp.eq.s32.totalorder %s16, 1
    %p29 = por %p27, %p28
    %p30 = scmp.ne.s32.totalorder %s21, %s22
    %p31 = scmp.eq.s32.totalorder %s16, 0
    %p32 = por %p30, %p31
    %p33 = scmp.ne.s32.totalorder %s21, %s22
    %p34 = scmp.eq.s32.totalorder %s17, 1
    %p35 = por %p33, %p34
    %p37 = scmp.ne.s32.totalorder %s22, %s36
    %p38 = scmp.eq.s32.totalorder %s17, 0
    %p39 = por %p37, %p38
    %s40 = ssub.s32 %s11, %s18
    %p41 = scmp.eq.s32.totalorder %s40, 0
    %s43 = sadd.s32 %s42, 1
    %s44 = scalar_select %p41, %s42, %s43
    %p47 = pneg %p41
    %p48 = scmp.eq.s32.totalorder %s11, 1
    %p49 = por %p47, %p48
    %p50 = scmp.ne.s32.totalorder %s42, %s45
    %p51 = scmp.eq.s32.totalorder %s11, 0
    %p52 = por %p50, %p51
    %p53 = scmp.ne.s32.totalorder %s42, %s45
    %p54 = scmp.eq.s32.totalorder %s16, 1
    %p55 = por %p53, %p54
    %p56 = scmp.ne.s32.totalorder %s45, %s46
    %p57 = scmp.eq.s32.totalorder %s16, 0
    %p58 = por %p56, %p57
    %p59 = scmp.ne.s32.totalorder %s45, %s46
    %p60 = scmp.eq.s32.totalorder %s17, 1
    %p61 = por %p59, %p60
    %p63 = scmp.ne.s32.totalorder %s46, %s62
    %p64 = scmp.eq.s32.totalorder %s17, 0
    %p65 = por %p63, %p64
    %s67 = sadd.s32 %s66, 1
    %p70 = scmp.eq.s32.totalorder %s11, 1
    %p71 = scmp.ne.s32.totalorder %s66, %s68
    %p72 = scmp.eq.s32.totalorder %s11, 0
    %p73 = por %p71, %p72
    %p74 = scmp.ne.s32.totalorder %s66, %s68
    %p75 = scmp.eq.s32.totalorder %s16, 1
    %p76 = por %p74, %p75
    %p77 = scmp.ne.s32.totalorder %s68, %s69
    %p78 = scmp.eq.s32.totalorder %s16, 0
    %p79 = por %p77, %p78
    %p80 = scmp.ne.s32.totalorder %s68, %s69
    %p81 = scmp.eq.s32.totalorder %s17, 1
    %p82 = por %p80, %p81
    %p84 = scmp.ne.s32.totalorder %s69, %s83
    %p85 = scmp.eq.s32.totalorder %s17, 0
    %p86 = por %p84, %p85
    %s87 = ssub.s32 %s11, %s18
    %p88 = scmp.eq.s32.totalorder %s87, 0
    %s90 = sadd.s32 %s89, 1
    %s91 = scalar_select %p88, %s89, %s90
    %p94 = pneg %p88
    %p95 = scmp.eq.s32.totalorder %s11, 1
    %p96 = por %p94, %p95
    %p97 = scmp.ne.s32.totalorder %s89, %s92
    %p98 = scmp.eq.s32.totalorder %s11, 0
    %p99 = por %p97, %p98
    %p100 = scmp.ne.s32.totalorder %s89, %s92
    %p101 = scmp.eq.s32.totalorder %s16, 1
    %p102 = por %p100, %p101
    %p103 = scmp.ne.s32.totalorder %s92, %s93
    %p104 = scmp.eq.s32.totalorder %s16, 0
    %p105 = por %p103, %p104
    %p106 = scmp.ne.s32.totalorder %s92, %s93
    %p107 = scmp.eq.s32.totalorder %s17, 1
    %p108 = por %p106, %p107
    %p110 = scmp.ne.s32.totalorder %s93, %s109
    %p111 = scmp.eq.s32.totalorder %s17, 0
    %p112 = por %p110, %p111
    %s113 = ssub.s32 %s11, %s18
    %p114 = scmp.eq.s32.totalorder %s113, 0
    %s116 = sadd.s32 %s115, 1
    %s117 = scalar_select %p114, %s115, %s116
    %p120 = pneg %p114
    %p121 = scmp.eq.s32.totalorder %s11, 1
    %p122 = por %p120, %p121
    %p123 = scmp.ne.s32.totalorder %s115, %s118
    %p124 = scmp.eq.s32.totalorder %s11, 0
    %p125 = por %p123, %p124
    %p126 = scmp.ne.s32.totalorder %s115, %s118
    %p127 = scmp.eq.s32.totalorder %s16, 1
    %p128 = por %p126, %p127
    %p129 = scmp.ne.s32.totalorder %s118, %s119
    %p130 = scmp.eq.s32.totalorder %s16, 0
    %p131 = por %p129, %p130
    %p132 = scmp.ne.s32.totalorder %s118, %s119
    %p133 = scmp.eq.s32.totalorder %s17, 1
    %p134 = por %p132, %p133
    %p136 = scmp.ne.s32.totalorder %s119, %s135
    %p137 = scmp.eq.s32.totalorder %s17, 0
    %p138 = por %p136, %p137
    %p139 = scmp.le.s32.totalorder 1, %s11
    %p140 = scmp.lt.s32.totalorder %s11, 3
    %p141 = pnand %p139, %p140
    %p142 = pneg %p141
    // Predicated region
    $region9: #{basic_block_forward.4} parent=5 // pred_check
      _
    $region10: #{basic_block_forward.4} parent=5 // pred_check_branch
      %144 = sbr.rel (%p141) target = $region12
    $region11: #{basic_block_forward.4} parent=5 // pred_region
      %s145 = ssub.s32 %s11, 1
      // Predicated region
      $region13: #{basic_block_forward.4} parent=11 // pred_check
        %p146 = pneg %p32
      $region14: #{basic_block_forward.4} parent=11 // pred_check_branch
        %148 = sbr.rel (%p146) target = $region16
      $region15: #{basic_block_forward.4} parent=11 // pred_region
        _
      $region16: #{basic_block_forward.4} parent=11 // pred_fallthru
        _
      // Predicated region
      $region17: #{basic_block_forward.4} parent=11 // pred_check
        %p149 = pneg %p79
      $region18: #{basic_block_forward.4} parent=11 // pred_check_branch
        %151 = sbr.rel (%p149) target = $region20
      $region19: #{basic_block_forward.4} parent=11 // pred_region
        _
      $region20: #{basic_block_forward.4} parent=11 // pred_fallthru
        _
    $region12: #{basic_block_forward.4} parent=5 // pred_fallthru
      _
    %p152 = scmp.lt.s32.totalorder %s11, 2
    // Predicated region
    $region21: #{basic_block_forward.4} parent=5 // pred_check
      %p153 = pneg %p152
    $region22: #{basic_block_forward.4} parent=5 // pred_check_branch
      %155 = sbr.rel (%p153) target = $region24
    $region23: #{basic_block_forward.4} parent=5 // pred_region
      // Predicated region
      $region25: #{basic_block_forward.4} parent=23 // pred_check
        %p156 = pneg %p52
      $region26: #{basic_block_forward.4} parent=23 // pred_check_branch
        %158 = sbr.rel (%p156) target = $region28
      $region27: #{basic_block_forward.4} parent=23 // pred_region
        %p159 = scmp.lt.s32.totalorder %s11, 1
        %s160 = scalar_select %p159, %s11, 1
        %s161 = smul.addr %s160, 32
        %s162 = smul.addr %s161, 8
        %s163 = scalar_lea.vmem %s1, %s162
      $region28: #{basic_block_forward.4} parent=23 // pred_fallthru
        _
    $region24: #{basic_block_forward.4} parent=5 // pred_fallthru
      _
    %p164 = scmp.le.s32.totalorder 1, %s11
    %p165 = scmp.lt.s32.totalorder %s11, 3
    %p166 = pnand %p164, %p165
    %p167 = pneg %p166
    // Predicated region
    $region29: #{basic_block_forward.4} parent=5 // pred_check
      _
    $region30: #{basic_block_forward.4} parent=5 // pred_check_branch
      %169 = sbr.rel (%p166) target = $region32
    $region31: #{basic_block_forward.4} parent=5 // pred_region
      %s170 = ssub.s32 %s11, 1
      %p171 = pneg %p32
      %p172 = pneg %p29
      %p173 = scmp.lt.s32.totalorder %s16, 1
      %s174 = scalar_select %p173, %s16, 1
      %s175 = smul.addr %s174, 32
      %s176 = smul.addr %s175, 8
      %s177 = scalar_lea.vmem %s1, %s176
      %p178 = pneg %p58
      %p179 = pneg %p55
      %p180 = pneg %p79
      %p181 = pneg %p76
      %p182 = pneg %p105
      %p183 = pneg %p102
      %p184 = scmp.lt.s32.totalorder %s16, 1
      %s185 = scalar_select %p184, %s16, 1
      %s186 = smul.addr %s185, 32
      %s187 = smul.addr %s186, 8
      %s188 = scalar_lea.vmem %s3, %s187
      %p189 = pneg %p131
      %p190 = pneg %p128
      %p191 = scmp.lt.s32.totalorder %s16, 1
      %s192 = scalar_select %p191, %s16, 1
      %s193 = smul.addr %s192, 2
      %s194 = scalar_lea.vmem %s4, %s193
      %p195 = scmp.lt.s32.totalorder %s16, 1
      %s196 = scalar_select %p195, %s16, 1
      %s197 = smul.addr %s196, 32
      %s198 = smul.addr %s197, 8
      %s199 = scalar_lea.vmem %s1, %s198
      %p200 = scmp.lt.s32.totalorder %s16, 1
      %s201 = scalar_select %p200, %s16, 1
      %s202 = smul.addr %s201, 32
      %s203 = smul.addr %s202, 8
      %s204 = scalar_lea.vmem %s3, %s203
      %p205 = scmp.lt.s32.totalorder %s16, 1
      %s206 = scalar_select %p205, %s16, 1
      %s207 = smul.addr %s206, 2
      %s208 = scalar_lea.vmem %s4, %s207
      %v209 = vld [vmem:[%s199] sm:$0xff]
      %v210 = vld [vmem:[%s199 + $0x8] sm:$0xff]
      %v211 = vld [vmem:[%s199 + $0x10] sm:$0xff]
      %v212 = vld [vmem:[%s199 + $0x18] sm:$0xff]
      %v213 = vld [vmem:[%s199 + $0x20] sm:$0xff]
      %v214 = vld [vmem:[%s199 + $0x28] sm:$0xff]
      %v215 = vld [vmem:[%s199 + $0x30] sm:$0xff]
      %v216 = vld [vmem:[%s199 + $0x38] sm:$0xff]
      %v217 = vld [vmem:[%s199 + $0x40] sm:$0xff]
      %v218 = vld [vmem:[%s199 + $0x48] sm:$0xff]
      %v219 = vld [vmem:[%s199 + $0x50] sm:$0xff]
      %v220 = vld [vmem:[%s199 + $0x58] sm:$0xff]
      %v221 = vld [vmem:[%s199 + $0x60] sm:$0xff]
      %v222 = vld [vmem:[%s199 + $0x68] sm:$0xff]
      %v223 = vld [vmem:[%s199 + $0x70] sm:$0xff]
      %v224 = vld [vmem:[%s199 + $0x78] sm:$0xff]
      %v225 = vld [vmem:[%s199 + $0x80] sm:$0xff]
      %v226 = vld [vmem:[%s199 + $0x88] sm:$0xff]
      %v227 = vld [vmem:[%s199 + $0x90] sm:$0xff]
      %v228 = vld [vmem:[%s199 + $0x98] sm:$0xff]
      %v229 = vld [vmem:[%s199 + $0xa0] sm:$0xff]
      %v230 = vld [vmem:[%s199 + $0xa8] sm:$0xff]
      %v231 = vld [vmem:[%s199 + $0xb0] sm:$0xff]
      %v232 = vld [vmem:[%s199 + $0xb8] sm:$0xff]
      %v233 = vld [vmem:[%s199 + $0xc0] sm:$0xff]
      %v234 = vld [vmem:[%s199 + $0xc8] sm:$0xff]
      %v235 = vld [vmem:[%s199 + $0xd0] sm:$0xff]
      %v236 = vld [vmem:[%s199 + $0xd8] sm:$0xff]
      %v237 = vld [vmem:[%s199 + $0xe0] sm:$0xff]
      %v238 = vld [vmem:[%s199 + $0xe8] sm:$0xff]
      %v239 = vld [vmem:[%s199 + $0xf0] sm:$0xff]
      %v240 = vld [vmem:[%s199 + $0xf8] sm:$0xff]
      %v241 = vld [vmem:[%s0] sm:$0x1]
      %v242 = vlaneseq
      %v243 = vshrl.u32 %v242, 7
      %v244 = vsub.s32 0, %v243
      %v245 = vrot.slane %v241, %v244
      %v246 = vmul.f32 %v209, %v245
      %v247 = vmul.f32 %v210, %v245
      %v248 = vmul.f32 %v211, %v245
      %v249 = vmul.f32 %v212, %v245
      %v250 = vmul.f32 %v213, %v245
      %v251 = vmul.f32 %v214, %v245
      %v252 = vmul.f32 %v215, %v245
      %v253 = vmul.f32 %v216, %v245
      %v254 = vmul.f32 %v217, %v245
      %v255 = vmul.f32 %v218, %v245
      %v256 = vmul.f32 %v219, %v245
      %v257 = vmul.f32 %v220, %v245
      %v258 = vmul.f32 %v221, %v245
      %v259 = vmul.f32 %v222, %v245
      %v260 = vmul.f32 %v223, %v245
      %v261 = vmul.f32 %v224, %v245
      %v262 = vmul.f32 %v225, %v245
      %v263 = vmul.f32 %v226, %v245
      %v264 = vmul.f32 %v227, %v245
      %v265 = vmul.f32 %v228, %v245
      %v266 = vmul.f32 %v229, %v245
      %v267 = vmul.f32 %v230, %v245
      %v268 = vmul.f32 %v231, %v245
      %v269 = vmul.f32 %v232, %v245
      %v270 = vmul.f32 %v233, %v245
      %v271 = vmul.f32 %v234, %v245
      %v272 = vmul.f32 %v235, %v245
      %v273 = vmul.f32 %v236, %v245
      %v274 = vmul.f32 %v237, %v245
      %v275 = vmul.f32 %v238, %v245
      %v276 = vmul.f32 %v239, %v245
      %v277 = vmul.f32 %v240, %v245
      %v278 = vld [vmem:[%s0 + $0x1] sm:$0x1]
      %v279 = vlaneseq
      %v280 = vshrl.u32 %v279, 7
      %v281 = vsub.s32 0, %v280
      %v282 = vrot.slane %v278, %v281
      %v283 = vadd.f32 %v246, %v282
      %v284 = vadd.f32 %v247, %v282
      %v285 = vadd.f32 %v248, %v282
      %v286 = vadd.f32 %v249, %v282
      %v287 = vadd.f32 %v250, %v282
      %v288 = vadd.f32 %v251, %v282
      %v289 = vadd.f32 %v252, %v282
      %v290 = vadd.f32 %v253, %v282
      %v291 = vadd.f32 %v254, %v282
      %v292 = vadd.f32 %v255, %v282
      %v293 = vadd.f32 %v256, %v282
      %v294 = vadd.f32 %v257, %v282
      %v295 = vadd.f32 %v258, %v282
      %v296 = vadd.f32 %v259, %v282
      %v297 = vadd.f32 %v260, %v282
      %v298 = vadd.f32 %v261, %v282
      %v299 = vadd.f32 %v262, %v282
      %v300 = vadd.f32 %v263, %v282
      %v301 = vadd.f32 %v264, %v282
      %v302 = vadd.f32 %v265, %v282
      %v303 = vadd.f32 %v266, %v282
      %v304 = vadd.f32 %v267, %v282
      %v305 = vadd.f32 %v268, %v282
      %v306 = vadd.f32 %v269, %v282
      %v307 = vadd.f32 %v270, %v282
      %v308 = vadd.f32 %v271, %v282
      %v309 = vadd.f32 %v272, %v282
      %v310 = vadd.f32 %v273, %v282
      %v311 = vadd.f32 %v274, %v282
      %v312 = vadd.f32 %v275, %v282
      %v313 = vadd.f32 %v276, %v282
      %v314 = vadd.f32 %v277, %v282
      %v315 = vmax.f32 %v283, 0.0
      %v316 = vmax.f32 %v284, 0.0
      %v317 = vmax.f32 %v285, 0.0
      %v318 = vmax.f32 %v286, 0.0
      %v319 = vmax.f32 %v287, 0.0
      %v320 = vmax.f32 %v288, 0.0
      %v321 = vmax.f32 %v289, 0.0
      %v322 = vmax.f32 %v290, 0.0
      %v323 = vmax.f32 %v291, 0.0
      %v324 = vmax.f32 %v292, 0.0
      %v325 = vmax.f32 %v293, 0.0
      %v326 = vmax.f32 %v294, 0.0
      %v327 = vmax.f32 %v295, 0.0
      %v328 = vmax.f32 %v296, 0.0
      %v329 = vmax.f32 %v297, 0.0
      %v330 = vmax.f32 %v298, 0.0
      %v331 = vmax.f32 %v299, 0.0
      %v332 = vmax.f32 %v300, 0.0
      %v333 = vmax.f32 %v301, 0.0
      %v334 = vmax.f32 %v302, 0.0
      %v335 = vmax.f32 %v303, 0.0
      %v336 = vmax.f32 %v304, 0.0
      %v337 = vmax.f32 %v305, 0.0
      %v338 = vmax.f32 %v306, 0.0
      %v339 = vmax.f32 %v307, 0.0
      %v340 = vmax.f32 %v308, 0.0
      %v341 = vmax.f32 %v309, 0.0
      %v342 = vmax.f32 %v310, 0.0
      %v343 = vmax.f32 %v311, 0.0
      %v344 = vmax.f32 %v312, 0.0
      %v345 = vmax.f32 %v313, 0.0
      %v346 = vmax.f32 %v314, 0.0
      %vm347 = vcmask 64512
      %348 = vst.msk [vmem:[#allocation2] sm:$0xff] %vm347, %v315
      %349 = vst.msk [vmem:[#allocation2 + $0x8] sm:$0xff] %vm347, %v316
      %350 = vst.msk [vmem:[#allocation2 + $0x10] sm:$0xff] %vm347, %v317
      %351 = vst.msk [vmem:[#allocation2 + $0x18] sm:$0xff] %vm347, %v318
      %352 = vst.msk [vmem:[#allocation2 + $0x20] sm:$0xff] %vm347, %v319
      %353 = vst.msk [vmem:[#allocation2 + $0x28] sm:$0xff] %vm347, %v320
      %354 = vst.msk [vmem:[#allocation2 + $0x30] sm:$0xff] %vm347, %v321
      %355 = vst.msk [vmem:[#allocation2 + $0x38] sm:$0xff] %vm347, %v322
      %356 = vst.msk [vmem:[#allocation2 + $0x40] sm:$0xff] %vm347, %v323
      %357 = vst.msk [vmem:[#allocation2 + $0x48] sm:$0xff] %vm347, %v324
      %358 = vst.msk [vmem:[#allocation2 + $0x50] sm:$0xff] %vm347, %v325
      %359 = vst.msk [vmem:[#allocation2 + $0x58] sm:$0xff] %vm347, %v326
      %360 = vst.msk [vmem:[#allocation2 + $0x60] sm:$0xff] %vm347, %v327
      %361 = vst.msk [vmem:[#allocation2 + $0x68] sm:$0xff] %vm347, %v328
      %362 = vst.msk [vmem:[#allocation2 + $0x70] sm:$0xff] %vm347, %v329
      %363 = vst.msk [vmem:[#allocation2 + $0x78] sm:$0xff] %vm347, %v330
      %364 = vst.msk [vmem:[#allocation2 + $0x80] sm:$0xff] %vm347, %v331
      %365 = vst.msk [vmem:[#allocation2 + $0x88] sm:$0xff] %vm347, %v332
      %366 = vst.msk [vmem:[#allocation2 + $0x90] sm:$0xff] %vm347, %v333
      %367 = vst.msk [vmem:[#allocation2 + $0x98] sm:$0xff] %vm347, %v334
      %368 = vst.msk [vmem:[#allocation2 + $0xa0] sm:$0xff] %vm347, %v335
      %369 = vst.msk [vmem:[#allocation2 + $0xa8] sm:$0xff] %vm347, %v336
      %370 = vst.msk [vmem:[#allocation2 + $0xb0] sm:$0xff] %vm347, %v337
      %371 = vst.msk [vmem:[#allocation2 + $0xb8] sm:$0xff] %vm347, %v338
      %372 = vst.msk [vmem:[#allocation2 + $0xc0] sm:$0xff] %vm347, %v339
      %373 = vst.msk [vmem:[#allocation2 + $0xc8] sm:$0xff] %vm347, %v340
      %374 = vst.msk [vmem:[#allocation2 + $0xd0] sm:$0xff] %vm347, %v341
      %375 = vst.msk [vmem:[#allocation2 + $0xd8] sm:$0xff] %vm347, %v342
      %376 = vst.msk [vmem:[#allocation2 + $0xe0] sm:$0xff] %vm347, %v343
      %377 = vst.msk [vmem:[#allocation2 + $0xe8] sm:$0xff] %vm347, %v344
      %378 = vst.msk [vmem:[#allocation2 + $0xf0] sm:$0xff] %vm347, %v345
      %379 = vst.msk [vmem:[#allocation2 + $0xf8] sm:$0xff] %vm347, %v346
      %v380 = vld [vmem:[#allocation2] sm:$0xff]
      %v381 = vld [vmem:[#allocation2 + $0x8] sm:$0xff]
      %v382 = vld [vmem:[#allocation2 + $0x10] sm:$0xff]
      %v383 = vld [vmem:[#allocation2 + $0x18] sm:$0xff]
      %v384 = vld [vmem:[#allocation2 + $0x20] sm:$0xff]
      %v385 = vld [vmem:[#allocation2 + $0x28] sm:$0xff]
      %v386 = vld [vmem:[#allocation2 + $0x30] sm:$0xff]
      %v387 = vld [vmem:[#allocation2 + $0x38] sm:$0xff]
      %v388 = vld [vmem:[#allocation2 + $0x40] sm:$0xff]
      %v389 = vld [vmem:[#allocation2 + $0x48] sm:$0xff]
      %v390 = vld [vmem:[#allocation2 + $0x50] sm:$0xff]
      %v391 = vld [vmem:[#allocation2 + $0x58] sm:$0xff]
      %v392 = vld [vmem:[#allocation2 + $0x60] sm:$0xff]
      %v393 = vld [vmem:[#allocation2 + $0x68] sm:$0xff]
      %v394 = vld [vmem:[#allocation2 + $0x70] sm:$0xff]
      %v395 = vld [vmem:[#allocation2 + $0x78] sm:$0xff]
      %v396 = vld [vmem:[#allocation2 + $0x80] sm:$0xff]
      %v397 = vld [vmem:[#allocation2 + $0x88] sm:$0xff]
      %v398 = vld [vmem:[#allocation2 + $0x90] sm:$0xff]
      %v399 = vld [vmem:[#allocation2 + $0x98] sm:$0xff]
      %v400 = vld [vmem:[#allocation2 + $0xa0] sm:$0xff]
      %v401 = vld [vmem:[#allocation2 + $0xa8] sm:$0xff]
      %v402 = vld [vmem:[#allocation2 + $0xb0] sm:$0xff]
      %v403 = vld [vmem:[#allocation2 + $0xb8] sm:$0xff]
      %v404 = vld [vmem:[#allocation2 + $0xc0] sm:$0xff]
      %v405 = vld [vmem:[#allocation2 + $0xc8] sm:$0xff]
      %v406 = vld [vmem:[#allocation2 + $0xd0] sm:$0xff]
      %v407 = vld [vmem:[#allocation2 + $0xd8] sm:$0xff]
      %v408 = vld [vmem:[#allocation2 + $0xe0] sm:$0xff]
      %v409 = vld [vmem:[#allocation2 + $0xe8] sm:$0xff]
      %vm440 = vcmask 1040384
      %v441 = vrot.slane %v380, 7
      %v442 = vrot.slane %v381, 7
      %v443 = vsel %vm440, %v441, %v442
      %v444 = vrot.slane %v382, 7
      %v445 = vrot.slane %v383, 7
      %v446 = vsel %vm440, %v444, %v445
      %v447 = vrot.slane %v384, 7
      %v448 = vrot.slane %v385, 7
      %v449 = vsel %vm440, %v447, %v448
      %v450 = vrot.slane %v386, 7
      %v451 = vrot.slane %v387, 7
      %v452 = vsel %vm440, %v450, %v451
      %v453 = vrot.slane %v388, 7
      %v454 = vrot.slane %v389, 7
      %v455 = vsel %vm440, %v453, %v454
      %v456 = vrot.slane %v390, 7
      %v457 = vrot.slane %v391, 7
      %v458 = vsel %vm440, %v456, %v457
      %v459 = vrot.slane %v392, 7
      %v460 = vrot.slane %v393, 7
      %v461 = vsel %vm440, %v459, %v460
      %v462 = vrot.slane %v394, 7
      %v463 = vrot.slane %v395, 7
      %v464 = vsel %vm440, %v462, %v463
      %v465 = vrot.slane %v396, 7
      %v466 = vrot.slane %v397, 7
      %v467 = vsel %vm440, %v465, %v466
      %v468 = vrot.slane %v398, 7
      %v469 = vrot.slane %v399, 7
      %v470 = vsel %vm440, %v468, %v469
      %v471 = vrot.slane %v400, 7
      %v472 = vrot.slane %v401, 7
      %v473 = vsel %vm440, %v471, %v472
      %v474 = vrot.slane %v402, 7
      %v475 = vrot.slane %v403, 7
      %v476 = vsel %vm440, %v474, %v475
      %v477 = vrot.slane %v404, 7
      %v478 = vrot.slane %v405, 7
      %v479 = vsel %vm440, %v477, %v478
      %v480 = vrot.slane %v406, 7
      %v481 = vrot.slane %v407, 7
      %v482 = vsel %vm440, %v480, %v481
      %v483 = vrot.slane %v408, 7
      %v484 = vrot.slane %v409, 7
      %v485 = vsel %vm440, %v483, %v484
      %v516 = vsel %vm440, 0.0, %v441
      %v517 = vsel %vm440, 0.0, %v444
      %v518 = vsel %vm440, 0.0, %v447
      %v519 = vsel %vm440, 0.0, %v450
      %v520 = vsel %vm440, 0.0, %v453
      %v521 = vsel %vm440, 0.0, %v456
      %v522 = vsel %vm440, 0.0, %v459
      %v523 = vsel %vm440, 0.0, %v462
      %v524 = vsel %vm440, 0.0, %v465
      %v525 = vsel %vm440, 0.0, %v468
      %v526 = vsel %vm440, 0.0, %v471
      %v527 = vsel %vm440, 0.0, %v474
      %v528 = vsel %vm440, 0.0, %v477
      %v529 = vsel %vm440, 0.0, %v480
      %v530 = vsel %vm440, 0.0, %v483
      %s531 = scalar_lea.vmem [#allocation3], 16
      %532 = vst.msk [vmem:[%s531] sm:$0xff] %vm347, %v516
      %533 = vst.msk [vmem:[%s531 + $0x8] sm:$0xff] %vm347, %v443
      %534 = vst.msk [vmem:[%s531 + $0x10] sm:$0xff] %vm347, %v517
      %535 = vst.msk [vmem:[%s531 + $0x18] sm:$0xff] %vm347, %v446
      %536 = vst.msk [vmem:[%s531 + $0x20] sm:$0xff] %vm347, %v518
      %537 = vst.msk [vmem:[%s531 + $0x28] sm:$0xff] %vm347, %v449
      %538 = vst.msk [vmem:[%s531 + $0x30] sm:$0xff] %vm347, %v519
      %539 = vst.msk [vmem:[%s531 + $0x38] sm:$0xff] %vm347, %v452
      %540 = vst.msk [vmem:[%s531 + $0x40] sm:$0xff] %vm347, %v520
      %541 = vst.msk [vmem:[%s531 + $0x48] sm:$0xff] %vm347, %v455
      %542 = vst.msk [vmem:[%s531 + $0x50] sm:$0xff] %vm347, %v521
      %543 = vst.msk [vmem:[%s531 + $0x58] sm:$0xff] %vm347, %v458
      %544 = vst.msk [vmem:[%s531 + $0x60] sm:$0xff] %vm347, %v522
      %545 = vst.msk [vmem:[%s531 + $0x68] sm:$0xff] %vm347, %v461
      %546 = vst.msk [vmem:[%s531 + $0x70] sm:$0xff] %vm347, %v523
      %547 = vst.msk [vmem:[%s531 + $0x78] sm:$0xff] %vm347, %v464
      %548 = vst.msk [vmem:[%s531 + $0x80] sm:$0xff] %vm347, %v524
      %549 = vst.msk [vmem:[%s531 + $0x88] sm:$0xff] %vm347, %v467
      %550 = vst.msk [vmem:[%s531 + $0x90] sm:$0xff] %vm347, %v525
      %551 = vst.msk [vmem:[%s531 + $0x98] sm:$0xff] %vm347, %v470
      %552 = vst.msk [vmem:[%s531 + $0xa0] sm:$0xff] %vm347, %v526
      %553 = vst.msk [vmem:[%s531 + $0xa8] sm:$0xff] %vm347, %v473
      %554 = vst.msk [vmem:[%s531 + $0xb0] sm:$0xff] %vm347, %v527
      %555 = vst.msk [vmem:[%s531 + $0xb8] sm:$0xff] %vm347, %v476
      %556 = vst.msk [vmem:[%s531 + $0xc0] sm:$0xff] %vm347, %v528
      %557 = vst.msk [vmem:[%s531 + $0xc8] sm:$0xff] %vm347, %v479
      %558 = vst.msk [vmem:[%s531 + $0xd0] sm:$0xff] %vm347, %v529
      %559 = vst.msk [vmem:[%s531 + $0xd8] sm:$0xff] %vm347, %v482
      %560 = vst.msk [vmem:[%s531 + $0xe0] sm:$0xff] %vm347, %v530
      %561 = vst.msk [vmem:[%s531 + $0xe8] sm:$0xff] %vm347, %v485
      %562 = vrot.lane.b32.xlu0 %v380, 8
      %v563 = vpop.permute.xlu0 %562
      %564 = vrot.lane.b32.xlu0 %v381, 8
      %v565 = vpop.permute.xlu0 %564
      %566 = vrot.lane.b32.xlu0 %v382, 8
      %v567 = vpop.permute.xlu0 %566
      %568 = vrot.lane.b32.xlu0 %v383, 8
      %v569 = vpop.permute.xlu0 %568
      %570 = vrot.lane.b32.xlu0 %v384, 8
      %v571 = vpop.permute.xlu0 %570
      %572 = vrot.lane.b32.xlu0 %v385, 8
      %v573 = vpop.permute.xlu0 %572
      %574 = vrot.lane.b32.xlu0 %v386, 8
      %v575 = vpop.permute.xlu0 %574
      %576 = vrot.lane.b32.xlu0 %v387, 8
      %v577 = vpop.permute.xlu0 %576
      %578 = vrot.lane.b32.xlu0 %v388, 8
      %v579 = vpop.permute.xlu0 %578
      %580 = vrot.lane.b32.xlu0 %v389, 8
      %v581 = vpop.permute.xlu0 %580
      %582 = vrot.lane.b32.xlu0 %v390, 8
      %v583 = vpop.permute.xlu0 %582
      %584 = vrot.lane.b32.xlu0 %v391, 8
      %v585 = vpop.permute.xlu0 %584
      %586 = vrot.lane.b32.xlu0 %v392, 8
      %v587 = vpop.permute.xlu0 %586
      %588 = vrot.lane.b32.xlu0 %v393, 8
      %v589 = vpop.permute.xlu0 %588
      %590 = vrot.lane.b32.xlu0 %v394, 8
      %v591 = vpop.permute.xlu0 %590
      %592 = vrot.lane.b32.xlu0 %v395, 8
      %v593 = vpop.permute.xlu0 %592
      %594 = vrot.lane.b32.xlu0 %v396, 8
      %v595 = vpop.permute.xlu0 %594
      %596 = vrot.lane.b32.xlu0 %v397, 8
      %v597 = vpop.permute.xlu0 %596
      %598 = vrot.lane.b32.xlu0 %v398, 8
      %v599 = vpop.permute.xlu0 %598
      %600 = vrot.lane.b32.xlu0 %v399, 8
      %v601 = vpop.permute.xlu0 %600
      %602 = vrot.lane.b32.xlu0 %v400, 8
      %v603 = vpop.permute.xlu0 %602
      %604 = vrot.lane.b32.xlu0 %v401, 8
      %v605 = vpop.permute.xlu0 %604
      %606 = vrot.lane.b32.xlu0 %v402, 8
      %v607 = vpop.permute.xlu0 %606
      %608 = vrot.lane.b32.xlu0 %v403, 8
      %v609 = vpop.permute.xlu0 %608
      %610 = vrot.lane.b32.xlu0 %v404, 8
      %v611 = vpop.permute.xlu0 %610
      %612 = vrot.lane.b32.xlu0 %v405, 8
      %v613 = vpop.permute.xlu0 %612
      %614 = vrot.lane.b32.xlu0 %v406, 8
      %v615 = vpop.permute.xlu0 %614
      %616 = vrot.lane.b32.xlu0 %v407, 8
      %v617 = vpop.permute.xlu0 %616
      %618 = vrot.lane.b32.xlu0 %v408, 8
      %v619 = vpop.permute.xlu0 %618
      %620 = vrot.lane.b32.xlu0 %v409, 8
      %v621 = vpop.permute.xlu0 %620
      %vm652 = vcmask 130112
      %653 = vst.msk [vmem:[%s531] sm:$0xff] %vm652, %v563
      %654 = vst.msk [vmem:[%s531 + $0x8] sm:$0xff] %vm652, %v565
      %655 = vst.msk [vmem:[%s531 + $0x10] sm:$0xff] %vm652, %v567
      %656 = vst.msk [vmem:[%s531 + $0x18] sm:$0xff] %vm652, %v569
      %657 = vst.msk [vmem:[%s531 + $0x20] sm:$0xff] %vm652, %v571
      %658 = vst.msk [vmem:[%s531 + $0x28] sm:$0xff] %vm652, %v573
      %659 = vst.msk [vmem:[%s531 + $0x30] sm:$0xff] %vm652, %v575
      %660 = vst.msk [vmem:[%s531 + $0x38] sm:$0xff] %vm652, %v577
      %661 = vst.msk [vmem:[%s531 + $0x40] sm:$0xff] %vm652, %v579
      %662 = vst.msk [vmem:[%s531 + $0x48] sm:$0xff] %vm652, %v581
      %663 = vst.msk [vmem:[%s531 + $0x50] sm:$0xff] %vm652, %v583
      %664 = vst.msk [vmem:[%s531 + $0x58] sm:$0xff] %vm652, %v585
      %665 = vst.msk [vmem:[%s531 + $0x60] sm:$0xff] %vm652, %v587
      %666 = vst.msk [vmem:[%s531 + $0x68] sm:$0xff] %vm652, %v589
      %667 = vst.msk [vmem:[%s531 + $0x70] sm:$0xff] %vm652, %v591
      %668 = vst.msk [vmem:[%s531 + $0x78] sm:$0xff] %vm652, %v593
      %669 = vst.msk [vmem:[%s531 + $0x80] sm:$0xff] %vm652, %v595
      %670 = vst.msk [vmem:[%s531 + $0x88] sm:$0xff] %vm652, %v597
      %671 = vst.msk [vmem:[%s531 + $0x90] sm:$0xff] %vm652, %v599
      %672 = vst.msk [vmem:[%s531 + $0x98] sm:$0xff] %vm652, %v601
      %673 = vst.msk [vmem:[%s531 + $0xa0] sm:$0xff] %vm652, %v603
      %674 = vst.msk [vmem:[%s531 + $0xa8] sm:$0xff] %vm652, %v605
      %675 = vst.msk [vmem:[%s531 + $0xb0] sm:$0xff] %vm652, %v607
      %676 = vst.msk [vmem:[%s531 + $0xb8] sm:$0xff] %vm652, %v609
      %677 = vst.msk [vmem:[%s531 + $0xc0] sm:$0xff] %vm652, %v611
      %678 = vst.msk [vmem:[%s531 + $0xc8] sm:$0xff] %vm652, %v613
      %679 = vst.msk [vmem:[%s531 + $0xd0] sm:$0xff] %vm652, %v615
      %680 = vst.msk [vmem:[%s531 + $0xd8] sm:$0xff] %vm652, %v617
      %681 = vst.msk [vmem:[%s531 + $0xe0] sm:$0xff] %vm652, %v619
      %682 = vst.msk [vmem:[%s531 + $0xe8] sm:$0xff] %vm652, %v621
      %vm683 = vcmask 1046528
      %v684 = vrot.slane %v380, 1
      %v685 = vrot.slane %v381, 1
      %v686 = vsel %vm683, %v684, %v685
      %v687 = vrot.slane %v382, 1
      %v688 = vrot.slane %v383, 1
      %v689 = vsel %vm683, %v687, %v688
      %v690 = vrot.slane %v384, 1
      %v691 = vrot.slane %v385, 1
      %v692 = vsel %vm683, %v690, %v691
      %v693 = vrot.slane %v386, 1
      %v694 = vrot.slane %v387, 1
      %v695 = vsel %vm683, %v693, %v694
      %v696 = vrot.slane %v388, 1
      %v697 = vrot.slane %v389, 1
      %v698 = vsel %vm683, %v696, %v697
      %v699 = vrot.slane %v390, 1
      %v700 = vrot.slane %v391, 1
      %v701 = vsel %vm683, %v699, %v700
      %v702 = vrot.slane %v392, 1
      %v703 = vrot.slane %v393, 1
      %v704 = vsel %vm683, %v702, %v703
      %v705 = vrot.slane %v394, 1
      %v706 = vrot.slane %v395, 1
      %v707 = vsel %vm683, %v705, %v706
      %v708 = vrot.slane %v396, 1
      %v709 = vrot.slane %v397, 1
      %v710 = vsel %vm683, %v708, %v709
      %v711 = vrot.slane %v398, 1
      %v712 = vrot.slane %v399, 1
      %v713 = vsel %vm683, %v711, %v712
      %v714 = vrot.slane %v400, 1
      %v715 = vrot.slane %v401, 1
      %v716 = vsel %vm683, %v714, %v715
      %v717 = vrot.slane %v402, 1
      %v718 = vrot.slane %v403, 1
      %v719 = vsel %vm683, %v717, %v718
      %v720 = vrot.slane %v404, 1
      %v721 = vrot.slane %v405, 1
      %v722 = vsel %vm683, %v720, %v721
      %v723 = vrot.slane %v406, 1
      %v724 = vrot.slane %v407, 1
      %v725 = vsel %vm683, %v723, %v724
      %v726 = vrot.slane %v408, 1
      %v727 = vrot.slane %v409, 1
      %v728 = vsel %vm683, %v726, %v727
      %v744 = vsel %vm683, %v685, 0.0
      %v745 = vsel %vm683, %v688, 0.0
      %v746 = vsel %vm683, %v691, 0.0
      %v747 = vsel %vm683, %v694, 0.0
      %v748 = vsel %vm683, %v697, 0.0
      %v749 = vsel %vm683, %v700, 0.0
      %v750 = vsel %vm683, %v703, 0.0
      %v751 = vsel %vm683, %v706, 0.0
      %v752 = vsel %vm683, %v709, 0.0
      %v753 = vsel %vm683, %v712, 0.0
      %v754 = vsel %vm683, %v715, 0.0
      %v755 = vsel %vm683, %v718, 0.0
      %v756 = vsel %vm683, %v721, 0.0
      %v757 = vsel %vm683, %v724, 0.0
      %v758 = vsel %vm683, %v727, 0.0
      %774 = vrot.lane.b32.xlu0 %v686, 16
      %v775 = vpop.permute.xlu0 %774
      %776 = vrot.lane.b32.xlu0 %v744, 16
      %v777 = vpop.permute.xlu0 %776
      %778 = vrot.lane.b32.xlu0 %v689, 16
      %v779 = vpop.permute.xlu0 %778
      %780 = vrot.lane.b32.xlu0 %v745, 16
      %v781 = vpop.permute.xlu0 %780
      %782 = vrot.lane.b32.xlu0 %v692, 16
      %v783 = vpop.permute.xlu0 %782
      %784 = vrot.lane.b32.xlu0 %v746, 16
      %v785 = vpop.permute.xlu0 %784
      %786 = vrot.lane.b32.xlu0 %v695, 16
      %v787 = vpop.permute.xlu0 %786
      %788 = vrot.lane.b32.xlu0 %v747, 16
      %v789 = vpop.permute.xlu0 %788
      %790 = vrot.lane.b32.xlu0 %v698, 16
      %v791 = vpop.permute.xlu0 %790
      %792 = vrot.lane.b32.xlu0 %v748, 16
      %v793 = vpop.permute.xlu0 %792
      %794 = vrot.lane.b32.xlu0 %v701, 16
      %v795 = vpop.permute.xlu0 %794
      %796 = vrot.lane.b32.xlu0 %v749, 16
      %v797 = vpop.permute.xlu0 %796
      %798 = vrot.lane.b32.xlu0 %v704, 16
      %v799 = vpop.permute.xlu0 %798
      %800 = vrot.lane.b32.xlu0 %v750, 16
      %v801 = vpop.permute.xlu0 %800
      %802 = vrot.lane.b32.xlu0 %v707, 16
      %v803 = vpop.permute.xlu0 %802
      %804 = vrot.lane.b32.xlu0 %v751, 16
      %v805 = vpop.permute.xlu0 %804
      %806 = vrot.lane.b32.xlu0 %v710, 16
      %v807 = vpop.permute.xlu0 %806
      %808 = vrot.lane.b32.xlu0 %v752, 16
      %v809 = vpop.permute.xlu0 %808
      %810 = vrot.lane.b32.xlu0 %v713, 16
      %v811 = vpop.permute.xlu0 %810
      %812 = vrot.lane.b32.xlu0 %v753, 16
      %v813 = vpop.permute.xlu0 %812
      %814 = vrot.lane.b32.xlu0 %v716, 16
      %v815 = vpop.permute.xlu0 %814
      %816 = vrot.lane.b32.xlu0 %v754, 16
      %v817 = vpop.permute.xlu0 %816
      %818 = vrot.lane.b32.xlu0 %v719, 16
      %v819 = vpop.permute.xlu0 %818
      %820 = vrot.lane.b32.xlu0 %v755, 16
      %v821 = vpop.permute.xlu0 %820
      %822 = vrot.lane.b32.xlu0 %v722, 16
      %v823 = vpop.permute.xlu0 %822
      %824 = vrot.lane.b32.xlu0 %v756, 16
      %v825 = vpop.permute.xlu0 %824
      %826 = vrot.lane.b32.xlu0 %v725, 16
      %v827 = vpop.permute.xlu0 %826
      %828 = vrot.lane.b32.xlu0 %v757, 16
      %v829 = vpop.permute.xlu0 %828
      %830 = vrot.lane.b32.xlu0 %v728, 16
      %v831 = vpop.permute.xlu0 %830
      %832 = vrot.lane.b32.xlu0 %v758, 16
      %v833 = vpop.permute.xlu0 %832
      %vm864 = vcmask 195712
      %865 = vst.msk [vmem:[%s531] sm:$0xff] %vm864, %v775
      %866 = vst.msk [vmem:[%s531 + $0x8] sm:$0xff] %vm864, %v777
      %867 = vst.msk [vmem:[%s531 + $0x10] sm:$0xff] %vm864, %v779
      %868 = vst.msk [vmem:[%s531 + $0x18] sm:$0xff] %vm864, %v781
      %869 = vst.msk [vmem:[%s531 + $0x20] sm:$0xff] %vm864, %v783
      %870 = vst.msk [vmem:[%s531 + $0x28] sm:$0xff] %vm864, %v785
      %871 = vst.msk [vmem:[%s531 + $0x30] sm:$0xff] %vm864, %v787
      %872 = vst.msk [vmem:[%s531 + $0x38] sm:$0xff] %vm864, %v789
      %873 = vst.msk [vmem:[%s531 + $0x40] sm:$0xff] %vm864, %v791
      %874 = vst.msk [vmem:[%s531 + $0x48] sm:$0xff] %vm864, %v793
      %875 = vst.msk [vmem:[%s531 + $0x50] sm:$0xff] %vm864, %v795
      %876 = vst.msk [vmem:[%s531 + $0x58] sm:$0xff] %vm864, %v797
      %877 = vst.msk [vmem:[%s531 + $0x60] sm:$0xff] %vm864, %v799
      %878 = vst.msk [vmem:[%s531 + $0x68] sm:$0xff] %vm864, %v801
      %879 = vst.msk [vmem:[%s531 + $0x70] sm:$0xff] %vm864, %v803
      %880 = vst.msk [vmem:[%s531 + $0x78] sm:$0xff] %vm864, %v805
      %881 = vst.msk [vmem:[%s531 + $0x80] sm:$0xff] %vm864, %v807
      %882 = vst.msk [vmem:[%s531 + $0x88] sm:$0xff] %vm864, %v809
      %883 = vst.msk [vmem:[%s531 + $0x90] sm:$0xff] %vm864, %v811
      %884 = vst.msk [vmem:[%s531 + $0x98] sm:$0xff] %vm864, %v813
      %885 = vst.msk [vmem:[%s531 + $0xa0] sm:$0xff] %vm864, %v815
      %886 = vst.msk [vmem:[%s531 + $0xa8] sm:$0xff] %vm864, %v817
      %887 = vst.msk [vmem:[%s531 + $0xb0] sm:$0xff] %vm864, %v819
      %888 = vst.msk [vmem:[%s531 + $0xb8] sm:$0xff] %vm864, %v821
      %889 = vst.msk [vmem:[%s531 + $0xc0] sm:$0xff] %vm864, %v823
      %890 = vst.msk [vmem:[%s531 + $0xc8] sm:$0xff] %vm864, %v825
      %891 = vst.msk [vmem:[%s531 + $0xd0] sm:$0xff] %vm864, %v827
      %892 = vst.msk [vmem:[%s531 + $0xd8] sm:$0xff] %vm864, %v829
      %893 = vst.msk [vmem:[%s531 + $0xe0] sm:$0xff] %vm864, %v831
      %894 = vst.msk [vmem:[%s531 + $0xe8] sm:$0xff] %vm864, %v833
      %vm895 = vcmask 195584
      %896 = vst.msk [vmem:[#allocation3] sm:$0xff] %vm895, 0.0
      %897 = vst.msk [vmem:[#allocation3 + $0x8] sm:$0xff] %vm895, 0.0
      %v898 = vld [vmem:[#allocation2] sm:$0xff]
      %v899 = vld [vmem:[#allocation2 + $0x8] sm:$0xff]
      %v900 = vld [vmem:[#allocation2 + $0x10] sm:$0xff]
      %v901 = vld [vmem:[#allocation2 + $0x18] sm:$0xff]
      %v902 = vld [vmem:[#allocation2 + $0x20] sm:$0xff]
      %v903 = vld [vmem:[#allocation2 + $0x28] sm:$0xff]
      %v904 = vld [vmem:[#allocation2 + $0x30] sm:$0xff]
      %v905 = vld [vmem:[#allocation2 + $0x38] sm:$0xff]
      %v906 = vld [vmem:[#allocation2 + $0x40] sm:$0xff]
      %v907 = vld [vmem:[#allocation2 + $0x48] sm:$0xff]
      %v908 = vld [vmem:[#allocation2 + $0x50] sm:$0xff]
      %v909 = vld [vmem:[#allocation2 + $0x58] sm:$0xff]
      %v910 = vld [vmem:[#allocation2 + $0x60] sm:$0xff]
      %v911 = vld [vmem:[#allocation2 + $0x68] sm:$0xff]
      %v912 = vld [vmem:[#allocation2 + $0x70] sm:$0xff]
      %v913 = vld [vmem:[#allocation2 + $0x78] sm:$0xff]
      %v914 = vld [vmem:[#allocation2 + $0x80] sm:$0xff]
      %v915 = vld [vmem:[#allocation2 + $0x88] sm:$0xff]
      %v916 = vld [vmem:[#allocation2 + $0x90] sm:$0xff]
      %v917 = vld [vmem:[#allocation2 + $0x98] sm:$0xff]
      %v918 = vld [vmem:[#allocation2 + $0xa0] sm:$0xff]
      %v919 = vld [vmem:[#allocation2 + $0xa8] sm:$0xff]
      %v920 = vld [vmem:[#allocation2 + $0xb0] sm:$0xff]
      %v921 = vld [vmem:[#allocation2 + $0xb8] sm:$0xff]
      %v922 = vld [vmem:[#allocation2 + $0xc0] sm:$0xff]
      %v923 = vld [vmem:[#allocation2 + $0xc8] sm:$0xff]
      %v924 = vld [vmem:[#allocation2 + $0xd0] sm:$0xff]
      %v925 = vld [vmem:[#allocation2 + $0xd8] sm:$0xff]
      %v926 = vld [vmem:[#allocation2 + $0xe0] sm:$0xff]
      %v927 = vld [vmem:[#allocation2 + $0xe8] sm:$0xff]
      %v928 = vld [vmem:[#allocation2 + $0xf0] sm:$0xff]
      %v929 = vld [vmem:[#allocation2 + $0xf8] sm:$0xff]
      %v962 = vrot.slane %v898, 7
      %v963 = vrot.slane %v899, 7
      %v964 = vsel %vm440, %v962, %v963
      %v965 = vrot.slane %v900, 7
      %v966 = vrot.slane %v901, 7
      %v967 = vsel %vm440, %v965, %v966
      %v968 = vrot.slane %v902, 7
      %v969 = vrot.slane %v903, 7
      %v970 = vsel %vm440, %v968, %v969
      %v971 = vrot.slane %v904, 7
      %v972 = vrot.slane %v905, 7
      %v973 = vsel %vm440, %v971, %v972
      %v974 = vrot.slane %v906, 7
      %v975 = vrot.slane %v907, 7
      %v976 = vsel %vm440, %v974, %v975
      %v977 = vrot.slane %v908, 7
      %v978 = vrot.slane %v909, 7
      %v979 = vsel %vm440, %v977, %v978
      %v980 = vrot.slane %v910, 7
      %v981 = vrot.slane %v911, 7
      %v982 = vsel %vm440, %v980, %v981
      %v983 = vrot.slane %v912, 7
      %v984 = vrot.slane %v913, 7
      %v985 = vsel %vm440, %v983, %v984
      %v986 = vrot.slane %v914, 7
      %v987 = vrot.slane %v915, 7
      %v988 = vsel %vm440, %v986, %v987
      %v989 = vrot.slane %v916, 7
      %v990 = vrot.slane %v917, 7
      %v991 = vsel %vm440, %v989, %v990
      %v992 = vrot.slane %v918, 7
      %v993 = vrot.slane %v919, 7
      %v994 = vsel %vm440, %v992, %v993
      %v995 = vrot.slane %v920, 7
      %v996 = vrot.slane %v921, 7
      %v997 = vsel %vm440, %v995, %v996
      %v998 = vrot.slane %v922, 7
      %v999 = vrot.slane %v923, 7
      %v1000 = vsel %vm440, %v998, %v999
      %v1001 = vrot.slane %v924, 7
      %v1002 = vrot.slane %v925, 7
      %v1003 = vsel %vm440, %v1001, %v1002
      %v1004 = vrot.slane %v926, 7
      %v1005 = vrot.slane %v927, 7
      %v1006 = vsel %vm440, %v1004, %v1005
      %v1007 = vrot.slane %v928, 7
      %v1008 = vrot.slane %v929, 7
      %v1009 = vsel %vm440, %v1007, %v1008
      %v1026 = vsel %vm440, 0.0, %v962
      %v1027 = vsel %vm440, 0.0, %v965
      %v1028 = vsel %vm440, 0.0, %v968
      %v1029 = vsel %vm440, 0.0, %v971
      %v1030 = vsel %vm440, 0.0, %v974
      %v1031 = vsel %vm440, 0.0, %v977
      %v1032 = vsel %vm440, 0.0, %v980
      %v1033 = vsel %vm440, 0.0, %v983
      %v1034 = vsel %vm440, 0.0, %v986
      %v1035 = vsel %vm440, 0.0, %v989
      %v1036 = vsel %vm440, 0.0, %v992
      %v1037 = vsel %vm440, 0.0, %v995
      %v1038 = vsel %vm440, 0.0, %v998
      %v1039 = vsel %vm440, 0.0, %v1001
      %v1040 = vsel %vm440, 0.0, %v1004
      %v1041 = vsel %vm440, 0.0, %v1007
      %1058 = vrot.lane.b32.xlu0 %v1026, 24
      %v1059 = vpop.permute.xlu0 %1058
      %1060 = vrot.lane.b32.xlu0 %v964, 24
      %v1061 = vpop.permute.xlu0 %1060
      %1062 = vrot.lane.b32.xlu0 %v1027, 24
      %v1063 = vpop.permute.xlu0 %1062
      %1064 = vrot.lane.b32.xlu0 %v967, 24
      %v1065 = vpop.permute.xlu0 %1064
      %1066 = vrot.lane.b32.xlu0 %v1028, 24
      %v1067 = vpop.permute.xlu0 %1066
      %1068 = vrot.lane.b32.xlu0 %v970, 24
      %v1069 = vpop.permute.xlu0 %1068
      %1070 = vrot.lane.b32.xlu0 %v1029, 24
      %v1071 = vpop.permute.xlu0 %1070
      %1072 = vrot.lane.b32.xlu0 %v973, 24
      %v1073 = vpop.permute.xlu0 %1072
      %1074 = vrot.lane.b32.xlu0 %v1030, 24
      %v1075 = vpop.permute.xlu0 %1074
      %1076 = vrot.lane.b32.xlu0 %v976, 24
      %v1077 = vpop.permute.xlu0 %1076
      %1078 = vrot.lane.b32.xlu0 %v1031, 24
      %v1079 = vpop.permute.xlu0 %1078
      %1080 = vrot.lane.b32.xlu0 %v979, 24
      %v1081 = vpop.permute.xlu0 %1080
      %1082 = vrot.lane.b32.xlu0 %v1032, 24
      %v1083 = vpop.permute.xlu0 %1082
      %1084 = vrot.lane.b32.xlu0 %v982, 24
      %v1085 = vpop.permute.xlu0 %1084
      %1086 = vrot.lane.b32.xlu0 %v1033, 24
      %v1087 = vpop.permute.xlu0 %1086
      %1088 = vrot.lane.b32.xlu0 %v985, 24
      %v1089 = vpop.permute.xlu0 %1088
      %1090 = vrot.lane.b32.xlu0 %v1034, 24
      %v1091 = vpop.permute.xlu0 %1090
      %1092 = vrot.lane.b32.xlu0 %v988, 24
      %v1093 = vpop.permute.xlu0 %1092
      %1094 = vrot.lane.b32.xlu0 %v1035, 24
      %v1095 = vpop.permute.xlu0 %1094
      %1096 = vrot.lane.b32.xlu0 %v991, 24
      %v1097 = vpop.permute.xlu0 %1096
      %1098 = vrot.lane.b32.xlu0 %v1036, 24
      %v1099 = vpop.permute.xlu0 %1098
      %1100 = vrot.lane.b32.xlu0 %v994, 24
      %v1101 = vpop.permute.xlu0 %1100
      %1102 = vrot.lane.b32.xlu0 %v1037, 24
      %v1103 = vpop.permute.xlu0 %1102
      %1104 = vrot.lane.b32.xlu0 %v997, 24
      %v1105 = vpop.permute.xlu0 %1104
      %1106 = vrot.lane.b32.xlu0 %v1038, 24
      %v1107 = vpop.permute.xlu0 %1106
      %1108 = vrot.lane.b32.xlu0 %v1000, 24
      %v1109 = vpop.permute.xlu0 %1108
      %1110 = vrot.lane.b32.xlu0 %v1039, 24
      %v1111 = vpop.permute.xlu0 %1110
      %1112 = vrot.lane.b32.xlu0 %v1003, 24
      %v1113 = vpop.permute.xlu0 %1112
      %1114 = vrot.lane.b32.xlu0 %v1040, 24
      %v1115 = vpop.permute.xlu0 %1114
      %1116 = vrot.lane.b32.xlu0 %v1006, 24
      %v1117 = vpop.permute.xlu0 %1116
      %1118 = vrot.lane.b32.xlu0 %v1041, 24
      %v1119 = vpop.permute.xlu0 %1118
      %1120 = vrot.lane.b32.xlu0 %v1009, 24
      %v1121 = vpop.permute.xlu0 %1120
      %vm1154 = vcmask 261312
      %1155 = vst.msk [vmem:[#allocation3] sm:$0xff] %vm1154, %v1059
      %1156 = vst.msk [vmem:[#allocation3 + $0x8] sm:$0xff] %vm1154, %v1061
      %1157 = vst.msk [vmem:[#allocation3 + $0x10] sm:$0xff] %vm1154, %v1063
      %1158 = vst.msk [vmem:[#allocation3 + $0x18] sm:$0xff] %vm1154, %v1065
      %1159 = vst.msk [vmem:[#allocation3 + $0x20] sm:$0xff] %vm1154, %v1067
      %1160 = vst.msk [vmem:[#allocation3 + $0x28] sm:$0xff] %vm1154, %v1069
      %1161 = vst.msk [vmem:[#allocation3 + $0x30] sm:$0xff] %vm1154, %v1071
      %1162 = vst.msk [vmem:[#allocation3 + $0x38] sm:$0xff] %vm1154, %v1073
      %1163 = vst.msk [vmem:[#allocation3 + $0x40] sm:$0xff] %vm1154, %v1075
      %1164 = vst.msk [vmem:[#allocation3 + $0x48] sm:$0xff] %vm1154, %v1077
      %1165 = vst.msk [vmem:[#allocation3 + $0x50] sm:$0xff] %vm1154, %v1079
      %1166 = vst.msk [vmem:[#allocation3 + $0x58] sm:$0xff] %vm1154, %v1081
      %1167 = vst.msk [vmem:[#allocation3 + $0x60] sm:$0xff] %vm1154, %v1083
      %1168 = vst.msk [vmem:[#allocation3 + $0x68] sm:$0xff] %vm1154, %v1085
      %1169 = vst.msk [vmem:[#allocation3 + $0x70] sm:$0xff] %vm1154, %v1087
      %1170 = vst.msk [vmem:[#allocation3 + $0x78] sm:$0xff] %vm1154, %v1089
      %1171 = vst.msk [vmem:[#allocation3 + $0x80] sm:$0xff] %vm1154, %v1091
      %1172 = vst.msk [vmem:[#allocation3 + $0x88] sm:$0xff] %vm1154, %v1093
      %1173 = vst.msk [vmem:[#allocation3 + $0x90] sm:$0xff] %vm1154, %v1095
      %1174 = vst.msk [vmem:[#allocation3 + $0x98] sm:$0xff] %vm1154, %v1097
      %1175 = vst.msk [vmem:[#allocation3 + $0xa0] sm:$0xff] %vm1154, %v1099
      %1176 = vst.msk [vmem:[#allocation3 + $0xa8] sm:$0xff] %vm1154, %v1101
      %1177 = vst.msk [vmem:[#allocation3 + $0xb0] sm:$0xff] %vm1154, %v1103
      %1178 = vst.msk [vmem:[#allocation3 + $0xb8] sm:$0xff] %vm1154, %v1105
      %1179 = vst.msk [vmem:[#allocation3 + $0xc0] sm:$0xff] %vm1154, %v1107
      %1180 = vst.msk [vmem:[#allocation3 + $0xc8] sm:$0xff] %vm1154, %v1109
      %1181 = vst.msk [vmem:[#allocation3 + $0xd0] sm:$0xff] %vm1154, %v1111
      %1182 = vst.msk [vmem:[#allocation3 + $0xd8] sm:$0xff] %vm1154, %v1113
      %1183 = vst.msk [vmem:[#allocation3 + $0xe0] sm:$0xff] %vm1154, %v1115
      %1184 = vst.msk [vmem:[#allocation3 + $0xe8] sm:$0xff] %vm1154, %v1117
      %1185 = vst.msk [vmem:[#allocation3 + $0xf0] sm:$0xff] %vm1154, %v1119
      %1186 = vst.msk [vmem:[#allocation3 + $0xf8] sm:$0xff] %vm1154, %v1121
      %1187 = vrot.lane.b32.xlu0 %v898, 32
      %v1188 = vpop.permute.xlu0 %1187
      %1189 = vrot.lane.b32.xlu0 %v899, 32
      %v1190 = vpop.permute.xlu0 %1189
      %1191 = vrot.lane.b32.xlu0 %v900, 32
      %v1192 = vpop.permute.xlu0 %1191
      %1193 = vrot.lane.b32.xlu0 %v901, 32
      %v1194 = vpop.permute.xlu0 %1193
      %1195 = vrot.lane.b32.xlu0 %v902, 32
      %v1196 = vpop.permute.xlu0 %1195
      %1197 = vrot.lane.b32.xlu0 %v903, 32
      %v1198 = vpop.permute.xlu0 %1197
      %1199 = vrot.lane.b32.xlu0 %v904, 32
      %v1200 = vpop.permute.xlu0 %1199
      %1201 = vrot.lane.b32.xlu0 %v905, 32
      %v1202 = vpop.permute.xlu0 %1201
      %1203 = vrot.lane.b32.xlu0 %v906, 32
      %v1204 = vpop.permute.xlu0 %1203
      %1205 = vrot.lane.b32.xlu0 %v907, 32
      %v1206 = vpop.permute.xlu0 %1205
      %1207 = vrot.lane.b32.xlu0 %v908, 32
      %v1208 = vpop.permute.xlu0 %1207
      %1209 = vrot.lane.b32.xlu0 %v909, 32
      %v1210 = vpop.permute.xlu0 %1209
      %1211 = vrot.lane.b32.xlu0 %v910, 32
      %v1212 = vpop.permute.xlu0 %1211
      %1213 = vrot.lane.b32.xlu0 %v911, 32
      %v1214 = vpop.permute.xlu0 %1213
      %1215 = vrot.lane.b32.xlu0 %v912, 32
      %v1216 = vpop.permute.xlu0 %1215
      %1217 = vrot.lane.b32.xlu0 %v913, 32
      %v1218 = vpop.permute.xlu0 %1217
      %1219 = vrot.lane.b32.xlu0 %v914, 32
      %v1220 = vpop.permute.xlu0 %1219
      %1221 = vrot.lane.b32.xlu0 %v915, 32
      %v1222 = vpop.permute.xlu0 %1221
      %1223 = vrot.lane.b32.xlu0 %v916, 32
      %v1224 = vpop.permute.xlu0 %1223
      %1225 = vrot.lane.b32.xlu0 %v917, 32
      %v1226 = vpop.permute.xlu0 %1225
      %1227 = vrot.lane.b32.xlu0 %v918, 32
      %v1228 = vpop.permute.xlu0 %1227
      %1229 = vrot.lane.b32.xlu0 %v919, 32
      %v1230 = vpop.permute.xlu0 %1229
      %1231 = vrot.lane.b32.xlu0 %v920, 32
      %v1232 = vpop.permute.xlu0 %1231
      %1233 = vrot.lane.b32.xlu0 %v921, 32
      %v1234 = vpop.permute.xlu0 %1233
      %1235 = vrot.lane.b32.xlu0 %v922, 32
      %v1236 = vpop.permute.xlu0 %1235
      %1237 = vrot.lane.b32.xlu0 %v923, 32
      %v1238 = vpop.permute.xlu0 %1237
      %1239 = vrot.lane.b32.xlu0 %v924, 32
      %v1240 = vpop.permute.xlu0 %1239
      %1241 = vrot.lane.b32.xlu0 %v925, 32
      %v1242 = vpop.permute.xlu0 %1241
      %1243 = vrot.lane.b32.xlu0 %v926, 32
      %v1244 = vpop.permute.xlu0 %1243
      %1245 = vrot.lane.b32.xlu0 %v927, 32
      %v1246 = vpop.permute.xlu0 %1245
      %1247 = vrot.lane.b32.xlu0 %v928, 32
      %v1248 = vpop.permute.xlu0 %1247
      %1249 = vrot.lane.b32.xlu0 %v929, 32
      %v1250 = vpop.permute.xlu0 %1249
      %vm1283 = vcmask 326912
      %1284 = vst.msk [vmem:[#allocation3] sm:$0xff] %vm1283, %v1188
      %1285 = vst.msk [vmem:[#allocation3 + $0x8] sm:$0xff] %vm1283, %v1190
      %1286 = vst.msk [vmem:[#allocation3 + $0x10] sm:$0xff] %vm1283, %v1192
      %1287 = vst.msk [vmem:[#allocation3 + $0x18] sm:$0xff] %vm1283, %v1194
      %1288 = vst.msk [vmem:[#allocation3 + $0x20] sm:$0xff] %vm1283, %v1196
      %1289 = vst.msk [vmem:[#allocation3 + $0x28] sm:$0xff] %vm1283, %v1198
      %1290 = vst.msk [vmem:[#allocation3 + $0x30] sm:$0xff] %vm1283, %v1200
      %1291 = vst.msk [vmem:[#allocation3 + $0x38] sm:$0xff] %vm1283, %v1202
      %1292 = vst.msk [vmem:[#allocation3 + $0x40] sm:$0xff] %vm1283, %v1204
      %1293 = vst.msk [vmem:[#allocation3 + $0x48] sm:$0xff] %vm1283, %v1206
      %1294 = vst.msk [vmem:[#allocation3 + $0x50] sm:$0xff] %vm1283, %v1208
      %1295 = vst.msk [vmem:[#allocation3 + $0x58] sm:$0xff] %vm1283, %v1210
      %1296 = vst.msk [vmem:[#allocation3 + $0x60] sm:$0xff] %vm1283, %v1212
      %1297 = vst.msk [vmem:[#allocation3 + $0x68] sm:$0xff] %vm1283, %v1214
      %1298 = vst.msk [vmem:[#allocation3 + $0x70] sm:$0xff] %vm1283, %v1216
      %1299 = vst.msk [vmem:[#allocation3 + $0x78] sm:$0xff] %vm1283, %v1218
      %1300 = vst.msk [vmem:[#allocation3 + $0x80] sm:$0xff] %vm1283, %v1220
      %1301 = vst.msk [vmem:[#allocation3 + $0x88] sm:$0xff] %vm1283, %v1222
      %1302 = vst.msk [vmem:[#allocation3 + $0x90] sm:$0xff] %vm1283, %v1224
      %1303 = vst.msk [vmem:[#allocation3 + $0x98] sm:$0xff] %vm1283, %v1226
      %1304 = vst.msk [vmem:[#allocation3 + $0xa0] sm:$0xff] %vm1283, %v1228
      %1305 = vst.msk [vmem:[#allocation3 + $0xa8] sm:$0xff] %vm1283, %v1230
      %1306 = vst.msk [vmem:[#allocation3 + $0xb0] sm:$0xff] %vm1283, %v1232
      %1307 = vst.msk [vmem:[#allocation3 + $0xb8] sm:$0xff] %vm1283, %v1234
      %1308 = vst.msk [vmem:[#allocation3 + $0xc0] sm:$0xff] %vm1283, %v1236
      %1309 = vst.msk [vmem:[#allocation3 + $0xc8] sm:$0xff] %vm1283, %v1238
      %1310 = vst.msk [vmem:[#allocation3 + $0xd0] sm:$0xff] %vm1283, %v1240
      %1311 = vst.msk [vmem:[#allocation3 + $0xd8] sm:$0xff] %vm1283, %v1242
      %1312 = vst.msk [vmem:[#allocation3 + $0xe0] sm:$0xff] %vm1283, %v1244
      %1313 = vst.msk [vmem:[#allocation3 + $0xe8] sm:$0xff] %vm1283, %v1246
      %1314 = vst.msk [vmem:[#allocation3 + $0xf0] sm:$0xff] %vm1283, %v1248
      %1315 = vst.msk [vmem:[#allocation3 + $0xf8] sm:$0xff] %vm1283, %v1250
      %v1316 = vrot.slane %v898, 1
      %v1317 = vrot.slane %v899, 1
      %v1318 = vsel %vm683, %v1316, %v1317
      %v1319 = vrot.slane %v900, 1
      %v1320 = vrot.slane %v901, 1
      %v1321 = vsel %vm683, %v1319, %v1320
      %v1322 = vrot.slane %v902, 1
      %v1323 = vrot.slane %v903, 1
      %v1324 = vsel %vm683, %v1322, %v1323
      %v1325 = vrot.slane %v904, 1
      %v1326 = vrot.slane %v905, 1
      %v1327 = vsel %vm683, %v1325, %v1326
      %v1328 = vrot.slane %v906, 1
      %v1329 = vrot.slane %v907, 1
      %v1330 = vsel %vm683, %v1328, %v1329
      %v1331 = vrot.slane %v908, 1
      %v1332 = vrot.slane %v909, 1
      %v1333 = vsel %vm683, %v1331, %v1332
      %v1334 = vrot.slane %v910, 1
      %v1335 = vrot.slane %v911, 1
      %v1336 = vsel %vm683, %v1334, %v1335
      %v1337 = vrot.slane %v912, 1
      %v1338 = vrot.slane %v913, 1
      %v1339 = vsel %vm683, %v1337, %v1338
      %v1340 = vrot.slane %v914, 1
      %v1341 = vrot.slane %v915, 1
      %v1342 = vsel %vm683, %v1340, %v1341
      %v1343 = vrot.slane %v916, 1
      %v1344 = vrot.slane %v917, 1
      %v1345 = vsel %vm683, %v1343, %v1344
      %v1346 = vrot.slane %v918, 1
      %v1347 = vrot.slane %v919, 1
      %v1348 = vsel %vm683, %v1346, %v1347
      %v1349 = vrot.slane %v920, 1
      %v1350 = vrot.slane %v921, 1
      %v1351 = vsel %vm683, %v1349, %v1350
      %v1352 = vrot.slane %v922, 1
      %v1353 = vrot.slane %v923, 1
      %v1354 = vsel %vm683, %v1352, %v1353
      %v1355 = vrot.slane %v924, 1
      %v1356 = vrot.slane %v925, 1
      %v1357 = vsel %vm683, %v1355, %v1356
      %v1358 = vrot.slane %v926, 1
      %v1359 = vrot.slane %v927, 1
      %v1360 = vsel %vm683, %v1358, %v1359
      %v1361 = vrot.slane %v928, 1
      %v1362 = vrot.slane %v929, 1
      %v1363 = vsel %vm683, %v1361, %v1362
      %v1380 = vsel %vm683, %v1317, 0.0
      %v1381 = vsel %vm683, %v1320, 0.0
      %v1382 = vsel %vm683, %v1323, 0.0
      %v1383 = vsel %vm683, %v1326, 0.0
      %v1384 = vsel %vm683, %v1329, 0.0
      %v1385 = vsel %vm683, %v1332, 0.0
      %v1386 = vsel %vm683, %v1335, 0.0
      %v1387 = vsel %vm683, %v1338, 0.0
      %v1388 = vsel %vm683, %v1341, 0.0
      %v1389 = vsel %vm683, %v1344, 0.0
      %v1390 = vsel %vm683, %v1347, 0.0
      %v1391 = vsel %vm683, %v1350, 0.0
      %v1392 = vsel %vm683, %v1353, 0.0
      %v1393 = vsel %vm683, %v1356, 0.0
      %v1394 = vsel %vm683, %v1359, 0.0
      %v1395 = vsel %vm683, %v1362, 0.0
      %1412 = vrot.lane.b32.xlu0 %v1318, 40
      %v1413 = vpop.permute.xlu0 %1412
      %1414 = vrot.lane.b32.xlu0 %v1380, 40
      %v1415 = vpop.permute.xlu0 %1414
      %1416 = vrot.lane.b32.xlu0 %v1321, 40
      %v1417 = vpop.permute.xlu0 %1416
      %1418 = vrot.lane.b32.xlu0 %v1381, 40
      %v1419 = vpop.permute.xlu0 %1418
      %1420 = vrot.lane.b32.xlu0 %v1324, 40
      %v1421 = vpop.permute.xlu0 %1420
      %1422 = vrot.lane.b32.xlu0 %v1382, 40
      %v1423 = vpop.permute.xlu0 %1422
      %1424 = vrot.lane.b32.xlu0 %v1327, 40
      %v1425 = vpop.permute.xlu0 %1424
      %1426 = vrot.lane.b32.xlu0 %v1383, 40
      %v1427 = vpop.permute.xlu0 %1426
      %1428 = vrot.lane.b32.xlu0 %v1330, 40
      %v1429 = vpop.permute.xlu0 %1428
      %1430 = vrot.lane.b32.xlu0 %v1384, 40
      %v1431 = vpop.permute.xlu0 %1430
      %1432 = vrot.lane.b32.xlu0 %v1333, 40
      %v1433 = vpop.permute.xlu0 %1432
      %1434 = vrot.lane.b32.xlu0 %v1385, 40
      %v1435 = vpop.permute.xlu0 %1434
      %1436 = vrot.lane.b32.xlu0 %v1336, 40
      %v1437 = vpop.permute.xlu0 %1436
      %1438 = vrot.lane.b32.xlu0 %v1386, 40
      %v1439 = vpop.permute.xlu0 %1438
      %1440 = vrot.lane.b32.xlu0 %v1339, 40
      %v1441 = vpop.permute.xlu0 %1440
      %1442 = vrot.lane.b32.xlu0 %v1387, 40
      %v1443 = vpop.permute.xlu0 %1442
      %1444 = vrot.lane.b32.xlu0 %v1342, 40
      %v1445 = vpop.permute.xlu0 %1444
      %1446 = vrot.lane.b32.xlu0 %v1388, 40
      %v1447 = vpop.permute.xlu0 %1446
      %1448 = vrot.lane.b32.xlu0 %v1345, 40
      %v1449 = vpop.permute.xlu0 %1448
      %1450 = vrot.lane.b32.xlu0 %v1389, 40
      %v1451 = vpop.permute.xlu0 %1450
      %1452 = vrot.lane.b32.xlu0 %v1348, 40
      %v1453 = vpop.permute.xlu0 %1452
      %1454 = vrot.lane.b32.xlu0 %v1390, 40
      %v1455 = vpop.permute.xlu0 %1454
      %1456 = vrot.lane.b32.xlu0 %v1351, 40
      %v1457 = vpop.permute.xlu0 %1456
      %1458 = vrot.lane.b32.xlu0 %v1391, 40
      %v1459 = vpop.permute.xlu0 %1458
      %1460 = vrot.lane.b32.xlu0 %v1354, 40
      %v1461 = vpop.permute.xlu0 %1460
      %1462 = vrot.lane.b32.xlu0 %v1392, 40
      %v1463 = vpop.permute.xlu0 %1462
      %1464 = vrot.lane.b32.xlu0 %v1357, 40
      %v1465 = vpop.permute.xlu0 %1464
      %1466 = vrot.lane.b32.xlu0 %v1393, 40
      %v1467 = vpop.permute.xlu0 %1466
      %1468 = vrot.lane.b32.xlu0 %v1360, 40
      %v1469 = vpop.permute.xlu0 %1468
      %1470 = vrot.lane.b32.xlu0 %v1394, 40
      %v1471 = vpop.permute.xlu0 %1470
      %1472 = vrot.lane.b32.xlu0 %v1363, 40
      %v1473 = vpop.permute.xlu0 %1472
      %1474 = vrot.lane.b32.xlu0 %v1395, 40
      %v1475 = vpop.permute.xlu0 %1474
      %vm1508 = vcmask 392512
      %1509 = vst.msk [vmem:[#allocation3] sm:$0xff] %vm1508, %v1413
      %1510 = vst.msk [vmem:[#allocation3 + $0x8] sm:$0xff] %vm1508, %v1415
      %1511 = vst.msk [vmem:[#allocation3 + $0x10] sm:$0xff] %vm1508, %v1417
      %1512 = vst.msk [vmem:[#allocation3 + $0x18] sm:$0xff] %vm1508, %v1419
      %1513 = vst.msk [vmem:[#allocation3 + $0x20] sm:$0xff] %vm1508, %v1421
      %1514 = vst.msk [vmem:[#allocation3 + $0x28] sm:$0xff] %vm1508, %v1423
      %1515 = vst.msk [vmem:[#allocation3 + $0x30] sm:$0xff] %vm1508, %v1425
      %1516 = vst.msk [vmem:[#allocation3 + $0x38] sm:$0xff] %vm1508, %v1427
      %1517 = vst.msk [vmem:[#allocation3 + $0x40] sm:$0xff] %vm1508, %v1429
      %1518 = vst.msk [vmem:[#allocation3 + $0x48] sm:$0xff] %vm1508, %v1431
      %1519 = vst.msk [vmem:[#allocation3 + $0x50] sm:$0xff] %vm1508, %v1433
      %1520 = vst.msk [vmem:[#allocation3 + $0x58] sm:$0xff] %vm1508, %v1435
      %1521 = vst.msk [vmem:[#allocation3 + $0x60] sm:$0xff] %vm1508, %v1437
      %1522 = vst.msk [vmem:[#allocation3 + $0x68] sm:$0xff] %vm1508, %v1439
      %1523 = vst.msk [vmem:[#allocation3 + $0x70] sm:$0xff] %vm1508, %v1441
      %1524 = vst.msk [vmem:[#allocation3 + $0x78] sm:$0xff] %vm1508, %v1443
      %1525 = vst.msk [vmem:[#allocation3 + $0x80] sm:$0xff] %vm1508, %v1445
      %1526 = vst.msk [vmem:[#allocation3 + $0x88] sm:$0xff] %vm1508, %v1447
      %1527 = vst.msk [vmem:[#allocation3 + $0x90] sm:$0xff] %vm1508, %v1449
      %1528 = vst.msk [vmem:[#allocation3 + $0x98] sm:$0xff] %vm1508, %v1451
      %1529 = vst.msk [vmem:[#allocation3 + $0xa0] sm:$0xff] %vm1508, %v1453
      %1530 = vst.msk [vmem:[#allocation3 + $0xa8] sm:$0xff] %vm1508, %v1455
      %1531 = vst.msk [vmem:[#allocation3 + $0xb0] sm:$0xff] %vm1508, %v1457
      %1532 = vst.msk [vmem:[#allocation3 + $0xb8] sm:$0xff] %vm1508, %v1459
      %1533 = vst.msk [vmem:[#allocation3 + $0xc0] sm:$0xff] %vm1508, %v1461
      %1534 = vst.msk [vmem:[#allocation3 + $0xc8] sm:$0xff] %vm1508, %v1463
      %1535 = vst.msk [vmem:[#allocation3 + $0xd0] sm:$0xff] %vm1508, %v1465
      %1536 = vst.msk [vmem:[#allocation3 + $0xd8] sm:$0xff] %vm1508, %v1467
      %1537 = vst.msk [vmem:[#allocation3 + $0xe0] sm:$0xff] %vm1508, %v1469
      %1538 = vst.msk [vmem:[#allocation3 + $0xe8] sm:$0xff] %vm1508, %v1471
      %1539 = vst.msk [vmem:[#allocation3 + $0xf0] sm:$0xff] %vm1508, %v1473
      %1540 = vst.msk [vmem:[#allocation3 + $0xf8] sm:$0xff] %vm1508, %v1475
      %s1541 = scalar_lea.vmem [#allocation2], 16
      %v1542 = vld [vmem:[%s1541] sm:$0xff]
      %v1543 = vld [vmem:[%s1541 + $0x8] sm:$0xff]
      %v1544 = vld [vmem:[%s1541 + $0x10] sm:$0xff]
      %v1545 = vld [vmem:[%s1541 + $0x18] sm:$0xff]
      %v1546 = vld [vmem:[%s1541 + $0x20] sm:$0xff]
      %v1547 = vld [vmem:[%s1541 + $0x28] sm:$0xff]
      %v1548 = vld [vmem:[%s1541 + $0x30] sm:$0xff]
      %v1549 = vld [vmem:[%s1541 + $0x38] sm:$0xff]
      %v1550 = vld [vmem:[%s1541 + $0x40] sm:$0xff]
      %v1551 = vld [vmem:[%s1541 + $0x48] sm:$0xff]
      %v1552 = vld [vmem:[%s1541 + $0x50] sm:$0xff]
      %v1553 = vld [vmem:[%s1541 + $0x58] sm:$0xff]
      %v1554 = vld [vmem:[%s1541 + $0x60] sm:$0xff]
      %v1555 = vld [vmem:[%s1541 + $0x68] sm:$0xff]
      %v1556 = vld [vmem:[%s1541 + $0x70] sm:$0xff]
      %v1557 = vld [vmem:[%s1541 + $0x78] sm:$0xff]
      %v1558 = vld [vmem:[%s1541 + $0x80] sm:$0xff]
      %v1559 = vld [vmem:[%s1541 + $0x88] sm:$0xff]
      %v1560 = vld [vmem:[%s1541 + $0x90] sm:$0xff]
      %v1561 = vld [vmem:[%s1541 + $0x98] sm:$0xff]
      %v1562 = vld [vmem:[%s1541 + $0xa0] sm:$0xff]
      %v1563 = vld [vmem:[%s1541 + $0xa8] sm:$0xff]
      %v1564 = vld [vmem:[%s1541 + $0xb0] sm:$0xff]
      %v1565 = vld [vmem:[%s1541 + $0xb8] sm:$0xff]
      %v1566 = vld [vmem:[%s1541 + $0xc0] sm:$0xff]
      %v1567 = vld [vmem:[%s1541 + $0xc8] sm:$0xff]
      %v1568 = vld [vmem:[%s1541 + $0xd0] sm:$0xff]
      %v1569 = vld [vmem:[%s1541 + $0xd8] sm:$0xff]
      %v1570 = vld [vmem:[%s1541 + $0xe0] sm:$0xff]
      %v1571 = vld [vmem:[%s1541 + $0xe8] sm:$0xff]
      %v1602 = vrot.slane %v1542, 7
      %v1603 = vrot.slane %v1543, 7
      %v1604 = vsel %vm440, %v1602, %v1603
      %v1605 = vrot.slane %v1544, 7
      %v1606 = vrot.slane %v1545, 7
      %v1607 = vsel %vm440, %v1605, %v1606
      %v1608 = vrot.slane %v1546, 7
      %v1609 = vrot.slane %v1547, 7
      %v1610 = vsel %vm440, %v1608, %v1609
      %v1611 = vrot.slane %v1548, 7
      %v1612 = vrot.slane %v1549, 7
      %v1613 = vsel %vm440, %v1611, %v1612
      %v1614 = vrot.slane %v1550, 7
      %v1615 = vrot.slane %v1551, 7
      %v1616 = vsel %vm440, %v1614, %v1615
      %v1617 = vrot.slane %v1552, 7
      %v1618 = vrot.slane %v1553, 7
      %v1619 = vsel %vm440, %v1617, %v1618
      %v1620 = vrot.slane %v1554, 7
      %v1621 = vrot.slane %v1555, 7
      %v1622 = vsel %vm440, %v1620, %v1621
      %v1623 = vrot.slane %v1556, 7
      %v1624 = vrot.slane %v1557, 7
      %v1625 = vsel %vm440, %v1623, %v1624
      %v1626 = vrot.slane %v1558, 7
      %v1627 = vrot.slane %v1559, 7
      %v1628 = vsel %vm440, %v1626, %v1627
      %v1629 = vrot.slane %v1560, 7
      %v1630 = vrot.slane %v1561, 7
      %v1631 = vsel %vm440, %v1629, %v1630
      %v1632 = vrot.slane %v1562, 7
      %v1633 = vrot.slane %v1563, 7
      %v1634 = vsel %vm440, %v1632, %v1633
      %v1635 = vrot.slane %v1564, 7
      %v1636 = vrot.slane %v1565, 7
      %v1637 = vsel %vm440, %v1635, %v1636
      %v1638 = vrot.slane %v1566, 7
      %v1639 = vrot.slane %v1567, 7
      %v1640 = vsel %vm440, %v1638, %v1639
      %v1641 = vrot.slane %v1568, 7
      %v1642 = vrot.slane %v1569, 7
      %v1643 = vsel %vm440, %v1641, %v1642
      %v1644 = vrot.slane %v1570, 7
      %v1645 = vrot.slane %v1571, 7
      %v1646 = vsel %vm440, %v1644, %v1645
      %v1662 = vsel %vm440, 0.0, %v1602
      %v1663 = vsel %vm440, 0.0, %v1605
      %v1664 = vsel %vm440, 0.0, %v1608
      %v1665 = vsel %vm440, 0.0, %v1611
      %v1666 = vsel %vm440, 0.0, %v1614
      %v1667 = vsel %vm440, 0.0, %v1617
      %v1668 = vsel %vm440, 0.0, %v1620
      %v1669 = vsel %vm440, 0.0, %v1623
      %v1670 = vsel %vm440, 0.0, %v1626
      %v1671 = vsel %vm440, 0.0, %v1629
      %v1672 = vsel %vm440, 0.0, %v1632
      %v1673 = vsel %vm440, 0.0, %v1635
      %v1674 = vsel %vm440, 0.0, %v1638
      %v1675 = vsel %vm440, 0.0, %v1641
      %v1676 = vsel %vm440, 0.0, %v1644
      %1692 = vrot.lane.b32.xlu0 %v1662, 48
      %v1693 = vpop.permute.xlu0 %1692
      %1694 = vrot.lane.b32.xlu0 %v1604, 48
      %v1695 = vpop.permute.xlu0 %1694
      %1696 = vrot.lane.b32.xlu0 %v1663, 48
      %v1697 = vpop.permute.xlu0 %1696
      %1698 = vrot.lane.b32.xlu0 %v1607, 48
      %v1699 = vpop.permute.xlu0 %1698
      %1700 = vrot.lane.b32.xlu0 %v1664, 48
      %v1701 = vpop.permute.xlu0 %1700
      %1702 = vrot.lane.b32.xlu0 %v1610, 48
      %v1703 = vpop.permute.xlu0 %1702
      %1704 = vrot.lane.b32.xlu0 %v1665, 48
      %v1705 = vpop.permute.xlu0 %1704
      %1706 = vrot.lane.b32.xlu0 %v1613, 48
      %v1707 = vpop.permute.xlu0 %1706
      %1708 = vrot.lane.b32.xlu0 %v1666, 48
      %v1709 = vpop.permute.xlu0 %1708
      %1710 = vrot.lane.b32.xlu0 %v1616, 48
      %v1711 = vpop.permute.xlu0 %1710
      %1712 = vrot.lane.b32.xlu0 %v1667, 48
      %v1713 = vpop.permute.xlu0 %1712
      %1714 = vrot.lane.b32.xlu0 %v1619, 48
      %v1715 = vpop.permute.xlu0 %1714
      %1716 = vrot.lane.b32.xlu0 %v1668, 48
      %v1717 = vpop.permute.xlu0 %1716
      %1718 = vrot.lane.b32.xlu0 %v1622, 48
      %v1719 = vpop.permute.xlu0 %1718
      %1720 = vrot.lane.b32.xlu0 %v1669, 48
      %v1721 = vpop.permute.xlu0 %1720
      %1722 = vrot.lane.b32.xlu0 %v1625, 48
      %v1723 = vpop.permute.xlu0 %1722
      %1724 = vrot.lane.b32.xlu0 %v1670, 48
      %v1725 = vpop.permute.xlu0 %1724
      %1726 = vrot.lane.b32.xlu0 %v1628, 48
      %v1727 = vpop.permute.xlu0 %1726
      %1728 = vrot.lane.b32.xlu0 %v1671, 48
      %v1729 = vpop.permute.xlu0 %1728
      %1730 = vrot.lane.b32.xlu0 %v1631, 48
      %v1731 = vpop.permute.xlu0 %1730
      %1732 = vrot.lane.b32.xlu0 %v1672, 48
      %v1733 = vpop.permute.xlu0 %1732
      %1734 = vrot.lane.b32.xlu0 %v1634, 48
      %v1735 = vpop.permute.xlu0 %1734
      %1736 = vrot.lane.b32.xlu0 %v1673, 48
      %v1737 = vpop.permute.xlu0 %1736
      %1738 = vrot.lane.b32.xlu0 %v1637, 48
      %v1739 = vpop.permute.xlu0 %1738
      %1740 = vrot.lane.b32.xlu0 %v1674, 48
      %v1741 = vpop.permute.xlu0 %1740
      %1742 = vrot.lane.b32.xlu0 %v1640, 48
      %v1743 = vpop.permute.xlu0 %1742
      %1744 = vrot.lane.b32.xlu0 %v1675, 48
      %v1745 = vpop.permute.xlu0 %1744
      %1746 = vrot.lane.b32.xlu0 %v1643, 48
      %v1747 = vpop.permute.xlu0 %1746
      %1748 = vrot.lane.b32.xlu0 %v1676, 48
      %v1749 = vpop.permute.xlu0 %1748
      %1750 = vrot.lane.b32.xlu0 %v1646, 48
      %v1751 = vpop.permute.xlu0 %1750
      %vm1782 = vcmask 458112
      %1783 = vst.msk [vmem:[#allocation3] sm:$0xff] %vm1782, %v1693
      %1784 = vst.msk [vmem:[#allocation3 + $0x8] sm:$0xff] %vm1782, %v1695
      %1785 = vst.msk [vmem:[#allocation3 + $0x10] sm:$0xff] %vm1782, %v1697
      %1786 = vst.msk [vmem:[#allocation3 + $0x18] sm:$0xff] %vm1782, %v1699
      %1787 = vst.msk [vmem:[#allocation3 + $0x20] sm:$0xff] %vm1782, %v1701
      %1788 = vst.msk [vmem:[#allocation3 + $0x28] sm:$0xff] %vm1782, %v1703
      %1789 = vst.msk [vmem:[#allocation3 + $0x30] sm:$0xff] %vm1782, %v1705
      %1790 = vst.msk [vmem:[#allocation3 + $0x38] sm:$0xff] %vm1782, %v1707
      %1791 = vst.msk [vmem:[#allocation3 + $0x40] sm:$0xff] %vm1782, %v1709
      %1792 = vst.msk [vmem:[#allocation3 + $0x48] sm:$0xff] %vm1782, %v1711
      %1793 = vst.msk [vmem:[#allocation3 + $0x50] sm:$0xff] %vm1782, %v1713
      %1794 = vst.msk [vmem:[#allocation3 + $0x58] sm:$0xff] %vm1782, %v1715
      %1795 = vst.msk [vmem:[#allocation3 + $0x60] sm:$0xff] %vm1782, %v1717
      %1796 = vst.msk [vmem:[#allocation3 + $0x68] sm:$0xff] %vm1782, %v1719
      %1797 = vst.msk [vmem:[#allocation3 + $0x70] sm:$0xff] %vm1782, %v1721
      %1798 = vst.msk [vmem:[#allocation3 + $0x78] sm:$0xff] %vm1782, %v1723
      %1799 = vst.msk [vmem:[#allocation3 + $0x80] sm:$0xff] %vm1782, %v1725
      %1800 = vst.msk [vmem:[#allocation3 + $0x88] sm:$0xff] %vm1782, %v1727
      %1801 = vst.msk [vmem:[#allocation3 + $0x90] sm:$0xff] %vm1782, %v1729
      %1802 = vst.msk [vmem:[#allocation3 + $0x98] sm:$0xff] %vm1782, %v1731
      %1803 = vst.msk [vmem:[#allocation3 + $0xa0] sm:$0xff] %vm1782, %v1733
      %1804 = vst.msk [vmem:[#allocation3 + $0xa8] sm:$0xff] %vm1782, %v1735
      %1805 = vst.msk [vmem:[#allocation3 + $0xb0] sm:$0xff] %vm1782, %v1737
      %1806 = vst.msk [vmem:[#allocation3 + $0xb8] sm:$0xff] %vm1782, %v1739
      %1807 = vst.msk [vmem:[#allocation3 + $0xc0] sm:$0xff] %vm1782, %v1741
      %1808 = vst.msk [vmem:[#allocation3 + $0xc8] sm:$0xff] %vm1782, %v1743
      %1809 = vst.msk [vmem:[#allocation3 + $0xd0] sm:$0xff] %vm1782, %v1745
      %1810 = vst.msk [vmem:[#allocation3 + $0xd8] sm:$0xff] %vm1782, %v1747
      %1811 = vst.msk [vmem:[#allocation3 + $0xe0] sm:$0xff] %vm1782, %v1749
      %1812 = vst.msk [vmem:[#allocation3 + $0xe8] sm:$0xff] %vm1782, %v1751
      %1813 = vrot.lane.b32.xlu0 %v1542, 56
      %v1814 = vpop.permute.xlu0 %1813
      %1815 = vrot.lane.b32.xlu0 %v1543, 56
      %v1816 = vpop.permute.xlu0 %1815
      %1817 = vrot.lane.b32.xlu0 %v1544, 56
      %v1818 = vpop.permute.xlu0 %1817
      %1819 = vrot.lane.b32.xlu0 %v1545, 56
      %v1820 = vpop.permute.xlu0 %1819
      %1821 = vrot.lane.b32.xlu0 %v1546, 56
      %v1822 = vpop.permute.xlu0 %1821
      %1823 = vrot.lane.b32.xlu0 %v1547, 56
      %v1824 = vpop.permute.xlu0 %1823
      %1825 = vrot.lane.b32.xlu0 %v1548, 56
      %v1826 = vpop.permute.xlu0 %1825
      %1827 = vrot.lane.b32.xlu0 %v1549, 56
      %v1828 = vpop.permute.xlu0 %1827
      %1829 = vrot.lane.b32.xlu0 %v1550, 56
      %v1830 = vpop.permute.xlu0 %1829
      %1831 = vrot.lane.b32.xlu0 %v1551, 56
      %v1832 = vpop.permute.xlu0 %1831
      %1833 = vrot.lane.b32.xlu0 %v1552, 56
      %v1834 = vpop.permute.xlu0 %1833
      %1835 = vrot.lane.b32.xlu0 %v1553, 56
      %v1836 = vpop.permute.xlu0 %1835
      %1837 = vrot.lane.b32.xlu0 %v1554, 56
      %v1838 = vpop.permute.xlu0 %1837
      %1839 = vrot.lane.b32.xlu0 %v1555, 56
      %v1840 = vpop.permute.xlu0 %1839
      %1841 = vrot.lane.b32.xlu0 %v1556, 56
      %v1842 = vpop.permute.xlu0 %1841
      %1843 = vrot.lane.b32.xlu0 %v1557, 56
      %v1844 = vpop.permute.xlu0 %1843
      %1845 = vrot.lane.b32.xlu0 %v1558, 56
      %v1846 = vpop.permute.xlu0 %1845
      %1847 = vrot.lane.b32.xlu0 %v1559, 56
      %v1848 = vpop.permute.xlu0 %1847
      %1849 = vrot.lane.b32.xlu0 %v1560, 56
      %v1850 = vpop.permute.xlu0 %1849
      %1851 = vrot.lane.b32.xlu0 %v1561, 56
      %v1852 = vpop.permute.xlu0 %1851
      %1853 = vrot.lane.b32.xlu0 %v1562, 56
      %v1854 = vpop.permute.xlu0 %1853
      %1855 = vrot.lane.b32.xlu0 %v1563, 56
      %v1856 = vpop.permute.xlu0 %1855
      %1857 = vrot.lane.b32.xlu0 %v1564, 56
      %v1858 = vpop.permute.xlu0 %1857
      %1859 = vrot.lane.b32.xlu0 %v1565, 56
      %v1860 = vpop.permute.xlu0 %1859
      %1861 = vrot.lane.b32.xlu0 %v1566, 56
      %v1862 = vpop.permute.xlu0 %1861
      %1863 = vrot.lane.b32.xlu0 %v1567, 56
      %v1864 = vpop.permute.xlu0 %1863
      %1865 = vrot.lane.b32.xlu0 %v1568, 56
      %v1866 = vpop.permute.xlu0 %1865
      %1867 = vrot.lane.b32.xlu0 %v1569, 56
      %v1868 = vpop.permute.xlu0 %1867
      %1869 = vrot.lane.b32.xlu0 %v1570, 56
      %v1870 = vpop.permute.xlu0 %1869
      %1871 = vrot.lane.b32.xlu0 %v1571, 56
      %v1872 = vpop.permute.xlu0 %1871
      %vm1903 = vcmask 523712
      %1904 = vst.msk [vmem:[#allocation3] sm:$0xff] %vm1903, %v1814
      %1905 = vst.msk [vmem:[#allocation3 + $0x8] sm:$0xff] %vm1903, %v1816
      %1906 = vst.msk [vmem:[#allocation3 + $0x10] sm:$0xff] %vm1903, %v1818
      %1907 = vst.msk [vmem:[#allocation3 + $0x18] sm:$0xff] %vm1903, %v1820
      %1908 = vst.msk [vmem:[#allocation3 + $0x20] sm:$0xff] %vm1903, %v1822
      %1909 = vst.msk [vmem:[#allocation3 + $0x28] sm:$0xff] %vm1903, %v1824
      %1910 = vst.msk [vmem:[#allocation3 + $0x30] sm:$0xff] %vm1903, %v1826
      %1911 = vst.msk [vmem:[#allocation3 + $0x38] sm:$0xff] %vm1903, %v1828
      %1912 = vst.msk [vmem:[#allocation3 + $0x40] sm:$0xff] %vm1903, %v1830
      %1913 = vst.msk [vmem:[#allocation3 + $0x48] sm:$0xff] %vm1903, %v1832
      %1914 = vst.msk [vmem:[#allocation3 + $0x50] sm:$0xff] %vm1903, %v1834
      %1915 = vst.msk [vmem:[#allocation3 + $0x58] sm:$0xff] %vm1903, %v1836
      %1916 = vst.msk [vmem:[#allocation3 + $0x60] sm:$0xff] %vm1903, %v1838
      %1917 = vst.msk [vmem:[#allocation3 + $0x68] sm:$0xff] %vm1903, %v1840
      %1918 = vst.msk [vmem:[#allocation3 + $0x70] sm:$0xff] %vm1903, %v1842
      %1919 = vst.msk [vmem:[#allocation3 + $0x78] sm:$0xff] %vm1903, %v1844
      %1920 = vst.msk [vmem:[#allocation3 + $0x80] sm:$0xff] %vm1903, %v1846
      %1921 = vst.msk [vmem:[#allocation3 + $0x88] sm:$0xff] %vm1903, %v1848
      %1922 = vst.msk [vmem:[#allocation3 + $0x90] sm:$0xff] %vm1903, %v1850
      %1923 = vst.msk [vmem:[#allocation3 + $0x98] sm:$0xff] %vm1903, %v1852
      %1924 = vst.msk [vmem:[#allocation3 + $0xa0] sm:$0xff] %vm1903, %v1854
      %1925 = vst.msk [vmem:[#allocation3 + $0xa8] sm:$0xff] %vm1903, %v1856
      %1926 = vst.msk [vmem:[#allocation3 + $0xb0] sm:$0xff] %vm1903, %v1858
      %1927 = vst.msk [vmem:[#allocation3 + $0xb8] sm:$0xff] %vm1903, %v1860
      %1928 = vst.msk [vmem:[#allocation3 + $0xc0] sm:$0xff] %vm1903, %v1862
      %1929 = vst.msk [vmem:[#allocation3 + $0xc8] sm:$0xff] %vm1903, %v1864
      %1930 = vst.msk [vmem:[#allocation3 + $0xd0] sm:$0xff] %vm1903, %v1866
      %1931 = vst.msk [vmem:[#allocation3 + $0xd8] sm:$0xff] %vm1903, %v1868
      %1932 = vst.msk [vmem:[#allocation3 + $0xe0] sm:$0xff] %vm1903, %v1870
      %1933 = vst.msk [vmem:[#allocation3 + $0xe8] sm:$0xff] %vm1903, %v1872
      %v1934 = vrot.slane %v1542, 1
      %v1935 = vrot.slane %v1543, 1
      %v1936 = vsel %vm683, %v1934, %v1935
      %v1937 = vrot.slane %v1544, 1
      %v1938 = vrot.slane %v1545, 1
      %v1939 = vsel %vm683, %v1937, %v1938
      %v1940 = vrot.slane %v1546, 1
      %v1941 = vrot.slane %v1547, 1
      %v1942 = vsel %vm683, %v1940, %v1941
      %v1943 = vrot.slane %v1548, 1
      %v1944 = vrot.slane %v1549, 1
      %v1945 = vsel %vm683, %v1943, %v1944
      %v1946 = vrot.slane %v1550, 1
      %v1947 = vrot.slane %v1551, 1
      %v1948 = vsel %vm683, %v1946, %v1947
      %v1949 = vrot.slane %v1552, 1
      %v1950 = vrot.slane %v1553, 1
      %v1951 = vsel %vm683, %v1949, %v1950
      %v1952 = vrot.slane %v1554, 1
      %v1953 = vrot.slane %v1555, 1
      %v1954 = vsel %vm683, %v1952, %v1953
      %v1955 = vrot.slane %v1556, 1
      %v1956 = vrot.slane %v1557, 1
      %v1957 = vsel %vm683, %v1955, %v1956
      %v1958 = vrot.slane %v1558, 1
      %v1959 = vrot.slane %v1559, 1
      %v1960 = vsel %vm683, %v1958, %v1959
      %v1961 = vrot.slane %v1560, 1
      %v1962 = vrot.slane %v1561, 1
      %v1963 = vsel %vm683, %v1961, %v1962
      %v1964 = vrot.slane %v1562, 1
      %v1965 = vrot.slane %v1563, 1
      %v1966 = vsel %vm683, %v1964, %v1965
      %v1967 = vrot.slane %v1564, 1
      %v1968 = vrot.slane %v1565, 1
      %v1969 = vsel %vm683, %v1967, %v1968
      %v1970 = vrot.slane %v1566, 1
      %v1971 = vrot.slane %v1567, 1
      %v1972 = vsel %vm683, %v1970, %v1971
      %v1973 = vrot.slane %v1568, 1
      %v1974 = vrot.slane %v1569, 1
      %v1975 = vsel %vm683, %v1973, %v1974
      %v1976 = vrot.slane %v1570, 1
      %v1977 = vrot.slane %v1571, 1
      %v1978 = vsel %vm683, %v1976, %v1977
      %v1994 = vsel %vm683, %v1935, 0.0
      %v1995 = vsel %vm683, %v1938, 0.0
      %v1996 = vsel %vm683, %v1941, 0.0
      %v1997 = vsel %vm683, %v1944, 0.0
      %v1998 = vsel %vm683, %v1947, 0.0
      %v1999 = vsel %vm683, %v1950, 0.0
      %v2000 = vsel %vm683, %v1953, 0.0
      %v2001 = vsel %vm683, %v1956, 0.0
      %v2002 = vsel %vm683, %v1959, 0.0
      %v2003 = vsel %vm683, %v1962, 0.0
      %v2004 = vsel %vm683, %v1965, 0.0
      %v2005 = vsel %vm683, %v1968, 0.0
      %v2006 = vsel %vm683, %v1971, 0.0
      %v2007 = vsel %vm683, %v1974, 0.0
      %v2008 = vsel %vm683, %v1977, 0.0
      %2024 = vrot.lane.b32.xlu0 %v1936, 64
      %v2025 = vpop.permute.xlu0 %2024
      %2026 = vrot.lane.b32.xlu0 %v1994, 64
      %v2027 = vpop.permute.xlu0 %2026
      %2028 = vrot.lane.b32.xlu0 %v1939, 64
      %v2029 = vpop.permute.xlu0 %2028
      %2030 = vrot.lane.b32.xlu0 %v1995, 64
      %v2031 = vpop.permute.xlu0 %2030
      %2032 = vrot.lane.b32.xlu0 %v1942, 64
      %v2033 = vpop.permute.xlu0 %2032
      %2034 = vrot.lane.b32.xlu0 %v1996, 64
      %v2035 = vpop.permute.xlu0 %2034
      %2036 = vrot.lane.b32.xlu0 %v1945, 64
      %v2037 = vpop.permute.xlu0 %2036
      %2038 = vrot.lane.b32.xlu0 %v1997, 64
      %v2039 = vpop.permute.xlu0 %2038
      %2040 = vrot.lane.b32.xlu0 %v1948, 64
      %v2041 = vpop.permute.xlu0 %2040
      %2042 = vrot.lane.b32.xlu0 %v1998, 64
      %v2043 = vpop.permute.xlu0 %2042
      %2044 = vrot.lane.b32.xlu0 %v1951, 64
      %v2045 = vpop.permute.xlu0 %2044
      %2046 = vrot.lane.b32.xlu0 %v1999, 64
      %v2047 = vpop.permute.xlu0 %2046
      %2048 = vrot.lane.b32.xlu0 %v1954, 64
      %v2049 = vpop.permute.xlu0 %2048
      %2050 = vrot.lane.b32.xlu0 %v2000, 64
      %v2051 = vpop.permute.xlu0 %2050
      %2052 = vrot.lane.b32.xlu0 %v1957, 64
      %v2053 = vpop.permute.xlu0 %2052
      %2054 = vrot.lane.b32.xlu0 %v2001, 64
      %v2055 = vpop.permute.xlu0 %2054
      %2056 = vrot.lane.b32.xlu0 %v1960, 64
      %v2057 = vpop.permute.xlu0 %2056
      %2058 = vrot.lane.b32.xlu0 %v2002, 64
      %v2059 = vpop.permute.xlu0 %2058
      %2060 = vrot.lane.b32.xlu0 %v1963, 64
      %v2061 = vpop.permute.xlu0 %2060
      %2062 = vrot.lane.b32.xlu0 %v2003, 64
      %v2063 = vpop.permute.xlu0 %2062
      %2064 = vrot.lane.b32.xlu0 %v1966, 64
      %v2065 = vpop.permute.xlu0 %2064
      %2066 = vrot.lane.b32.xlu0 %v2004, 64
      %v2067 = vpop.permute.xlu0 %2066
      %2068 = vrot.lane.b32.xlu0 %v1969, 64
      %v2069 = vpop.permute.xlu0 %2068
      %2070 = vrot.lane.b32.xlu0 %v2005, 64
      %v2071 = vpop.permute.xlu0 %2070
      %2072 = vrot.lane.b32.xlu0 %v1972, 64
      %v2073 = vpop.permute.xlu0 %2072
      %2074 = vrot.lane.b32.xlu0 %v2006, 64
      %v2075 = vpop.permute.xlu0 %2074
      %2076 = vrot.lane.b32.xlu0 %v1975, 64
      %v2077 = vpop.permute.xlu0 %2076
      %2078 = vrot.lane.b32.xlu0 %v2007, 64
      %v2079 = vpop.permute.xlu0 %2078
      %2080 = vrot.lane.b32.xlu0 %v1978, 64
      %v2081 = vpop.permute.xlu0 %2080
      %2082 = vrot.lane.b32.xlu0 %v2008, 64
      %v2083 = vpop.permute.xlu0 %2082
      %vm2114 = vcmask 589312
      %2115 = vst.msk [vmem:[#allocation3] sm:$0xff] %vm2114, %v2025
      %2116 = vst.msk [vmem:[#allocation3 + $0x8] sm:$0xff] %vm2114, %v2027
      %2117 = vst.msk [vmem:[#allocation3 + $0x10] sm:$0xff] %vm2114, %v2029
      %2118 = vst.msk [vmem:[#allocation3 + $0x18] sm:$0xff] %vm2114, %v2031
      %2119 = vst.msk [vmem:[#allocation3 + $0x20] sm:$0xff] %vm2114, %v2033
      %2120 = vst.msk [vmem:[#allocation3 + $0x28] sm:$0xff] %vm2114, %v2035
      %2121 = vst.msk [vmem:[#allocation3 + $0x30] sm:$0xff] %vm2114, %v2037
      %2122 = vst.msk [vmem:[#allocation3 + $0x38] sm:$0xff] %vm2114, %v2039
      %2123 = vst.msk [vmem:[#allocation3 + $0x40] sm:$0xff] %vm2114, %v2041
      %2124 = vst.msk [vmem:[#allocation3 + $0x48] sm:$0xff] %vm2114, %v2043
      %2125 = vst.msk [vmem:[#allocation3 + $0x50] sm:$0xff] %vm2114, %v2045
      %2126 = vst.msk [vmem:[#allocation3 + $0x58] sm:$0xff] %vm2114, %v2047
      %2127 = vst.msk [vmem:[#allocation3 + $0x60] sm:$0xff] %vm2114, %v2049
      %2128 = vst.msk [vmem:[#allocation3 + $0x68] sm:$0xff] %vm2114, %v2051
      %2129 = vst.msk [vmem:[#allocation3 + $0x70] sm:$0xff] %vm2114, %v2053
      %2130 = vst.msk [vmem:[#allocation3 + $0x78] sm:$0xff] %vm2114, %v2055
      %2131 = vst.msk [vmem:[#allocation3 + $0x80] sm:$0xff] %vm2114, %v2057
      %2132 = vst.msk [vmem:[#allocation3 + $0x88] sm:$0xff] %vm2114, %v2059
      %2133 = vst.msk [vmem:[#allocation3 + $0x90] sm:$0xff] %vm2114, %v2061
      %2134 = vst.msk [vmem:[#allocation3 + $0x98] sm:$0xff] %vm2114, %v2063
      %2135 = vst.msk [vmem:[#allocation3 + $0xa0] sm:$0xff] %vm2114, %v2065
      %2136 = vst.msk [vmem:[#allocation3 + $0xa8] sm:$0xff] %vm2114, %v2067
      %2137 = vst.msk [vmem:[#allocation3 + $0xb0] sm:$0xff] %vm2114, %v2069
      %2138 = vst.msk [vmem:[#allocation3 + $0xb8] sm:$0xff] %vm2114, %v2071
      %2139 = vst.msk [vmem:[#allocation3 + $0xc0] sm:$0xff] %vm2114, %v2073
      %2140 = vst.msk [vmem:[#allocation3 + $0xc8] sm:$0xff] %vm2114, %v2075
      %2141 = vst.msk [vmem:[#allocation3 + $0xd0] sm:$0xff] %vm2114, %v2077
      %2142 = vst.msk [vmem:[#allocation3 + $0xd8] sm:$0xff] %vm2114, %v2079
      %2143 = vst.msk [vmem:[#allocation3 + $0xe0] sm:$0xff] %vm2114, %v2081
      %2144 = vst.msk [vmem:[#allocation3 + $0xe8] sm:$0xff] %vm2114, %v2083
      %s2145 = scalar_lea.vmem [#allocation3], 240
      %vm2146 = vcmask 589184
      %2147 = vst.msk [vmem:[%s2145] sm:$0xff] %vm2146, 0.0
      %2148 = vst.msk [vmem:[%s2145 + $0x8] sm:$0xff] %vm2146, 0.0
      %v2149 = vld [vmem:[#allocation3] sm:$0xff]
      %v2150 = vld [vmem:[#allocation3 + $0x8] sm:$0xff]
      %v2151 = vld [vmem:[#allocation3 + $0x10] sm:$0xff]
      %v2152 = vld [vmem:[#allocation3 + $0x18] sm:$0xff]
      %v2153 = vld [vmem:[#allocation3 + $0x20] sm:$0xff]
      %v2154 = vld [vmem:[#allocation3 + $0x28] sm:$0xff]
      %v2155 = vld [vmem:[#allocation3 + $0x30] sm:$0xff]
      %v2156 = vld [vmem:[#allocation3 + $0x38] sm:$0xff]
      %v2157 = vld [vmem:[#allocation3 + $0x40] sm:$0xff]
      %v2158 = vld [vmem:[#allocation3 + $0x48] sm:$0xff]
      %v2159 = vld [vmem:[#allocation3 + $0x50] sm:$0xff]
      %v2160 = vld [vmem:[#allocation3 + $0x58] sm:$0xff]
      %v2161 = vld [vmem:[#allocation3 + $0x60] sm:$0xff]
      %v2162 = vld [vmem:[#allocation3 + $0x68] sm:$0xff]
      %v2163 = vld [vmem:[#allocation3 + $0x70] sm:$0xff]
      %v2164 = vld [vmem:[#allocation3 + $0x78] sm:$0xff]
      %v2165 = vld [vmem:[#allocation3 + $0x80] sm:$0xff]
      %v2166 = vld [vmem:[#allocation3 + $0x88] sm:$0xff]
      %v2167 = vld [vmem:[#allocation3 + $0x90] sm:$0xff]
      %v2168 = vld [vmem:[#allocation3 + $0x98] sm:$0xff]
      %v2169 = vld [vmem:[#allocation3 + $0xa0] sm:$0xff]
      %v2170 = vld [vmem:[#allocation3 + $0xa8] sm:$0xff]
      %v2171 = vld [vmem:[#allocation3 + $0xb0] sm:$0xff]
      %v2172 = vld [vmem:[#allocation3 + $0xb8] sm:$0xff]
      %v2173 = vld [vmem:[#allocation3 + $0xc0] sm:$0xff]
      %v2174 = vld [vmem:[#allocation3 + $0xc8] sm:$0xff]
      %v2175 = vld [vmem:[#allocation3 + $0xd0] sm:$0xff]
      %v2176 = vld [vmem:[#allocation3 + $0xd8] sm:$0xff]
      %v2177 = vld [vmem:[#allocation3 + $0xe0] sm:$0xff]
      %v2178 = vld [vmem:[#allocation3 + $0xe8] sm:$0xff]
      %v2179 = vld [vmem:[#allocation3 + $0xf0] sm:$0xff]
      %v2180 = vld [vmem:[#allocation3 + $0xf8] sm:$0xff]
      %v2181 = vld [vmem:[%s2] sm:$0xff]
      %v2182 = vld [vmem:[%s2 + $0x8] sm:$0xff]
      %v2183 = vld [vmem:[%s2 + $0x10] sm:$0xff]
      %v2184 = vld [vmem:[%s2 + $0x18] sm:$0xff]
      %v2185 = vld [vmem:[%s2 + $0x20] sm:$0xff]
      %v2186 = vld [vmem:[%s2 + $0x28] sm:$0xff]
      %v2187 = vld [vmem:[%s2 + $0x30] sm:$0xff]
      %v2188 = vld [vmem:[%s2 + $0x38] sm:$0xff]
      %v2189 = vld [vmem:[%s2 + $0x40] sm:$0xff]
      %vm2190 = vcmask 588800
      %v2192 = vsel %vm2190, %v2149, 0
      %v2195 = vsel %vm2190, %v2150, 0
      %v2198 = vsel %vm2190, %v2151, 0
      %v2201 = vsel %vm2190, %v2152, 0
      %v2204 = vsel %vm2190, %v2153, 0
      %v2207 = vsel %vm2190, %v2154, 0
      %v2210 = vsel %vm2190, %v2155, 0
      %v2213 = vsel %vm2190, %v2156, 0
      %v2216 = vsel %vm2190, %v2157, 0
      %v2219 = vsel %vm2190, %v2158, 0
      %v2222 = vsel %vm2190, %v2159, 0
      %v2225 = vsel %vm2190, %v2160, 0
      %v2228 = vsel %vm2190, %v2161, 0
      %v2231 = vsel %vm2190, %v2162, 0
      %v2234 = vsel %vm2190, %v2163, 0
      %v2237 = vsel %vm2190, %v2164, 0
      %v2240 = vsel %vm2190, %v2165, 0
      %v2243 = vsel %vm2190, %v2166, 0
      %v2246 = vsel %vm2190, %v2167, 0
      %v2249 = vsel %vm2190, %v2168, 0
      %v2252 = vsel %vm2190, %v2169, 0
      %v2255 = vsel %vm2190, %v2170, 0
      %v2258 = vsel %vm2190, %v2171, 0
      %v2261 = vsel %vm2190, %v2172, 0
      %v2264 = vsel %vm2190, %v2173, 0
      %v2267 = vsel %vm2190, %v2174, 0
      %v2270 = vsel %vm2190, %v2175, 0
      %v2273 = vsel %vm2190, %v2176, 0
      %v2276 = vsel %vm2190, %v2177, 0
      %v2279 = vsel %vm2190, %v2178, 0
      %v2282 = vsel %vm2190, %v2179, 0
      %v2285 = vsel %vm2190, %v2180, 0
      %2287 = vmatprep.subr.mxu0 0.0
      %2288 = vmatpush1.msra.mxu0 %v2181
      %2289 = vmatprep.subr.mxu0 0.0
      %2290 = vmatpush1.msra.mxu0 %v2182
      %2291 = vmatprep.subr.mxu0 0.0
      %2292 = vmatpush1.msra.mxu0 %v2183
      %2293 = vmatprep.subr.mxu0 0.0
      %2294 = vmatpush1.msra.mxu0 %v2184
      %2295 = vmatprep.subr.mxu0 0.0
      %2296 = vmatpush1.msra.mxu0 %v2185
      %2297 = vmatprep.subr.mxu0 0.0
      %2298 = vmatpush1.msra.mxu0 %v2186
      %2299 = vmatprep.subr.mxu0 0.0
      %2300 = vmatpush1.msra.mxu0 %v2187
      %2301 = vmatprep.subr.mxu0 0.0
      %2302 = vmatpush1.msra.mxu0 %v2188
      %2303 = vmatprep.subr.mxu0 0.0
      %2304 = vmatpush1.msra.mxu0 %v2189
      %2305 = vmatprep.subr.mxu0 0.0
      %2306 = vmatpush1.msra.mxu0 0.0
      %2307 = vmatprep.subr.mxu0 0.0
      %2308 = vmatpush1.msra.mxu0 0.0
      %2309 = vmatprep.subr.mxu0 0.0
      %2310 = vmatpush1.msra.mxu0 0.0
      %2311 = vmatprep.subr.mxu0 0.0
      %2312 = vmatpush1.msra.mxu0 0.0
      %2313 = vmatprep.subr.mxu0 0.0
      %2314 = vmatpush1.msra.mxu0 0.0
      %2315 = vmatprep.subr.mxu0 0.0
      %2316 = vmatpush1.msra.mxu0 0.0
      %2317 = vmatprep.subr.mxu0 0.0
      %2318 = vmatpush1.msra.mxu0 0.0
      %2319 = vmatprep.subr.mxu0 0.0
      %2320 = vmatpush1.msra.mxu0 0.0
      %2321 = vmatprep.subr.mxu0 0.0
      %2322 = vmatpush1.msra.mxu0 0.0
      %2323 = vmatprep.subr.mxu0 0.0
      %2324 = vmatpush1.msra.mxu0 0.0
      %2325 = vmatprep.subr.mxu0 0.0
      %2326 = vmatpush1.msra.mxu0 0.0
      %2327 = vmatprep.subr.mxu0 0.0
      %2328 = vmatpush1.msra.mxu0 0.0
      %2329 = vmatprep.subr.mxu0 0.0
      %2330 = vmatpush1.msra.mxu0 0.0
      %2331 = vmatprep.subr.mxu0 0.0
      %2332 = vmatpush1.msra.mxu0 0.0
      %2333 = vmatprep.subr.mxu0 0.0
      %2334 = vmatpush1.msra.mxu0 0.0
      %2335 = vmatprep.subr.mxu0 0.0
      %2336 = vmatpush1.msra.mxu0 0.0
      %2337 = vmatprep.subr.mxu0 0.0
      %2338 = vmatpush1.msra.mxu0 0.0
      %2339 = vmatprep.subr.mxu0 0.0
      %2340 = vmatpush1.msra.mxu0 0.0
      %2341 = vmatprep.subr.mxu0 0.0
      %2342 = vmatpush1.msra.mxu0 0.0
      %2343 = vmatprep.subr.mxu0 0.0
      %2344 = vmatpush1.msra.mxu0 0.0
      %2345 = vmatprep.subr.mxu0 0.0
      %2346 = vmatpush1.msra.mxu0 0.0
      %2347 = vmatprep.subr.mxu0 0.0
      %2348 = vmatpush1.msra.mxu0 0.0
      %2349 = vmatprep.subr.mxu0 0.0
      %2350 = vmatpush1.msra.mxu0 0.0
      %2351 = vmatprep.mubr.f32.mxu0 0.0
      %2352 = vmatmul.mubr.f32.gmra.mrb[0].mxu0 %v2192
      %v2353 = vpop.f32.mrb[0].mxu0
      %v2354 = vadd.f32 0.0, %v2353
      %v2355 = vpop.f32.mrb[0].mxu0
      %2356 = vmatprep.mubr.f32.mxu0 0.0
      %2357 = vmatmul.mubr.f32.gmra.mrb[0].mxu0 %v2195
      %v2358 = vpop.f32.mrb[0].mxu0
      %v2359 = vadd.f32 0.0, %v2358
      %v2360 = vpop.f32.mrb[0].mxu0
      %2361 = vmatprep.mubr.f32.mxu0 0.0
      %2362 = vmatmul.mubr.f32.gmra.mrb[0].mxu0 %v2198
      %v2363 = vpop.f32.mrb[0].mxu0
      %v2364 = vadd.f32 0.0, %v2363
      %v2365 = vpop.f32.mrb[0].mxu0
      %2366 = vmatprep.mubr.f32.mxu0 0.0
      %2367 = vmatmul.mubr.f32.gmra.mrb[0].mxu0 %v2201
      %v2368 = vpop.f32.mrb[0].mxu0
      %v2369 = vadd.f32 0.0, %v2368
      %v2370 = vpop.f32.mrb[0].mxu0
      %2371 = vmatprep.mubr.f32.mxu0 0.0
      %2372 = vmatmul.mubr.f32.gmra.mrb[0].mxu0 %v2204
      %v2373 = vpop.f32.mrb[0].mxu0
      %v2374 = vadd.f32 0.0, %v2373
      %v2375 = vpop.f32.mrb[0].mxu0
      %2376 = vmatprep.mubr.f32.mxu0 0.0
      %2377 = vmatmul.mubr.f32.gmra.mrb[0].mxu0 %v2207
      %v2378 = vpop.f32.mrb[0].mxu0
      %v2379 = vadd.f32 0.0, %v2378
      %v2380 = vpop.f32.mrb[0].mxu0
      %2381 = vmatprep.mubr.f32.mxu0 0.0
      %2382 = vmatmul.mubr.f32.gmra.mrb[0].mxu0 %v2210
      %v2383 = vpop.f32.mrb[0].mxu0
      %v2384 = vadd.f32 0.0, %v2383
      %v2385 = vpop.f32.mrb[0].mxu0
      %2386 = vmatprep.mubr.f32.mxu0 0.0
      %2387 = vmatmul.mubr.f32.gmra.mrb[0].mxu0 %v2213
      %v2388 = vpop.f32.mrb[0].mxu0
      %v2389 = vadd.f32 0.0, %v2388
      %v2390 = vpop.f32.mrb[0].mxu0
      %2391 = vmatprep.mubr.f32.mxu0 0.0
      %2392 = vmatmul.mubr.f32.gmra.mrb[0].mxu0 %v2216
      %v2393 = vpop.f32.mrb[0].mxu0
      %v2394 = vadd.f32 0.0, %v2393
      %v2395 = vpop.f32.mrb[0].mxu0
      %2396 = vmatprep.mubr.f32.mxu0 0.0
      %2397 = vmatmul.mubr.f32.gmra.mrb[0].mxu0 %v2219
      %v2398 = vpop.f32.mrb[0].mxu0
      %v2399 = vadd.f32 0.0, %v2398
      %v2400 = vpop.f32.mrb[0].mxu0
      %2401 = vmatprep.mubr.f32.mxu0 0.0
      %2402 = vmatmul.mubr.f32.gmra.mrb[0].mxu0 %v2222
      %v2403 = vpop.f32.mrb[0].mxu0
      %v2404 = vadd.f32 0.0, %v2403
      %v2405 = vpop.f32.mrb[0].mxu0
      %2406 = vmatprep.mubr.f32.mxu0 0.0
      %2407 = vmatmul.mubr.f32.gmra.mrb[0].mxu0 %v2225
      %v2408 = vpop.f32.mrb[0].mxu0
      %v2409 = vadd.f32 0.0, %v2408
      %v2410 = vpop.f32.mrb[0].mxu0
      %2411 = vmatprep.mubr.f32.mxu0 0.0
      %2412 = vmatmul.mubr.f32.gmra.mrb[0].mxu0 %v2228
      %v2413 = vpop.f32.mrb[0].mxu0
      %v2414 = vadd.f32 0.0, %v2413
      %v2415 = vpop.f32.mrb[0].mxu0
      %2416 = vmatprep.mubr.f32.mxu0 0.0
      %2417 = vmatmul.mubr.f32.gmra.mrb[0].mxu0 %v2231
      %v2418 = vpop.f32.mrb[0].mxu0
      %v2419 = vadd.f32 0.0, %v2418
      %v2420 = vpop.f32.mrb[0].mxu0
      %2421 = vmatprep.mubr.f32.mxu0 0.0
      %2422 = vmatmul.mubr.f32.gmra.mrb[0].mxu0 %v2234
      %v2423 = vpop.f32.mrb[0].mxu0
      %v2424 = vadd.f32 0.0, %v2423
      %v2425 = vpop.f32.mrb[0].mxu0
      %2426 = vmatprep.mubr.f32.mxu0 0.0
      %2427 = vmatmul.mubr.f32.gmra.mrb[0].mxu0 %v2237
      %v2428 = vpop.f32.mrb[0].mxu0
      %v2429 = vadd.f32 0.0, %v2428
      %v2430 = vpop.f32.mrb[0].mxu0
      %2431 = vmatprep.mubr.f32.mxu0 0.0
      %2432 = vmatmul.mubr.f32.gmra.mrb[0].mxu0 %v2240
      %v2433 = vpop.f32.mrb[0].mxu0
      %v2434 = vadd.f32 0.0, %v2433
      %v2435 = vpop.f32.mrb[0].mxu0
      %2436 = vmatprep.mubr.f32.mxu0 0.0
      %2437 = vmatmul.mubr.f32.gmra.mrb[0].mxu0 %v2243
      %v2438 = vpop.f32.mrb[0].mxu0
      %v2439 = vadd.f32 0.0, %v2438
      %v2440 = vpop.f32.mrb[0].mxu0
      %2441 = vmatprep.mubr.f32.mxu0 0.0
      %2442 = vmatmul.mubr.f32.gmra.mrb[0].mxu0 %v2246
      %v2443 = vpop.f32.mrb[0].mxu0
      %v2444 = vadd.f32 0.0, %v2443
      %v2445 = vpop.f32.mrb[0].mxu0
      %2446 = vmatprep.mubr.f32.mxu0 0.0
      %2447 = vmatmul.mubr.f32.gmra.mrb[0].mxu0 %v2249
      %v2448 = vpop.f32.mrb[0].mxu0
      %v2449 = vadd.f32 0.0, %v2448
      %v2450 = vpop.f32.mrb[0].mxu0
      %2451 = vmatprep.mubr.f32.mxu0 0.0
      %2452 = vmatmul.mubr.f32.gmra.mrb[0].mxu0 %v2252
      %v2453 = vpop.f32.mrb[0].mxu0
      %v2454 = vadd.f32 0.0, %v2453
      %v2455 = vpop.f32.mrb[0].mxu0
      %2456 = vmatprep.mubr.f32.mxu0 0.0
      %2457 = vmatmul.mubr.f32.gmra.mrb[0].mxu0 %v2255
      %v2458 = vpop.f32.mrb[0].mxu0
      %v2459 = vadd.f32 0.0, %v2458
      %v2460 = vpop.f32.mrb[0].mxu0
      %2461 = vmatprep.mubr.f32.mxu0 0.0
      %2462 = vmatmul.mubr.f32.gmra.mrb[0].mxu0 %v2258
      %v2463 = vpop.f32.mrb[0].mxu0
      %v2464 = vadd.f32 0.0, %v2463
      %v2465 = vpop.f32.mrb[0].mxu0
      %2466 = vmatprep.mubr.f32.mxu0 0.0
      %2467 = vmatmul.mubr.f32.gmra.mrb[0].mxu0 %v2261
      %v2468 = vpop.f32.mrb[0].mxu0
      %v2469 = vadd.f32 0.0, %v2468
      %v2470 = vpop.f32.mrb[0].mxu0
      %2471 = vmatprep.mubr.f32.mxu0 0.0
      %2472 = vmatmul.mubr.f32.gmra.mrb[0].mxu0 %v2264
      %v2473 = vpop.f32.mrb[0].mxu0
      %v2474 = vadd.f32 0.0, %v2473
      %v2475 = vpop.f32.mrb[0].mxu0
      %2476 = vmatprep.mubr.f32.mxu0 0.0
      %2477 = vmatmul.mubr.f32.gmra.mrb[0].mxu0 %v2267
      %v2478 = vpop.f32.mrb[0].mxu0
      %v2479 = vadd.f32 0.0, %v2478
      %v2480 = vpop.f32.mrb[0].mxu0
      %2481 = vmatprep.mubr.f32.mxu0 0.0
      %2482 = vmatmul.mubr.f32.gmra.mrb[0].mxu0 %v2270
      %v2483 = vpop.f32.mrb[0].mxu0
      %v2484 = vadd.f32 0.0, %v2483
      %v2485 = vpop.f32.mrb[0].mxu0
      %2486 = vmatprep.mubr.f32.mxu0 0.0
      %2487 = vmatmul.mubr.f32.gmra.mrb[0].mxu0 %v2273
      %v2488 = vpop.f32.mrb[0].mxu0
      %v2489 = vadd.f32 0.0, %v2488
      %v2490 = vpop.f32.mrb[0].mxu0
      %2491 = vmatprep.mubr.f32.mxu0 0.0
      %2492 = vmatmul.mubr.f32.gmra.mrb[0].mxu0 %v2276
      %v2493 = vpop.f32.mrb[0].mxu0
      %v2494 = vadd.f32 0.0, %v2493
      %v2495 = vpop.f32.mrb[0].mxu0
      %2496 = vmatprep.mubr.f32.mxu0 0.0
      %2497 = vmatmul.mubr.f32.gmra.mrb[0].mxu0 %v2279
      %v2498 = vpop.f32.mrb[0].mxu0
      %v2499 = vadd.f32 0.0, %v2498
      %v2500 = vpop.f32.mrb[0].mxu0
      %2501 = vmatprep.mubr.f32.mxu0 0.0
      %2502 = vmatmul.mubr.f32.gmra.mrb[0].mxu0 %v2282
      %v2503 = vpop.f32.mrb[0].mxu0
      %v2504 = vadd.f32 0.0, %v2503
      %v2505 = vpop.f32.mrb[0].mxu0
      %2506 = vmatprep.mubr.f32.mxu0 0.0
      %2507 = vmatmul.mubr.f32.gmra.mrb[0].mxu0 %v2285
      %v2508 = vpop.f32.mrb[0].mxu0
      %v2509 = vadd.f32 0.0, %v2508
      %v2510 = vpop.f32.mrb[0].mxu0
      %2511 = vdwg.mxu0
      %2512 = vst.msk [vmem:[%s204] sm:$0xff] %vm347, %v2354
      %2513 = vst.msk [vmem:[%s204 + $0x8] sm:$0xff] %vm347, %v2359
      %2514 = vst.msk [vmem:[%s204 + $0x10] sm:$0xff] %vm347, %v2364
      %2515 = vst.msk [vmem:[%s204 + $0x18] sm:$0xff] %vm347, %v2369
      %2516 = vst.msk [vmem:[%s204 + $0x20] sm:$0xff] %vm347, %v2374
      %2517 = vst.msk [vmem:[%s204 + $0x28] sm:$0xff] %vm347, %v2379
      %2518 = vst.msk [vmem:[%s204 + $0x30] sm:$0xff] %vm347, %v2384
      %2519 = vst.msk [vmem:[%s204 + $0x38] sm:$0xff] %vm347, %v2389
      %2520 = vst.msk [vmem:[%s204 + $0x40] sm:$0xff] %vm347, %v2394
      %2521 = vst.msk [vmem:[%s204 + $0x48] sm:$0xff] %vm347, %v2399
      %2522 = vst.msk [vmem:[%s204 + $0x50] sm:$0xff] %vm347, %v2404
      %2523 = vst.msk [vmem:[%s204 + $0x58] sm:$0xff] %vm347, %v2409
      %2524 = vst.msk [vmem:[%s204 + $0x60] sm:$0xff] %vm347, %v2414
      %2525 = vst.msk [vmem:[%s204 + $0x68] sm:$0xff] %vm347, %v2419
      %2526 = vst.msk [vmem:[%s204 + $0x70] sm:$0xff] %vm347, %v2424
      %2527 = vst.msk [vmem:[%s204 + $0x78] sm:$0xff] %vm347, %v2429
      %2528 = vst.msk [vmem:[%s204 + $0x80] sm:$0xff] %vm347, %v2434
      %2529 = vst.msk [vmem:[%s204 + $0x88] sm:$0xff] %vm347, %v2439
      %2530 = vst.msk [vmem:[%s204 + $0x90] sm:$0xff] %vm347, %v2444
      %2531 = vst.msk [vmem:[%s204 + $0x98] sm:$0xff] %vm347, %v2449
      %2532 = vst.msk [vmem:[%s204 + $0xa0] sm:$0xff] %vm347, %v2454
      %2533 = vst.msk [vmem:[%s204 + $0xa8] sm:$0xff] %vm347, %v2459
      %2534 = vst.msk [vmem:[%s204 + $0xb0] sm:$0xff] %vm347, %v2464
      %2535 = vst.msk [vmem:[%s204 + $0xb8] sm:$0xff] %vm347, %v2469
      %2536 = vst.msk [vmem:[%s204 + $0xc0] sm:$0xff] %vm347, %v2474
      %2537 = vst.msk [vmem:[%s204 + $0xc8] sm:$0xff] %vm347, %v2479
      %2538 = vst.msk [vmem:[%s204 + $0xd0] sm:$0xff] %vm347, %v2484
      %2539 = vst.msk [vmem:[%s204 + $0xd8] sm:$0xff] %vm347, %v2489
      %2540 = vst.msk [vmem:[%s204 + $0xe0] sm:$0xff] %vm347, %v2494
      %2541 = vst.msk [vmem:[%s204 + $0xe8] sm:$0xff] %vm347, %v2499
      %2542 = vst.msk [vmem:[%s204 + $0xf0] sm:$0xff] %vm347, %v2504
      %2543 = vst.msk [vmem:[%s204 + $0xf8] sm:$0xff] %vm347, %v2509
      %v2544 = vsel %vm347, %v2354, 0.0
      %v2545 = vsel %vm347, %v2359, 0.0
      %v2546 = vadd.f32 %v2544, %v2545
      %v2547 = vsel %vm347, %v2364, 0.0
      %v2548 = vadd.f32 %v2546, %v2547
      %v2549 = vsel %vm347, %v2369, 0.0
      %v2550 = vadd.f32 %v2548, %v2549
      %v2551 = vsel %vm347, %v2374, 0.0
      %v2552 = vadd.f32 %v2550, %v2551
      %v2553 = vsel %vm347, %v2379, 0.0
      %v2554 = vadd.f32 %v2552, %v2553
      %v2555 = vsel %vm347, %v2384, 0.0
      %v2556 = vadd.f32 %v2554, %v2555
      %v2557 = vsel %vm347, %v2389, 0.0
      %v2558 = vadd.f32 %v2556, %v2557
      %v2559 = vsel %vm347, %v2394, 0.0
      %v2560 = vadd.f32 %v2558, %v2559
      %v2561 = vsel %vm347, %v2399, 0.0
      %v2562 = vadd.f32 %v2560, %v2561
      %v2563 = vsel %vm347, %v2404, 0.0
      %v2564 = vadd.f32 %v2562, %v2563
      %v2565 = vsel %vm347, %v2409, 0.0
      %v2566 = vadd.f32 %v2564, %v2565
      %v2567 = vsel %vm347, %v2414, 0.0
      %v2568 = vadd.f32 %v2566, %v2567
      %v2569 = vsel %vm347, %v2419, 0.0
      %v2570 = vadd.f32 %v2568, %v2569
      %v2571 = vsel %vm347, %v2424, 0.0
      %v2572 = vadd.f32 %v2570, %v2571
      %v2573 = vsel %vm347, %v2429, 0.0
      %v2574 = vadd.f32 %v2572, %v2573
      %v2575 = vsel %vm347, %v2434, 0.0
      %v2576 = vadd.f32 %v2574, %v2575
      %v2577 = vsel %vm347, %v2439, 0.0
      %v2578 = vadd.f32 %v2576, %v2577
      %v2579 = vsel %vm347, %v2444, 0.0
      %v2580 = vadd.f32 %v2578, %v2579
      %v2581 = vsel %vm347, %v2449, 0.0
      %v2582 = vadd.f32 %v2580, %v2581
      %v2583 = vsel %vm347, %v2454, 0.0
      %v2584 = vadd.f32 %v2582, %v2583
      %v2585 = vsel %vm347, %v2459, 0.0
      %v2586 = vadd.f32 %v2584, %v2585
      %v2587 = vsel %vm347, %v2464, 0.0
      %v2588 = vadd.f32 %v2586, %v2587
      %v2589 = vsel %vm347, %v2469, 0.0
      %v2590 = vadd.f32 %v2588, %v2589
      %v2591 = vsel %vm347, %v2474, 0.0
      %v2592 = vadd.f32 %v2590, %v2591
      %v2593 = vsel %vm347, %v2479, 0.0
      %v2594 = vadd.f32 %v2592, %v2593
      %v2595 = vsel %vm347, %v2484, 0.0
      %v2596 = vadd.f32 %v2594, %v2595
      %v2597 = vsel %vm347, %v2489, 0.0
      %v2598 = vadd.f32 %v2596, %v2597
      %v2599 = vsel %vm347, %v2494, 0.0
      %v2600 = vadd.f32 %v2598, %v2599
      %v2601 = vsel %vm347, %v2499, 0.0
      %v2602 = vadd.f32 %v2600, %v2601
      %v2603 = vsel %vm347, %v2504, 0.0
      %v2604 = vadd.f32 %v2602, %v2603
      %v2605 = vsel %vm347, %v2509, 0.0
      %v2606 = vadd.f32 %v2604, %v2605
      %v2607 = vrot.slane %v2606, 4
      %v2608 = vadd.f32 %v2606, %v2607
      %v2609 = vrot.slane %v2608, 2
      %v2610 = vadd.f32 %v2608, %v2609
      %v2611 = vrot.slane %v2610, 1
      %v2612 = vadd.f32 %v2610, %v2611
      %v2613 = vmul.f32 %v2354, %v2354
      %v2614 = vmul.f32 %v2359, %v2359
      %v2615 = vmul.f32 %v2364, %v2364
      %v2616 = vmul.f32 %v2369, %v2369
      %v2617 = vmul.f32 %v2374, %v2374
      %v2618 = vmul.f32 %v2379, %v2379
      %v2619 = vmul.f32 %v2384, %v2384
      %v2620 = vmul.f32 %v2389, %v2389
      %v2621 = vmul.f32 %v2394, %v2394
      %v2622 = vmul.f32 %v2399, %v2399
      %v2623 = vmul.f32 %v2404, %v2404
      %v2624 = vmul.f32 %v2409, %v2409
      %v2625 = vmul.f32 %v2414, %v2414
      %v2626 = vmul.f32 %v2419, %v2419
      %v2627 = vmul.f32 %v2424, %v2424
      %v2628 = vmul.f32 %v2429, %v2429
      %v2629 = vmul.f32 %v2434, %v2434
      %v2630 = vmul.f32 %v2439, %v2439
      %v2631 = vmul.f32 %v2444, %v2444
      %v2632 = vmul.f32 %v2449, %v2449
      %v2633 = vmul.f32 %v2454, %v2454
      %v2634 = vmul.f32 %v2459, %v2459
      %v2635 = vmul.f32 %v2464, %v2464
      %v2636 = vmul.f32 %v2469, %v2469
      %v2637 = vmul.f32 %v2474, %v2474
      %v2638 = vmul.f32 %v2479, %v2479
      %v2639 = vmul.f32 %v2484, %v2484
      %v2640 = vmul.f32 %v2489, %v2489
      %v2641 = vmul.f32 %v2494, %v2494
      %v2642 = vmul.f32 %v2499, %v2499
      %v2643 = vmul.f32 %v2504, %v2504
      %v2644 = vmul.f32 %v2509, %v2509
      %v2645 = vsel %vm347, %v2613, 0.0
      %v2646 = vsel %vm347, %v2614, 0.0
      %v2647 = vadd.f32 %v2645, %v2646
      %v2648 = vsel %vm347, %v2615, 0.0
      %v2649 = vadd.f32 %v2647, %v2648
      %v2650 = vsel %vm347, %v2616, 0.0
      %v2651 = vadd.f32 %v2649, %v2650
      %v2652 = vsel %vm347, %v2617, 0.0
      %v2653 = vadd.f32 %v2651, %v2652
      %v2654 = vsel %vm347, %v2618, 0.0
      %v2655 = vadd.f32 %v2653, %v2654
      %v2656 = vsel %vm347, %v2619, 0.0
      %v2657 = vadd.f32 %v2655, %v2656
      %v2658 = vsel %vm347, %v2620, 0.0
      %v2659 = vadd.f32 %v2657, %v2658
      %v2660 = vsel %vm347, %v2621, 0.0
      %v2661 = vadd.f32 %v2659, %v2660
      %v2662 = vsel %vm347, %v2622, 0.0
      %v2663 = vadd.f32 %v2661, %v2662
      %v2664 = vsel %vm347, %v2623, 0.0
      %v2665 = vadd.f32 %v2663, %v2664
      %v2666 = vsel %vm347, %v2624, 0.0
      %v2667 = vadd.f32 %v2665, %v2666
      %v2668 = vsel %vm347, %v2625, 0.0
      %v2669 = vadd.f32 %v2667, %v2668
      %v2670 = vsel %vm347, %v2626, 0.0
      %v2671 = vadd.f32 %v2669, %v2670
      %v2672 = vsel %vm347, %v2627, 0.0
      %v2673 = vadd.f32 %v2671, %v2672
      %v2674 = vsel %vm347, %v2628, 0.0
      %v2675 = vadd.f32 %v2673, %v2674
      %v2676 = vsel %vm347, %v2629, 0.0
      %v2677 = vadd.f32 %v2675, %v2676
      %v2678 = vsel %vm347, %v2630, 0.0
      %v2679 = vadd.f32 %v2677, %v2678
      %v2680 = vsel %vm347, %v2631, 0.0
      %v2681 = vadd.f32 %v2679, %v2680
      %v2682 = vsel %vm347, %v2632, 0.0
      %v2683 = vadd.f32 %v2681, %v2682
      %v2684 = vsel %vm347, %v2633, 0.0
      %v2685 = vadd.f32 %v2683, %v2684
      %v2686 = vsel %vm347, %v2634, 0.0
      %v2687 = vadd.f32 %v2685, %v2686
      %v2688 = vsel %vm347, %v2635, 0.0
      %v2689 = vadd.f32 %v2687, %v2688
      %v2690 = vsel %vm347, %v2636, 0.0
      %v2691 = vadd.f32 %v2689, %v2690
      %v2692 = vsel %vm347, %v2637, 0.0
      %v2693 = vadd.f32 %v2691, %v2692
      %v2694 = vsel %vm347, %v2638, 0.0
      %v2695 = vadd.f32 %v2693, %v2694
      %v2696 = vsel %vm347, %v2639, 0.0
      %v2697 = vadd.f32 %v2695, %v2696
      %v2698 = vsel %vm347, %v2640, 0.0
      %v2699 = vadd.f32 %v2697, %v2698
      %v2700 = vsel %vm347, %v2641, 0.0
      %v2701 = vadd.f32 %v2699, %v2700
      %v2702 = vsel %vm347, %v2642, 0.0
      %v2703 = vadd.f32 %v2701, %v2702
      %v2704 = vsel %vm347, %v2643, 0.0
      %v2705 = vadd.f32 %v2703, %v2704
      %v2706 = vsel %vm347, %v2644, 0.0
      %v2707 = vadd.f32 %v2705, %v2706
      %v2708 = vrot.slane %v2707, 4
      %v2709 = vadd.f32 %v2707, %v2708
      %v2710 = vrot.slane %v2709, 2
      %v2711 = vadd.f32 %v2709, %v2710
      %v2712 = vrot.slane %v2711, 1
      %v2713 = vadd.f32 %v2711, %v2712
      %v2714 = vsel %vm440, %v2612, %v2713
      %vm2715 = vcmask 58368
      %2716 = vst.msk [vmem:[%s208] sm:$0x3] %vm2715, %v2714
      %p2717 = scmp.lt.s32.totalorder %s16, 1
      %s2718 = scalar_select %p2717, %s16, 1
      %s2719 = smul.addr %s2718, 32
      %s2720 = smul.addr %s2719, 8
      %s2721 = scalar_lea.vmem %s3, %s2720
      %p2722 = scmp.lt.s32.totalorder %s16, 1
      %s2723 = scalar_select %p2722, %s16, 1
      %s2724 = smul.addr %s2723, 2
      %s2725 = scalar_lea.vmem %s4, %s2724
      // Predicated region
      $region33: #{basic_block_forward.4} parent=31 // pred_check
        %p2726 = pneg %p102
      $region34: #{basic_block_forward.4} parent=31 // pred_check_branch
        %2728 = sbr.rel (%p2726) target = $region36
      $region35: #{basic_block_forward.4} parent=31 // pred_region
        _
      $region36: #{basic_block_forward.4} parent=31 // pred_fallthru
        _
      // Predicated region
      $region37: #{basic_block_forward.4} parent=31 // pred_check
        %p2729 = pneg %p128
      $region38: #{basic_block_forward.4} parent=31 // pred_check_branch
        %2731 = sbr.rel (%p2729) target = $region40
      $region39: #{basic_block_forward.4} parent=31 // pred_region
        _
      $region40: #{basic_block_forward.4} parent=31 // pred_fallthru
        _
    $region32: #{basic_block_forward.4} parent=5 // pred_fallthru
      _
    %p2732 = scmp.le.s32.totalorder 2, %s11
    // Predicated region
    $region41: #{basic_block_forward.4} parent=5 // pred_check
      %p2733 = pneg %p2732
    $region42: #{basic_block_forward.4} parent=5 // pred_check_branch
      %2735 = sbr.rel (%p2733) target = $region44
    $region43: #{basic_block_forward.4} parent=5 // pred_region
      %s2736 = ssub.s32 %s11, 2
      // Predicated region
      $region45: #{basic_block_forward.4} parent=43 // pred_check
        %p2737 = pneg %p108
      $region46: #{basic_block_forward.4} parent=43 // pred_check_branch
        %2739 = sbr.rel (%p2737) target = $region48
      $region47: #{basic_block_forward.4} parent=43 // pred_region
        %p2740 = scmp.lt.s32.totalorder %s17, 1
        %s2741 = scalar_select %p2740, %s17, 1
        %s2742 = smul.addr %s2741, 32
        %s2743 = smul.addr %s2742, 8
        %s2744 = scalar_lea.vmem %s3, %s2743
      $region48: #{basic_block_forward.4} parent=43 // pred_fallthru
        _
      // Predicated region
      $region49: #{basic_block_forward.4} parent=43 // pred_check
        %p2745 = pneg %p134
      $region50: #{basic_block_forward.4} parent=43 // pred_check_branch
        %2747 = sbr.rel (%p2745) target = $region52
      $region51: #{basic_block_forward.4} parent=43 // pred_region
        %p2748 = scmp.lt.s32.totalorder %s17, 1
        %s2749 = scalar_select %p2748, %s17, 1
        %s2750 = smul.addr %s2749, 2
        %s2751 = scalar_lea.vmem %s4, %s2750
      $region52: #{basic_block_forward.4} parent=43 // pred_fallthru
        _
    $region44: #{basic_block_forward.4} parent=5 // pred_fallthru
      _
  $region6: #{basic_block_forward.4} parent=0 // loop_footer
    %s15 = sadd.s32 1, %s11
  $region7: #{basic_block_forward.4} parent=0 // loop_footer_branch
    %10 = sbr.rel target = $region3
  $region8: #{basic_block_forward.4} parent=0 // loop_exit
    _

</llo_original>
